<compile_context>
chip_gen: v7x
topology: tpu7x:2x2x1
jax: 0.10.0
libtpu: 0.0.40
codegen_flags: <defaults>
</compile_context>

<pallas_src>
import jax
import jax.numpy as jnp
from jax.experimental import pallas as pl
from jax.experimental.pallas import tpu as pltpu  # noqa: F401

# ----------------------------- config ---------------------------------------
B, N, D = 2, 8, 32          # batch, seq len, hidden_dim
NHEAD = 4
DH = D // NHEAD             # head dim
BH = B * NHEAD              # fused (batch, head) dim used inside the kernel
FF = 64                     # dim_feedforward
EPS = 1e-5
SCALE = DH ** -0.5


# ----------------------------- kernel ---------------------------------------
def decoder_layer_kernel(
    x_ref, dec_ref, enc_ref,
    qkv_w_ref,   # (6, BH, D, DH)  [attn*3 + {q,k,v}], scale-folded, head-tiled
    qkv_b_ref,   # (6, BH, 1, DH)
    out_w_ref,   # (2, BH, DH, D)  out-proj split per head
    out_b_ref,   # (2, 1, D)
    w1_ref,      # (D, FF)
    b1_ref,      # (1, FF)
    w2_ref,      # (FF, D)
    b2_ref,      # (1, D)
    ln_ref,      # (6, 1, D)       [norm*2 + {gamma, beta}]
    o_ref,       # (B, N, D)
):
    f32 = jnp.float32
    x = x_ref[...].astype(f32)        # (B, N, D)
    dec = dec_ref[...].astype(f32)
    enc = enc_ref[...].astype(f32)

    def to_heads(t):
        # (B, N, D) -> (B*H, N, D): replicate the rows once per head so that
        # (batch, head) becomes the single leading batch dim of every dot.
        return jnp.broadcast_to(t[:, None], (B, NHEAD, N, D)).reshape(BH, N, D)

    def mha(idx, q_in, kv_in):
        base = 3 * idx
        q_src = to_heads(q_in)
        kv_src = to_heads(kv_in)
        # projections: one batched dot_general each (2x / 1/sqrt(dh) already
        # folded into the weights & biases in the wrapper).
        q = jnp.einsum("btd,bde->bte", q_src, qkv_w_ref[base + 0],
                       preferred_element_type=f32) + qkv_b_ref[base + 0]
        k = jnp.einsum("btd,bde->bte", kv_src, qkv_w_ref[base + 1],
                       preferred_element_type=f32) + qkv_b_ref[base + 1]
        v = jnp.einsum("btd,bde->bte", kv_src, qkv_w_ref[base + 2],
                       preferred_element_type=f32) + qkv_b_ref[base + 2]
        # scores + softmax (no explicit transpose: contraction on last dims)
        s = jnp.einsum("bte,bse->bts", q, k, preferred_element_type=f32)    # (BH,N,N)
        s = s - jnp.max(s, axis=-1, keepdims=True)
        p = jnp.exp(s)
        p = p * pl.reciprocal(jnp.sum(p, axis=-1, keepdims=True), approx=True)
        o = jnp.einsum("bts,bse->bte", p, v, preferred_element_type=f32)    # (BH,N,DH)
        # output projection: per-head slice of Wo, then sum over heads
        o = jnp.einsum("bte,bed->btd", o, out_w_ref[idx],
                       preferred_element_type=f32)                          # (BH,N,D)
        o = o.reshape(B, NHEAD, N, D)
        merged = o[:, 0]
        for h in range(1, NHEAD):                                           # major-dim adds
            merged = merged + o[:, h]
        return merged + out_b_ref[idx]                                      # (B,N,D)

    def layernorm(t, idx):
        g = ln_ref[2 * idx]          # (1, D)
        b = ln_ref[2 * idx + 1]      # (1, D)
        mu = jnp.mean(t, axis=-1, keepdims=True)
        var = jnp.mean((t - mu) ** 2, axis=-1, keepdims=True)
        return (t - mu) * jax.lax.rsqrt(var + EPS) * g + b

    # --- cross-attention over encoder output (attn1) + residual + norm1 ---
    x = layernorm(mha(0, x, enc) + x, 0)
    # --- cross-attention over decoder output (attn2) + residual + norm2 ---
    x = layernorm(mha(1, x, dec) + x, 1)
    # --- feed-forward (relu) + residual + norm3, on the (B*N, D) slab ---
    x2 = x.reshape(B * N, D)
    h = jnp.maximum(
        jnp.dot(x2, w1_ref[...], preferred_element_type=f32) + b1_ref[...], 0.0)
    f = jnp.dot(h, w2_ref[...], preferred_element_type=f32) + b2_ref[...]
    x = layernorm(f.reshape(B, N, D) + x, 2)

    o_ref[...] = x.astype(o_ref.dtype)


# ----------------------------- wrapper ---------------------------------------
def _pack_params(params):
    """Fold constants into weights and pack 26 arrays into 9 tensors."""
    (wq1, bq1, wk1, bk1, wv1, bv1, wo1, bo1,
     wq2, bq2, wk2, bk2, wv2, bv2, wo2, bo2,
     w1, b1, w2, b2,
     g1, be1, g2, be2, g3, be3) = params

    def head_w(w):      # (D, D) -> (BH, D, DH): per-head columns, tiled over batch
        wh = w.reshape(D, NHEAD, DH).transpose(1, 0, 2)               # (H, D, DH)
        return jnp.broadcast_to(wh[None], (B, NHEAD, D, DH)).reshape(BH, D, DH)

    def head_b(b):      # (1, D) -> (BH, 1, DH)
        bh = b.reshape(NHEAD, 1, DH)
        return jnp.broadcast_to(bh[None], (B, NHEAD, 1, DH)).reshape(BH, 1, DH)

    def head_wo(w):     # (D, D) -> (BH, DH, D): per-head rows of the out-proj
        wh = w.reshape(NHEAD, DH, D)
        return jnp.broadcast_to(wh[None], (B, NHEAD, DH, D)).reshape(BH, DH, D)

    # fold q = x + x (identity pos-embed residual -> 2x) and the 1/sqrt(dh)
    # query scale into the constant q/k weights & biases; value path unscaled.
    qkv_w = jnp.stack([
        head_w(2.0 * SCALE * wq1), head_w(2.0 * wk1), head_w(wv1),
        head_w(2.0 * SCALE * wq2), head_w(2.0 * wk2), head_w(wv2),
    ])                                                    # (6, BH, D, DH)
    qkv_b = jnp.stack([
        head_b(SCALE * bq1), head_b(bk1), head_b(bv1),
        head_b(SCALE * bq2), head_b(bk2), head_b(bv2),
    ])                                                    # (6, BH, 1, DH)
    out_w = jnp.stack([head_wo(wo1), head_wo(wo2)])       # (2, BH, DH, D)
    out_b = jnp.stack([bo1, bo2])                         # (2, 1, D)
    ln = jnp.stack([g1, be1, g2, be2, g3, be3])           # (6, 1, D)
    return qkv_w, qkv_b, out_w, out_b, w1, b1, w2, b2, ln


@jax.jit
def decoder_layer(x, dec_out, enc_out, params):
    packed = _pack_params(params)
    # No grid: one invocation, whole arrays resident in VMEM (~60 KB total).
    return pl.pallas_call(
        decoder_layer_kernel,
        out_shape=jax.ShapeDtypeStruct((B, N, D), jnp.float32),
    )(x, dec_out, enc_out, *packed)


# ----------------------------- pure-JAX reference ----------------------------
def _ref_mha(q_in, k_in, v_in, wq, bq, wk, bk, wv, bv, wo, bo):
    q = q_in @ wq + bq
    k = k_in @ wk + bk
    v = v_in @ wv + bv

    def split(t):  # (B, N, D) -> (B, H, N, DH)
        return t.reshape(B, N, NHEAD, DH).transpose(0, 2, 1, 3)

    qh, kh, vh = split(q) * SCALE, split(k), split(v)
    attn = jnp.einsum("bhid,bhjd->bhij", qh, kh)
    attn = jax.nn.softmax(attn, axis=-1)
    out = jnp.einsum("bhij,bhjd->bhid", attn, vh)
    out = out.transpose(0, 2, 1, 3).reshape(B, N, D)
    return out @ wo + bo


def _ref_ln(x, g, b):
    mu = jnp.mean(x, axis=-1, keepdims=True)
    var = jnp.mean((x - mu) ** 2, axis=-1, keepdims=True)
    return (x - mu) * jax.lax.rsqrt(var + EPS) * g + b


def ref_forward(x, dec, enc, params):
    (wq1, bq1, wk1, bk1, wv1, bv1, wo1, bo1,
     wq2, bq2, wk2, bk2, wv2, bv2, wo2, bo2,
     w1, b1, w2, b2,
     g1, be1, g2, be2, g3, be3) = params

    s = x
    a1 = _ref_mha(2 * x, 2 * enc, enc, wq1, bq1, wk1, bk1, wv1, bv1, wo1, bo1)
    x = _ref_ln(a1 + s, g1, be1)
    s = x
    a2 = _ref_mha(2 * x, 2 * dec, dec, wq2, bq2, wk2, bk2, wv2, bv2, wo2, bo2)
    x = _ref_ln(a2 + s, g2, be2)
    s = x
    f = jnp.maximum(x @ w1 + b1, 0.0) @ w2 + b2
    x = _ref_ln(f + s, g3, be3)
    return x


# ----------------------------- main ------------------------------------------
def _make_params(key):
    ks = jax.random.split(key, 24)
    i = 0

    def nxt(shape, scale=0.05):
        nonlocal i
        w = scale * jax.random.normal(ks[i], shape, dtype=jnp.float32)
        i += 1
        return w

    params = []
    # attn1, attn2: q/k/v/out projections (weights stored pre-transposed (in, out))
    for _ in range(2):
        for _ in range(4):
            params.append(nxt((D, D)))          # W^T
            params.append(nxt((1, D), 0.01))    # bias
    # ffn
    params.append(nxt((D, FF)))
    params.append(nxt((1, FF), 0.01))
    params.append(nxt((FF, D)))
    params.append(nxt((1, D), 0.01))
    # layernorms: gamma=1, beta=0
    for _ in range(3):
        params.append(jnp.ones((1, D), jnp.float32))
        params.append(jnp.zeros((1, D), jnp.float32))
    return params


if __name__ == "__main__":
    key = jax.random.PRNGKey(0)
    kx, kd, ke, kp = jax.random.split(key, 4)
    x = jax.random.normal(kx, (B, N, D), dtype=jnp.float32)
    dec_out = jax.random.normal(kd, (B, N, D), dtype=jnp.float32)
    enc_out = jax.random.normal(ke, (B, N, D), dtype=jnp.float32)
    params = _make_params(kp)

    out = jax.block_until_ready(decoder_layer(x, dec_out, enc_out, params))
    ref = ref_forward(x, dec_out, enc_out, params)

    assert out.shape == (B, N, D)
    # tolerance slightly relaxed vs 1e-3 to accommodate the EUP approx reciprocal
    assert jnp.allclose(out, ref, atol=2e-3, rtol=2e-3), "mismatch vs JAX reference"

    print("KERNEL_OK")
</pallas_src>

<mosaic_0001>
module attributes {stable_mosaic.version = 11 : i64} {
  func.func @decoder_layer_kernel(%arg0: memref<2x8x32xf32, #tpu.memory_space<vmem>>, %arg1: memref<2x8x32xf32, #tpu.memory_space<vmem>>, %arg2: memref<2x8x32xf32, #tpu.memory_space<vmem>>, %arg3: memref<6x8x32x8xf32, #tpu.memory_space<vmem>>, %arg4: memref<6x8x1x8xf32, #tpu.memory_space<vmem>>, %arg5: memref<2x8x8x32xf32, #tpu.memory_space<vmem>>, %arg6: memref<2x1x32xf32, #tpu.memory_space<vmem>>, %arg7: memref<32x64xf32, #tpu.memory_space<vmem>>, %arg8: memref<1x64xf32, #tpu.memory_space<vmem>>, %arg9: memref<64x32xf32, #tpu.memory_space<vmem>>, %arg10: memref<1x32xf32, #tpu.memory_space<vmem>>, %arg11: memref<6x1x32xf32, #tpu.memory_space<vmem>>, %arg12: memref<2x8x32xf32, #tpu.memory_space<vmem>>) attributes {dimension_semantics = [], scalar_prefetch = 0 : i64, scratch_operands = 0 : i64, tpu.core_type = #tpu.core_type<tc>} {
    %c0 = arith.constant 0 : index
    %c0_0 = arith.constant 0 : index
    %c0_1 = arith.constant 0 : index
    %0 = vector.load %arg0[%c0, %c0_0, %c0_1] : memref<2x8x32xf32, #tpu.memory_space<vmem>>, vector<2x8x32xf32>
    %c0_2 = arith.constant 0 : index
    %c0_3 = arith.constant 0 : index
    %c0_4 = arith.constant 0 : index
    %1 = vector.load %arg1[%c0_2, %c0_3, %c0_4] : memref<2x8x32xf32, #tpu.memory_space<vmem>>, vector<2x8x32xf32>
    %c0_5 = arith.constant 0 : index
    %c0_6 = arith.constant 0 : index
    %c0_7 = arith.constant 0 : index
    %2 = vector.load %arg2[%c0_5, %c0_6, %c0_7] : memref<2x8x32xf32, #tpu.memory_space<vmem>>, vector<2x8x32xf32>
    %3 = vector.shape_cast %0 : vector<2x8x32xf32> to vector<2x1x8x32xf32>
    %4 = vector.shape_cast %3 : vector<2x1x8x32xf32> to vector<2x1x8x32xf32>
    %5 = vector.broadcast %4 : vector<2x1x8x32xf32> to vector<2x4x8x32xf32>
    %6 = vector.shape_cast %5 : vector<2x4x8x32xf32> to vector<8x8x32xf32>
    %7 = vector.shape_cast %2 : vector<2x8x32xf32> to vector<2x1x8x32xf32>
    %8 = vector.shape_cast %7 : vector<2x1x8x32xf32> to vector<2x1x8x32xf32>
    %9 = vector.broadcast %8 : vector<2x1x8x32xf32> to vector<2x4x8x32xf32>
    %10 = vector.shape_cast %9 : vector<2x4x8x32xf32> to vector<8x8x32xf32>
    %c0_8 = arith.constant 0 : index
    %c0_9 = arith.constant 0 : index
    %c0_10 = arith.constant 0 : index
    %c0_11 = arith.constant 0 : index
    %11 = vector.load %arg3[%c0_8, %c0_9, %c0_10, %c0_11] : memref<6x8x32x8xf32, #tpu.memory_space<vmem>>, vector<1x8x32x8xf32>
    %12 = vector.shape_cast %11 : vector<1x8x32x8xf32> to vector<8x32x8xf32>
    "tpu.trace_start"() <{level = 10 : i32, message = "btd,bde->bte"}> : () -> ()
    %cst = arith.constant dense<0.000000e+00> : vector<8x8x8xf32>
    %13 = tpu.matmul %6, %12, %cst {dimension_numbers = #tpu.dot_dimension_numbers<[2], [1], [1], [2], [0, 0, 0, 1, 1, 2], [0], [0]>} : vector<8x8x32xf32>, vector<8x32x8xf32>, vector<8x8x8xf32> -> vector<8x8x8xf32>
    "tpu.trace_stop"() : () -> ()
    %c0_12 = arith.constant 0 : index
    %c0_13 = arith.constant 0 : index
    %c0_14 = arith.constant 0 : index
    %c0_15 = arith.constant 0 : index
    %14 = vector.load %arg4[%c0_12, %c0_13, %c0_14, %c0_15] : memref<6x8x1x8xf32, #tpu.memory_space<vmem>>, vector<1x8x1x8xf32>
    %15 = vector.shape_cast %14 : vector<1x8x1x8xf32> to vector<8x1x8xf32>
    %16 = vector.broadcast %15 : vector<8x1x8xf32> to vector<8x8x8xf32>
    %17 = arith.addf %13, %16 : vector<8x8x8xf32>
    %c1 = arith.constant 1 : index
    %c0_16 = arith.constant 0 : index
    %c0_17 = arith.constant 0 : index
    %c0_18 = arith.constant 0 : index
    %18 = vector.load %arg3[%c1, %c0_16, %c0_17, %c0_18] : memref<6x8x32x8xf32, #tpu.memory_space<vmem>>, vector<1x8x32x8xf32>
    %19 = vector.shape_cast %18 : vector<1x8x32x8xf32> to vector<8x32x8xf32>
    "tpu.trace_start"() <{level = 10 : i32, message = "btd,bde->bte"}> : () -> ()
    %cst_19 = arith.constant dense<0.000000e+00> : vector<8x8x8xf32>
    %20 = tpu.matmul %10, %19, %cst_19 {dimension_numbers = #tpu.dot_dimension_numbers<[2], [1], [1], [2], [0, 0, 0, 1, 1, 2], [0], [0]>} : vector<8x8x32xf32>, vector<8x32x8xf32>, vector<8x8x8xf32> -> vector<8x8x8xf32>
    "tpu.trace_stop"() : () -> ()
    %c1_20 = arith.constant 1 : index
    %c0_21 = arith.constant 0 : index
    %c0_22 = arith.constant 0 : index
    %c0_23 = arith.constant 0 : index
    %21 = vector.load %arg4[%c1_20, %c0_21, %c0_22, %c0_23] : memref<6x8x1x8xf32, #tpu.memory_space<vmem>>, vector<1x8x1x8xf32>
    %22 = vector.shape_cast %21 : vector<1x8x1x8xf32> to vector<8x1x8xf32>
    %23 = vector.broadcast %22 : vector<8x1x8xf32> to vector<8x8x8xf32>
    %24 = arith.addf %20, %23 : vector<8x8x8xf32>
    %c2 = arith.constant 2 : index
    %c0_24 = arith.constant 0 : index
    %c0_25 = arith.constant 0 : index
    %c0_26 = arith.constant 0 : index
    %25 = vector.load %arg3[%c2, %c0_24, %c0_25, %c0_26] : memref<6x8x32x8xf32, #tpu.memory_space<vmem>>, vector<1x8x32x8xf32>
    %26 = vector.shape_cast %25 : vector<1x8x32x8xf32> to vector<8x32x8xf32>
    "tpu.trace_start"() <{level = 10 : i32, message = "btd,bde->bte"}> : () -> ()
    %cst_27 = arith.constant dense<0.000000e+00> : vector<8x8x8xf32>
    %27 = tpu.matmul %10, %26, %cst_27 {dimension_numbers = #tpu.dot_dimension_numbers<[2], [1], [1], [2], [0, 0, 0, 1, 1, 2], [0], [0]>} : vector<8x8x32xf32>, vector<8x32x8xf32>, vector<8x8x8xf32> -> vector<8x8x8xf32>
    "tpu.trace_stop"() : () -> ()
    %c2_28 = arith.constant 2 : index
    %c0_29 = arith.constant 0 : index
    %c0_30 = arith.constant 0 : index
    %c0_31 = arith.constant 0 : index
    %28 = vector.load %arg4[%c2_28, %c0_29, %c0_30, %c0_31] : memref<6x8x1x8xf32, #tpu.memory_space<vmem>>, vector<1x8x1x8xf32>
    %29 = vector.shape_cast %28 : vector<1x8x1x8xf32> to vector<8x1x8xf32>
    %30 = vector.broadcast %29 : vector<8x1x8xf32> to vector<8x8x8xf32>
    %31 = arith.addf %27, %30 : vector<8x8x8xf32>
    "tpu.trace_start"() <{level = 10 : i32, message = "bte,bse->bts"}> : () -> ()
    %cst_32 = arith.constant dense<0.000000e+00> : vector<8x8x8xf32>
    %32 = tpu.matmul %17, %24, %cst_32 {dimension_numbers = #tpu.dot_dimension_numbers<[2], [2], [1], [1], [0, 0, 0, 1, 1, 1], [0], [0]>} : vector<8x8x8xf32>, vector<8x8x8xf32>, vector<8x8x8xf32> -> vector<8x8x8xf32>
    "tpu.trace_stop"() : () -> ()
    %cst_33 = arith.constant dense<0xFF800000> : vector<8x8xf32>
    %33 = vector.multi_reduction <maximumf>, %32, %cst_33 [2] : vector<8x8x8xf32> to vector<8x8xf32>
    %34 = vector.shape_cast %33 : vector<8x8xf32> to vector<8x8x1xf32>
    %35 = vector.broadcast %34 : vector<8x8x1xf32> to vector<8x8x8xf32>
    %36 = arith.subf %32, %35 : vector<8x8x8xf32>
    %37 = math.exp %36 : vector<8x8x8xf32>
    %cst_34 = arith.constant dense<0.000000e+00> : vector<8x8xf32>
    %38 = vector.multi_reduction <add>, %37, %cst_34 [2] : vector<8x8x8xf32> to vector<8x8xf32>
    %39 = vector.shape_cast %38 : vector<8x8xf32> to vector<8x8x1xf32>
    %40 = tpu.reciprocal %39 {approx = true} : vector<8x8x1xf32> -> vector<8x8x1xf32>
    %41 = vector.broadcast %40 : vector<8x8x1xf32> to vector<8x8x8xf32>
    %42 = arith.mulf %37, %41 : vector<8x8x8xf32>
    "tpu.trace_start"() <{level = 10 : i32, message = "bts,bse->bte"}> : () -> ()
    %cst_35 = arith.constant dense<0.000000e+00> : vector<8x8x8xf32>
    %43 = tpu.matmul %42, %31, %cst_35 {dimension_numbers = #tpu.dot_dimension_numbers<[2], [1], [1], [2], [0, 0, 0, 1, 1, 2], [0], [0]>} : vector<8x8x8xf32>, vector<8x8x8xf32>, vector<8x8x8xf32> -> vector<8x8x8xf32>
    "tpu.trace_stop"() : () -> ()
    %c0_36 = arith.constant 0 : index
    %c0_37 = arith.constant 0 : index
    %c0_38 = arith.constant 0 : index
    %c0_39 = arith.constant 0 : index
    %44 = vector.load %arg5[%c0_36, %c0_37, %c0_38, %c0_39] : memref<2x8x8x32xf32, #tpu.memory_space<vmem>>, vector<1x8x8x32xf32>
    %45 = vector.shape_cast %44 : vector<1x8x8x32xf32> to vector<8x8x32xf32>
    "tpu.trace_start"() <{level = 10 : i32, message = "bte,bed->btd"}> : () -> ()
    %cst_40 = arith.constant dense<0.000000e+00> : vector<8x8x32xf32>
    %46 = tpu.matmul %43, %45, %cst_40 {dimension_numbers = #tpu.dot_dimension_numbers<[2], [1], [1], [2], [0, 0, 0, 1, 1, 2], [0], [0]>} : vector<8x8x8xf32>, vector<8x8x32xf32>, vector<8x8x32xf32> -> vector<8x8x32xf32>
    "tpu.trace_stop"() : () -> ()
    %47 = vector.shape_cast %46 : vector<8x8x32xf32> to vector<2x4x8x32xf32>
    %48 = vector.extract_strided_slice %47 {offsets = [0, 0, 0, 0], sizes = [2, 1, 8, 32], strides = [1, 1, 1, 1]} : vector<2x4x8x32xf32> to vector<2x1x8x32xf32>
    %49 = vector.shape_cast %48 : vector<2x1x8x32xf32> to vector<2x8x32xf32>
    %50 = vector.extract_strided_slice %47 {offsets = [0, 1, 0, 0], sizes = [2, 1, 8, 32], strides = [1, 1, 1, 1]} : vector<2x4x8x32xf32> to vector<2x1x8x32xf32>
    %51 = vector.shape_cast %50 : vector<2x1x8x32xf32> to vector<2x8x32xf32>
    %52 = arith.addf %49, %51 : vector<2x8x32xf32>
    %53 = vector.extract_strided_slice %47 {offsets = [0, 2, 0, 0], sizes = [2, 1, 8, 32], strides = [1, 1, 1, 1]} : vector<2x4x8x32xf32> to vector<2x1x8x32xf32>
    %54 = vector.shape_cast %53 : vector<2x1x8x32xf32> to vector<2x8x32xf32>
    %55 = arith.addf %52, %54 : vector<2x8x32xf32>
    %56 = vector.extract_strided_slice %47 {offsets = [0, 3, 0, 0], sizes = [2, 1, 8, 32], strides = [1, 1, 1, 1]} : vector<2x4x8x32xf32> to vector<2x1x8x32xf32>
    %57 = vector.shape_cast %56 : vector<2x1x8x32xf32> to vector<2x8x32xf32>
    %58 = arith.addf %55, %57 : vector<2x8x32xf32>
    %c0_41 = arith.constant 0 : index
    %c0_42 = arith.constant 0 : index
    %c0_43 = arith.constant 0 : index
    %59 = vector.load %arg6[%c0_41, %c0_42, %c0_43] : memref<2x1x32xf32, #tpu.memory_space<vmem>>, vector<1x1x32xf32>
    %60 = vector.shape_cast %59 : vector<1x1x32xf32> to vector<1x32xf32>
    %61 = vector.shape_cast %60 : vector<1x32xf32> to vector<1x1x32xf32>
    %62 = vector.broadcast %61 : vector<1x1x32xf32> to vector<2x8x32xf32>
    %63 = arith.addf %58, %62 : vector<2x8x32xf32>
    %64 = arith.addf %63, %0 : vector<2x8x32xf32>
    %c0_44 = arith.constant 0 : index
    %c0_45 = arith.constant 0 : index
    %c0_46 = arith.constant 0 : index
    %65 = vector.load %arg11[%c0_44, %c0_45, %c0_46] : memref<6x1x32xf32, #tpu.memory_space<vmem>>, vector<1x1x32xf32>
    %66 = vector.shape_cast %65 : vector<1x1x32xf32> to vector<1x32xf32>
    %c1_47 = arith.constant 1 : index
    %c0_48 = arith.constant 0 : index
    %c0_49 = arith.constant 0 : index
    %67 = vector.load %arg11[%c1_47, %c0_48, %c0_49] : memref<6x1x32xf32, #tpu.memory_space<vmem>>, vector<1x1x32xf32>
    %68 = vector.shape_cast %67 : vector<1x1x32xf32> to vector<1x32xf32>
    %cst_50 = arith.constant dense<0.000000e+00> : vector<2x8xf32>
    %69 = vector.multi_reduction <add>, %64, %cst_50 [2] : vector<2x8x32xf32> to vector<2x8xf32>
    %70 = vector.shape_cast %69 : vector<2x8xf32> to vector<2x8x1xf32>
    %cst_51 = arith.constant 3.200000e+01 : f32
    %71 = vector.broadcast %cst_51 : f32 to vector<2x8x1xf32>
    %72 = arith.divf %70, %71 : vector<2x8x1xf32>
    %73 = vector.broadcast %72 : vector<2x8x1xf32> to vector<2x8x32xf32>
    %74 = arith.subf %64, %73 : vector<2x8x32xf32>
    %75 = arith.mulf %74, %74 : vector<2x8x32xf32>
    %cst_52 = arith.constant dense<0.000000e+00> : vector<2x8xf32>
    %76 = vector.multi_reduction <add>, %75, %cst_52 [2] : vector<2x8x32xf32> to vector<2x8xf32>
    %77 = vector.shape_cast %76 : vector<2x8xf32> to vector<2x8x1xf32>
    %cst_53 = arith.constant 3.200000e+01 : f32
    %78 = vector.broadcast %cst_53 : f32 to vector<2x8x1xf32>
    %79 = arith.divf %77, %78 : vector<2x8x1xf32>
    %80 = vector.broadcast %72 : vector<2x8x1xf32> to vector<2x8x32xf32>
    %81 = arith.subf %64, %80 : vector<2x8x32xf32>
    %cst_54 = arith.constant 9.99999974E-6 : f32
    %82 = vector.broadcast %cst_54 : f32 to vector<2x8x1xf32>
    %83 = arith.addf %79, %82 : vector<2x8x1xf32>
    %84 = math.rsqrt %83 : vector<2x8x1xf32>
    %85 = vector.broadcast %84 : vector<2x8x1xf32> to vector<2x8x32xf32>
    %86 = arith.mulf %81, %85 : vector<2x8x32xf32>
    %87 = vector.shape_cast %66 : vector<1x32xf32> to vector<1x1x32xf32>
    %88 = vector.broadcast %87 : vector<1x1x32xf32> to vector<2x8x32xf32>
    %89 = arith.mulf %86, %88 : vector<2x8x32xf32>
    %90 = vector.shape_cast %68 : vector<1x32xf32> to vector<1x1x32xf32>
    %91 = vector.broadcast %90 : vector<1x1x32xf32> to vector<2x8x32xf32>
    %92 = arith.addf %89, %91 : vector<2x8x32xf32>
    %93 = vector.shape_cast %92 : vector<2x8x32xf32> to vector<2x1x8x32xf32>
    %94 = vector.shape_cast %93 : vector<2x1x8x32xf32> to vector<2x1x8x32xf32>
    %95 = vector.broadcast %94 : vector<2x1x8x32xf32> to vector<2x4x8x32xf32>
    %96 = vector.shape_cast %95 : vector<2x4x8x32xf32> to vector<8x8x32xf32>
    %97 = vector.shape_cast %1 : vector<2x8x32xf32> to vector<2x1x8x32xf32>
    %98 = vector.shape_cast %97 : vector<2x1x8x32xf32> to vector<2x1x8x32xf32>
    %99 = vector.broadcast %98 : vector<2x1x8x32xf32> to vector<2x4x8x32xf32>
    %100 = vector.shape_cast %99 : vector<2x4x8x32xf32> to vector<8x8x32xf32>
    %c3 = arith.constant 3 : index
    %c0_55 = arith.constant 0 : index
    %c0_56 = arith.constant 0 : index
    %c0_57 = arith.constant 0 : index
    %101 = vector.load %arg3[%c3, %c0_55, %c0_56, %c0_57] : memref<6x8x32x8xf32, #tpu.memory_space<vmem>>, vector<1x8x32x8xf32>
    %102 = vector.shape_cast %101 : vector<1x8x32x8xf32> to vector<8x32x8xf32>
    "tpu.trace_start"() <{level = 10 : i32, message = "btd,bde->bte"}> : () -> ()
    %cst_58 = arith.constant dense<0.000000e+00> : vector<8x8x8xf32>
    %103 = tpu.matmul %96, %102, %cst_58 {dimension_numbers = #tpu.dot_dimension_numbers<[2], [1], [1], [2], [0, 0, 0, 1, 1, 2], [0], [0]>} : vector<8x8x32xf32>, vector<8x32x8xf32>, vector<8x8x8xf32> -> vector<8x8x8xf32>
    "tpu.trace_stop"() : () -> ()
    %c3_59 = arith.constant 3 : index
    %c0_60 = arith.constant 0 : index
    %c0_61 = arith.constant 0 : index
    %c0_62 = arith.constant 0 : index
    %104 = vector.load %arg4[%c3_59, %c0_60, %c0_61, %c0_62] : memref<6x8x1x8xf32, #tpu.memory_space<vmem>>, vector<1x8x1x8xf32>
    %105 = vector.shape_cast %104 : vector<1x8x1x8xf32> to vector<8x1x8xf32>
    %106 = vector.broadcast %105 : vector<8x1x8xf32> to vector<8x8x8xf32>
    %107 = arith.addf %103, %106 : vector<8x8x8xf32>
    %c4 = arith.constant 4 : index
    %c0_63 = arith.constant 0 : index
    %c0_64 = arith.constant 0 : index
    %c0_65 = arith.constant 0 : index
    %108 = vector.load %arg3[%c4, %c0_63, %c0_64, %c0_65] : memref<6x8x32x8xf32, #tpu.memory_space<vmem>>, vector<1x8x32x8xf32>
    %109 = vector.shape_cast %108 : vector<1x8x32x8xf32> to vector<8x32x8xf32>
    "tpu.trace_start"() <{level = 10 : i32, message = "btd,bde->bte"}> : () -> ()
    %cst_66 = arith.constant dense<0.000000e+00> : vector<8x8x8xf32>
    %110 = tpu.matmul %100, %109, %cst_66 {dimension_numbers = #tpu.dot_dimension_numbers<[2], [1], [1], [2], [0, 0, 0, 1, 1, 2], [0], [0]>} : vector<8x8x32xf32>, vector<8x32x8xf32>, vector<8x8x8xf32> -> vector<8x8x8xf32>
    "tpu.trace_stop"() : () -> ()
    %c4_67 = arith.constant 4 : index
    %c0_68 = arith.constant 0 : index
    %c0_69 = arith.constant 0 : index
    %c0_70 = arith.constant 0 : index
    %111 = vector.load %arg4[%c4_67, %c0_68, %c0_69, %c0_70] : memref<6x8x1x8xf32, #tpu.memory_space<vmem>>, vector<1x8x1x8xf32>
    %112 = vector.shape_cast %111 : vector<1x8x1x8xf32> to vector<8x1x8xf32>
    %113 = vector.broadcast %112 : vector<8x1x8xf32> to vector<8x8x8xf32>
    %114 = arith.addf %110, %113 : vector<8x8x8xf32>
    %c5 = arith.constant 5 : index
    %c0_71 = arith.constant 0 : index
    %c0_72 = arith.constant 0 : index
    %c0_73 = arith.constant 0 : index
    %115 = vector.load %arg3[%c5, %c0_71, %c0_72, %c0_73] : memref<6x8x32x8xf32, #tpu.memory_space<vmem>>, vector<1x8x32x8xf32>
    %116 = vector.shape_cast %115 : vector<1x8x32x8xf32> to vector<8x32x8xf32>
    "tpu.trace_start"() <{level = 10 : i32, message = "btd,bde->bte"}> : () -> ()
    %cst_74 = arith.constant dense<0.000000e+00> : vector<8x8x8xf32>
    %117 = tpu.matmul %100, %116, %cst_74 {dimension_numbers = #tpu.dot_dimension_numbers<[2], [1], [1], [2], [0, 0, 0, 1, 1, 2], [0], [0]>} : vector<8x8x32xf32>, vector<8x32x8xf32>, vector<8x8x8xf32> -> vector<8x8x8xf32>
    "tpu.trace_stop"() : () -> ()
    %c5_75 = arith.constant 5 : index
    %c0_76 = arith.constant 0 : index
    %c0_77 = arith.constant 0 : index
    %c0_78 = arith.constant 0 : index
    %118 = vector.load %arg4[%c5_75, %c0_76, %c0_77, %c0_78] : memref<6x8x1x8xf32, #tpu.memory_space<vmem>>, vector<1x8x1x8xf32>
    %119 = vector.shape_cast %118 : vector<1x8x1x8xf32> to vector<8x1x8xf32>
    %120 = vector.broadcast %119 : vector<8x1x8xf32> to vector<8x8x8xf32>
    %121 = arith.addf %117, %120 : vector<8x8x8xf32>
    "tpu.trace_start"() <{level = 10 : i32, message = "bte,bse->bts"}> : () -> ()
    %cst_79 = arith.constant dense<0.000000e+00> : vector<8x8x8xf32>
    %122 = tpu.matmul %107, %114, %cst_79 {dimension_numbers = #tpu.dot_dimension_numbers<[2], [2], [1], [1], [0, 0, 0, 1, 1, 1], [0], [0]>} : vector<8x8x8xf32>, vector<8x8x8xf32>, vector<8x8x8xf32> -> vector<8x8x8xf32>
    "tpu.trace_stop"() : () -> ()
    %cst_80 = arith.constant dense<0xFF800000> : vector<8x8xf32>
    %123 = vector.multi_reduction <maximumf>, %122, %cst_80 [2] : vector<8x8x8xf32> to vector<8x8xf32>
    %124 = vector.shape_cast %123 : vector<8x8xf32> to vector<8x8x1xf32>
    %125 = vector.broadcast %124 : vector<8x8x1xf32> to vector<8x8x8xf32>
    %126 = arith.subf %122, %125 : vector<8x8x8xf32>
    %127 = math.exp %126 : vector<8x8x8xf32>
    %cst_81 = arith.constant dense<0.000000e+00> : vector<8x8xf32>
    %128 = vector.multi_reduction <add>, %127, %cst_81 [2] : vector<8x8x8xf32> to vector<8x8xf32>
    %129 = vector.shape_cast %128 : vector<8x8xf32> to vector<8x8x1xf32>
    %130 = tpu.reciprocal %129 {approx = true} : vector<8x8x1xf32> -> vector<8x8x1xf32>
    %131 = vector.broadcast %130 : vector<8x8x1xf32> to vector<8x8x8xf32>
    %132 = arith.mulf %127, %131 : vector<8x8x8xf32>
    "tpu.trace_start"() <{level = 10 : i32, message = "bts,bse->bte"}> : () -> ()
    %cst_82 = arith.constant dense<0.000000e+00> : vector<8x8x8xf32>
    %133 = tpu.matmul %132, %121, %cst_82 {dimension_numbers = #tpu.dot_dimension_numbers<[2], [1], [1], [2], [0, 0, 0, 1, 1, 2], [0], [0]>} : vector<8x8x8xf32>, vector<8x8x8xf32>, vector<8x8x8xf32> -> vector<8x8x8xf32>
    "tpu.trace_stop"() : () -> ()
    %c1_83 = arith.constant 1 : index
    %c0_84 = arith.constant 0 : index
    %c0_85 = arith.constant 0 : index
    %c0_86 = arith.constant 0 : index
    %134 = vector.load %arg5[%c1_83, %c0_84, %c0_85, %c0_86] : memref<2x8x8x32xf32, #tpu.memory_space<vmem>>, vector<1x8x8x32xf32>
    %135 = vector.shape_cast %134 : vector<1x8x8x32xf32> to vector<8x8x32xf32>
    "tpu.trace_start"() <{level = 10 : i32, message = "bte,bed->btd"}> : () -> ()
    %cst_87 = arith.constant dense<0.000000e+00> : vector<8x8x32xf32>
    %136 = tpu.matmul %133, %135, %cst_87 {dimension_numbers = #tpu.dot_dimension_numbers<[2], [1], [1], [2], [0, 0, 0, 1, 1, 2], [0], [0]>} : vector<8x8x8xf32>, vector<8x8x32xf32>, vector<8x8x32xf32> -> vector<8x8x32xf32>
    "tpu.trace_stop"() : () -> ()
    %137 = vector.shape_cast %136 : vector<8x8x32xf32> to vector<2x4x8x32xf32>
    %138 = vector.extract_strided_slice %137 {offsets = [0, 0, 0, 0], sizes = [2, 1, 8, 32], strides = [1, 1, 1, 1]} : vector<2x4x8x32xf32> to vector<2x1x8x32xf32>
    %139 = vector.shape_cast %138 : vector<2x1x8x32xf32> to vector<2x8x32xf32>
    %140 = vector.extract_strided_slice %137 {offsets = [0, 1, 0, 0], sizes = [2, 1, 8, 32], strides = [1, 1, 1, 1]} : vector<2x4x8x32xf32> to vector<2x1x8x32xf32>
    %141 = vector.shape_cast %140 : vector<2x1x8x32xf32> to vector<2x8x32xf32>
    %142 = arith.addf %139, %141 : vector<2x8x32xf32>
    %143 = vector.extract_strided_slice %137 {offsets = [0, 2, 0, 0], sizes = [2, 1, 8, 32], strides = [1, 1, 1, 1]} : vector<2x4x8x32xf32> to vector<2x1x8x32xf32>
    %144 = vector.shape_cast %143 : vector<2x1x8x32xf32> to vector<2x8x32xf32>
    %145 = arith.addf %142, %144 : vector<2x8x32xf32>
    %146 = vector.extract_strided_slice %137 {offsets = [0, 3, 0, 0], sizes = [2, 1, 8, 32], strides = [1, 1, 1, 1]} : vector<2x4x8x32xf32> to vector<2x1x8x32xf32>
    %147 = vector.shape_cast %146 : vector<2x1x8x32xf32> to vector<2x8x32xf32>
    %148 = arith.addf %145, %147 : vector<2x8x32xf32>
    %c1_88 = arith.constant 1 : index
    %c0_89 = arith.constant 0 : index
    %c0_90 = arith.constant 0 : index
    %149 = vector.load %arg6[%c1_88, %c0_89, %c0_90] : memref<2x1x32xf32, #tpu.memory_space<vmem>>, vector<1x1x32xf32>
    %150 = vector.shape_cast %149 : vector<1x1x32xf32> to vector<1x32xf32>
    %151 = vector.shape_cast %150 : vector<1x32xf32> to vector<1x1x32xf32>
    %152 = vector.broadcast %151 : vector<1x1x32xf32> to vector<2x8x32xf32>
    %153 = arith.addf %148, %152 : vector<2x8x32xf32>
    %154 = arith.addf %153, %92 : vector<2x8x32xf32>
    %c2_91 = arith.constant 2 : index
    %c0_92 = arith.constant 0 : index
    %c0_93 = arith.constant 0 : index
    %155 = vector.load %arg11[%c2_91, %c0_92, %c0_93] : memref<6x1x32xf32, #tpu.memory_space<vmem>>, vector<1x1x32xf32>
    %156 = vector.shape_cast %155 : vector<1x1x32xf32> to vector<1x32xf32>
    %c3_94 = arith.constant 3 : index
    %c0_95 = arith.constant 0 : index
    %c0_96 = arith.constant 0 : index
    %157 = vector.load %arg11[%c3_94, %c0_95, %c0_96] : memref<6x1x32xf32, #tpu.memory_space<vmem>>, vector<1x1x32xf32>
    %158 = vector.shape_cast %157 : vector<1x1x32xf32> to vector<1x32xf32>
    %cst_97 = arith.constant dense<0.000000e+00> : vector<2x8xf32>
    %159 = vector.multi_reduction <add>, %154, %cst_97 [2] : vector<2x8x32xf32> to vector<2x8xf32>
    %160 = vector.shape_cast %159 : vector<2x8xf32> to vector<2x8x1xf32>
    %cst_98 = arith.constant 3.200000e+01 : f32
    %161 = vector.broadcast %cst_98 : f32 to vector<2x8x1xf32>
    %162 = arith.divf %160, %161 : vector<2x8x1xf32>
    %163 = vector.broadcast %162 : vector<2x8x1xf32> to vector<2x8x32xf32>
    %164 = arith.subf %154, %163 : vector<2x8x32xf32>
    %165 = arith.mulf %164, %164 : vector<2x8x32xf32>
    %cst_99 = arith.constant dense<0.000000e+00> : vector<2x8xf32>
    %166 = vector.multi_reduction <add>, %165, %cst_99 [2] : vector<2x8x32xf32> to vector<2x8xf32>
    %167 = vector.shape_cast %166 : vector<2x8xf32> to vector<2x8x1xf32>
    %cst_100 = arith.constant 3.200000e+01 : f32
    %168 = vector.broadcast %cst_100 : f32 to vector<2x8x1xf32>
    %169 = arith.divf %167, %168 : vector<2x8x1xf32>
    %170 = vector.broadcast %162 : vector<2x8x1xf32> to vector<2x8x32xf32>
    %171 = arith.subf %154, %170 : vector<2x8x32xf32>
    %cst_101 = arith.constant 9.99999974E-6 : f32
    %172 = vector.broadcast %cst_101 : f32 to vector<2x8x1xf32>
    %173 = arith.addf %169, %172 : vector<2x8x1xf32>
    %174 = math.rsqrt %173 : vector<2x8x1xf32>
    %175 = vector.broadcast %174 : vector<2x8x1xf32> to vector<2x8x32xf32>
    %176 = arith.mulf %171, %175 : vector<2x8x32xf32>
    %177 = vector.shape_cast %156 : vector<1x32xf32> to vector<1x1x32xf32>
    %178 = vector.broadcast %177 : vector<1x1x32xf32> to vector<2x8x32xf32>
    %179 = arith.mulf %176, %178 : vector<2x8x32xf32>
    %180 = vector.shape_cast %158 : vector<1x32xf32> to vector<1x1x32xf32>
    %181 = vector.broadcast %180 : vector<1x1x32xf32> to vector<2x8x32xf32>
    %182 = arith.addf %179, %181 : vector<2x8x32xf32>
    %183 = vector.shape_cast %182 : vector<2x8x32xf32> to vector<16x32xf32>
    %c0_102 = arith.constant 0 : index
    %c0_103 = arith.constant 0 : index
    %184 = vector.load %arg7[%c0_102, %c0_103] : memref<32x64xf32, #tpu.memory_space<vmem>>, vector<32x64xf32>
    %cst_104 = arith.constant dense<0.000000e+00> : vector<16x64xf32>
    %185 = tpu.matmul %183, %184, %cst_104 {dimension_numbers = #tpu.dot_dimension_numbers<[1], [0], [0], [1], [0, 0, 1, 1], [], []>} : vector<16x32xf32>, vector<32x64xf32>, vector<16x64xf32> -> vector<16x64xf32>
    %c0_105 = arith.constant 0 : index
    %c0_106 = arith.constant 0 : index
    %186 = vector.load %arg8[%c0_105, %c0_106] : memref<1x64xf32, #tpu.memory_space<vmem>>, vector<1x64xf32>
    %187 = vector.broadcast %186 : vector<1x64xf32> to vector<16x64xf32>
    %188 = arith.addf %185, %187 : vector<16x64xf32>
    %cst_107 = arith.constant 0.000000e+00 : f32
    %189 = vector.broadcast %cst_107 : f32 to vector<16x64xf32>
    %190 = arith.maximumf %188, %189 : vector<16x64xf32>
    %c0_108 = arith.constant 0 : index
    %c0_109 = arith.constant 0 : index
    %191 = vector.load %arg9[%c0_108, %c0_109] : memref<64x32xf32, #tpu.memory_space<vmem>>, vector<64x32xf32>
    %cst_110 = arith.constant dense<0.000000e+00> : vector<16x32xf32>
    %192 = tpu.matmul %190, %191, %cst_110 {dimension_numbers = #tpu.dot_dimension_numbers<[1], [0], [0], [1], [0, 0, 1, 1], [], []>} : vector<16x64xf32>, vector<64x32xf32>, vector<16x32xf32> -> vector<16x32xf32>
    %c0_111 = arith.constant 0 : index
    %c0_112 = arith.constant 0 : index
    %193 = vector.load %arg10[%c0_111, %c0_112] : memref<1x32xf32, #tpu.memory_space<vmem>>, vector<1x32xf32>
    %194 = vector.broadcast %193 : vector<1x32xf32> to vector<16x32xf32>
    %195 = arith.addf %192, %194 : vector<16x32xf32>
    %196 = vector.shape_cast %195 : vector<16x32xf32> to vector<2x8x32xf32>
    %197 = arith.addf %196, %182 : vector<2x8x32xf32>
    %c4_113 = arith.constant 4 : index
    %c0_114 = arith.constant 0 : index
    %c0_115 = arith.constant 0 : index
    %198 = vector.load %arg11[%c4_113, %c0_114, %c0_115] : memref<6x1x32xf32, #tpu.memory_space<vmem>>, vector<1x1x32xf32>
    %199 = vector.shape_cast %198 : vector<1x1x32xf32> to vector<1x32xf32>
    %c5_116 = arith.constant 5 : index
    %c0_117 = arith.constant 0 : index
    %c0_118 = arith.constant 0 : index
    %200 = vector.load %arg11[%c5_116, %c0_117, %c0_118] : memref<6x1x32xf32, #tpu.memory_space<vmem>>, vector<1x1x32xf32>
    %201 = vector.shape_cast %200 : vector<1x1x32xf32> to vector<1x32xf32>
    %cst_119 = arith.constant dense<0.000000e+00> : vector<2x8xf32>
    %202 = vector.multi_reduction <add>, %197, %cst_119 [2] : vector<2x8x32xf32> to vector<2x8xf32>
    %203 = vector.shape_cast %202 : vector<2x8xf32> to vector<2x8x1xf32>
    %cst_120 = arith.constant 3.200000e+01 : f32
    %204 = vector.broadcast %cst_120 : f32 to vector<2x8x1xf32>
    %205 = arith.divf %203, %204 : vector<2x8x1xf32>
    %206 = vector.broadcast %205 : vector<2x8x1xf32> to vector<2x8x32xf32>
    %207 = arith.subf %197, %206 : vector<2x8x32xf32>
    %208 = arith.mulf %207, %207 : vector<2x8x32xf32>
    %cst_121 = arith.constant dense<0.000000e+00> : vector<2x8xf32>
    %209 = vector.multi_reduction <add>, %208, %cst_121 [2] : vector<2x8x32xf32> to vector<2x8xf32>
    %210 = vector.shape_cast %209 : vector<2x8xf32> to vector<2x8x1xf32>
    %cst_122 = arith.constant 3.200000e+01 : f32
    %211 = vector.broadcast %cst_122 : f32 to vector<2x8x1xf32>
    %212 = arith.divf %210, %211 : vector<2x8x1xf32>
    %213 = vector.broadcast %205 : vector<2x8x1xf32> to vector<2x8x32xf32>
    %214 = arith.subf %197, %213 : vector<2x8x32xf32>
    %cst_123 = arith.constant 9.99999974E-6 : f32
    %215 = vector.broadcast %cst_123 : f32 to vector<2x8x1xf32>
    %216 = arith.addf %212, %215 : vector<2x8x1xf32>
    %217 = math.rsqrt %216 : vector<2x8x1xf32>
    %218 = vector.broadcast %217 : vector<2x8x1xf32> to vector<2x8x32xf32>
    %219 = arith.mulf %214, %218 : vector<2x8x32xf32>
    %220 = vector.shape_cast %199 : vector<1x32xf32> to vector<1x1x32xf32>
    %221 = vector.broadcast %220 : vector<1x1x32xf32> to vector<2x8x32xf32>
    %222 = arith.mulf %219, %221 : vector<2x8x32xf32>
    %223 = vector.shape_cast %201 : vector<1x32xf32> to vector<1x1x32xf32>
    %224 = vector.broadcast %223 : vector<1x1x32xf32> to vector<2x8x32xf32>
    %225 = arith.addf %222, %224 : vector<2x8x32xf32>
    %c0_124 = arith.constant 0 : index
    %c0_125 = arith.constant 0 : index
    %c0_126 = arith.constant 0 : index
    %226 = vector.load %arg12[%c0_124, %c0_125, %c0_126] : memref<2x8x32xf32, #tpu.memory_space<vmem>>, vector<2x8x32xf32>
    tpu.vector_store %arg12[%c0_124, %c0_125, %c0_126], %225 {strides = array<i32>} : memref<2x8x32xf32, #tpu.memory_space<vmem>>, vector<2x8x32xf32>,
    return
  }
}

</mosaic_0001>

<llo_original>
// kernel: decoder_layer.1
$region0: #{decoder_layer.1}
  #allocation0 [shape = 'u32[]', space=smem, size = 0x4, offset = 0x4, fixed_abs, tag = 'smem constant byte address 0x4 - core index']
  #allocation1 [shape = 'u32[144,128]{1,0:T(1,128)}', space=vmem, size = 0x12000, scoped, tag = 'internal scratch']
  %s0 = inlined_call_operand.vmem [shape: f32[2,8,32], index: 0, kind: input, shape index: {}]
  %s1 = inlined_call_operand.vmem [shape: f32[2,8,32], index: 1, kind: input, shape index: {}]
  %s2 = inlined_call_operand.vmem [shape: f32[2,8,32], index: 2, kind: input, shape index: {}]
  %s3 = inlined_call_operand.vmem [shape: f32[6,8,32,8], index: 3, kind: input, shape index: {}]
  %s4 = inlined_call_operand.vmem [shape: f32[6,8,1,8], index: 4, kind: input, shape index: {}]
  %s5 = inlined_call_operand.vmem [shape: f32[2,8,8,32], index: 5, kind: input, shape index: {}]
  %s6 = inlined_call_operand.vmem [shape: f32[2,1,32], index: 6, kind: input, shape index: {}]
  %s7 = inlined_call_operand.vmem [shape: f32[32,64], index: 7, kind: input, shape index: {}]
  %s8 = inlined_call_operand.vmem [shape: f32[1,64], index: 8, kind: input, shape index: {}]
  %s9 = inlined_call_operand.vmem [shape: f32[64,32], index: 9, kind: input, shape index: {}]
  %s10 = inlined_call_operand.vmem [shape: f32[1,32], index: 10, kind: input, shape index: {}]
  %s11 = inlined_call_operand.vmem [shape: f32[6,1,32], index: 11, kind: input, shape index: {}]
  %s12 = inlined_call_operand.hbm [shape: f32[2,8,32], index: 12, kind: output, shape index: {}]
  %s13 = sld [smem:[#allocation0]]
  $region58: #{decoder_layer.1} parent=0
    _
  %s15 = ssub.s32 1, %s13
  %s16 = scalar_select 0, %s15, %s13
  $region1: #{decoder_layer.1} parent=0
    #allocation2 [shape = 'u8[8192]{0}', space=vmem, size = 0x2000, scoped, tag = 'output window, operand 0, single buffered']
    #allocation3 [shape = 's32[1]{0}', space=sflag, size = 0x4, scoped, tag = 'scoped memory for decoder_layer.1']
    %17 = vsyncpa [#allocation3], 0
    // Predicated region
    $region2: #{decoder_layer.1} parent=1 // pred_check
      _
    $region3: #{decoder_layer.1} parent=1 // pred_check_branch
      %19 = sbr.rel (0) target = $region5
    $region4: #{decoder_layer.1} parent=1 // pred_region
      _
    $region5: #{decoder_layer.1} parent=1 // pred_fallthru
      _
    // Predicated region
    $region6: #{decoder_layer.1} parent=1 // pred_check
      _
    $region7: #{decoder_layer.1} parent=1 // pred_check_branch
      %21 = sbr.rel (0) target = $region9
    $region8: #{decoder_layer.1} parent=1 // pred_region
      _
    $region9: #{decoder_layer.1} parent=1 // pred_fallthru
      _
    // Predicated region
    $region10: #{decoder_layer.1} parent=1 // pred_check
      _
    $region11: #{decoder_layer.1} parent=1 // pred_check_branch
      %23 = sbr.rel (0) target = $region13
    $region12: #{decoder_layer.1} parent=1 // pred_region
      _
    $region13: #{decoder_layer.1} parent=1 // pred_fallthru
      _
    // Predicated region
    $region14: #{decoder_layer.1} parent=1 // pred_check
      _
    $region15: #{decoder_layer.1} parent=1 // pred_check_branch
      %25 = sbr.rel (0) target = $region17
    $region16: #{decoder_layer.1} parent=1 // pred_region
      _
    $region17: #{decoder_layer.1} parent=1 // pred_fallthru
      _
    // Predicated region
    $region18: #{decoder_layer.1} parent=1 // pred_check
      _
    $region19: #{decoder_layer.1} parent=1 // pred_check_branch
      %27 = sbr.rel (0) target = $region21
    $region20: #{decoder_layer.1} parent=1 // pred_region
      _
    $region21: #{decoder_layer.1} parent=1 // pred_fallthru
      _
    // Predicated region
    $region22: #{decoder_layer.1} parent=1 // pred_check
      _
    $region23: #{decoder_layer.1} parent=1 // pred_check_branch
      %29 = sbr.rel (0) target = $region25
    $region24: #{decoder_layer.1} parent=1 // pred_region
      _
    $region25: #{decoder_layer.1} parent=1 // pred_fallthru
      _
    // Predicated region
    $region26: #{decoder_layer.1} parent=1 // pred_check
      _
    $region27: #{decoder_layer.1} parent=1 // pred_check_branch
      %31 = sbr.rel (0) target = $region29
    $region28: #{decoder_layer.1} parent=1 // pred_region
      _
    $region29: #{decoder_layer.1} parent=1 // pred_fallthru
      _
    // Predicated region
    $region30: #{decoder_layer.1} parent=1 // pred_check
      _
    $region31: #{decoder_layer.1} parent=1 // pred_check_branch
      %33 = sbr.rel (0) target = $region33
    $region32: #{decoder_layer.1} parent=1 // pred_region
      _
    $region33: #{decoder_layer.1} parent=1 // pred_fallthru
      _
    // Predicated region
    $region34: #{decoder_layer.1} parent=1 // pred_check
      _
    $region35: #{decoder_layer.1} parent=1 // pred_check_branch
      %35 = sbr.rel (0) target = $region37
    $region36: #{decoder_layer.1} parent=1 // pred_region
      _
    $region37: #{decoder_layer.1} parent=1 // pred_fallthru
      _
    // Predicated region
    $region38: #{decoder_layer.1} parent=1 // pred_check
      _
    $region39: #{decoder_layer.1} parent=1 // pred_check_branch
      %37 = sbr.rel (0) target = $region41
    $region40: #{decoder_layer.1} parent=1 // pred_region
      _
    $region41: #{decoder_layer.1} parent=1 // pred_fallthru
      _
    // Predicated region
    $region42: #{decoder_layer.1} parent=1 // pred_check
      _
    $region43: #{decoder_layer.1} parent=1 // pred_check_branch
      %39 = sbr.rel (0) target = $region45
    $region44: #{decoder_layer.1} parent=1 // pred_region
      _
    $region45: #{decoder_layer.1} parent=1 // pred_fallthru
      _
    // Predicated region
    $region46: #{decoder_layer.1} parent=1 // pred_check
      _
    $region47: #{decoder_layer.1} parent=1 // pred_check_branch
      %41 = sbr.rel (0) target = $region49
    $region48: #{decoder_layer.1} parent=1 // pred_region
      _
    $region49: #{decoder_layer.1} parent=1 // pred_fallthru
      _
    %v42 = vld [vmem:[%s0] sm:$0xff]
    %v43 = vld [vmem:[%s0 + $0x8] sm:$0xff]
    %v44 = vld [vmem:[%s1] sm:$0xff]
    %v45 = vld [vmem:[%s1 + $0x8] sm:$0xff]
    %v46 = vld [vmem:[%s2] sm:$0xff]
    %v47 = vld [vmem:[%s2 + $0x8] sm:$0xff]
    %v48 = vld [vmem:[%s3] sm:$0xff]
    %v49 = vld [vmem:[%s3 + $0x8] sm:$0xff]
    %v50 = vld [vmem:[%s3 + $0x10] sm:$0xff]
    %v51 = vld [vmem:[%s3 + $0x18] sm:$0xff]
    %v52 = vld [vmem:[%s3 + $0x20] sm:$0xff]
    %v53 = vld [vmem:[%s3 + $0x28] sm:$0xff]
    %v54 = vld [vmem:[%s3 + $0x30] sm:$0xff]
    %v55 = vld [vmem:[%s3 + $0x38] sm:$0xff]
    %v56 = vld [vmem:[%s3 + $0x40] sm:$0xff]
    %v57 = vld [vmem:[%s3 + $0x48] sm:$0xff]
    %v58 = vld [vmem:[%s3 + $0x50] sm:$0xff]
    %v59 = vld [vmem:[%s3 + $0x58] sm:$0xff]
    %v60 = vld [vmem:[%s3 + $0x60] sm:$0xff]
    %v61 = vld [vmem:[%s3 + $0x68] sm:$0xff]
    %v62 = vld [vmem:[%s3 + $0x70] sm:$0xff]
    %v63 = vld [vmem:[%s3 + $0x78] sm:$0xff]
    %v64 = vld [vmem:[%s3 + $0x80] sm:$0xff]
    %v65 = vld [vmem:[%s3 + $0x88] sm:$0xff]
    %v66 = vld [vmem:[%s3 + $0x90] sm:$0xff]
    %v67 = vld [vmem:[%s3 + $0x98] sm:$0xff]
    %v68 = vld [vmem:[%s3 + $0xa0] sm:$0xff]
    %v69 = vld [vmem:[%s3 + $0xa8] sm:$0xff]
    %v70 = vld [vmem:[%s3 + $0xb0] sm:$0xff]
    %v71 = vld [vmem:[%s3 + $0xb8] sm:$0xff]
    %v72 = vld [vmem:[%s3 + $0xc0] sm:$0xff]
    %v73 = vld [vmem:[%s3 + $0xc8] sm:$0xff]
    %v74 = vld [vmem:[%s3 + $0xd0] sm:$0xff]
    %v75 = vld [vmem:[%s3 + $0xd8] sm:$0xff]
    %v76 = vld [vmem:[%s3 + $0xe0] sm:$0xff]
    %v77 = vld [vmem:[%s3 + $0xe8] sm:$0xff]
    %v78 = vld [vmem:[%s3 + $0xf0] sm:$0xff]
    %v79 = vld [vmem:[%s3 + $0xf8] sm:$0xff]
    %v80 = vld [vmem:[%s4] sm:$0x1]
    %v81 = vld [vmem:[%s4 + $0x1] sm:$0x1]
    %v82 = vld [vmem:[%s4 + $0x2] sm:$0x1]
    %v83 = vld [vmem:[%s4 + $0x3] sm:$0x1]
    %v84 = vld [vmem:[%s4 + $0x4] sm:$0x1]
    %v85 = vld [vmem:[%s4 + $0x5] sm:$0x1]
    %v86 = vld [vmem:[%s4 + $0x6] sm:$0x1]
    %v87 = vld [vmem:[%s4 + $0x7] sm:$0x1]
    %v96 = vlaneseq
    %v97 = vshrl.u32 %v96, 7
    %v98 = vsub.s32 0, %v97
    %v99 = vrot.slane %v80, %v98
    %v100 = vlaneseq
    %v101 = vshrl.u32 %v100, 7
    %v102 = vsub.s32 0, %v101
    %v103 = vrot.slane %v81, %v102
    %v104 = vlaneseq
    %v105 = vshrl.u32 %v104, 7
    %v106 = vsub.s32 0, %v105
    %v107 = vrot.slane %v82, %v106
    %v108 = vlaneseq
    %v109 = vshrl.u32 %v108, 7
    %v110 = vsub.s32 0, %v109
    %v111 = vrot.slane %v83, %v110
    %v112 = vlaneseq
    %v113 = vshrl.u32 %v112, 7
    %v114 = vsub.s32 0, %v113
    %v115 = vrot.slane %v84, %v114
    %v116 = vlaneseq
    %v117 = vshrl.u32 %v116, 7
    %v118 = vsub.s32 0, %v117
    %v119 = vrot.slane %v85, %v118
    %v120 = vlaneseq
    %v121 = vshrl.u32 %v120, 7
    %v122 = vsub.s32 0, %v121
    %v123 = vrot.slane %v86, %v122
    %v124 = vlaneseq
    %v125 = vshrl.u32 %v124, 7
    %v126 = vsub.s32 0, %v125
    %v127 = vrot.slane %v87, %v126
    %vm136 = vcmask 261120
    %v138 = vsel %vm136, %v42, 0
    %140 = vmatprep.subr.mxu0 0.0
    %141 = vmatpush1.msra.mxu0 %v48
    %142 = vmatprep.subr.mxu0 0.0
    %143 = vmatpush1.msra.mxu0 %v49
    %144 = vmatprep.subr.mxu0 0.0
    %145 = vmatpush1.msra.mxu0 %v50
    %146 = vmatprep.subr.mxu0 0.0
    %147 = vmatpush1.msra.mxu0 %v51
    %148 = vmatprep.subr.mxu0 0.0
    %149 = vmatpush1.msra.mxu0 0.0
    %150 = vmatprep.subr.mxu0 0.0
    %151 = vmatpush1.msra.mxu0 0.0
    %152 = vmatprep.subr.mxu0 0.0
    %153 = vmatpush1.msra.mxu0 0.0
    %154 = vmatprep.subr.mxu0 0.0
    %155 = vmatpush1.msra.mxu0 0.0
    %156 = vmatprep.subr.mxu0 0.0
    %157 = vmatpush1.msra.mxu0 0.0
    %158 = vmatprep.subr.mxu0 0.0
    %159 = vmatpush1.msra.mxu0 0.0
    %160 = vmatprep.subr.mxu0 0.0
    %161 = vmatpush1.msra.mxu0 0.0
    %162 = vmatprep.subr.mxu0 0.0
    %163 = vmatpush1.msra.mxu0 0.0
    %164 = vmatprep.subr.mxu0 0.0
    %165 = vmatpush1.msra.mxu0 0.0
    %166 = vmatprep.subr.mxu0 0.0
    %167 = vmatpush1.msra.mxu0 0.0
    %168 = vmatprep.subr.mxu0 0.0
    %169 = vmatpush1.msra.mxu0 0.0
    %170 = vmatprep.subr.mxu0 0.0
    %171 = vmatpush1.msra.mxu0 0.0
    %172 = vmatprep.subr.mxu0 0.0
    %173 = vmatpush1.msra.mxu0 0.0
    %174 = vmatprep.subr.mxu0 0.0
    %175 = vmatpush1.msra.mxu0 0.0
    %176 = vmatprep.subr.mxu0 0.0
    %177 = vmatpush1.msra.mxu0 0.0
    %178 = vmatprep.subr.mxu0 0.0
    %179 = vmatpush1.msra.mxu0 0.0
    %180 = vmatprep.subr.mxu0 0.0
    %181 = vmatpush1.msra.mxu0 0.0
    %182 = vmatprep.subr.mxu0 0.0
    %183 = vmatpush1.msra.mxu0 0.0
    %184 = vmatprep.subr.mxu0 0.0
    %185 = vmatpush1.msra.mxu0 0.0
    %186 = vmatprep.subr.mxu0 0.0
    %187 = vmatpush1.msra.mxu0 0.0
    %188 = vmatprep.subr.mxu0 0.0
    %189 = vmatpush1.msra.mxu0 0.0
    %190 = vmatprep.subr.mxu0 0.0
    %191 = vmatpush1.msra.mxu0 0.0
    %192 = vmatprep.subr.mxu0 0.0
    %193 = vmatpush1.msra.mxu0 0.0
    %194 = vmatprep.subr.mxu0 0.0
    %195 = vmatpush1.msra.mxu0 0.0
    %196 = vmatprep.subr.mxu0 0.0
    %197 = vmatpush1.msra.mxu0 0.0
    %198 = vmatprep.subr.mxu0 0.0
    %199 = vmatpush1.msra.mxu0 0.0
    %200 = vmatprep.subr.mxu0 0.0
    %201 = vmatpush1.msra.mxu0 0.0
    %202 = vmatprep.subr.mxu0 0.0
    %203 = vmatpush1.msra.mxu0 0.0
    %204 = vmatprep.mubr.f32.mxu0 0.0
    %205 = vmatmul.mubr.f32.gmra.mrb[0].mxu0 %v138
    %v206 = vpop.f32.mrb[0].mxu0
    %v207 = vadd.f32 %v99, %v206
    %v208 = vpop.f32.mrb[0].mxu0
    %209 = vdwg.mxu0
    %210 = vmatprep.subr.mxu0 0.0
    %211 = vmatpush1.msra.mxu0 %v52
    %212 = vmatprep.subr.mxu0 0.0
    %213 = vmatpush1.msra.mxu0 %v53
    %214 = vmatprep.subr.mxu0 0.0
    %215 = vmatpush1.msra.mxu0 %v54
    %216 = vmatprep.subr.mxu0 0.0
    %217 = vmatpush1.msra.mxu0 %v55
    %218 = vmatprep.subr.mxu0 0.0
    %219 = vmatpush1.msra.mxu0 0.0
    %220 = vmatprep.subr.mxu0 0.0
    %221 = vmatpush1.msra.mxu0 0.0
    %222 = vmatprep.subr.mxu0 0.0
    %223 = vmatpush1.msra.mxu0 0.0
    %224 = vmatprep.subr.mxu0 0.0
    %225 = vmatpush1.msra.mxu0 0.0
    %226 = vmatprep.subr.mxu0 0.0
    %227 = vmatpush1.msra.mxu0 0.0
    %228 = vmatprep.subr.mxu0 0.0
    %229 = vmatpush1.msra.mxu0 0.0
    %230 = vmatprep.subr.mxu0 0.0
    %231 = vmatpush1.msra.mxu0 0.0
    %232 = vmatprep.subr.mxu0 0.0
    %233 = vmatpush1.msra.mxu0 0.0
    %234 = vmatprep.subr.mxu0 0.0
    %235 = vmatpush1.msra.mxu0 0.0
    %236 = vmatprep.subr.mxu0 0.0
    %237 = vmatpush1.msra.mxu0 0.0
    %238 = vmatprep.subr.mxu0 0.0
    %239 = vmatpush1.msra.mxu0 0.0
    %240 = vmatprep.subr.mxu0 0.0
    %241 = vmatpush1.msra.mxu0 0.0
    %242 = vmatprep.subr.mxu0 0.0
    %243 = vmatpush1.msra.mxu0 0.0
    %244 = vmatprep.subr.mxu0 0.0
    %245 = vmatpush1.msra.mxu0 0.0
    %246 = vmatprep.subr.mxu0 0.0
    %247 = vmatpush1.msra.mxu0 0.0
    %248 = vmatprep.subr.mxu0 0.0
    %249 = vmatpush1.msra.mxu0 0.0
    %250 = vmatprep.subr.mxu0 0.0
    %251 = vmatpush1.msra.mxu0 0.0
    %252 = vmatprep.subr.mxu0 0.0
    %253 = vmatpush1.msra.mxu0 0.0
    %254 = vmatprep.subr.mxu0 0.0
    %255 = vmatpush1.msra.mxu0 0.0
    %256 = vmatprep.subr.mxu0 0.0
    %257 = vmatpush1.msra.mxu0 0.0
    %258 = vmatprep.subr.mxu0 0.0
    %259 = vmatpush1.msra.mxu0 0.0
    %260 = vmatprep.subr.mxu0 0.0
    %261 = vmatpush1.msra.mxu0 0.0
    %262 = vmatprep.subr.mxu0 0.0
    %263 = vmatpush1.msra.mxu0 0.0
    %264 = vmatprep.subr.mxu0 0.0
    %265 = vmatpush1.msra.mxu0 0.0
    %266 = vmatprep.subr.mxu0 0.0
    %267 = vmatpush1.msra.mxu0 0.0
    %268 = vmatprep.subr.mxu0 0.0
    %269 = vmatpush1.msra.mxu0 0.0
    %270 = vmatprep.subr.mxu0 0.0
    %271 = vmatpush1.msra.mxu0 0.0
    %272 = vmatprep.subr.mxu0 0.0
    %273 = vmatpush1.msra.mxu0 0.0
    %274 = vmatprep.mubr.f32.mxu0 0.0
    %275 = vmatmul.mubr.f32.gmra.mrb[0].mxu0 %v138
    %v276 = vpop.f32.mrb[0].mxu0
    %v277 = vadd.f32 %v103, %v276
    %v278 = vpop.f32.mrb[0].mxu0
    %279 = vdwg.mxu0
    %280 = vmatprep.subr.mxu0 0.0
    %281 = vmatpush1.msra.mxu0 %v56
    %282 = vmatprep.subr.mxu0 0.0
    %283 = vmatpush1.msra.mxu0 %v57
    %284 = vmatprep.subr.mxu0 0.0
    %285 = vmatpush1.msra.mxu0 %v58
    %286 = vmatprep.subr.mxu0 0.0
    %287 = vmatpush1.msra.mxu0 %v59
    %288 = vmatprep.subr.mxu0 0.0
    %289 = vmatpush1.msra.mxu0 0.0
    %290 = vmatprep.subr.mxu0 0.0
    %291 = vmatpush1.msra.mxu0 0.0
    %292 = vmatprep.subr.mxu0 0.0
    %293 = vmatpush1.msra.mxu0 0.0
    %294 = vmatprep.subr.mxu0 0.0
    %295 = vmatpush1.msra.mxu0 0.0
    %296 = vmatprep.subr.mxu0 0.0
    %297 = vmatpush1.msra.mxu0 0.0
    %298 = vmatprep.subr.mxu0 0.0
    %299 = vmatpush1.msra.mxu0 0.0
    %300 = vmatprep.subr.mxu0 0.0
    %301 = vmatpush1.msra.mxu0 0.0
    %302 = vmatprep.subr.mxu0 0.0
    %303 = vmatpush1.msra.mxu0 0.0
    %304 = vmatprep.subr.mxu0 0.0
    %305 = vmatpush1.msra.mxu0 0.0
    %306 = vmatprep.subr.mxu0 0.0
    %307 = vmatpush1.msra.mxu0 0.0
    %308 = vmatprep.subr.mxu0 0.0
    %309 = vmatpush1.msra.mxu0 0.0
    %310 = vmatprep.subr.mxu0 0.0
    %311 = vmatpush1.msra.mxu0 0.0
    %312 = vmatprep.subr.mxu0 0.0
    %313 = vmatpush1.msra.mxu0 0.0
    %314 = vmatprep.subr.mxu0 0.0
    %315 = vmatpush1.msra.mxu0 0.0
    %316 = vmatprep.subr.mxu0 0.0
    %317 = vmatpush1.msra.mxu0 0.0
    %318 = vmatprep.subr.mxu0 0.0
    %319 = vmatpush1.msra.mxu0 0.0
    %320 = vmatprep.subr.mxu0 0.0
    %321 = vmatpush1.msra.mxu0 0.0
    %322 = vmatprep.subr.mxu0 0.0
    %323 = vmatpush1.msra.mxu0 0.0
    %324 = vmatprep.subr.mxu0 0.0
    %325 = vmatpush1.msra.mxu0 0.0
    %326 = vmatprep.subr.mxu0 0.0
    %327 = vmatpush1.msra.mxu0 0.0
    %328 = vmatprep.subr.mxu0 0.0
    %329 = vmatpush1.msra.mxu0 0.0
    %330 = vmatprep.subr.mxu0 0.0
    %331 = vmatpush1.msra.mxu0 0.0
    %332 = vmatprep.subr.mxu0 0.0
    %333 = vmatpush1.msra.mxu0 0.0
    %334 = vmatprep.subr.mxu0 0.0
    %335 = vmatpush1.msra.mxu0 0.0
    %336 = vmatprep.subr.mxu0 0.0
    %337 = vmatpush1.msra.mxu0 0.0
    %338 = vmatprep.subr.mxu0 0.0
    %339 = vmatpush1.msra.mxu0 0.0
    %340 = vmatprep.subr.mxu0 0.0
    %341 = vmatpush1.msra.mxu0 0.0
    %342 = vmatprep.subr.mxu0 0.0
    %343 = vmatpush1.msra.mxu0 0.0
    %344 = vmatprep.mubr.f32.mxu0 0.0
    %345 = vmatmul.mubr.f32.gmra.mrb[0].mxu0 %v138
    %v346 = vpop.f32.mrb[0].mxu0
    %v347 = vadd.f32 %v107, %v346
    %v348 = vpop.f32.mrb[0].mxu0
    %349 = vdwg.mxu0
    %350 = vmatprep.subr.mxu0 0.0
    %351 = vmatpush1.msra.mxu0 %v60
    %352 = vmatprep.subr.mxu0 0.0
    %353 = vmatpush1.msra.mxu0 %v61
    %354 = vmatprep.subr.mxu0 0.0
    %355 = vmatpush1.msra.mxu0 %v62
    %356 = vmatprep.subr.mxu0 0.0
    %357 = vmatpush1.msra.mxu0 %v63
    %358 = vmatprep.subr.mxu0 0.0
    %359 = vmatpush1.msra.mxu0 0.0
    %360 = vmatprep.subr.mxu0 0.0
    %361 = vmatpush1.msra.mxu0 0.0
    %362 = vmatprep.subr.mxu0 0.0
    %363 = vmatpush1.msra.mxu0 0.0
    %364 = vmatprep.subr.mxu0 0.0
    %365 = vmatpush1.msra.mxu0 0.0
    %366 = vmatprep.subr.mxu0 0.0
    %367 = vmatpush1.msra.mxu0 0.0
    %368 = vmatprep.subr.mxu0 0.0
    %369 = vmatpush1.msra.mxu0 0.0
    %370 = vmatprep.subr.mxu0 0.0
    %371 = vmatpush1.msra.mxu0 0.0
    %372 = vmatprep.subr.mxu0 0.0
    %373 = vmatpush1.msra.mxu0 0.0
    %374 = vmatprep.subr.mxu0 0.0
    %375 = vmatpush1.msra.mxu0 0.0
    %376 = vmatprep.subr.mxu0 0.0
    %377 = vmatpush1.msra.mxu0 0.0
    %378 = vmatprep.subr.mxu0 0.0
    %379 = vmatpush1.msra.mxu0 0.0
    %380 = vmatprep.subr.mxu0 0.0
    %381 = vmatpush1.msra.mxu0 0.0
    %382 = vmatprep.subr.mxu0 0.0
    %383 = vmatpush1.msra.mxu0 0.0
    %384 = vmatprep.subr.mxu0 0.0
    %385 = vmatpush1.msra.mxu0 0.0
    %386 = vmatprep.subr.mxu0 0.0
    %387 = vmatpush1.msra.mxu0 0.0
    %388 = vmatprep.subr.mxu0 0.0
    %389 = vmatpush1.msra.mxu0 0.0
    %390 = vmatprep.subr.mxu0 0.0
    %391 = vmatpush1.msra.mxu0 0.0
    %392 = vmatprep.subr.mxu0 0.0
    %393 = vmatpush1.msra.mxu0 0.0
    %394 = vmatprep.subr.mxu0 0.0
    %395 = vmatpush1.msra.mxu0 0.0
    %396 = vmatprep.subr.mxu0 0.0
    %397 = vmatpush1.msra.mxu0 0.0
    %398 = vmatprep.subr.mxu0 0.0
    %399 = vmatpush1.msra.mxu0 0.0
    %400 = vmatprep.subr.mxu0 0.0
    %401 = vmatpush1.msra.mxu0 0.0
    %402 = vmatprep.subr.mxu0 0.0
    %403 = vmatpush1.msra.mxu0 0.0
    %404 = vmatprep.subr.mxu0 0.0
    %405 = vmatpush1.msra.mxu0 0.0
    %406 = vmatprep.subr.mxu0 0.0
    %407 = vmatpush1.msra.mxu0 0.0
    %408 = vmatprep.subr.mxu0 0.0
    %409 = vmatpush1.msra.mxu0 0.0
    %410 = vmatprep.subr.mxu0 0.0
    %411 = vmatpush1.msra.mxu0 0.0
    %412 = vmatprep.subr.mxu0 0.0
    %413 = vmatpush1.msra.mxu0 0.0
    %414 = vmatprep.mubr.f32.mxu0 0.0
    %415 = vmatmul.mubr.f32.gmra.mrb[0].mxu0 %v138
    %v416 = vpop.f32.mrb[0].mxu0
    %v417 = vadd.f32 %v111, %v416
    %v418 = vpop.f32.mrb[0].mxu0
    %419 = vdwg.mxu0
    %v421 = vsel %vm136, %v43, 0
    %423 = vmatprep.subr.mxu0 0.0
    %424 = vmatpush1.msra.mxu0 %v64
    %425 = vmatprep.subr.mxu0 0.0
    %426 = vmatpush1.msra.mxu0 %v65
    %427 = vmatprep.subr.mxu0 0.0
    %428 = vmatpush1.msra.mxu0 %v66
    %429 = vmatprep.subr.mxu0 0.0
    %430 = vmatpush1.msra.mxu0 %v67
    %431 = vmatprep.subr.mxu0 0.0
    %432 = vmatpush1.msra.mxu0 0.0
    %433 = vmatprep.subr.mxu0 0.0
    %434 = vmatpush1.msra.mxu0 0.0
    %435 = vmatprep.subr.mxu0 0.0
    %436 = vmatpush1.msra.mxu0 0.0
    %437 = vmatprep.subr.mxu0 0.0
    %438 = vmatpush1.msra.mxu0 0.0
    %439 = vmatprep.subr.mxu0 0.0
    %440 = vmatpush1.msra.mxu0 0.0
    %441 = vmatprep.subr.mxu0 0.0
    %442 = vmatpush1.msra.mxu0 0.0
    %443 = vmatprep.subr.mxu0 0.0
    %444 = vmatpush1.msra.mxu0 0.0
    %445 = vmatprep.subr.mxu0 0.0
    %446 = vmatpush1.msra.mxu0 0.0
    %447 = vmatprep.subr.mxu0 0.0
    %448 = vmatpush1.msra.mxu0 0.0
    %449 = vmatprep.subr.mxu0 0.0
    %450 = vmatpush1.msra.mxu0 0.0
    %451 = vmatprep.subr.mxu0 0.0
    %452 = vmatpush1.msra.mxu0 0.0
    %453 = vmatprep.subr.mxu0 0.0
    %454 = vmatpush1.msra.mxu0 0.0
    %455 = vmatprep.subr.mxu0 0.0
    %456 = vmatpush1.msra.mxu0 0.0
    %457 = vmatprep.subr.mxu0 0.0
    %458 = vmatpush1.msra.mxu0 0.0
    %459 = vmatprep.subr.mxu0 0.0
    %460 = vmatpush1.msra.mxu0 0.0
    %461 = vmatprep.subr.mxu0 0.0
    %462 = vmatpush1.msra.mxu0 0.0
    %463 = vmatprep.subr.mxu0 0.0
    %464 = vmatpush1.msra.mxu0 0.0
    %465 = vmatprep.subr.mxu0 0.0
    %466 = vmatpush1.msra.mxu0 0.0
    %467 = vmatprep.subr.mxu0 0.0
    %468 = vmatpush1.msra.mxu0 0.0
    %469 = vmatprep.subr.mxu0 0.0
    %470 = vmatpush1.msra.mxu0 0.0
    %471 = vmatprep.subr.mxu0 0.0
    %472 = vmatpush1.msra.mxu0 0.0
    %473 = vmatprep.subr.mxu0 0.0
    %474 = vmatpush1.msra.mxu0 0.0
    %475 = vmatprep.subr.mxu0 0.0
    %476 = vmatpush1.msra.mxu0 0.0
    %477 = vmatprep.subr.mxu0 0.0
    %478 = vmatpush1.msra.mxu0 0.0
    %479 = vmatprep.subr.mxu0 0.0
    %480 = vmatpush1.msra.mxu0 0.0
    %481 = vmatprep.subr.mxu0 0.0
    %482 = vmatpush1.msra.mxu0 0.0
    %483 = vmatprep.subr.mxu0 0.0
    %484 = vmatpush1.msra.mxu0 0.0
    %485 = vmatprep.subr.mxu0 0.0
    %486 = vmatpush1.msra.mxu0 0.0
    %487 = vmatprep.mubr.f32.mxu0 0.0
    %488 = vmatmul.mubr.f32.gmra.mrb[0].mxu0 %v421
    %v489 = vpop.f32.mrb[0].mxu0
    %v490 = vadd.f32 %v115, %v489
    %v491 = vpop.f32.mrb[0].mxu0
    %492 = vdwg.mxu0
    %493 = vmatprep.subr.mxu0 0.0
    %494 = vmatpush1.msra.mxu0 %v68
    %495 = vmatprep.subr.mxu0 0.0
    %496 = vmatpush1.msra.mxu0 %v69
    %497 = vmatprep.subr.mxu0 0.0
    %498 = vmatpush1.msra.mxu0 %v70
    %499 = vmatprep.subr.mxu0 0.0
    %500 = vmatpush1.msra.mxu0 %v71
    %501 = vmatprep.subr.mxu0 0.0
    %502 = vmatpush1.msra.mxu0 0.0
    %503 = vmatprep.subr.mxu0 0.0
    %504 = vmatpush1.msra.mxu0 0.0
    %505 = vmatprep.subr.mxu0 0.0
    %506 = vmatpush1.msra.mxu0 0.0
    %507 = vmatprep.subr.mxu0 0.0
    %508 = vmatpush1.msra.mxu0 0.0
    %509 = vmatprep.subr.mxu0 0.0
    %510 = vmatpush1.msra.mxu0 0.0
    %511 = vmatprep.subr.mxu0 0.0
    %512 = vmatpush1.msra.mxu0 0.0
    %513 = vmatprep.subr.mxu0 0.0
    %514 = vmatpush1.msra.mxu0 0.0
    %515 = vmatprep.subr.mxu0 0.0
    %516 = vmatpush1.msra.mxu0 0.0
    %517 = vmatprep.subr.mxu0 0.0
    %518 = vmatpush1.msra.mxu0 0.0
    %519 = vmatprep.subr.mxu0 0.0
    %520 = vmatpush1.msra.mxu0 0.0
    %521 = vmatprep.subr.mxu0 0.0
    %522 = vmatpush1.msra.mxu0 0.0
    %523 = vmatprep.subr.mxu0 0.0
    %524 = vmatpush1.msra.mxu0 0.0
    %525 = vmatprep.subr.mxu0 0.0
    %526 = vmatpush1.msra.mxu0 0.0
    %527 = vmatprep.subr.mxu0 0.0
    %528 = vmatpush1.msra.mxu0 0.0
    %529 = vmatprep.subr.mxu0 0.0
    %530 = vmatpush1.msra.mxu0 0.0
    %531 = vmatprep.subr.mxu0 0.0
    %532 = vmatpush1.msra.mxu0 0.0
    %533 = vmatprep.subr.mxu0 0.0
    %534 = vmatpush1.msra.mxu0 0.0
    %535 = vmatprep.subr.mxu0 0.0
    %536 = vmatpush1.msra.mxu0 0.0
    %537 = vmatprep.subr.mxu0 0.0
    %538 = vmatpush1.msra.mxu0 0.0
    %539 = vmatprep.subr.mxu0 0.0
    %540 = vmatpush1.msra.mxu0 0.0
    %541 = vmatprep.subr.mxu0 0.0
    %542 = vmatpush1.msra.mxu0 0.0
    %543 = vmatprep.subr.mxu0 0.0
    %544 = vmatpush1.msra.mxu0 0.0
    %545 = vmatprep.subr.mxu0 0.0
    %546 = vmatpush1.msra.mxu0 0.0
    %547 = vmatprep.subr.mxu0 0.0
    %548 = vmatpush1.msra.mxu0 0.0
    %549 = vmatprep.subr.mxu0 0.0
    %550 = vmatpush1.msra.mxu0 0.0
    %551 = vmatprep.subr.mxu0 0.0
    %552 = vmatpush1.msra.mxu0 0.0
    %553 = vmatprep.subr.mxu0 0.0
    %554 = vmatpush1.msra.mxu0 0.0
    %555 = vmatprep.subr.mxu0 0.0
    %556 = vmatpush1.msra.mxu0 0.0
    %557 = vmatprep.mubr.f32.mxu0 0.0
    %558 = vmatmul.mubr.f32.gmra.mrb[0].mxu0 %v421
    %v559 = vpop.f32.mrb[0].mxu0
    %v560 = vadd.f32 %v119, %v559
    %v561 = vpop.f32.mrb[0].mxu0
    %562 = vdwg.mxu0
    %563 = vmatprep.subr.mxu0 0.0
    %564 = vmatpush1.msra.mxu0 %v72
    %565 = vmatprep.subr.mxu0 0.0
    %566 = vmatpush1.msra.mxu0 %v73
    %567 = vmatprep.subr.mxu0 0.0
    %568 = vmatpush1.msra.mxu0 %v74
    %569 = vmatprep.subr.mxu0 0.0
    %570 = vmatpush1.msra.mxu0 %v75
    %571 = vmatprep.subr.mxu0 0.0
    %572 = vmatpush1.msra.mxu0 0.0
    %573 = vmatprep.subr.mxu0 0.0
    %574 = vmatpush1.msra.mxu0 0.0
    %575 = vmatprep.subr.mxu0 0.0
    %576 = vmatpush1.msra.mxu0 0.0
    %577 = vmatprep.subr.mxu0 0.0
    %578 = vmatpush1.msra.mxu0 0.0
    %579 = vmatprep.subr.mxu0 0.0
    %580 = vmatpush1.msra.mxu0 0.0
    %581 = vmatprep.subr.mxu0 0.0
    %582 = vmatpush1.msra.mxu0 0.0
    %583 = vmatprep.subr.mxu0 0.0
    %584 = vmatpush1.msra.mxu0 0.0
    %585 = vmatprep.subr.mxu0 0.0
    %586 = vmatpush1.msra.mxu0 0.0
    %587 = vmatprep.subr.mxu0 0.0
    %588 = vmatpush1.msra.mxu0 0.0
    %589 = vmatprep.subr.mxu0 0.0
    %590 = vmatpush1.msra.mxu0 0.0
    %591 = vmatprep.subr.mxu0 0.0
    %592 = vmatpush1.msra.mxu0 0.0
    %593 = vmatprep.subr.mxu0 0.0
    %594 = vmatpush1.msra.mxu0 0.0
    %595 = vmatprep.subr.mxu0 0.0
    %596 = vmatpush1.msra.mxu0 0.0
    %597 = vmatprep.subr.mxu0 0.0
    %598 = vmatpush1.msra.mxu0 0.0
    %599 = vmatprep.subr.mxu0 0.0
    %600 = vmatpush1.msra.mxu0 0.0
    %601 = vmatprep.subr.mxu0 0.0
    %602 = vmatpush1.msra.mxu0 0.0
    %603 = vmatprep.subr.mxu0 0.0
    %604 = vmatpush1.msra.mxu0 0.0
    %605 = vmatprep.subr.mxu0 0.0
    %606 = vmatpush1.msra.mxu0 0.0
    %607 = vmatprep.subr.mxu0 0.0
    %608 = vmatpush1.msra.mxu0 0.0
    %609 = vmatprep.subr.mxu0 0.0
    %610 = vmatpush1.msra.mxu0 0.0
    %611 = vmatprep.subr.mxu0 0.0
    %612 = vmatpush1.msra.mxu0 0.0
    %613 = vmatprep.subr.mxu0 0.0
    %614 = vmatpush1.msra.mxu0 0.0
    %615 = vmatprep.subr.mxu0 0.0
    %616 = vmatpush1.msra.mxu0 0.0
    %617 = vmatprep.subr.mxu0 0.0
    %618 = vmatpush1.msra.mxu0 0.0
    %619 = vmatprep.subr.mxu0 0.0
    %620 = vmatpush1.msra.mxu0 0.0
    %621 = vmatprep.subr.mxu0 0.0
    %622 = vmatpush1.msra.mxu0 0.0
    %623 = vmatprep.subr.mxu0 0.0
    %624 = vmatpush1.msra.mxu0 0.0
    %625 = vmatprep.subr.mxu0 0.0
    %626 = vmatpush1.msra.mxu0 0.0
    %627 = vmatprep.mubr.f32.mxu0 0.0
    %628 = vmatmul.mubr.f32.gmra.mrb[0].mxu0 %v421
    %v629 = vpop.f32.mrb[0].mxu0
    %v630 = vadd.f32 %v123, %v629
    %v631 = vpop.f32.mrb[0].mxu0
    %632 = vdwg.mxu0
    %633 = vmatprep.subr.mxu0 0.0
    %634 = vmatpush1.msra.mxu0 %v76
    %635 = vmatprep.subr.mxu0 0.0
    %636 = vmatpush1.msra.mxu0 %v77
    %637 = vmatprep.subr.mxu0 0.0
    %638 = vmatpush1.msra.mxu0 %v78
    %639 = vmatprep.subr.mxu0 0.0
    %640 = vmatpush1.msra.mxu0 %v79
    %641 = vmatprep.subr.mxu0 0.0
    %642 = vmatpush1.msra.mxu0 0.0
    %643 = vmatprep.subr.mxu0 0.0
    %644 = vmatpush1.msra.mxu0 0.0
    %645 = vmatprep.subr.mxu0 0.0
    %646 = vmatpush1.msra.mxu0 0.0
    %647 = vmatprep.subr.mxu0 0.0
    %648 = vmatpush1.msra.mxu0 0.0
    %649 = vmatprep.subr.mxu0 0.0
    %650 = vmatpush1.msra.mxu0 0.0
    %651 = vmatprep.subr.mxu0 0.0
    %652 = vmatpush1.msra.mxu0 0.0
    %653 = vmatprep.subr.mxu0 0.0
    %654 = vmatpush1.msra.mxu0 0.0
    %655 = vmatprep.subr.mxu0 0.0
    %656 = vmatpush1.msra.mxu0 0.0
    %657 = vmatprep.subr.mxu0 0.0
    %658 = vmatpush1.msra.mxu0 0.0
    %659 = vmatprep.subr.mxu0 0.0
    %660 = vmatpush1.msra.mxu0 0.0
    %661 = vmatprep.subr.mxu0 0.0
    %662 = vmatpush1.msra.mxu0 0.0
    %663 = vmatprep.subr.mxu0 0.0
    %664 = vmatpush1.msra.mxu0 0.0
    %665 = vmatprep.subr.mxu0 0.0
    %666 = vmatpush1.msra.mxu0 0.0
    %667 = vmatprep.subr.mxu0 0.0
    %668 = vmatpush1.msra.mxu0 0.0
    %669 = vmatprep.subr.mxu0 0.0
    %670 = vmatpush1.msra.mxu0 0.0
    %671 = vmatprep.subr.mxu0 0.0
    %672 = vmatpush1.msra.mxu0 0.0
    %673 = vmatprep.subr.mxu0 0.0
    %674 = vmatpush1.msra.mxu0 0.0
    %675 = vmatprep.subr.mxu0 0.0
    %676 = vmatpush1.msra.mxu0 0.0
    %677 = vmatprep.subr.mxu0 0.0
    %678 = vmatpush1.msra.mxu0 0.0
    %679 = vmatprep.subr.mxu0 0.0
    %680 = vmatpush1.msra.mxu0 0.0
    %681 = vmatprep.subr.mxu0 0.0
    %682 = vmatpush1.msra.mxu0 0.0
    %683 = vmatprep.subr.mxu0 0.0
    %684 = vmatpush1.msra.mxu0 0.0
    %685 = vmatprep.subr.mxu0 0.0
    %686 = vmatpush1.msra.mxu0 0.0
    %687 = vmatprep.subr.mxu0 0.0
    %688 = vmatpush1.msra.mxu0 0.0
    %689 = vmatprep.subr.mxu0 0.0
    %690 = vmatpush1.msra.mxu0 0.0
    %691 = vmatprep.subr.mxu0 0.0
    %692 = vmatpush1.msra.mxu0 0.0
    %693 = vmatprep.subr.mxu0 0.0
    %694 = vmatpush1.msra.mxu0 0.0
    %695 = vmatprep.subr.mxu0 0.0
    %696 = vmatpush1.msra.mxu0 0.0
    %697 = vmatprep.mubr.f32.mxu0 0.0
    %698 = vmatmul.mubr.f32.gmra.mrb[0].mxu0 %v421
    %v699 = vpop.f32.mrb[0].mxu0
    %v700 = vadd.f32 %v127, %v699
    %v701 = vpop.f32.mrb[0].mxu0
    %702 = vdwg.mxu0
    %s703 = scalar_lea.vmem %s3, 256
    %v704 = vld [vmem:[%s703] sm:$0xff]
    %v705 = vld [vmem:[%s703 + $0x8] sm:$0xff]
    %v706 = vld [vmem:[%s703 + $0x10] sm:$0xff]
    %v707 = vld [vmem:[%s703 + $0x18] sm:$0xff]
    %v708 = vld [vmem:[%s703 + $0x20] sm:$0xff]
    %v709 = vld [vmem:[%s703 + $0x28] sm:$0xff]
    %v710 = vld [vmem:[%s703 + $0x30] sm:$0xff]
    %v711 = vld [vmem:[%s703 + $0x38] sm:$0xff]
    %v712 = vld [vmem:[%s703 + $0x40] sm:$0xff]
    %v713 = vld [vmem:[%s703 + $0x48] sm:$0xff]
    %v714 = vld [vmem:[%s703 + $0x50] sm:$0xff]
    %v715 = vld [vmem:[%s703 + $0x58] sm:$0xff]
    %v716 = vld [vmem:[%s703 + $0x60] sm:$0xff]
    %v717 = vld [vmem:[%s703 + $0x68] sm:$0xff]
    %v718 = vld [vmem:[%s703 + $0x70] sm:$0xff]
    %v719 = vld [vmem:[%s703 + $0x78] sm:$0xff]
    %v720 = vld [vmem:[%s703 + $0x80] sm:$0xff]
    %v721 = vld [vmem:[%s703 + $0x88] sm:$0xff]
    %v722 = vld [vmem:[%s703 + $0x90] sm:$0xff]
    %v723 = vld [vmem:[%s703 + $0x98] sm:$0xff]
    %v724 = vld [vmem:[%s703 + $0xa0] sm:$0xff]
    %v725 = vld [vmem:[%s703 + $0xa8] sm:$0xff]
    %v726 = vld [vmem:[%s703 + $0xb0] sm:$0xff]
    %v727 = vld [vmem:[%s703 + $0xb8] sm:$0xff]
    %v728 = vld [vmem:[%s703 + $0xc0] sm:$0xff]
    %v729 = vld [vmem:[%s703 + $0xc8] sm:$0xff]
    %v730 = vld [vmem:[%s703 + $0xd0] sm:$0xff]
    %v731 = vld [vmem:[%s703 + $0xd8] sm:$0xff]
    %v732 = vld [vmem:[%s703 + $0xe0] sm:$0xff]
    %v733 = vld [vmem:[%s703 + $0xe8] sm:$0xff]
    %v734 = vld [vmem:[%s703 + $0xf0] sm:$0xff]
    %v735 = vld [vmem:[%s703 + $0xf8] sm:$0xff]
    %s736 = scalar_lea.vmem %s4, 8
    %v737 = vld [vmem:[%s736] sm:$0x1]
    %v738 = vld [vmem:[%s736 + $0x1] sm:$0x1]
    %v739 = vld [vmem:[%s736 + $0x2] sm:$0x1]
    %v740 = vld [vmem:[%s736 + $0x3] sm:$0x1]
    %v741 = vld [vmem:[%s736 + $0x4] sm:$0x1]
    %v742 = vld [vmem:[%s736 + $0x5] sm:$0x1]
    %v743 = vld [vmem:[%s736 + $0x6] sm:$0x1]
    %v744 = vld [vmem:[%s736 + $0x7] sm:$0x1]
    %v753 = vlaneseq
    %v754 = vshrl.u32 %v753, 7
    %v755 = vsub.s32 0, %v754
    %v756 = vrot.slane %v737, %v755
    %v757 = vlaneseq
    %v758 = vshrl.u32 %v757, 7
    %v759 = vsub.s32 0, %v758
    %v760 = vrot.slane %v738, %v759
    %v761 = vlaneseq
    %v762 = vshrl.u32 %v761, 7
    %v763 = vsub.s32 0, %v762
    %v764 = vrot.slane %v739, %v763
    %v765 = vlaneseq
    %v766 = vshrl.u32 %v765, 7
    %v767 = vsub.s32 0, %v766
    %v768 = vrot.slane %v740, %v767
    %v769 = vlaneseq
    %v770 = vshrl.u32 %v769, 7
    %v771 = vsub.s32 0, %v770
    %v772 = vrot.slane %v741, %v771
    %v773 = vlaneseq
    %v774 = vshrl.u32 %v773, 7
    %v775 = vsub.s32 0, %v774
    %v776 = vrot.slane %v742, %v775
    %v777 = vlaneseq
    %v778 = vshrl.u32 %v777, 7
    %v779 = vsub.s32 0, %v778
    %v780 = vrot.slane %v743, %v779
    %v781 = vlaneseq
    %v782 = vshrl.u32 %v781, 7
    %v783 = vsub.s32 0, %v782
    %v784 = vrot.slane %v744, %v783
    %v794 = vsel %vm136, %v46, 0
    %796 = vmatprep.subr.mxu0 0.0
    %797 = vmatpush1.msra.mxu0 %v704
    %798 = vmatprep.subr.mxu0 0.0
    %799 = vmatpush1.msra.mxu0 %v705
    %800 = vmatprep.subr.mxu0 0.0
    %801 = vmatpush1.msra.mxu0 %v706
    %802 = vmatprep.subr.mxu0 0.0
    %803 = vmatpush1.msra.mxu0 %v707
    %804 = vmatprep.subr.mxu0 0.0
    %805 = vmatpush1.msra.mxu0 0.0
    %806 = vmatprep.subr.mxu0 0.0
    %807 = vmatpush1.msra.mxu0 0.0
    %808 = vmatprep.subr.mxu0 0.0
    %809 = vmatpush1.msra.mxu0 0.0
    %810 = vmatprep.subr.mxu0 0.0
    %811 = vmatpush1.msra.mxu0 0.0
    %812 = vmatprep.subr.mxu0 0.0
    %813 = vmatpush1.msra.mxu0 0.0
    %814 = vmatprep.subr.mxu0 0.0
    %815 = vmatpush1.msra.mxu0 0.0
    %816 = vmatprep.subr.mxu0 0.0
    %817 = vmatpush1.msra.mxu0 0.0
    %818 = vmatprep.subr.mxu0 0.0
    %819 = vmatpush1.msra.mxu0 0.0
    %820 = vmatprep.subr.mxu0 0.0
    %821 = vmatpush1.msra.mxu0 0.0
    %822 = vmatprep.subr.mxu0 0.0
    %823 = vmatpush1.msra.mxu0 0.0
    %824 = vmatprep.subr.mxu0 0.0
    %825 = vmatpush1.msra.mxu0 0.0
    %826 = vmatprep.subr.mxu0 0.0
    %827 = vmatpush1.msra.mxu0 0.0
    %828 = vmatprep.subr.mxu0 0.0
    %829 = vmatpush1.msra.mxu0 0.0
    %830 = vmatprep.subr.mxu0 0.0
    %831 = vmatpush1.msra.mxu0 0.0
    %832 = vmatprep.subr.mxu0 0.0
    %833 = vmatpush1.msra.mxu0 0.0
    %834 = vmatprep.subr.mxu0 0.0
    %835 = vmatpush1.msra.mxu0 0.0
    %836 = vmatprep.subr.mxu0 0.0
    %837 = vmatpush1.msra.mxu0 0.0
    %838 = vmatprep.subr.mxu0 0.0
    %839 = vmatpush1.msra.mxu0 0.0
    %840 = vmatprep.subr.mxu0 0.0
    %841 = vmatpush1.msra.mxu0 0.0
    %842 = vmatprep.subr.mxu0 0.0
    %843 = vmatpush1.msra.mxu0 0.0
    %844 = vmatprep.subr.mxu0 0.0
    %845 = vmatpush1.msra.mxu0 0.0
    %846 = vmatprep.subr.mxu0 0.0
    %847 = vmatpush1.msra.mxu0 0.0
    %848 = vmatprep.subr.mxu0 0.0
    %849 = vmatpush1.msra.mxu0 0.0
    %850 = vmatprep.subr.mxu0 0.0
    %851 = vmatpush1.msra.mxu0 0.0
    %852 = vmatprep.subr.mxu0 0.0
    %853 = vmatpush1.msra.mxu0 0.0
    %854 = vmatprep.subr.mxu0 0.0
    %855 = vmatpush1.msra.mxu0 0.0
    %856 = vmatprep.subr.mxu0 0.0
    %857 = vmatpush1.msra.mxu0 0.0
    %858 = vmatprep.subr.mxu0 0.0
    %859 = vmatpush1.msra.mxu0 0.0
    %860 = vmatprep.mubr.f32.mxu0 0.0
    %861 = vmatmul.mubr.f32.gmra.mrb[0].mxu0 %v794
    %v862 = vpop.f32.mrb[0].mxu0
    %v863 = vadd.f32 %v756, %v862
    %v864 = vpop.f32.mrb[0].mxu0
    %865 = vdwg.mxu0
    %866 = vmatprep.subr.mxu0 0.0
    %867 = vmatpush1.msra.mxu0 %v708
    %868 = vmatprep.subr.mxu0 0.0
    %869 = vmatpush1.msra.mxu0 %v709
    %870 = vmatprep.subr.mxu0 0.0
    %871 = vmatpush1.msra.mxu0 %v710
    %872 = vmatprep.subr.mxu0 0.0
    %873 = vmatpush1.msra.mxu0 %v711
    %874 = vmatprep.subr.mxu0 0.0
    %875 = vmatpush1.msra.mxu0 0.0
    %876 = vmatprep.subr.mxu0 0.0
    %877 = vmatpush1.msra.mxu0 0.0
    %878 = vmatprep.subr.mxu0 0.0
    %879 = vmatpush1.msra.mxu0 0.0
    %880 = vmatprep.subr.mxu0 0.0
    %881 = vmatpush1.msra.mxu0 0.0
    %882 = vmatprep.subr.mxu0 0.0
    %883 = vmatpush1.msra.mxu0 0.0
    %884 = vmatprep.subr.mxu0 0.0
    %885 = vmatpush1.msra.mxu0 0.0
    %886 = vmatprep.subr.mxu0 0.0
    %887 = vmatpush1.msra.mxu0 0.0
    %888 = vmatprep.subr.mxu0 0.0
    %889 = vmatpush1.msra.mxu0 0.0
    %890 = vmatprep.subr.mxu0 0.0
    %891 = vmatpush1.msra.mxu0 0.0
    %892 = vmatprep.subr.mxu0 0.0
    %893 = vmatpush1.msra.mxu0 0.0
    %894 = vmatprep.subr.mxu0 0.0
    %895 = vmatpush1.msra.mxu0 0.0
    %896 = vmatprep.subr.mxu0 0.0
    %897 = vmatpush1.msra.mxu0 0.0
    %898 = vmatprep.subr.mxu0 0.0
    %899 = vmatpush1.msra.mxu0 0.0
    %900 = vmatprep.subr.mxu0 0.0
    %901 = vmatpush1.msra.mxu0 0.0
    %902 = vmatprep.subr.mxu0 0.0
    %903 = vmatpush1.msra.mxu0 0.0
    %904 = vmatprep.subr.mxu0 0.0
    %905 = vmatpush1.msra.mxu0 0.0
    %906 = vmatprep.subr.mxu0 0.0
    %907 = vmatpush1.msra.mxu0 0.0
    %908 = vmatprep.subr.mxu0 0.0
    %909 = vmatpush1.msra.mxu0 0.0
    %910 = vmatprep.subr.mxu0 0.0
    %911 = vmatpush1.msra.mxu0 0.0
    %912 = vmatprep.subr.mxu0 0.0
    %913 = vmatpush1.msra.mxu0 0.0
    %914 = vmatprep.subr.mxu0 0.0
    %915 = vmatpush1.msra.mxu0 0.0
    %916 = vmatprep.subr.mxu0 0.0
    %917 = vmatpush1.msra.mxu0 0.0
    %918 = vmatprep.subr.mxu0 0.0
    %919 = vmatpush1.msra.mxu0 0.0
    %920 = vmatprep.subr.mxu0 0.0
    %921 = vmatpush1.msra.mxu0 0.0
    %922 = vmatprep.subr.mxu0 0.0
    %923 = vmatpush1.msra.mxu0 0.0
    %924 = vmatprep.subr.mxu0 0.0
    %925 = vmatpush1.msra.mxu0 0.0
    %926 = vmatprep.subr.mxu0 0.0
    %927 = vmatpush1.msra.mxu0 0.0
    %928 = vmatprep.subr.mxu0 0.0
    %929 = vmatpush1.msra.mxu0 0.0
    %930 = vmatprep.mubr.f32.mxu0 0.0
    %931 = vmatmul.mubr.f32.gmra.mrb[0].mxu0 %v794
    %v932 = vpop.f32.mrb[0].mxu0
    %v933 = vadd.f32 %v760, %v932
    %v934 = vpop.f32.mrb[0].mxu0
    %935 = vdwg.mxu0
    %936 = vmatprep.subr.mxu0 0.0
    %937 = vmatpush1.msra.mxu0 %v712
    %938 = vmatprep.subr.mxu0 0.0
    %939 = vmatpush1.msra.mxu0 %v713
    %940 = vmatprep.subr.mxu0 0.0
    %941 = vmatpush1.msra.mxu0 %v714
    %942 = vmatprep.subr.mxu0 0.0
    %943 = vmatpush1.msra.mxu0 %v715
    %944 = vmatprep.subr.mxu0 0.0
    %945 = vmatpush1.msra.mxu0 0.0
    %946 = vmatprep.subr.mxu0 0.0
    %947 = vmatpush1.msra.mxu0 0.0
    %948 = vmatprep.subr.mxu0 0.0
    %949 = vmatpush1.msra.mxu0 0.0
    %950 = vmatprep.subr.mxu0 0.0
    %951 = vmatpush1.msra.mxu0 0.0
    %952 = vmatprep.subr.mxu0 0.0
    %953 = vmatpush1.msra.mxu0 0.0
    %954 = vmatprep.subr.mxu0 0.0
    %955 = vmatpush1.msra.mxu0 0.0
    %956 = vmatprep.subr.mxu0 0.0
    %957 = vmatpush1.msra.mxu0 0.0
    %958 = vmatprep.subr.mxu0 0.0
    %959 = vmatpush1.msra.mxu0 0.0
    %960 = vmatprep.subr.mxu0 0.0
    %961 = vmatpush1.msra.mxu0 0.0
    %962 = vmatprep.subr.mxu0 0.0
    %963 = vmatpush1.msra.mxu0 0.0
    %964 = vmatprep.subr.mxu0 0.0
    %965 = vmatpush1.msra.mxu0 0.0
    %966 = vmatprep.subr.mxu0 0.0
    %967 = vmatpush1.msra.mxu0 0.0
    %968 = vmatprep.subr.mxu0 0.0
    %969 = vmatpush1.msra.mxu0 0.0
    %970 = vmatprep.subr.mxu0 0.0
    %971 = vmatpush1.msra.mxu0 0.0
    %972 = vmatprep.subr.mxu0 0.0
    %973 = vmatpush1.msra.mxu0 0.0
    %974 = vmatprep.subr.mxu0 0.0
    %975 = vmatpush1.msra.mxu0 0.0
    %976 = vmatprep.subr.mxu0 0.0
    %977 = vmatpush1.msra.mxu0 0.0
    %978 = vmatprep.subr.mxu0 0.0
    %979 = vmatpush1.msra.mxu0 0.0
    %980 = vmatprep.subr.mxu0 0.0
    %981 = vmatpush1.msra.mxu0 0.0
    %982 = vmatprep.subr.mxu0 0.0
    %983 = vmatpush1.msra.mxu0 0.0
    %984 = vmatprep.subr.mxu0 0.0
    %985 = vmatpush1.msra.mxu0 0.0
    %986 = vmatprep.subr.mxu0 0.0
    %987 = vmatpush1.msra.mxu0 0.0
    %988 = vmatprep.subr.mxu0 0.0
    %989 = vmatpush1.msra.mxu0 0.0
    %990 = vmatprep.subr.mxu0 0.0
    %991 = vmatpush1.msra.mxu0 0.0
    %992 = vmatprep.subr.mxu0 0.0
    %993 = vmatpush1.msra.mxu0 0.0
    %994 = vmatprep.subr.mxu0 0.0
    %995 = vmatpush1.msra.mxu0 0.0
    %996 = vmatprep.subr.mxu0 0.0
    %997 = vmatpush1.msra.mxu0 0.0
    %998 = vmatprep.subr.mxu0 0.0
    %999 = vmatpush1.msra.mxu0 0.0
    %1000 = vmatprep.mubr.f32.mxu0 0.0
    %1001 = vmatmul.mubr.f32.gmra.mrb[0].mxu0 %v794
    %v1002 = vpop.f32.mrb[0].mxu0
    %v1003 = vadd.f32 %v764, %v1002
    %v1004 = vpop.f32.mrb[0].mxu0
    %1005 = vdwg.mxu0
    %1006 = vmatprep.subr.mxu0 0.0
    %1007 = vmatpush1.msra.mxu0 %v716
    %1008 = vmatprep.subr.mxu0 0.0
    %1009 = vmatpush1.msra.mxu0 %v717
    %1010 = vmatprep.subr.mxu0 0.0
    %1011 = vmatpush1.msra.mxu0 %v718
    %1012 = vmatprep.subr.mxu0 0.0
    %1013 = vmatpush1.msra.mxu0 %v719
    %1014 = vmatprep.subr.mxu0 0.0
    %1015 = vmatpush1.msra.mxu0 0.0
    %1016 = vmatprep.subr.mxu0 0.0
    %1017 = vmatpush1.msra.mxu0 0.0
    %1018 = vmatprep.subr.mxu0 0.0
    %1019 = vmatpush1.msra.mxu0 0.0
    %1020 = vmatprep.subr.mxu0 0.0
    %1021 = vmatpush1.msra.mxu0 0.0
    %1022 = vmatprep.subr.mxu0 0.0
    %1023 = vmatpush1.msra.mxu0 0.0
    %1024 = vmatprep.subr.mxu0 0.0
    %1025 = vmatpush1.msra.mxu0 0.0
    %1026 = vmatprep.subr.mxu0 0.0
    %1027 = vmatpush1.msra.mxu0 0.0
    %1028 = vmatprep.subr.mxu0 0.0
    %1029 = vmatpush1.msra.mxu0 0.0
    %1030 = vmatprep.subr.mxu0 0.0
    %1031 = vmatpush1.msra.mxu0 0.0
    %1032 = vmatprep.subr.mxu0 0.0
    %1033 = vmatpush1.msra.mxu0 0.0
    %1034 = vmatprep.subr.mxu0 0.0
    %1035 = vmatpush1.msra.mxu0 0.0
    %1036 = vmatprep.subr.mxu0 0.0
    %1037 = vmatpush1.msra.mxu0 0.0
    %1038 = vmatprep.subr.mxu0 0.0
    %1039 = vmatpush1.msra.mxu0 0.0
    %1040 = vmatprep.subr.mxu0 0.0
    %1041 = vmatpush1.msra.mxu0 0.0
    %1042 = vmatprep.subr.mxu0 0.0
    %1043 = vmatpush1.msra.mxu0 0.0
    %1044 = vmatprep.subr.mxu0 0.0
    %1045 = vmatpush1.msra.mxu0 0.0
    %1046 = vmatprep.subr.mxu0 0.0
    %1047 = vmatpush1.msra.mxu0 0.0
    %1048 = vmatprep.subr.mxu0 0.0
    %1049 = vmatpush1.msra.mxu0 0.0
    %1050 = vmatprep.subr.mxu0 0.0
    %1051 = vmatpush1.msra.mxu0 0.0
    %1052 = vmatprep.subr.mxu0 0.0
    %1053 = vmatpush1.msra.mxu0 0.0
    %1054 = vmatprep.subr.mxu0 0.0
    %1055 = vmatpush1.msra.mxu0 0.0
    %1056 = vmatprep.subr.mxu0 0.0
    %1057 = vmatpush1.msra.mxu0 0.0
    %1058 = vmatprep.subr.mxu0 0.0
    %1059 = vmatpush1.msra.mxu0 0.0
    %1060 = vmatprep.subr.mxu0 0.0
    %1061 = vmatpush1.msra.mxu0 0.0
    %1062 = vmatprep.subr.mxu0 0.0
    %1063 = vmatpush1.msra.mxu0 0.0
    %1064 = vmatprep.subr.mxu0 0.0
    %1065 = vmatpush1.msra.mxu0 0.0
    %1066 = vmatprep.subr.mxu0 0.0
    %1067 = vmatpush1.msra.mxu0 0.0
    %1068 = vmatprep.subr.mxu0 0.0
    %1069 = vmatpush1.msra.mxu0 0.0
    %1070 = vmatprep.mubr.f32.mxu0 0.0
    %1071 = vmatmul.mubr.f32.gmra.mrb[0].mxu0 %v794
    %v1072 = vpop.f32.mrb[0].mxu0
    %v1073 = vadd.f32 %v768, %v1072
    %v1074 = vpop.f32.mrb[0].mxu0
    %1075 = vdwg.mxu0
    %v1077 = vsel %vm136, %v47, 0
    %1079 = vmatprep.subr.mxu0 0.0
    %1080 = vmatpush1.msra.mxu0 %v720
    %1081 = vmatprep.subr.mxu0 0.0
    %1082 = vmatpush1.msra.mxu0 %v721
    %1083 = vmatprep.subr.mxu0 0.0
    %1084 = vmatpush1.msra.mxu0 %v722
    %1085 = vmatprep.subr.mxu0 0.0
    %1086 = vmatpush1.msra.mxu0 %v723
    %1087 = vmatprep.subr.mxu0 0.0
    %1088 = vmatpush1.msra.mxu0 0.0
    %1089 = vmatprep.subr.mxu0 0.0
    %1090 = vmatpush1.msra.mxu0 0.0
    %1091 = vmatprep.subr.mxu0 0.0
    %1092 = vmatpush1.msra.mxu0 0.0
    %1093 = vmatprep.subr.mxu0 0.0
    %1094 = vmatpush1.msra.mxu0 0.0
    %1095 = vmatprep.subr.mxu0 0.0
    %1096 = vmatpush1.msra.mxu0 0.0
    %1097 = vmatprep.subr.mxu0 0.0
    %1098 = vmatpush1.msra.mxu0 0.0
    %1099 = vmatprep.subr.mxu0 0.0
    %1100 = vmatpush1.msra.mxu0 0.0
    %1101 = vmatprep.subr.mxu0 0.0
    %1102 = vmatpush1.msra.mxu0 0.0
    %1103 = vmatprep.subr.mxu0 0.0
    %1104 = vmatpush1.msra.mxu0 0.0
    %1105 = vmatprep.subr.mxu0 0.0
    %1106 = vmatpush1.msra.mxu0 0.0
    %1107 = vmatprep.subr.mxu0 0.0
    %1108 = vmatpush1.msra.mxu0 0.0
    %1109 = vmatprep.subr.mxu0 0.0
    %1110 = vmatpush1.msra.mxu0 0.0
    %1111 = vmatprep.subr.mxu0 0.0
    %1112 = vmatpush1.msra.mxu0 0.0
    %1113 = vmatprep.subr.mxu0 0.0
    %1114 = vmatpush1.msra.mxu0 0.0
    %1115 = vmatprep.subr.mxu0 0.0
    %1116 = vmatpush1.msra.mxu0 0.0
    %1117 = vmatprep.subr.mxu0 0.0
    %1118 = vmatpush1.msra.mxu0 0.0
    %1119 = vmatprep.subr.mxu0 0.0
    %1120 = vmatpush1.msra.mxu0 0.0
    %1121 = vmatprep.subr.mxu0 0.0
    %1122 = vmatpush1.msra.mxu0 0.0
    %1123 = vmatprep.subr.mxu0 0.0
    %1124 = vmatpush1.msra.mxu0 0.0
    %1125 = vmatprep.subr.mxu0 0.0
    %1126 = vmatpush1.msra.mxu0 0.0
    %1127 = vmatprep.subr.mxu0 0.0
    %1128 = vmatpush1.msra.mxu0 0.0
    %1129 = vmatprep.subr.mxu0 0.0
    %1130 = vmatpush1.msra.mxu0 0.0
    %1131 = vmatprep.subr.mxu0 0.0
    %1132 = vmatpush1.msra.mxu0 0.0
    %1133 = vmatprep.subr.mxu0 0.0
    %1134 = vmatpush1.msra.mxu0 0.0
    %1135 = vmatprep.subr.mxu0 0.0
    %1136 = vmatpush1.msra.mxu0 0.0
    %1137 = vmatprep.subr.mxu0 0.0
    %1138 = vmatpush1.msra.mxu0 0.0
    %1139 = vmatprep.subr.mxu0 0.0
    %1140 = vmatpush1.msra.mxu0 0.0
    %1141 = vmatprep.subr.mxu0 0.0
    %1142 = vmatpush1.msra.mxu0 0.0
    %1143 = vmatprep.mubr.f32.mxu0 0.0
    %1144 = vmatmul.mubr.f32.gmra.mrb[0].mxu0 %v1077
    %v1145 = vpop.f32.mrb[0].mxu0
    %v1146 = vadd.f32 %v772, %v1145
    %v1147 = vpop.f32.mrb[0].mxu0
    %1148 = vdwg.mxu0
    %1149 = vmatprep.subr.mxu0 0.0
    %1150 = vmatpush1.msra.mxu0 %v724
    %1151 = vmatprep.subr.mxu0 0.0
    %1152 = vmatpush1.msra.mxu0 %v725
    %1153 = vmatprep.subr.mxu0 0.0
    %1154 = vmatpush1.msra.mxu0 %v726
    %1155 = vmatprep.subr.mxu0 0.0
    %1156 = vmatpush1.msra.mxu0 %v727
    %1157 = vmatprep.subr.mxu0 0.0
    %1158 = vmatpush1.msra.mxu0 0.0
    %1159 = vmatprep.subr.mxu0 0.0
    %1160 = vmatpush1.msra.mxu0 0.0
    %1161 = vmatprep.subr.mxu0 0.0
    %1162 = vmatpush1.msra.mxu0 0.0
    %1163 = vmatprep.subr.mxu0 0.0
    %1164 = vmatpush1.msra.mxu0 0.0
    %1165 = vmatprep.subr.mxu0 0.0
    %1166 = vmatpush1.msra.mxu0 0.0
    %1167 = vmatprep.subr.mxu0 0.0
    %1168 = vmatpush1.msra.mxu0 0.0
    %1169 = vmatprep.subr.mxu0 0.0
    %1170 = vmatpush1.msra.mxu0 0.0
    %1171 = vmatprep.subr.mxu0 0.0
    %1172 = vmatpush1.msra.mxu0 0.0
    %1173 = vmatprep.subr.mxu0 0.0
    %1174 = vmatpush1.msra.mxu0 0.0
    %1175 = vmatprep.subr.mxu0 0.0
    %1176 = vmatpush1.msra.mxu0 0.0
    %1177 = vmatprep.subr.mxu0 0.0
    %1178 = vmatpush1.msra.mxu0 0.0
    %1179 = vmatprep.subr.mxu0 0.0
    %1180 = vmatpush1.msra.mxu0 0.0
    %1181 = vmatprep.subr.mxu0 0.0
    %1182 = vmatpush1.msra.mxu0 0.0
    %1183 = vmatprep.subr.mxu0 0.0
    %1184 = vmatpush1.msra.mxu0 0.0
    %1185 = vmatprep.subr.mxu0 0.0
    %1186 = vmatpush1.msra.mxu0 0.0
    %1187 = vmatprep.subr.mxu0 0.0
    %1188 = vmatpush1.msra.mxu0 0.0
    %1189 = vmatprep.subr.mxu0 0.0
    %1190 = vmatpush1.msra.mxu0 0.0
    %1191 = vmatprep.subr.mxu0 0.0
    %1192 = vmatpush1.msra.mxu0 0.0
    %1193 = vmatprep.subr.mxu0 0.0
    %1194 = vmatpush1.msra.mxu0 0.0
    %1195 = vmatprep.subr.mxu0 0.0
    %1196 = vmatpush1.msra.mxu0 0.0
    %1197 = vmatprep.subr.mxu0 0.0
    %1198 = vmatpush1.msra.mxu0 0.0
    %1199 = vmatprep.subr.mxu0 0.0
    %1200 = vmatpush1.msra.mxu0 0.0
    %1201 = vmatprep.subr.mxu0 0.0
    %1202 = vmatpush1.msra.mxu0 0.0
    %1203 = vmatprep.subr.mxu0 0.0
    %1204 = vmatpush1.msra.mxu0 0.0
    %1205 = vmatprep.subr.mxu0 0.0
    %1206 = vmatpush1.msra.mxu0 0.0
    %1207 = vmatprep.subr.mxu0 0.0
    %1208 = vmatpush1.msra.mxu0 0.0
    %1209 = vmatprep.subr.mxu0 0.0
    %1210 = vmatpush1.msra.mxu0 0.0
    %1211 = vmatprep.subr.mxu0 0.0
    %1212 = vmatpush1.msra.mxu0 0.0
    %1213 = vmatprep.mubr.f32.mxu0 0.0
    %1214 = vmatmul.mubr.f32.gmra.mrb[0].mxu0 %v1077
    %v1215 = vpop.f32.mrb[0].mxu0
    %v1216 = vadd.f32 %v776, %v1215
    %v1217 = vpop.f32.mrb[0].mxu0
    %1218 = vdwg.mxu0
    %1219 = vmatprep.subr.mxu0 0.0
    %1220 = vmatpush1.msra.mxu0 %v728
    %1221 = vmatprep.subr.mxu0 0.0
    %1222 = vmatpush1.msra.mxu0 %v729
    %1223 = vmatprep.subr.mxu0 0.0
    %1224 = vmatpush1.msra.mxu0 %v730
    %1225 = vmatprep.subr.mxu0 0.0
    %1226 = vmatpush1.msra.mxu0 %v731
    %1227 = vmatprep.subr.mxu0 0.0
    %1228 = vmatpush1.msra.mxu0 0.0
    %1229 = vmatprep.subr.mxu0 0.0
    %1230 = vmatpush1.msra.mxu0 0.0
    %1231 = vmatprep.subr.mxu0 0.0
    %1232 = vmatpush1.msra.mxu0 0.0
    %1233 = vmatprep.subr.mxu0 0.0
    %1234 = vmatpush1.msra.mxu0 0.0
    %1235 = vmatprep.subr.mxu0 0.0
    %1236 = vmatpush1.msra.mxu0 0.0
    %1237 = vmatprep.subr.mxu0 0.0
    %1238 = vmatpush1.msra.mxu0 0.0
    %1239 = vmatprep.subr.mxu0 0.0
    %1240 = vmatpush1.msra.mxu0 0.0
    %1241 = vmatprep.subr.mxu0 0.0
    %1242 = vmatpush1.msra.mxu0 0.0
    %1243 = vmatprep.subr.mxu0 0.0
    %1244 = vmatpush1.msra.mxu0 0.0
    %1245 = vmatprep.subr.mxu0 0.0
    %1246 = vmatpush1.msra.mxu0 0.0
    %1247 = vmatprep.subr.mxu0 0.0
    %1248 = vmatpush1.msra.mxu0 0.0
    %1249 = vmatprep.subr.mxu0 0.0
    %1250 = vmatpush1.msra.mxu0 0.0
    %1251 = vmatprep.subr.mxu0 0.0
    %1252 = vmatpush1.msra.mxu0 0.0
    %1253 = vmatprep.subr.mxu0 0.0
    %1254 = vmatpush1.msra.mxu0 0.0
    %1255 = vmatprep.subr.mxu0 0.0
    %1256 = vmatpush1.msra.mxu0 0.0
    %1257 = vmatprep.subr.mxu0 0.0
    %1258 = vmatpush1.msra.mxu0 0.0
    %1259 = vmatprep.subr.mxu0 0.0
    %1260 = vmatpush1.msra.mxu0 0.0
    %1261 = vmatprep.subr.mxu0 0.0
    %1262 = vmatpush1.msra.mxu0 0.0
    %1263 = vmatprep.subr.mxu0 0.0
    %1264 = vmatpush1.msra.mxu0 0.0
    %1265 = vmatprep.subr.mxu0 0.0
    %1266 = vmatpush1.msra.mxu0 0.0
    %1267 = vmatprep.subr.mxu0 0.0
    %1268 = vmatpush1.msra.mxu0 0.0
    %1269 = vmatprep.subr.mxu0 0.0
    %1270 = vmatpush1.msra.mxu0 0.0
    %1271 = vmatprep.subr.mxu0 0.0
    %1272 = vmatpush1.msra.mxu0 0.0
    %1273 = vmatprep.subr.mxu0 0.0
    %1274 = vmatpush1.msra.mxu0 0.0
    %1275 = vmatprep.subr.mxu0 0.0
    %1276 = vmatpush1.msra.mxu0 0.0
    %1277 = vmatprep.subr.mxu0 0.0
    %1278 = vmatpush1.msra.mxu0 0.0
    %1279 = vmatprep.subr.mxu0 0.0
    %1280 = vmatpush1.msra.mxu0 0.0
    %1281 = vmatprep.subr.mxu0 0.0
    %1282 = vmatpush1.msra.mxu0 0.0
    %1283 = vmatprep.mubr.f32.mxu0 0.0
    %1284 = vmatmul.mubr.f32.gmra.mrb[0].mxu0 %v1077
    %v1285 = vpop.f32.mrb[0].mxu0
    %v1286 = vadd.f32 %v780, %v1285
    %v1287 = vpop.f32.mrb[0].mxu0
    %1288 = vdwg.mxu0
    %1289 = vmatprep.subr.mxu0 0.0
    %1290 = vmatpush1.msra.mxu0 %v732
    %1291 = vmatprep.subr.mxu0 0.0
    %1292 = vmatpush1.msra.mxu0 %v733
    %1293 = vmatprep.subr.mxu0 0.0
    %1294 = vmatpush1.msra.mxu0 %v734
    %1295 = vmatprep.subr.mxu0 0.0
    %1296 = vmatpush1.msra.mxu0 %v735
    %1297 = vmatprep.subr.mxu0 0.0
    %1298 = vmatpush1.msra.mxu0 0.0
    %1299 = vmatprep.subr.mxu0 0.0
    %1300 = vmatpush1.msra.mxu0 0.0
    %1301 = vmatprep.subr.mxu0 0.0
    %1302 = vmatpush1.msra.mxu0 0.0
    %1303 = vmatprep.subr.mxu0 0.0
    %1304 = vmatpush1.msra.mxu0 0.0
    %1305 = vmatprep.subr.mxu0 0.0
    %1306 = vmatpush1.msra.mxu0 0.0
    %1307 = vmatprep.subr.mxu0 0.0
    %1308 = vmatpush1.msra.mxu0 0.0
    %1309 = vmatprep.subr.mxu0 0.0
    %1310 = vmatpush1.msra.mxu0 0.0
    %1311 = vmatprep.subr.mxu0 0.0
    %1312 = vmatpush1.msra.mxu0 0.0
    %1313 = vmatprep.subr.mxu0 0.0
    %1314 = vmatpush1.msra.mxu0 0.0
    %1315 = vmatprep.subr.mxu0 0.0
    %1316 = vmatpush1.msra.mxu0 0.0
    %1317 = vmatprep.subr.mxu0 0.0
    %1318 = vmatpush1.msra.mxu0 0.0
    %1319 = vmatprep.subr.mxu0 0.0
    %1320 = vmatpush1.msra.mxu0 0.0
    %1321 = vmatprep.subr.mxu0 0.0
    %1322 = vmatpush1.msra.mxu0 0.0
    %1323 = vmatprep.subr.mxu0 0.0
    %1324 = vmatpush1.msra.mxu0 0.0
    %1325 = vmatprep.subr.mxu0 0.0
    %1326 = vmatpush1.msra.mxu0 0.0
    %1327 = vmatprep.subr.mxu0 0.0
    %1328 = vmatpush1.msra.mxu0 0.0
    %1329 = vmatprep.subr.mxu0 0.0
    %1330 = vmatpush1.msra.mxu0 0.0
    %1331 = vmatprep.subr.mxu0 0.0
    %1332 = vmatpush1.msra.mxu0 0.0
    %1333 = vmatprep.subr.mxu0 0.0
    %1334 = vmatpush1.msra.mxu0 0.0
    %1335 = vmatprep.subr.mxu0 0.0
    %1336 = vmatpush1.msra.mxu0 0.0
    %1337 = vmatprep.subr.mxu0 0.0
    %1338 = vmatpush1.msra.mxu0 0.0
    %1339 = vmatprep.subr.mxu0 0.0
    %1340 = vmatpush1.msra.mxu0 0.0
    %1341 = vmatprep.subr.mxu0 0.0
    %1342 = vmatpush1.msra.mxu0 0.0
    %1343 = vmatprep.subr.mxu0 0.0
    %1344 = vmatpush1.msra.mxu0 0.0
    %1345 = vmatprep.subr.mxu0 0.0
    %1346 = vmatpush1.msra.mxu0 0.0
    %1347 = vmatprep.subr.mxu0 0.0
    %1348 = vmatpush1.msra.mxu0 0.0
    %1349 = vmatprep.subr.mxu0 0.0
    %1350 = vmatpush1.msra.mxu0 0.0
    %1351 = vmatprep.subr.mxu0 0.0
    %1352 = vmatpush1.msra.mxu0 0.0
    %1353 = vmatprep.mubr.f32.mxu0 0.0
    %1354 = vmatmul.mubr.f32.gmra.mrb[0].mxu0 %v1077
    %v1355 = vpop.f32.mrb[0].mxu0
    %v1356 = vadd.f32 %v784, %v1355
    %v1357 = vpop.f32.mrb[0].mxu0
    %1358 = vdwg.mxu0
    %s1359 = scalar_lea.vmem %s3, 512
    %v1360 = vld [vmem:[%s1359] sm:$0xff]
    %v1361 = vld [vmem:[%s1359 + $0x8] sm:$0xff]
    %v1362 = vld [vmem:[%s1359 + $0x10] sm:$0xff]
    %v1363 = vld [vmem:[%s1359 + $0x18] sm:$0xff]
    %v1364 = vld [vmem:[%s1359 + $0x20] sm:$0xff]
    %v1365 = vld [vmem:[%s1359 + $0x28] sm:$0xff]
    %v1366 = vld [vmem:[%s1359 + $0x30] sm:$0xff]
    %v1367 = vld [vmem:[%s1359 + $0x38] sm:$0xff]
    %v1368 = vld [vmem:[%s1359 + $0x40] sm:$0xff]
    %v1369 = vld [vmem:[%s1359 + $0x48] sm:$0xff]
    %v1370 = vld [vmem:[%s1359 + $0x50] sm:$0xff]
    %v1371 = vld [vmem:[%s1359 + $0x58] sm:$0xff]
    %v1372 = vld [vmem:[%s1359 + $0x60] sm:$0xff]
    %v1373 = vld [vmem:[%s1359 + $0x68] sm:$0xff]
    %v1374 = vld [vmem:[%s1359 + $0x70] sm:$0xff]
    %v1375 = vld [vmem:[%s1359 + $0x78] sm:$0xff]
    %v1376 = vld [vmem:[%s1359 + $0x80] sm:$0xff]
    %v1377 = vld [vmem:[%s1359 + $0x88] sm:$0xff]
    %v1378 = vld [vmem:[%s1359 + $0x90] sm:$0xff]
    %v1379 = vld [vmem:[%s1359 + $0x98] sm:$0xff]
    %v1380 = vld [vmem:[%s1359 + $0xa0] sm:$0xff]
    %v1381 = vld [vmem:[%s1359 + $0xa8] sm:$0xff]
    %v1382 = vld [vmem:[%s1359 + $0xb0] sm:$0xff]
    %v1383 = vld [vmem:[%s1359 + $0xb8] sm:$0xff]
    %v1384 = vld [vmem:[%s1359 + $0xc0] sm:$0xff]
    %v1385 = vld [vmem:[%s1359 + $0xc8] sm:$0xff]
    %v1386 = vld [vmem:[%s1359 + $0xd0] sm:$0xff]
    %v1387 = vld [vmem:[%s1359 + $0xd8] sm:$0xff]
    %v1388 = vld [vmem:[%s1359 + $0xe0] sm:$0xff]
    %v1389 = vld [vmem:[%s1359 + $0xe8] sm:$0xff]
    %v1390 = vld [vmem:[%s1359 + $0xf0] sm:$0xff]
    %v1391 = vld [vmem:[%s1359 + $0xf8] sm:$0xff]
    %s1392 = scalar_lea.vmem %s4, 16
    %v1393 = vld [vmem:[%s1392] sm:$0x1]
    %v1394 = vld [vmem:[%s1392 + $0x1] sm:$0x1]
    %v1395 = vld [vmem:[%s1392 + $0x2] sm:$0x1]
    %v1396 = vld [vmem:[%s1392 + $0x3] sm:$0x1]
    %v1397 = vld [vmem:[%s1392 + $0x4] sm:$0x1]
    %v1398 = vld [vmem:[%s1392 + $0x5] sm:$0x1]
    %v1399 = vld [vmem:[%s1392 + $0x6] sm:$0x1]
    %v1400 = vld [vmem:[%s1392 + $0x7] sm:$0x1]
    %v1409 = vlaneseq
    %v1410 = vshrl.u32 %v1409, 7
    %v1411 = vsub.s32 0, %v1410
    %v1412 = vrot.slane %v1393, %v1411
    %v1413 = vlaneseq
    %v1414 = vshrl.u32 %v1413, 7
    %v1415 = vsub.s32 0, %v1414
    %v1416 = vrot.slane %v1394, %v1415
    %v1417 = vlaneseq
    %v1418 = vshrl.u32 %v1417, 7
    %v1419 = vsub.s32 0, %v1418
    %v1420 = vrot.slane %v1395, %v1419
    %v1421 = vlaneseq
    %v1422 = vshrl.u32 %v1421, 7
    %v1423 = vsub.s32 0, %v1422
    %v1424 = vrot.slane %v1396, %v1423
    %v1425 = vlaneseq
    %v1426 = vshrl.u32 %v1425, 7
    %v1427 = vsub.s32 0, %v1426
    %v1428 = vrot.slane %v1397, %v1427
    %v1429 = vlaneseq
    %v1430 = vshrl.u32 %v1429, 7
    %v1431 = vsub.s32 0, %v1430
    %v1432 = vrot.slane %v1398, %v1431
    %v1433 = vlaneseq
    %v1434 = vshrl.u32 %v1433, 7
    %v1435 = vsub.s32 0, %v1434
    %v1436 = vrot.slane %v1399, %v1435
    %v1437 = vlaneseq
    %v1438 = vshrl.u32 %v1437, 7
    %v1439 = vsub.s32 0, %v1438
    %v1440 = vrot.slane %v1400, %v1439
    %1449 = vmatprep.subr.mxu0 0.0
    %1450 = vmatpush1.msra.mxu0 %v1360
    %1451 = vmatprep.subr.mxu0 0.0
    %1452 = vmatpush1.msra.mxu0 %v1361
    %1453 = vmatprep.subr.mxu0 0.0
    %1454 = vmatpush1.msra.mxu0 %v1362
    %1455 = vmatprep.subr.mxu0 0.0
    %1456 = vmatpush1.msra.mxu0 %v1363
    %1457 = vmatprep.subr.mxu0 0.0
    %1458 = vmatpush1.msra.mxu0 0.0
    %1459 = vmatprep.subr.mxu0 0.0
    %1460 = vmatpush1.msra.mxu0 0.0
    %1461 = vmatprep.subr.mxu0 0.0
    %1462 = vmatpush1.msra.mxu0 0.0
    %1463 = vmatprep.subr.mxu0 0.0
    %1464 = vmatpush1.msra.mxu0 0.0
    %1465 = vmatprep.subr.mxu0 0.0
    %1466 = vmatpush1.msra.mxu0 0.0
    %1467 = vmatprep.subr.mxu0 0.0
    %1468 = vmatpush1.msra.mxu0 0.0
    %1469 = vmatprep.subr.mxu0 0.0
    %1470 = vmatpush1.msra.mxu0 0.0
    %1471 = vmatprep.subr.mxu0 0.0
    %1472 = vmatpush1.msra.mxu0 0.0
    %1473 = vmatprep.subr.mxu0 0.0
    %1474 = vmatpush1.msra.mxu0 0.0
    %1475 = vmatprep.subr.mxu0 0.0
    %1476 = vmatpush1.msra.mxu0 0.0
    %1477 = vmatprep.subr.mxu0 0.0
    %1478 = vmatpush1.msra.mxu0 0.0
    %1479 = vmatprep.subr.mxu0 0.0
    %1480 = vmatpush1.msra.mxu0 0.0
    %1481 = vmatprep.subr.mxu0 0.0
    %1482 = vmatpush1.msra.mxu0 0.0
    %1483 = vmatprep.subr.mxu0 0.0
    %1484 = vmatpush1.msra.mxu0 0.0
    %1485 = vmatprep.subr.mxu0 0.0
    %1486 = vmatpush1.msra.mxu0 0.0
    %1487 = vmatprep.subr.mxu0 0.0
    %1488 = vmatpush1.msra.mxu0 0.0
    %1489 = vmatprep.subr.mxu0 0.0
    %1490 = vmatpush1.msra.mxu0 0.0
    %1491 = vmatprep.subr.mxu0 0.0
    %1492 = vmatpush1.msra.mxu0 0.0
    %1493 = vmatprep.subr.mxu0 0.0
    %1494 = vmatpush1.msra.mxu0 0.0
    %1495 = vmatprep.subr.mxu0 0.0
    %1496 = vmatpush1.msra.mxu0 0.0
    %1497 = vmatprep.subr.mxu0 0.0
    %1498 = vmatpush1.msra.mxu0 0.0
    %1499 = vmatprep.subr.mxu0 0.0
    %1500 = vmatpush1.msra.mxu0 0.0
    %1501 = vmatprep.subr.mxu0 0.0
    %1502 = vmatpush1.msra.mxu0 0.0
    %1503 = vmatprep.subr.mxu0 0.0
    %1504 = vmatpush1.msra.mxu0 0.0
    %1505 = vmatprep.subr.mxu0 0.0
    %1506 = vmatpush1.msra.mxu0 0.0
    %1507 = vmatprep.subr.mxu0 0.0
    %1508 = vmatpush1.msra.mxu0 0.0
    %1509 = vmatprep.subr.mxu0 0.0
    %1510 = vmatpush1.msra.mxu0 0.0
    %1511 = vmatprep.subr.mxu0 0.0
    %1512 = vmatpush1.msra.mxu0 0.0
    %1513 = vmatprep.mubr.f32.mxu0 0.0
    %1514 = vmatmul.mubr.f32.gmra.mrb[0].mxu0 %v794
    %v1515 = vpop.f32.mrb[0].mxu0
    %v1516 = vadd.f32 %v1412, %v1515
    %v1517 = vpop.f32.mrb[0].mxu0
    %1518 = vdwg.mxu0
    %1519 = vmatprep.subr.mxu0 0.0
    %1520 = vmatpush1.msra.mxu0 %v1364
    %1521 = vmatprep.subr.mxu0 0.0
    %1522 = vmatpush1.msra.mxu0 %v1365
    %1523 = vmatprep.subr.mxu0 0.0
    %1524 = vmatpush1.msra.mxu0 %v1366
    %1525 = vmatprep.subr.mxu0 0.0
    %1526 = vmatpush1.msra.mxu0 %v1367
    %1527 = vmatprep.subr.mxu0 0.0
    %1528 = vmatpush1.msra.mxu0 0.0
    %1529 = vmatprep.subr.mxu0 0.0
    %1530 = vmatpush1.msra.mxu0 0.0
    %1531 = vmatprep.subr.mxu0 0.0
    %1532 = vmatpush1.msra.mxu0 0.0
    %1533 = vmatprep.subr.mxu0 0.0
    %1534 = vmatpush1.msra.mxu0 0.0
    %1535 = vmatprep.subr.mxu0 0.0
    %1536 = vmatpush1.msra.mxu0 0.0
    %1537 = vmatprep.subr.mxu0 0.0
    %1538 = vmatpush1.msra.mxu0 0.0
    %1539 = vmatprep.subr.mxu0 0.0
    %1540 = vmatpush1.msra.mxu0 0.0
    %1541 = vmatprep.subr.mxu0 0.0
    %1542 = vmatpush1.msra.mxu0 0.0
    %1543 = vmatprep.subr.mxu0 0.0
    %1544 = vmatpush1.msra.mxu0 0.0
    %1545 = vmatprep.subr.mxu0 0.0
    %1546 = vmatpush1.msra.mxu0 0.0
    %1547 = vmatprep.subr.mxu0 0.0
    %1548 = vmatpush1.msra.mxu0 0.0
    %1549 = vmatprep.subr.mxu0 0.0
    %1550 = vmatpush1.msra.mxu0 0.0
    %1551 = vmatprep.subr.mxu0 0.0
    %1552 = vmatpush1.msra.mxu0 0.0
    %1553 = vmatprep.subr.mxu0 0.0
    %1554 = vmatpush1.msra.mxu0 0.0
    %1555 = vmatprep.subr.mxu0 0.0
    %1556 = vmatpush1.msra.mxu0 0.0
    %1557 = vmatprep.subr.mxu0 0.0
    %1558 = vmatpush1.msra.mxu0 0.0
    %1559 = vmatprep.subr.mxu0 0.0
    %1560 = vmatpush1.msra.mxu0 0.0
    %1561 = vmatprep.subr.mxu0 0.0
    %1562 = vmatpush1.msra.mxu0 0.0
    %1563 = vmatprep.subr.mxu0 0.0
    %1564 = vmatpush1.msra.mxu0 0.0
    %1565 = vmatprep.subr.mxu0 0.0
    %1566 = vmatpush1.msra.mxu0 0.0
    %1567 = vmatprep.subr.mxu0 0.0
    %1568 = vmatpush1.msra.mxu0 0.0
    %1569 = vmatprep.subr.mxu0 0.0
    %1570 = vmatpush1.msra.mxu0 0.0
    %1571 = vmatprep.subr.mxu0 0.0
    %1572 = vmatpush1.msra.mxu0 0.0
    %1573 = vmatprep.subr.mxu0 0.0
    %1574 = vmatpush1.msra.mxu0 0.0
    %1575 = vmatprep.subr.mxu0 0.0
    %1576 = vmatpush1.msra.mxu0 0.0
    %1577 = vmatprep.subr.mxu0 0.0
    %1578 = vmatpush1.msra.mxu0 0.0
    %1579 = vmatprep.subr.mxu0 0.0
    %1580 = vmatpush1.msra.mxu0 0.0
    %1581 = vmatprep.subr.mxu0 0.0
    %1582 = vmatpush1.msra.mxu0 0.0
    %1583 = vmatprep.mubr.f32.mxu0 0.0
    %1584 = vmatmul.mubr.f32.gmra.mrb[0].mxu0 %v794
    %v1585 = vpop.f32.mrb[0].mxu0
    %v1586 = vadd.f32 %v1416, %v1585
    %v1587 = vpop.f32.mrb[0].mxu0
    %1588 = vdwg.mxu0
    %1589 = vmatprep.subr.mxu0 0.0
    %1590 = vmatpush1.msra.mxu0 %v1368
    %1591 = vmatprep.subr.mxu0 0.0
    %1592 = vmatpush1.msra.mxu0 %v1369
    %1593 = vmatprep.subr.mxu0 0.0
    %1594 = vmatpush1.msra.mxu0 %v1370
    %1595 = vmatprep.subr.mxu0 0.0
    %1596 = vmatpush1.msra.mxu0 %v1371
    %1597 = vmatprep.subr.mxu0 0.0
    %1598 = vmatpush1.msra.mxu0 0.0
    %1599 = vmatprep.subr.mxu0 0.0
    %1600 = vmatpush1.msra.mxu0 0.0
    %1601 = vmatprep.subr.mxu0 0.0
    %1602 = vmatpush1.msra.mxu0 0.0
    %1603 = vmatprep.subr.mxu0 0.0
    %1604 = vmatpush1.msra.mxu0 0.0
    %1605 = vmatprep.subr.mxu0 0.0
    %1606 = vmatpush1.msra.mxu0 0.0
    %1607 = vmatprep.subr.mxu0 0.0
    %1608 = vmatpush1.msra.mxu0 0.0
    %1609 = vmatprep.subr.mxu0 0.0
    %1610 = vmatpush1.msra.mxu0 0.0
    %1611 = vmatprep.subr.mxu0 0.0
    %1612 = vmatpush1.msra.mxu0 0.0
    %1613 = vmatprep.subr.mxu0 0.0
    %1614 = vmatpush1.msra.mxu0 0.0
    %1615 = vmatprep.subr.mxu0 0.0
    %1616 = vmatpush1.msra.mxu0 0.0
    %1617 = vmatprep.subr.mxu0 0.0
    %1618 = vmatpush1.msra.mxu0 0.0
    %1619 = vmatprep.subr.mxu0 0.0
    %1620 = vmatpush1.msra.mxu0 0.0
    %1621 = vmatprep.subr.mxu0 0.0
    %1622 = vmatpush1.msra.mxu0 0.0
    %1623 = vmatprep.subr.mxu0 0.0
    %1624 = vmatpush1.msra.mxu0 0.0
    %1625 = vmatprep.subr.mxu0 0.0
    %1626 = vmatpush1.msra.mxu0 0.0
    %1627 = vmatprep.subr.mxu0 0.0
    %1628 = vmatpush1.msra.mxu0 0.0
    %1629 = vmatprep.subr.mxu0 0.0
    %1630 = vmatpush1.msra.mxu0 0.0
    %1631 = vmatprep.subr.mxu0 0.0
    %1632 = vmatpush1.msra.mxu0 0.0
    %1633 = vmatprep.subr.mxu0 0.0
    %1634 = vmatpush1.msra.mxu0 0.0
    %1635 = vmatprep.subr.mxu0 0.0
    %1636 = vmatpush1.msra.mxu0 0.0
    %1637 = vmatprep.subr.mxu0 0.0
    %1638 = vmatpush1.msra.mxu0 0.0
    %1639 = vmatprep.subr.mxu0 0.0
    %1640 = vmatpush1.msra.mxu0 0.0
    %1641 = vmatprep.subr.mxu0 0.0
    %1642 = vmatpush1.msra.mxu0 0.0
    %1643 = vmatprep.subr.mxu0 0.0
    %1644 = vmatpush1.msra.mxu0 0.0
    %1645 = vmatprep.subr.mxu0 0.0
    %1646 = vmatpush1.msra.mxu0 0.0
    %1647 = vmatprep.subr.mxu0 0.0
    %1648 = vmatpush1.msra.mxu0 0.0
    %1649 = vmatprep.subr.mxu0 0.0
    %1650 = vmatpush1.msra.mxu0 0.0
    %1651 = vmatprep.subr.mxu0 0.0
    %1652 = vmatpush1.msra.mxu0 0.0
    %1653 = vmatprep.mubr.f32.mxu0 0.0
    %1654 = vmatmul.mubr.f32.gmra.mrb[0].mxu0 %v794
    %v1655 = vpop.f32.mrb[0].mxu0
    %v1656 = vadd.f32 %v1420, %v1655
    %v1657 = vpop.f32.mrb[0].mxu0
    %1658 = vdwg.mxu0
    %1659 = vmatprep.subr.mxu0 0.0
    %1660 = vmatpush1.msra.mxu0 %v1372
    %1661 = vmatprep.subr.mxu0 0.0
    %1662 = vmatpush1.msra.mxu0 %v1373
    %1663 = vmatprep.subr.mxu0 0.0
    %1664 = vmatpush1.msra.mxu0 %v1374
    %1665 = vmatprep.subr.mxu0 0.0
    %1666 = vmatpush1.msra.mxu0 %v1375
    %1667 = vmatprep.subr.mxu0 0.0
    %1668 = vmatpush1.msra.mxu0 0.0
    %1669 = vmatprep.subr.mxu0 0.0
    %1670 = vmatpush1.msra.mxu0 0.0
    %1671 = vmatprep.subr.mxu0 0.0
    %1672 = vmatpush1.msra.mxu0 0.0
    %1673 = vmatprep.subr.mxu0 0.0
    %1674 = vmatpush1.msra.mxu0 0.0
    %1675 = vmatprep.subr.mxu0 0.0
    %1676 = vmatpush1.msra.mxu0 0.0
    %1677 = vmatprep.subr.mxu0 0.0
    %1678 = vmatpush1.msra.mxu0 0.0
    %1679 = vmatprep.subr.mxu0 0.0
    %1680 = vmatpush1.msra.mxu0 0.0
    %1681 = vmatprep.subr.mxu0 0.0
    %1682 = vmatpush1.msra.mxu0 0.0
    %1683 = vmatprep.subr.mxu0 0.0
    %1684 = vmatpush1.msra.mxu0 0.0
    %1685 = vmatprep.subr.mxu0 0.0
    %1686 = vmatpush1.msra.mxu0 0.0
    %1687 = vmatprep.subr.mxu0 0.0
    %1688 = vmatpush1.msra.mxu0 0.0
    %1689 = vmatprep.subr.mxu0 0.0
    %1690 = vmatpush1.msra.mxu0 0.0
    %1691 = vmatprep.subr.mxu0 0.0
    %1692 = vmatpush1.msra.mxu0 0.0
    %1693 = vmatprep.subr.mxu0 0.0
    %1694 = vmatpush1.msra.mxu0 0.0
    %1695 = vmatprep.subr.mxu0 0.0
    %1696 = vmatpush1.msra.mxu0 0.0
    %1697 = vmatprep.subr.mxu0 0.0
    %1698 = vmatpush1.msra.mxu0 0.0
    %1699 = vmatprep.subr.mxu0 0.0
    %1700 = vmatpush1.msra.mxu0 0.0
    %1701 = vmatprep.subr.mxu0 0.0
    %1702 = vmatpush1.msra.mxu0 0.0
    %1703 = vmatprep.subr.mxu0 0.0
    %1704 = vmatpush1.msra.mxu0 0.0
    %1705 = vmatprep.subr.mxu0 0.0
    %1706 = vmatpush1.msra.mxu0 0.0
    %1707 = vmatprep.subr.mxu0 0.0
    %1708 = vmatpush1.msra.mxu0 0.0
    %1709 = vmatprep.subr.mxu0 0.0
    %1710 = vmatpush1.msra.mxu0 0.0
    %1711 = vmatprep.subr.mxu0 0.0
    %1712 = vmatpush1.msra.mxu0 0.0
    %1713 = vmatprep.subr.mxu0 0.0
    %1714 = vmatpush1.msra.mxu0 0.0
    %1715 = vmatprep.subr.mxu0 0.0
    %1716 = vmatpush1.msra.mxu0 0.0
    %1717 = vmatprep.subr.mxu0 0.0
    %1718 = vmatpush1.msra.mxu0 0.0
    %1719 = vmatprep.subr.mxu0 0.0
    %1720 = vmatpush1.msra.mxu0 0.0
    %1721 = vmatprep.subr.mxu0 0.0
    %1722 = vmatpush1.msra.mxu0 0.0
    %1723 = vmatprep.mubr.f32.mxu0 0.0
    %1724 = vmatmul.mubr.f32.gmra.mrb[0].mxu0 %v794
    %v1725 = vpop.f32.mrb[0].mxu0
    %v1726 = vadd.f32 %v1424, %v1725
    %v1727 = vpop.f32.mrb[0].mxu0
    %1728 = vdwg.mxu0
    %1729 = vmatprep.subr.mxu0 0.0
    %1730 = vmatpush1.msra.mxu0 %v1376
    %1731 = vmatprep.subr.mxu0 0.0
    %1732 = vmatpush1.msra.mxu0 %v1377
    %1733 = vmatprep.subr.mxu0 0.0
    %1734 = vmatpush1.msra.mxu0 %v1378
    %1735 = vmatprep.subr.mxu0 0.0
    %1736 = vmatpush1.msra.mxu0 %v1379
    %1737 = vmatprep.subr.mxu0 0.0
    %1738 = vmatpush1.msra.mxu0 0.0
    %1739 = vmatprep.subr.mxu0 0.0
    %1740 = vmatpush1.msra.mxu0 0.0
    %1741 = vmatprep.subr.mxu0 0.0
    %1742 = vmatpush1.msra.mxu0 0.0
    %1743 = vmatprep.subr.mxu0 0.0
    %1744 = vmatpush1.msra.mxu0 0.0
    %1745 = vmatprep.subr.mxu0 0.0
    %1746 = vmatpush1.msra.mxu0 0.0
    %1747 = vmatprep.subr.mxu0 0.0
    %1748 = vmatpush1.msra.mxu0 0.0
    %1749 = vmatprep.subr.mxu0 0.0
    %1750 = vmatpush1.msra.mxu0 0.0
    %1751 = vmatprep.subr.mxu0 0.0
    %1752 = vmatpush1.msra.mxu0 0.0
    %1753 = vmatprep.subr.mxu0 0.0
    %1754 = vmatpush1.msra.mxu0 0.0
    %1755 = vmatprep.subr.mxu0 0.0
    %1756 = vmatpush1.msra.mxu0 0.0
    %1757 = vmatprep.subr.mxu0 0.0
    %1758 = vmatpush1.msra.mxu0 0.0
    %1759 = vmatprep.subr.mxu0 0.0
    %1760 = vmatpush1.msra.mxu0 0.0
    %1761 = vmatprep.subr.mxu0 0.0
    %1762 = vmatpush1.msra.mxu0 0.0
    %1763 = vmatprep.subr.mxu0 0.0
    %1764 = vmatpush1.msra.mxu0 0.0
    %1765 = vmatprep.subr.mxu0 0.0
    %1766 = vmatpush1.msra.mxu0 0.0
    %1767 = vmatprep.subr.mxu0 0.0
    %1768 = vmatpush1.msra.mxu0 0.0
    %1769 = vmatprep.subr.mxu0 0.0
    %1770 = vmatpush1.msra.mxu0 0.0
    %1771 = vmatprep.subr.mxu0 0.0
    %1772 = vmatpush1.msra.mxu0 0.0
    %1773 = vmatprep.subr.mxu0 0.0
    %1774 = vmatpush1.msra.mxu0 0.0
    %1775 = vmatprep.subr.mxu0 0.0
    %1776 = vmatpush1.msra.mxu0 0.0
    %1777 = vmatprep.subr.mxu0 0.0
    %1778 = vmatpush1.msra.mxu0 0.0
    %1779 = vmatprep.subr.mxu0 0.0
    %1780 = vmatpush1.msra.mxu0 0.0
    %1781 = vmatprep.subr.mxu0 0.0
    %1782 = vmatpush1.msra.mxu0 0.0
    %1783 = vmatprep.subr.mxu0 0.0
    %1784 = vmatpush1.msra.mxu0 0.0
    %1785 = vmatprep.subr.mxu0 0.0
    %1786 = vmatpush1.msra.mxu0 0.0
    %1787 = vmatprep.subr.mxu0 0.0
    %1788 = vmatpush1.msra.mxu0 0.0
    %1789 = vmatprep.subr.mxu0 0.0
    %1790 = vmatpush1.msra.mxu0 0.0
    %1791 = vmatprep.subr.mxu0 0.0
    %1792 = vmatpush1.msra.mxu0 0.0
    %1793 = vmatprep.mubr.f32.mxu0 0.0
    %1794 = vmatmul.mubr.f32.gmra.mrb[0].mxu0 %v1077
    %v1795 = vpop.f32.mrb[0].mxu0
    %v1796 = vadd.f32 %v1428, %v1795
    %v1797 = vpop.f32.mrb[0].mxu0
    %1798 = vdwg.mxu0
    %1799 = vmatprep.subr.mxu0 0.0
    %1800 = vmatpush1.msra.mxu0 %v1380
    %1801 = vmatprep.subr.mxu0 0.0
    %1802 = vmatpush1.msra.mxu0 %v1381
    %1803 = vmatprep.subr.mxu0 0.0
    %1804 = vmatpush1.msra.mxu0 %v1382
    %1805 = vmatprep.subr.mxu0 0.0
    %1806 = vmatpush1.msra.mxu0 %v1383
    %1807 = vmatprep.subr.mxu0 0.0
    %1808 = vmatpush1.msra.mxu0 0.0
    %1809 = vmatprep.subr.mxu0 0.0
    %1810 = vmatpush1.msra.mxu0 0.0
    %1811 = vmatprep.subr.mxu0 0.0
    %1812 = vmatpush1.msra.mxu0 0.0
    %1813 = vmatprep.subr.mxu0 0.0
    %1814 = vmatpush1.msra.mxu0 0.0
    %1815 = vmatprep.subr.mxu0 0.0
    %1816 = vmatpush1.msra.mxu0 0.0
    %1817 = vmatprep.subr.mxu0 0.0
    %1818 = vmatpush1.msra.mxu0 0.0
    %1819 = vmatprep.subr.mxu0 0.0
    %1820 = vmatpush1.msra.mxu0 0.0
    %1821 = vmatprep.subr.mxu0 0.0
    %1822 = vmatpush1.msra.mxu0 0.0
    %1823 = vmatprep.subr.mxu0 0.0
    %1824 = vmatpush1.msra.mxu0 0.0
    %1825 = vmatprep.subr.mxu0 0.0
    %1826 = vmatpush1.msra.mxu0 0.0
    %1827 = vmatprep.subr.mxu0 0.0
    %1828 = vmatpush1.msra.mxu0 0.0
    %1829 = vmatprep.subr.mxu0 0.0
    %1830 = vmatpush1.msra.mxu0 0.0
    %1831 = vmatprep.subr.mxu0 0.0
    %1832 = vmatpush1.msra.mxu0 0.0
    %1833 = vmatprep.subr.mxu0 0.0
    %1834 = vmatpush1.msra.mxu0 0.0
    %1835 = vmatprep.subr.mxu0 0.0
    %1836 = vmatpush1.msra.mxu0 0.0
    %1837 = vmatprep.subr.mxu0 0.0
    %1838 = vmatpush1.msra.mxu0 0.0
    %1839 = vmatprep.subr.mxu0 0.0
    %1840 = vmatpush1.msra.mxu0 0.0
    %1841 = vmatprep.subr.mxu0 0.0
    %1842 = vmatpush1.msra.mxu0 0.0
    %1843 = vmatprep.subr.mxu0 0.0
    %1844 = vmatpush1.msra.mxu0 0.0
    %1845 = vmatprep.subr.mxu0 0.0
    %1846 = vmatpush1.msra.mxu0 0.0
    %1847 = vmatprep.subr.mxu0 0.0
    %1848 = vmatpush1.msra.mxu0 0.0
    %1849 = vmatprep.subr.mxu0 0.0
    %1850 = vmatpush1.msra.mxu0 0.0
    %1851 = vmatprep.subr.mxu0 0.0
    %1852 = vmatpush1.msra.mxu0 0.0
    %1853 = vmatprep.subr.mxu0 0.0
    %1854 = vmatpush1.msra.mxu0 0.0
    %1855 = vmatprep.subr.mxu0 0.0
    %1856 = vmatpush1.msra.mxu0 0.0
    %1857 = vmatprep.subr.mxu0 0.0
    %1858 = vmatpush1.msra.mxu0 0.0
    %1859 = vmatprep.subr.mxu0 0.0
    %1860 = vmatpush1.msra.mxu0 0.0
    %1861 = vmatprep.subr.mxu0 0.0
    %1862 = vmatpush1.msra.mxu0 0.0
    %1863 = vmatprep.mubr.f32.mxu0 0.0
    %1864 = vmatmul.mubr.f32.gmra.mrb[0].mxu0 %v1077
    %v1865 = vpop.f32.mrb[0].mxu0
    %v1866 = vadd.f32 %v1432, %v1865
    %v1867 = vpop.f32.mrb[0].mxu0
    %1868 = vdwg.mxu0
    %1869 = vmatprep.subr.mxu0 0.0
    %1870 = vmatpush1.msra.mxu0 %v1384
    %1871 = vmatprep.subr.mxu0 0.0
    %1872 = vmatpush1.msra.mxu0 %v1385
    %1873 = vmatprep.subr.mxu0 0.0
    %1874 = vmatpush1.msra.mxu0 %v1386
    %1875 = vmatprep.subr.mxu0 0.0
    %1876 = vmatpush1.msra.mxu0 %v1387
    %1877 = vmatprep.subr.mxu0 0.0
    %1878 = vmatpush1.msra.mxu0 0.0
    %1879 = vmatprep.subr.mxu0 0.0
    %1880 = vmatpush1.msra.mxu0 0.0
    %1881 = vmatprep.subr.mxu0 0.0
    %1882 = vmatpush1.msra.mxu0 0.0
    %1883 = vmatprep.subr.mxu0 0.0
    %1884 = vmatpush1.msra.mxu0 0.0
    %1885 = vmatprep.subr.mxu0 0.0
    %1886 = vmatpush1.msra.mxu0 0.0
    %1887 = vmatprep.subr.mxu0 0.0
    %1888 = vmatpush1.msra.mxu0 0.0
    %1889 = vmatprep.subr.mxu0 0.0
    %1890 = vmatpush1.msra.mxu0 0.0
    %1891 = vmatprep.subr.mxu0 0.0
    %1892 = vmatpush1.msra.mxu0 0.0
    %1893 = vmatprep.subr.mxu0 0.0
    %1894 = vmatpush1.msra.mxu0 0.0
    %1895 = vmatprep.subr.mxu0 0.0
    %1896 = vmatpush1.msra.mxu0 0.0
    %1897 = vmatprep.subr.mxu0 0.0
    %1898 = vmatpush1.msra.mxu0 0.0
    %1899 = vmatprep.subr.mxu0 0.0
    %1900 = vmatpush1.msra.mxu0 0.0
    %1901 = vmatprep.subr.mxu0 0.0
    %1902 = vmatpush1.msra.mxu0 0.0
    %1903 = vmatprep.subr.mxu0 0.0
    %1904 = vmatpush1.msra.mxu0 0.0
    %1905 = vmatprep.subr.mxu0 0.0
    %1906 = vmatpush1.msra.mxu0 0.0
    %1907 = vmatprep.subr.mxu0 0.0
    %1908 = vmatpush1.msra.mxu0 0.0
    %1909 = vmatprep.subr.mxu0 0.0
    %1910 = vmatpush1.msra.mxu0 0.0
    %1911 = vmatprep.subr.mxu0 0.0
    %1912 = vmatpush1.msra.mxu0 0.0
    %1913 = vmatprep.subr.mxu0 0.0
    %1914 = vmatpush1.msra.mxu0 0.0
    %1915 = vmatprep.subr.mxu0 0.0
    %1916 = vmatpush1.msra.mxu0 0.0
    %1917 = vmatprep.subr.mxu0 0.0
    %1918 = vmatpush1.msra.mxu0 0.0
    %1919 = vmatprep.subr.mxu0 0.0
    %1920 = vmatpush1.msra.mxu0 0.0
    %1921 = vmatprep.subr.mxu0 0.0
    %1922 = vmatpush1.msra.mxu0 0.0
    %1923 = vmatprep.subr.mxu0 0.0
    %1924 = vmatpush1.msra.mxu0 0.0
    %1925 = vmatprep.subr.mxu0 0.0
    %1926 = vmatpush1.msra.mxu0 0.0
    %1927 = vmatprep.subr.mxu0 0.0
    %1928 = vmatpush1.msra.mxu0 0.0
    %1929 = vmatprep.subr.mxu0 0.0
    %1930 = vmatpush1.msra.mxu0 0.0
    %1931 = vmatprep.subr.mxu0 0.0
    %1932 = vmatpush1.msra.mxu0 0.0
    %1933 = vmatprep.mubr.f32.mxu0 0.0
    %1934 = vmatmul.mubr.f32.gmra.mrb[0].mxu0 %v1077
    %v1935 = vpop.f32.mrb[0].mxu0
    %v1936 = vadd.f32 %v1436, %v1935
    %v1937 = vpop.f32.mrb[0].mxu0
    %1938 = vdwg.mxu0
    %1939 = vmatprep.subr.mxu0 0.0
    %1940 = vmatpush1.msra.mxu0 %v1388
    %1941 = vmatprep.subr.mxu0 0.0
    %1942 = vmatpush1.msra.mxu0 %v1389
    %1943 = vmatprep.subr.mxu0 0.0
    %1944 = vmatpush1.msra.mxu0 %v1390
    %1945 = vmatprep.subr.mxu0 0.0
    %1946 = vmatpush1.msra.mxu0 %v1391
    %1947 = vmatprep.subr.mxu0 0.0
    %1948 = vmatpush1.msra.mxu0 0.0
    %1949 = vmatprep.subr.mxu0 0.0
    %1950 = vmatpush1.msra.mxu0 0.0
    %1951 = vmatprep.subr.mxu0 0.0
    %1952 = vmatpush1.msra.mxu0 0.0
    %1953 = vmatprep.subr.mxu0 0.0
    %1954 = vmatpush1.msra.mxu0 0.0
    %1955 = vmatprep.subr.mxu0 0.0
    %1956 = vmatpush1.msra.mxu0 0.0
    %1957 = vmatprep.subr.mxu0 0.0
    %1958 = vmatpush1.msra.mxu0 0.0
    %1959 = vmatprep.subr.mxu0 0.0
    %1960 = vmatpush1.msra.mxu0 0.0
    %1961 = vmatprep.subr.mxu0 0.0
    %1962 = vmatpush1.msra.mxu0 0.0
    %1963 = vmatprep.subr.mxu0 0.0
    %1964 = vmatpush1.msra.mxu0 0.0
    %1965 = vmatprep.subr.mxu0 0.0
    %1966 = vmatpush1.msra.mxu0 0.0
    %1967 = vmatprep.subr.mxu0 0.0
    %1968 = vmatpush1.msra.mxu0 0.0
    %1969 = vmatprep.subr.mxu0 0.0
    %1970 = vmatpush1.msra.mxu0 0.0
    %1971 = vmatprep.subr.mxu0 0.0
    %1972 = vmatpush1.msra.mxu0 0.0
    %1973 = vmatprep.subr.mxu0 0.0
    %1974 = vmatpush1.msra.mxu0 0.0
    %1975 = vmatprep.subr.mxu0 0.0
    %1976 = vmatpush1.msra.mxu0 0.0
    %1977 = vmatprep.subr.mxu0 0.0
    %1978 = vmatpush1.msra.mxu0 0.0
    %1979 = vmatprep.subr.mxu0 0.0
    %1980 = vmatpush1.msra.mxu0 0.0
    %1981 = vmatprep.subr.mxu0 0.0
    %1982 = vmatpush1.msra.mxu0 0.0
    %1983 = vmatprep.subr.mxu0 0.0
    %1984 = vmatpush1.msra.mxu0 0.0
    %1985 = vmatprep.subr.mxu0 0.0
    %1986 = vmatpush1.msra.mxu0 0.0
    %1987 = vmatprep.subr.mxu0 0.0
    %1988 = vmatpush1.msra.mxu0 0.0
    %1989 = vmatprep.subr.mxu0 0.0
    %1990 = vmatpush1.msra.mxu0 0.0
    %1991 = vmatprep.subr.mxu0 0.0
    %1992 = vmatpush1.msra.mxu0 0.0
    %1993 = vmatprep.subr.mxu0 0.0
    %1994 = vmatpush1.msra.mxu0 0.0
    %1995 = vmatprep.subr.mxu0 0.0
    %1996 = vmatpush1.msra.mxu0 0.0
    %1997 = vmatprep.subr.mxu0 0.0
    %1998 = vmatpush1.msra.mxu0 0.0
    %1999 = vmatprep.subr.mxu0 0.0
    %2000 = vmatpush1.msra.mxu0 0.0
    %2001 = vmatprep.subr.mxu0 0.0
    %2002 = vmatpush1.msra.mxu0 0.0
    %2003 = vmatprep.mubr.f32.mxu0 0.0
    %2004 = vmatmul.mubr.f32.gmra.mrb[0].mxu0 %v1077
    %v2005 = vpop.f32.mrb[0].mxu0
    %v2006 = vadd.f32 %v1440, %v2005
    %v2007 = vpop.f32.mrb[0].mxu0
    %2008 = vdwg.mxu0
    %vm2009 = vcmask 64512
    %v2011 = vsel %vm2009, %v207, 0
    %v2014 = vsel %vm2009, %v863, 0
    %2016 = vmatprep.subr.mxu0 0.0
    %2017 = vmatpush1.xpose.msra.mxu0 %v2014
    %2018 = vmatprep.subr.mxu0 0.0
    %2019 = vmatpush1.xpose.msra.mxu0 0.0
    %2020 = vmatprep.subr.mxu0 0.0
    %2021 = vmatpush1.xpose.msra.mxu0 0.0
    %2022 = vmatprep.subr.mxu0 0.0
    %2023 = vmatpush1.xpose.msra.mxu0 0.0
    %2024 = vmatprep.subr.mxu0 0.0
    %2025 = vmatpush1.xpose.msra.mxu0 0.0
    %2026 = vmatprep.subr.mxu0 0.0
    %2027 = vmatpush1.xpose.msra.mxu0 0.0
    %2028 = vmatprep.subr.mxu0 0.0
    %2029 = vmatpush1.xpose.msra.mxu0 0.0
    %2030 = vmatprep.subr.mxu0 0.0
    %2031 = vmatpush1.xpose.msra.mxu0 0.0
    %2032 = vmatprep.subr.mxu0 0.0
    %2033 = vmatpush1.xpose.msra.mxu0 0.0
    %2034 = vmatprep.subr.mxu0 0.0
    %2035 = vmatpush1.xpose.msra.mxu0 0.0
    %2036 = vmatprep.subr.mxu0 0.0
    %2037 = vmatpush1.xpose.msra.mxu0 0.0
    %2038 = vmatprep.subr.mxu0 0.0
    %2039 = vmatpush1.xpose.msra.mxu0 0.0
    %2040 = vmatprep.subr.mxu0 0.0
    %2041 = vmatpush1.xpose.msra.mxu0 0.0
    %2042 = vmatprep.subr.mxu0 0.0
    %2043 = vmatpush1.xpose.msra.mxu0 0.0
    %2044 = vmatprep.subr.mxu0 0.0
    %2045 = vmatpush1.xpose.msra.mxu0 0.0
    %2046 = vmatprep.subr.mxu0 0.0
    %2047 = vmatpush1.xpose.msra.mxu0 0.0
    %2048 = vmatprep.subr.mxu0 0.0
    %2049 = vmatpush1.xpose.msra.mxu0 0.0
    %2050 = vmatprep.subr.mxu0 0.0
    %2051 = vmatpush1.xpose.msra.mxu0 0.0
    %2052 = vmatprep.subr.mxu0 0.0
    %2053 = vmatpush1.xpose.msra.mxu0 0.0
    %2054 = vmatprep.subr.mxu0 0.0
    %2055 = vmatpush1.xpose.msra.mxu0 0.0
    %2056 = vmatprep.subr.mxu0 0.0
    %2057 = vmatpush1.xpose.msra.mxu0 0.0
    %2058 = vmatprep.subr.mxu0 0.0
    %2059 = vmatpush1.xpose.msra.mxu0 0.0
    %2060 = vmatprep.subr.mxu0 0.0
    %2061 = vmatpush1.xpose.msra.mxu0 0.0
    %2062 = vmatprep.subr.mxu0 0.0
    %2063 = vmatpush1.xpose.msra.mxu0 0.0
    %2064 = vmatprep.subr.mxu0 0.0
    %2065 = vmatpush1.xpose.msra.mxu0 0.0
    %2066 = vmatprep.subr.mxu0 0.0
    %2067 = vmatpush1.xpose.msra.mxu0 0.0
    %2068 = vmatprep.subr.mxu0 0.0
    %2069 = vmatpush1.xpose.msra.mxu0 0.0
    %2070 = vmatprep.subr.mxu0 0.0
    %2071 = vmatpush1.xpose.msra.mxu0 0.0
    %2072 = vmatprep.subr.mxu0 0.0
    %2073 = vmatpush1.xpose.msra.mxu0 0.0
    %2074 = vmatprep.subr.mxu0 0.0
    %2075 = vmatpush1.xpose.msra.mxu0 0.0
    %2076 = vmatprep.subr.mxu0 0.0
    %2077 = vmatpush1.xpose.msra.mxu0 0.0
    %2078 = vmatprep.subr.mxu0 0.0
    %2079 = vmatpush1.xpose.msra.mxu0 0.0
    %2080 = vmatprep.mubr.f32.mxu0 0.0
    %2081 = vmatmul.mubr.f32.gmra.mrb[0].mxu0 %v2011
    %v2082 = vpop.f32.mrb[0].mxu0
    %v2083 = vadd.f32 0.0, %v2082
    %v2084 = vpop.f32.mrb[0].mxu0
    %2085 = vdwg.mxu0
    %v2087 = vsel %vm2009, %v277, 0
    %v2090 = vsel %vm2009, %v933, 0
    %2092 = vmatprep.subr.mxu0 0.0
    %2093 = vmatpush1.xpose.msra.mxu0 %v2090
    %2094 = vmatprep.subr.mxu0 0.0
    %2095 = vmatpush1.xpose.msra.mxu0 0.0
    %2096 = vmatprep.subr.mxu0 0.0
    %2097 = vmatpush1.xpose.msra.mxu0 0.0
    %2098 = vmatprep.subr.mxu0 0.0
    %2099 = vmatpush1.xpose.msra.mxu0 0.0
    %2100 = vmatprep.subr.mxu0 0.0
    %2101 = vmatpush1.xpose.msra.mxu0 0.0
    %2102 = vmatprep.subr.mxu0 0.0
    %2103 = vmatpush1.xpose.msra.mxu0 0.0
    %2104 = vmatprep.subr.mxu0 0.0
    %2105 = vmatpush1.xpose.msra.mxu0 0.0
    %2106 = vmatprep.subr.mxu0 0.0
    %2107 = vmatpush1.xpose.msra.mxu0 0.0
    %2108 = vmatprep.subr.mxu0 0.0
    %2109 = vmatpush1.xpose.msra.mxu0 0.0
    %2110 = vmatprep.subr.mxu0 0.0
    %2111 = vmatpush1.xpose.msra.mxu0 0.0
    %2112 = vmatprep.subr.mxu0 0.0
    %2113 = vmatpush1.xpose.msra.mxu0 0.0
    %2114 = vmatprep.subr.mxu0 0.0
    %2115 = vmatpush1.xpose.msra.mxu0 0.0
    %2116 = vmatprep.subr.mxu0 0.0
    %2117 = vmatpush1.xpose.msra.mxu0 0.0
    %2118 = vmatprep.subr.mxu0 0.0
    %2119 = vmatpush1.xpose.msra.mxu0 0.0
    %2120 = vmatprep.subr.mxu0 0.0
    %2121 = vmatpush1.xpose.msra.mxu0 0.0
    %2122 = vmatprep.subr.mxu0 0.0
    %2123 = vmatpush1.xpose.msra.mxu0 0.0
    %2124 = vmatprep.subr.mxu0 0.0
    %2125 = vmatpush1.xpose.msra.mxu0 0.0
    %2126 = vmatprep.subr.mxu0 0.0
    %2127 = vmatpush1.xpose.msra.mxu0 0.0
    %2128 = vmatprep.subr.mxu0 0.0
    %2129 = vmatpush1.xpose.msra.mxu0 0.0
    %2130 = vmatprep.subr.mxu0 0.0
    %2131 = vmatpush1.xpose.msra.mxu0 0.0
    %2132 = vmatprep.subr.mxu0 0.0
    %2133 = vmatpush1.xpose.msra.mxu0 0.0
    %2134 = vmatprep.subr.mxu0 0.0
    %2135 = vmatpush1.xpose.msra.mxu0 0.0
    %2136 = vmatprep.subr.mxu0 0.0
    %2137 = vmatpush1.xpose.msra.mxu0 0.0
    %2138 = vmatprep.subr.mxu0 0.0
    %2139 = vmatpush1.xpose.msra.mxu0 0.0
    %2140 = vmatprep.subr.mxu0 0.0
    %2141 = vmatpush1.xpose.msra.mxu0 0.0
    %2142 = vmatprep.subr.mxu0 0.0
    %2143 = vmatpush1.xpose.msra.mxu0 0.0
    %2144 = vmatprep.subr.mxu0 0.0
    %2145 = vmatpush1.xpose.msra.mxu0 0.0
    %2146 = vmatprep.subr.mxu0 0.0
    %2147 = vmatpush1.xpose.msra.mxu0 0.0
    %2148 = vmatprep.subr.mxu0 0.0
    %2149 = vmatpush1.xpose.msra.mxu0 0.0
    %2150 = vmatprep.subr.mxu0 0.0
    %2151 = vmatpush1.xpose.msra.mxu0 0.0
    %2152 = vmatprep.subr.mxu0 0.0
    %2153 = vmatpush1.xpose.msra.mxu0 0.0
    %2154 = vmatprep.subr.mxu0 0.0
    %2155 = vmatpush1.xpose.msra.mxu0 0.0
    %2156 = vmatprep.mubr.f32.mxu0 0.0
    %2157 = vmatmul.mubr.f32.gmra.mrb[0].mxu0 %v2087
    %v2158 = vpop.f32.mrb[0].mxu0
    %v2159 = vadd.f32 0.0, %v2158
    %v2160 = vpop.f32.mrb[0].mxu0
    %2161 = vdwg.mxu0
    %v2163 = vsel %vm2009, %v347, 0
    %v2166 = vsel %vm2009, %v1003, 0
    %2168 = vmatprep.subr.mxu0 0.0
    %2169 = vmatpush1.xpose.msra.mxu0 %v2166
    %2170 = vmatprep.subr.mxu0 0.0
    %2171 = vmatpush1.xpose.msra.mxu0 0.0
    %2172 = vmatprep.subr.mxu0 0.0
    %2173 = vmatpush1.xpose.msra.mxu0 0.0
    %2174 = vmatprep.subr.mxu0 0.0
    %2175 = vmatpush1.xpose.msra.mxu0 0.0
    %2176 = vmatprep.subr.mxu0 0.0
    %2177 = vmatpush1.xpose.msra.mxu0 0.0
    %2178 = vmatprep.subr.mxu0 0.0
    %2179 = vmatpush1.xpose.msra.mxu0 0.0
    %2180 = vmatprep.subr.mxu0 0.0
    %2181 = vmatpush1.xpose.msra.mxu0 0.0
    %2182 = vmatprep.subr.mxu0 0.0
    %2183 = vmatpush1.xpose.msra.mxu0 0.0
    %2184 = vmatprep.subr.mxu0 0.0
    %2185 = vmatpush1.xpose.msra.mxu0 0.0
    %2186 = vmatprep.subr.mxu0 0.0
    %2187 = vmatpush1.xpose.msra.mxu0 0.0
    %2188 = vmatprep.subr.mxu0 0.0
    %2189 = vmatpush1.xpose.msra.mxu0 0.0
    %2190 = vmatprep.subr.mxu0 0.0
    %2191 = vmatpush1.xpose.msra.mxu0 0.0
    %2192 = vmatprep.subr.mxu0 0.0
    %2193 = vmatpush1.xpose.msra.mxu0 0.0
    %2194 = vmatprep.subr.mxu0 0.0
    %2195 = vmatpush1.xpose.msra.mxu0 0.0
    %2196 = vmatprep.subr.mxu0 0.0
    %2197 = vmatpush1.xpose.msra.mxu0 0.0
    %2198 = vmatprep.subr.mxu0 0.0
    %2199 = vmatpush1.xpose.msra.mxu0 0.0
    %2200 = vmatprep.subr.mxu0 0.0
    %2201 = vmatpush1.xpose.msra.mxu0 0.0
    %2202 = vmatprep.subr.mxu0 0.0
    %2203 = vmatpush1.xpose.msra.mxu0 0.0
    %2204 = vmatprep.subr.mxu0 0.0
    %2205 = vmatpush1.xpose.msra.mxu0 0.0
    %2206 = vmatprep.subr.mxu0 0.0
    %2207 = vmatpush1.xpose.msra.mxu0 0.0
    %2208 = vmatprep.subr.mxu0 0.0
    %2209 = vmatpush1.xpose.msra.mxu0 0.0
    %2210 = vmatprep.subr.mxu0 0.0
    %2211 = vmatpush1.xpose.msra.mxu0 0.0
    %2212 = vmatprep.subr.mxu0 0.0
    %2213 = vmatpush1.xpose.msra.mxu0 0.0
    %2214 = vmatprep.subr.mxu0 0.0
    %2215 = vmatpush1.xpose.msra.mxu0 0.0
    %2216 = vmatprep.subr.mxu0 0.0
    %2217 = vmatpush1.xpose.msra.mxu0 0.0
    %2218 = vmatprep.subr.mxu0 0.0
    %2219 = vmatpush1.xpose.msra.mxu0 0.0
    %2220 = vmatprep.subr.mxu0 0.0
    %2221 = vmatpush1.xpose.msra.mxu0 0.0
    %2222 = vmatprep.subr.mxu0 0.0
    %2223 = vmatpush1.xpose.msra.mxu0 0.0
    %2224 = vmatprep.subr.mxu0 0.0
    %2225 = vmatpush1.xpose.msra.mxu0 0.0
    %2226 = vmatprep.subr.mxu0 0.0
    %2227 = vmatpush1.xpose.msra.mxu0 0.0
    %2228 = vmatprep.subr.mxu0 0.0
    %2229 = vmatpush1.xpose.msra.mxu0 0.0
    %2230 = vmatprep.subr.mxu0 0.0
    %2231 = vmatpush1.xpose.msra.mxu0 0.0
    %2232 = vmatprep.mubr.f32.mxu0 0.0
    %2233 = vmatmul.mubr.f32.gmra.mrb[0].mxu0 %v2163
    %v2234 = vpop.f32.mrb[0].mxu0
    %v2235 = vadd.f32 0.0, %v2234
    %v2236 = vpop.f32.mrb[0].mxu0
    %2237 = vdwg.mxu0
    %v2239 = vsel %vm2009, %v417, 0
    %v2242 = vsel %vm2009, %v1073, 0
    %2244 = vmatprep.subr.mxu0 0.0
    %2245 = vmatpush1.xpose.msra.mxu0 %v2242
    %2246 = vmatprep.subr.mxu0 0.0
    %2247 = vmatpush1.xpose.msra.mxu0 0.0
    %2248 = vmatprep.subr.mxu0 0.0
    %2249 = vmatpush1.xpose.msra.mxu0 0.0
    %2250 = vmatprep.subr.mxu0 0.0
    %2251 = vmatpush1.xpose.msra.mxu0 0.0
    %2252 = vmatprep.subr.mxu0 0.0
    %2253 = vmatpush1.xpose.msra.mxu0 0.0
    %2254 = vmatprep.subr.mxu0 0.0
    %2255 = vmatpush1.xpose.msra.mxu0 0.0
    %2256 = vmatprep.subr.mxu0 0.0
    %2257 = vmatpush1.xpose.msra.mxu0 0.0
    %2258 = vmatprep.subr.mxu0 0.0
    %2259 = vmatpush1.xpose.msra.mxu0 0.0
    %2260 = vmatprep.subr.mxu0 0.0
    %2261 = vmatpush1.xpose.msra.mxu0 0.0
    %2262 = vmatprep.subr.mxu0 0.0
    %2263 = vmatpush1.xpose.msra.mxu0 0.0
    %2264 = vmatprep.subr.mxu0 0.0
    %2265 = vmatpush1.xpose.msra.mxu0 0.0
    %2266 = vmatprep.subr.mxu0 0.0
    %2267 = vmatpush1.xpose.msra.mxu0 0.0
    %2268 = vmatprep.subr.mxu0 0.0
    %2269 = vmatpush1.xpose.msra.mxu0 0.0
    %2270 = vmatprep.subr.mxu0 0.0
    %2271 = vmatpush1.xpose.msra.mxu0 0.0
    %2272 = vmatprep.subr.mxu0 0.0
    %2273 = vmatpush1.xpose.msra.mxu0 0.0
    %2274 = vmatprep.subr.mxu0 0.0
    %2275 = vmatpush1.xpose.msra.mxu0 0.0
    %2276 = vmatprep.subr.mxu0 0.0
    %2277 = vmatpush1.xpose.msra.mxu0 0.0
    %2278 = vmatprep.subr.mxu0 0.0
    %2279 = vmatpush1.xpose.msra.mxu0 0.0
    %2280 = vmatprep.subr.mxu0 0.0
    %2281 = vmatpush1.xpose.msra.mxu0 0.0
    %2282 = vmatprep.subr.mxu0 0.0
    %2283 = vmatpush1.xpose.msra.mxu0 0.0
    %2284 = vmatprep.subr.mxu0 0.0
    %2285 = vmatpush1.xpose.msra.mxu0 0.0
    %2286 = vmatprep.subr.mxu0 0.0
    %2287 = vmatpush1.xpose.msra.mxu0 0.0
    %2288 = vmatprep.subr.mxu0 0.0
    %2289 = vmatpush1.xpose.msra.mxu0 0.0
    %2290 = vmatprep.subr.mxu0 0.0
    %2291 = vmatpush1.xpose.msra.mxu0 0.0
    %2292 = vmatprep.subr.mxu0 0.0
    %2293 = vmatpush1.xpose.msra.mxu0 0.0
    %2294 = vmatprep.subr.mxu0 0.0
    %2295 = vmatpush1.xpose.msra.mxu0 0.0
    %2296 = vmatprep.subr.mxu0 0.0
    %2297 = vmatpush1.xpose.msra.mxu0 0.0
    %2298 = vmatprep.subr.mxu0 0.0
    %2299 = vmatpush1.xpose.msra.mxu0 0.0
    %2300 = vmatprep.subr.mxu0 0.0
    %2301 = vmatpush1.xpose.msra.mxu0 0.0
    %2302 = vmatprep.subr.mxu0 0.0
    %2303 = vmatpush1.xpose.msra.mxu0 0.0
    %2304 = vmatprep.subr.mxu0 0.0
    %2305 = vmatpush1.xpose.msra.mxu0 0.0
    %2306 = vmatprep.subr.mxu0 0.0
    %2307 = vmatpush1.xpose.msra.mxu0 0.0
    %2308 = vmatprep.mubr.f32.mxu0 0.0
    %2309 = vmatmul.mubr.f32.gmra.mrb[0].mxu0 %v2239
    %v2310 = vpop.f32.mrb[0].mxu0
    %v2311 = vadd.f32 0.0, %v2310
    %v2312 = vpop.f32.mrb[0].mxu0
    %2313 = vdwg.mxu0
    %v2315 = vsel %vm2009, %v490, 0
    %v2318 = vsel %vm2009, %v1146, 0
    %2320 = vmatprep.subr.mxu0 0.0
    %2321 = vmatpush1.xpose.msra.mxu0 %v2318
    %2322 = vmatprep.subr.mxu0 0.0
    %2323 = vmatpush1.xpose.msra.mxu0 0.0
    %2324 = vmatprep.subr.mxu0 0.0
    %2325 = vmatpush1.xpose.msra.mxu0 0.0
    %2326 = vmatprep.subr.mxu0 0.0
    %2327 = vmatpush1.xpose.msra.mxu0 0.0
    %2328 = vmatprep.subr.mxu0 0.0
    %2329 = vmatpush1.xpose.msra.mxu0 0.0
    %2330 = vmatprep.subr.mxu0 0.0
    %2331 = vmatpush1.xpose.msra.mxu0 0.0
    %2332 = vmatprep.subr.mxu0 0.0
    %2333 = vmatpush1.xpose.msra.mxu0 0.0
    %2334 = vmatprep.subr.mxu0 0.0
    %2335 = vmatpush1.xpose.msra.mxu0 0.0
    %2336 = vmatprep.subr.mxu0 0.0
    %2337 = vmatpush1.xpose.msra.mxu0 0.0
    %2338 = vmatprep.subr.mxu0 0.0
    %2339 = vmatpush1.xpose.msra.mxu0 0.0
    %2340 = vmatprep.subr.mxu0 0.0
    %2341 = vmatpush1.xpose.msra.mxu0 0.0
    %2342 = vmatprep.subr.mxu0 0.0
    %2343 = vmatpush1.xpose.msra.mxu0 0.0
    %2344 = vmatprep.subr.mxu0 0.0
    %2345 = vmatpush1.xpose.msra.mxu0 0.0
    %2346 = vmatprep.subr.mxu0 0.0
    %2347 = vmatpush1.xpose.msra.mxu0 0.0
    %2348 = vmatprep.subr.mxu0 0.0
    %2349 = vmatpush1.xpose.msra.mxu0 0.0
    %2350 = vmatprep.subr.mxu0 0.0
    %2351 = vmatpush1.xpose.msra.mxu0 0.0
    %2352 = vmatprep.subr.mxu0 0.0
    %2353 = vmatpush1.xpose.msra.mxu0 0.0
    %2354 = vmatprep.subr.mxu0 0.0
    %2355 = vmatpush1.xpose.msra.mxu0 0.0
    %2356 = vmatprep.subr.mxu0 0.0
    %2357 = vmatpush1.xpose.msra.mxu0 0.0
    %2358 = vmatprep.subr.mxu0 0.0
    %2359 = vmatpush1.xpose.msra.mxu0 0.0
    %2360 = vmatprep.subr.mxu0 0.0
    %2361 = vmatpush1.xpose.msra.mxu0 0.0
    %2362 = vmatprep.subr.mxu0 0.0
    %2363 = vmatpush1.xpose.msra.mxu0 0.0
    %2364 = vmatprep.subr.mxu0 0.0
    %2365 = vmatpush1.xpose.msra.mxu0 0.0
    %2366 = vmatprep.subr.mxu0 0.0
    %2367 = vmatpush1.xpose.msra.mxu0 0.0
    %2368 = vmatprep.subr.mxu0 0.0
    %2369 = vmatpush1.xpose.msra.mxu0 0.0
    %2370 = vmatprep.subr.mxu0 0.0
    %2371 = vmatpush1.xpose.msra.mxu0 0.0
    %2372 = vmatprep.subr.mxu0 0.0
    %2373 = vmatpush1.xpose.msra.mxu0 0.0
    %2374 = vmatprep.subr.mxu0 0.0
    %2375 = vmatpush1.xpose.msra.mxu0 0.0
    %2376 = vmatprep.subr.mxu0 0.0
    %2377 = vmatpush1.xpose.msra.mxu0 0.0
    %2378 = vmatprep.subr.mxu0 0.0
    %2379 = vmatpush1.xpose.msra.mxu0 0.0
    %2380 = vmatprep.subr.mxu0 0.0
    %2381 = vmatpush1.xpose.msra.mxu0 0.0
    %2382 = vmatprep.subr.mxu0 0.0
    %2383 = vmatpush1.xpose.msra.mxu0 0.0
    %2384 = vmatprep.mubr.f32.mxu0 0.0
    %2385 = vmatmul.mubr.f32.gmra.mrb[0].mxu0 %v2315
    %v2386 = vpop.f32.mrb[0].mxu0
    %v2387 = vadd.f32 0.0, %v2386
    %v2388 = vpop.f32.mrb[0].mxu0
    %2389 = vdwg.mxu0
    %v2391 = vsel %vm2009, %v560, 0
    %v2394 = vsel %vm2009, %v1216, 0
    %2396 = vmatprep.subr.mxu0 0.0
    %2397 = vmatpush1.xpose.msra.mxu0 %v2394
    %2398 = vmatprep.subr.mxu0 0.0
    %2399 = vmatpush1.xpose.msra.mxu0 0.0
    %2400 = vmatprep.subr.mxu0 0.0
    %2401 = vmatpush1.xpose.msra.mxu0 0.0
    %2402 = vmatprep.subr.mxu0 0.0
    %2403 = vmatpush1.xpose.msra.mxu0 0.0
    %2404 = vmatprep.subr.mxu0 0.0
    %2405 = vmatpush1.xpose.msra.mxu0 0.0
    %2406 = vmatprep.subr.mxu0 0.0
    %2407 = vmatpush1.xpose.msra.mxu0 0.0
    %2408 = vmatprep.subr.mxu0 0.0
    %2409 = vmatpush1.xpose.msra.mxu0 0.0
    %2410 = vmatprep.subr.mxu0 0.0
    %2411 = vmatpush1.xpose.msra.mxu0 0.0
    %2412 = vmatprep.subr.mxu0 0.0
    %2413 = vmatpush1.xpose.msra.mxu0 0.0
    %2414 = vmatprep.subr.mxu0 0.0
    %2415 = vmatpush1.xpose.msra.mxu0 0.0
    %2416 = vmatprep.subr.mxu0 0.0
    %2417 = vmatpush1.xpose.msra.mxu0 0.0
    %2418 = vmatprep.subr.mxu0 0.0
    %2419 = vmatpush1.xpose.msra.mxu0 0.0
    %2420 = vmatprep.subr.mxu0 0.0
    %2421 = vmatpush1.xpose.msra.mxu0 0.0
    %2422 = vmatprep.subr.mxu0 0.0
    %2423 = vmatpush1.xpose.msra.mxu0 0.0
    %2424 = vmatprep.subr.mxu0 0.0
    %2425 = vmatpush1.xpose.msra.mxu0 0.0
    %2426 = vmatprep.subr.mxu0 0.0
    %2427 = vmatpush1.xpose.msra.mxu0 0.0
    %2428 = vmatprep.subr.mxu0 0.0
    %2429 = vmatpush1.xpose.msra.mxu0 0.0
    %2430 = vmatprep.subr.mxu0 0.0
    %2431 = vmatpush1.xpose.msra.mxu0 0.0
    %2432 = vmatprep.subr.mxu0 0.0
    %2433 = vmatpush1.xpose.msra.mxu0 0.0
    %2434 = vmatprep.subr.mxu0 0.0
    %2435 = vmatpush1.xpose.msra.mxu0 0.0
    %2436 = vmatprep.subr.mxu0 0.0
    %2437 = vmatpush1.xpose.msra.mxu0 0.0
    %2438 = vmatprep.subr.mxu0 0.0
    %2439 = vmatpush1.xpose.msra.mxu0 0.0
    %2440 = vmatprep.subr.mxu0 0.0
    %2441 = vmatpush1.xpose.msra.mxu0 0.0
    %2442 = vmatprep.subr.mxu0 0.0
    %2443 = vmatpush1.xpose.msra.mxu0 0.0
    %2444 = vmatprep.subr.mxu0 0.0
    %2445 = vmatpush1.xpose.msra.mxu0 0.0
    %2446 = vmatprep.subr.mxu0 0.0
    %2447 = vmatpush1.xpose.msra.mxu0 0.0
    %2448 = vmatprep.subr.mxu0 0.0
    %2449 = vmatpush1.xpose.msra.mxu0 0.0
    %2450 = vmatprep.subr.mxu0 0.0
    %2451 = vmatpush1.xpose.msra.mxu0 0.0
    %2452 = vmatprep.subr.mxu0 0.0
    %2453 = vmatpush1.xpose.msra.mxu0 0.0
    %2454 = vmatprep.subr.mxu0 0.0
    %2455 = vmatpush1.xpose.msra.mxu0 0.0
    %2456 = vmatprep.subr.mxu0 0.0
    %2457 = vmatpush1.xpose.msra.mxu0 0.0
    %2458 = vmatprep.subr.mxu0 0.0
    %2459 = vmatpush1.xpose.msra.mxu0 0.0
    %2460 = vmatprep.mubr.f32.mxu0 0.0
    %2461 = vmatmul.mubr.f32.gmra.mrb[0].mxu0 %v2391
    %v2462 = vpop.f32.mrb[0].mxu0
    %v2463 = vadd.f32 0.0, %v2462
    %v2464 = vpop.f32.mrb[0].mxu0
    %2465 = vdwg.mxu0
    %v2467 = vsel %vm2009, %v630, 0
    %v2470 = vsel %vm2009, %v1286, 0
    %2472 = vmatprep.subr.mxu0 0.0
    %2473 = vmatpush1.xpose.msra.mxu0 %v2470
    %2474 = vmatprep.subr.mxu0 0.0
    %2475 = vmatpush1.xpose.msra.mxu0 0.0
    %2476 = vmatprep.subr.mxu0 0.0
    %2477 = vmatpush1.xpose.msra.mxu0 0.0
    %2478 = vmatprep.subr.mxu0 0.0
    %2479 = vmatpush1.xpose.msra.mxu0 0.0
    %2480 = vmatprep.subr.mxu0 0.0
    %2481 = vmatpush1.xpose.msra.mxu0 0.0
    %2482 = vmatprep.subr.mxu0 0.0
    %2483 = vmatpush1.xpose.msra.mxu0 0.0
    %2484 = vmatprep.subr.mxu0 0.0
    %2485 = vmatpush1.xpose.msra.mxu0 0.0
    %2486 = vmatprep.subr.mxu0 0.0
    %2487 = vmatpush1.xpose.msra.mxu0 0.0
    %2488 = vmatprep.subr.mxu0 0.0
    %2489 = vmatpush1.xpose.msra.mxu0 0.0
    %2490 = vmatprep.subr.mxu0 0.0
    %2491 = vmatpush1.xpose.msra.mxu0 0.0
    %2492 = vmatprep.subr.mxu0 0.0
    %2493 = vmatpush1.xpose.msra.mxu0 0.0
    %2494 = vmatprep.subr.mxu0 0.0
    %2495 = vmatpush1.xpose.msra.mxu0 0.0
    %2496 = vmatprep.subr.mxu0 0.0
    %2497 = vmatpush1.xpose.msra.mxu0 0.0
    %2498 = vmatprep.subr.mxu0 0.0
    %2499 = vmatpush1.xpose.msra.mxu0 0.0
    %2500 = vmatprep.subr.mxu0 0.0
    %2501 = vmatpush1.xpose.msra.mxu0 0.0
    %2502 = vmatprep.subr.mxu0 0.0
    %2503 = vmatpush1.xpose.msra.mxu0 0.0
    %2504 = vmatprep.subr.mxu0 0.0
    %2505 = vmatpush1.xpose.msra.mxu0 0.0
    %2506 = vmatprep.subr.mxu0 0.0
    %2507 = vmatpush1.xpose.msra.mxu0 0.0
    %2508 = vmatprep.subr.mxu0 0.0
    %2509 = vmatpush1.xpose.msra.mxu0 0.0
    %2510 = vmatprep.subr.mxu0 0.0
    %2511 = vmatpush1.xpose.msra.mxu0 0.0
    %2512 = vmatprep.subr.mxu0 0.0
    %2513 = vmatpush1.xpose.msra.mxu0 0.0
    %2514 = vmatprep.subr.mxu0 0.0
    %2515 = vmatpush1.xpose.msra.mxu0 0.0
    %2516 = vmatprep.subr.mxu0 0.0
    %2517 = vmatpush1.xpose.msra.mxu0 0.0
    %2518 = vmatprep.subr.mxu0 0.0
    %2519 = vmatpush1.xpose.msra.mxu0 0.0
    %2520 = vmatprep.subr.mxu0 0.0
    %2521 = vmatpush1.xpose.msra.mxu0 0.0
    %2522 = vmatprep.subr.mxu0 0.0
    %2523 = vmatpush1.xpose.msra.mxu0 0.0
    %2524 = vmatprep.subr.mxu0 0.0
    %2525 = vmatpush1.xpose.msra.mxu0 0.0
    %2526 = vmatprep.subr.mxu0 0.0
    %2527 = vmatpush1.xpose.msra.mxu0 0.0
    %2528 = vmatprep.subr.mxu0 0.0
    %2529 = vmatpush1.xpose.msra.mxu0 0.0
    %2530 = vmatprep.subr.mxu0 0.0
    %2531 = vmatpush1.xpose.msra.mxu0 0.0
    %2532 = vmatprep.subr.mxu0 0.0
    %2533 = vmatpush1.xpose.msra.mxu0 0.0
    %2534 = vmatprep.subr.mxu0 0.0
    %2535 = vmatpush1.xpose.msra.mxu0 0.0
    %2536 = vmatprep.mubr.f32.mxu0 0.0
    %2537 = vmatmul.mubr.f32.gmra.mrb[0].mxu0 %v2467
    %v2538 = vpop.f32.mrb[0].mxu0
    %v2539 = vadd.f32 0.0, %v2538
    %v2540 = vpop.f32.mrb[0].mxu0
    %2541 = vdwg.mxu0
    %v2543 = vsel %vm2009, %v700, 0
    %v2546 = vsel %vm2009, %v1356, 0
    %2548 = vmatprep.subr.mxu0 0.0
    %2549 = vmatpush1.xpose.msra.mxu0 %v2546
    %2550 = vmatprep.subr.mxu0 0.0
    %2551 = vmatpush1.xpose.msra.mxu0 0.0
    %2552 = vmatprep.subr.mxu0 0.0
    %2553 = vmatpush1.xpose.msra.mxu0 0.0
    %2554 = vmatprep.subr.mxu0 0.0
    %2555 = vmatpush1.xpose.msra.mxu0 0.0
    %2556 = vmatprep.subr.mxu0 0.0
    %2557 = vmatpush1.xpose.msra.mxu0 0.0
    %2558 = vmatprep.subr.mxu0 0.0
    %2559 = vmatpush1.xpose.msra.mxu0 0.0
    %2560 = vmatprep.subr.mxu0 0.0
    %2561 = vmatpush1.xpose.msra.mxu0 0.0
    %2562 = vmatprep.subr.mxu0 0.0
    %2563 = vmatpush1.xpose.msra.mxu0 0.0
    %2564 = vmatprep.subr.mxu0 0.0
    %2565 = vmatpush1.xpose.msra.mxu0 0.0
    %2566 = vmatprep.subr.mxu0 0.0
    %2567 = vmatpush1.xpose.msra.mxu0 0.0
    %2568 = vmatprep.subr.mxu0 0.0
    %2569 = vmatpush1.xpose.msra.mxu0 0.0
    %2570 = vmatprep.subr.mxu0 0.0
    %2571 = vmatpush1.xpose.msra.mxu0 0.0
    %2572 = vmatprep.subr.mxu0 0.0
    %2573 = vmatpush1.xpose.msra.mxu0 0.0
    %2574 = vmatprep.subr.mxu0 0.0
    %2575 = vmatpush1.xpose.msra.mxu0 0.0
    %2576 = vmatprep.subr.mxu0 0.0
    %2577 = vmatpush1.xpose.msra.mxu0 0.0
    %2578 = vmatprep.subr.mxu0 0.0
    %2579 = vmatpush1.xpose.msra.mxu0 0.0
    %2580 = vmatprep.subr.mxu0 0.0
    %2581 = vmatpush1.xpose.msra.mxu0 0.0
    %2582 = vmatprep.subr.mxu0 0.0
    %2583 = vmatpush1.xpose.msra.mxu0 0.0
    %2584 = vmatprep.subr.mxu0 0.0
    %2585 = vmatpush1.xpose.msra.mxu0 0.0
    %2586 = vmatprep.subr.mxu0 0.0
    %2587 = vmatpush1.xpose.msra.mxu0 0.0
    %2588 = vmatprep.subr.mxu0 0.0
    %2589 = vmatpush1.xpose.msra.mxu0 0.0
    %2590 = vmatprep.subr.mxu0 0.0
    %2591 = vmatpush1.xpose.msra.mxu0 0.0
    %2592 = vmatprep.subr.mxu0 0.0
    %2593 = vmatpush1.xpose.msra.mxu0 0.0
    %2594 = vmatprep.subr.mxu0 0.0
    %2595 = vmatpush1.xpose.msra.mxu0 0.0
    %2596 = vmatprep.subr.mxu0 0.0
    %2597 = vmatpush1.xpose.msra.mxu0 0.0
    %2598 = vmatprep.subr.mxu0 0.0
    %2599 = vmatpush1.xpose.msra.mxu0 0.0
    %2600 = vmatprep.subr.mxu0 0.0
    %2601 = vmatpush1.xpose.msra.mxu0 0.0
    %2602 = vmatprep.subr.mxu0 0.0
    %2603 = vmatpush1.xpose.msra.mxu0 0.0
    %2604 = vmatprep.subr.mxu0 0.0
    %2605 = vmatpush1.xpose.msra.mxu0 0.0
    %2606 = vmatprep.subr.mxu0 0.0
    %2607 = vmatpush1.xpose.msra.mxu0 0.0
    %2608 = vmatprep.subr.mxu0 0.0
    %2609 = vmatpush1.xpose.msra.mxu0 0.0
    %2610 = vmatprep.subr.mxu0 0.0
    %2611 = vmatpush1.xpose.msra.mxu0 0.0
    %2612 = vmatprep.mubr.f32.mxu0 0.0
    %2613 = vmatmul.mubr.f32.gmra.mrb[0].mxu0 %v2543
    %v2614 = vpop.f32.mrb[0].mxu0
    %v2615 = vadd.f32 0.0, %v2614
    %v2616 = vpop.f32.mrb[0].mxu0
    %2617 = vdwg.mxu0
    %v2618 = vsel %vm2009, %v2083, -inf
    %2619 = vmax.xlane.f32.xlu0 %v2618
    %v2620 = vpop.xlane.xlu0 %2619
    %v2621 = vsel %vm2009, %v2159, -inf
    %2622 = vmax.xlane.f32.xlu0 %v2621
    %v2623 = vpop.xlane.xlu0 %2622
    %v2624 = vsel %vm2009, %v2235, -inf
    %2625 = vmax.xlane.f32.xlu0 %v2624
    %v2626 = vpop.xlane.xlu0 %2625
    %v2627 = vsel %vm2009, %v2311, -inf
    %2628 = vmax.xlane.f32.xlu0 %v2627
    %v2629 = vpop.xlane.xlu0 %2628
    %v2630 = vsel %vm2009, %v2387, -inf
    %2631 = vmax.xlane.f32.xlu0 %v2630
    %v2632 = vpop.xlane.xlu0 %2631
    %v2633 = vsel %vm2009, %v2463, -inf
    %2634 = vmax.xlane.f32.xlu0 %v2633
    %v2635 = vpop.xlane.xlu0 %2634
    %v2636 = vsel %vm2009, %v2539, -inf
    %2637 = vmax.xlane.f32.xlu0 %v2636
    %v2638 = vpop.xlane.xlu0 %2637
    %v2639 = vsel %vm2009, %v2615, -inf
    %2640 = vmax.xlane.f32.xlu0 %v2639
    %v2641 = vpop.xlane.xlu0 %2640
    %v2642 = vsub.f32 %v2083, %v2620
    %v2643 = vsub.f32 %v2159, %v2623
    %v2644 = vsub.f32 %v2235, %v2626
    %v2645 = vsub.f32 %v2311, %v2629
    %v2646 = vsub.f32 %v2387, %v2632
    %v2647 = vsub.f32 %v2463, %v2635
    %v2648 = vsub.f32 %v2539, %v2638
    %v2649 = vsub.f32 %v2615, %v2641
    %v2650 = vmul.f32 %v2642, 1.442695
    %v2651 = vpow.pop %v2650
    %v2652 = vmul.f32 %v2643, 1.442695
    %v2653 = vpow.pop %v2652
    %v2654 = vmul.f32 %v2644, 1.442695
    %v2655 = vpow.pop %v2654
    %v2656 = vmul.f32 %v2645, 1.442695
    %v2657 = vpow.pop %v2656
    %v2658 = vmul.f32 %v2646, 1.442695
    %v2659 = vpow.pop %v2658
    %v2660 = vmul.f32 %v2647, 1.442695
    %v2661 = vpow.pop %v2660
    %v2662 = vmul.f32 %v2648, 1.442695
    %v2663 = vpow.pop %v2662
    %v2664 = vmul.f32 %v2649, 1.442695
    %v2665 = vpow.pop %v2664
    %v2666 = vsel %vm2009, %v2651, 0.0
    %2667 = vadd.xlane.f32.xlu0 %v2666
    %v2668 = vpop.xlane.xlu0 %2667
    %v2669 = vsel %vm2009, %v2653, 0.0
    %2670 = vadd.xlane.f32.xlu0 %v2669
    %v2671 = vpop.xlane.xlu0 %2670
    %v2672 = vsel %vm2009, %v2655, 0.0
    %2673 = vadd.xlane.f32.xlu0 %v2672
    %v2674 = vpop.xlane.xlu0 %2673
    %v2675 = vsel %vm2009, %v2657, 0.0
    %2676 = vadd.xlane.f32.xlu0 %v2675
    %v2677 = vpop.xlane.xlu0 %2676
    %v2678 = vsel %vm2009, %v2659, 0.0
    %2679 = vadd.xlane.f32.xlu0 %v2678
    %v2680 = vpop.xlane.xlu0 %2679
    %v2681 = vsel %vm2009, %v2661, 0.0
    %2682 = vadd.xlane.f32.xlu0 %v2681
    %v2683 = vpop.xlane.xlu0 %2682
    %v2684 = vsel %vm2009, %v2663, 0.0
    %2685 = vadd.xlane.f32.xlu0 %v2684
    %v2686 = vpop.xlane.xlu0 %2685
    %v2687 = vsel %vm2009, %v2665, 0.0
    %2688 = vadd.xlane.f32.xlu0 %v2687
    %v2689 = vpop.xlane.xlu0 %2688
    %v2690 = vrcp.pop %v2668
    %v2691 = vrcp.pop %v2671
    %v2692 = vrcp.pop %v2674
    %v2693 = vrcp.pop %v2677
    %v2694 = vrcp.pop %v2680
    %v2695 = vrcp.pop %v2683
    %v2696 = vrcp.pop %v2686
    %v2697 = vrcp.pop %v2689
    %v2698 = vmul.f32 %v2651, %v2690
    %v2699 = vmul.f32 %v2653, %v2691
    %v2700 = vmul.f32 %v2655, %v2692
    %v2701 = vmul.f32 %v2657, %v2693
    %v2702 = vmul.f32 %v2659, %v2694
    %v2703 = vmul.f32 %v2661, %v2695
    %v2704 = vmul.f32 %v2663, %v2696
    %v2705 = vmul.f32 %v2665, %v2697
    %v2707 = vsel %vm2009, %v2698, 0
    %2709 = vmatprep.subr.mxu0 0.0
    %2710 = vmatpush1.msra.mxu0 %v1516
    %2711 = vmatprep.subr.mxu0 0.0
    %2712 = vmatpush1.msra.mxu0 0.0
    %2713 = vmatprep.subr.mxu0 0.0
    %2714 = vmatpush1.msra.mxu0 0.0
    %2715 = vmatprep.subr.mxu0 0.0
    %2716 = vmatpush1.msra.mxu0 0.0
    %2717 = vmatprep.subr.mxu0 0.0
    %2718 = vmatpush1.msra.mxu0 0.0
    %2719 = vmatprep.subr.mxu0 0.0
    %2720 = vmatpush1.msra.mxu0 0.0
    %2721 = vmatprep.subr.mxu0 0.0
    %2722 = vmatpush1.msra.mxu0 0.0
    %2723 = vmatprep.subr.mxu0 0.0
    %2724 = vmatpush1.msra.mxu0 0.0
    %2725 = vmatprep.subr.mxu0 0.0
    %2726 = vmatpush1.msra.mxu0 0.0
    %2727 = vmatprep.subr.mxu0 0.0
    %2728 = vmatpush1.msra.mxu0 0.0
    %2729 = vmatprep.subr.mxu0 0.0
    %2730 = vmatpush1.msra.mxu0 0.0
    %2731 = vmatprep.subr.mxu0 0.0
    %2732 = vmatpush1.msra.mxu0 0.0
    %2733 = vmatprep.subr.mxu0 0.0
    %2734 = vmatpush1.msra.mxu0 0.0
    %2735 = vmatprep.subr.mxu0 0.0
    %2736 = vmatpush1.msra.mxu0 0.0
    %2737 = vmatprep.subr.mxu0 0.0
    %2738 = vmatpush1.msra.mxu0 0.0
    %2739 = vmatprep.subr.mxu0 0.0
    %2740 = vmatpush1.msra.mxu0 0.0
    %2741 = vmatprep.subr.mxu0 0.0
    %2742 = vmatpush1.msra.mxu0 0.0
    %2743 = vmatprep.subr.mxu0 0.0
    %2744 = vmatpush1.msra.mxu0 0.0
    %2745 = vmatprep.subr.mxu0 0.0
    %2746 = vmatpush1.msra.mxu0 0.0
    %2747 = vmatprep.subr.mxu0 0.0
    %2748 = vmatpush1.msra.mxu0 0.0
    %2749 = vmatprep.subr.mxu0 0.0
    %2750 = vmatpush1.msra.mxu0 0.0
    %2751 = vmatprep.subr.mxu0 0.0
    %2752 = vmatpush1.msra.mxu0 0.0
    %2753 = vmatprep.subr.mxu0 0.0
    %2754 = vmatpush1.msra.mxu0 0.0
    %2755 = vmatprep.subr.mxu0 0.0
    %2756 = vmatpush1.msra.mxu0 0.0
    %2757 = vmatprep.subr.mxu0 0.0
    %2758 = vmatpush1.msra.mxu0 0.0
    %2759 = vmatprep.subr.mxu0 0.0
    %2760 = vmatpush1.msra.mxu0 0.0
    %2761 = vmatprep.subr.mxu0 0.0
    %2762 = vmatpush1.msra.mxu0 0.0
    %2763 = vmatprep.subr.mxu0 0.0
    %2764 = vmatpush1.msra.mxu0 0.0
    %2765 = vmatprep.subr.mxu0 0.0
    %2766 = vmatpush1.msra.mxu0 0.0
    %2767 = vmatprep.subr.mxu0 0.0
    %2768 = vmatpush1.msra.mxu0 0.0
    %2769 = vmatprep.subr.mxu0 0.0
    %2770 = vmatpush1.msra.mxu0 0.0
    %2771 = vmatprep.subr.mxu0 0.0
    %2772 = vmatpush1.msra.mxu0 0.0
    %2773 = vmatprep.mubr.f32.mxu0 0.0
    %2774 = vmatmul.mubr.f32.gmra.mrb[0].mxu0 %v2707
    %v2775 = vpop.f32.mrb[0].mxu0
    %v2776 = vadd.f32 0.0, %v2775
    %v2777 = vpop.f32.mrb[0].mxu0
    %2778 = vdwg.mxu0
    %v2780 = vsel %vm2009, %v2699, 0
    %2782 = vmatprep.subr.mxu0 0.0
    %2783 = vmatpush1.msra.mxu0 %v1586
    %2784 = vmatprep.subr.mxu0 0.0
    %2785 = vmatpush1.msra.mxu0 0.0
    %2786 = vmatprep.subr.mxu0 0.0
    %2787 = vmatpush1.msra.mxu0 0.0
    %2788 = vmatprep.subr.mxu0 0.0
    %2789 = vmatpush1.msra.mxu0 0.0
    %2790 = vmatprep.subr.mxu0 0.0
    %2791 = vmatpush1.msra.mxu0 0.0
    %2792 = vmatprep.subr.mxu0 0.0
    %2793 = vmatpush1.msra.mxu0 0.0
    %2794 = vmatprep.subr.mxu0 0.0
    %2795 = vmatpush1.msra.mxu0 0.0
    %2796 = vmatprep.subr.mxu0 0.0
    %2797 = vmatpush1.msra.mxu0 0.0
    %2798 = vmatprep.subr.mxu0 0.0
    %2799 = vmatpush1.msra.mxu0 0.0
    %2800 = vmatprep.subr.mxu0 0.0
    %2801 = vmatpush1.msra.mxu0 0.0
    %2802 = vmatprep.subr.mxu0 0.0
    %2803 = vmatpush1.msra.mxu0 0.0
    %2804 = vmatprep.subr.mxu0 0.0
    %2805 = vmatpush1.msra.mxu0 0.0
    %2806 = vmatprep.subr.mxu0 0.0
    %2807 = vmatpush1.msra.mxu0 0.0
    %2808 = vmatprep.subr.mxu0 0.0
    %2809 = vmatpush1.msra.mxu0 0.0
    %2810 = vmatprep.subr.mxu0 0.0
    %2811 = vmatpush1.msra.mxu0 0.0
    %2812 = vmatprep.subr.mxu0 0.0
    %2813 = vmatpush1.msra.mxu0 0.0
    %2814 = vmatprep.subr.mxu0 0.0
    %2815 = vmatpush1.msra.mxu0 0.0
    %2816 = vmatprep.subr.mxu0 0.0
    %2817 = vmatpush1.msra.mxu0 0.0
    %2818 = vmatprep.subr.mxu0 0.0
    %2819 = vmatpush1.msra.mxu0 0.0
    %2820 = vmatprep.subr.mxu0 0.0
    %2821 = vmatpush1.msra.mxu0 0.0
    %2822 = vmatprep.subr.mxu0 0.0
    %2823 = vmatpush1.msra.mxu0 0.0
    %2824 = vmatprep.subr.mxu0 0.0
    %2825 = vmatpush1.msra.mxu0 0.0
    %2826 = vmatprep.subr.mxu0 0.0
    %2827 = vmatpush1.msra.mxu0 0.0
    %2828 = vmatprep.subr.mxu0 0.0
    %2829 = vmatpush1.msra.mxu0 0.0
    %2830 = vmatprep.subr.mxu0 0.0
    %2831 = vmatpush1.msra.mxu0 0.0
    %2832 = vmatprep.subr.mxu0 0.0
    %2833 = vmatpush1.msra.mxu0 0.0
    %2834 = vmatprep.subr.mxu0 0.0
    %2835 = vmatpush1.msra.mxu0 0.0
    %2836 = vmatprep.subr.mxu0 0.0
    %2837 = vmatpush1.msra.mxu0 0.0
    %2838 = vmatprep.subr.mxu0 0.0
    %2839 = vmatpush1.msra.mxu0 0.0
    %2840 = vmatprep.subr.mxu0 0.0
    %2841 = vmatpush1.msra.mxu0 0.0
    %2842 = vmatprep.subr.mxu0 0.0
    %2843 = vmatpush1.msra.mxu0 0.0
    %2844 = vmatprep.subr.mxu0 0.0
    %2845 = vmatpush1.msra.mxu0 0.0
    %2846 = vmatprep.mubr.f32.mxu0 0.0
    %2847 = vmatmul.mubr.f32.gmra.mrb[0].mxu0 %v2780
    %v2848 = vpop.f32.mrb[0].mxu0
    %v2849 = vadd.f32 0.0, %v2848
    %v2850 = vpop.f32.mrb[0].mxu0
    %2851 = vdwg.mxu0
    %v2853 = vsel %vm2009, %v2700, 0
    %2855 = vmatprep.subr.mxu0 0.0
    %2856 = vmatpush1.msra.mxu0 %v1656
    %2857 = vmatprep.subr.mxu0 0.0
    %2858 = vmatpush1.msra.mxu0 0.0
    %2859 = vmatprep.subr.mxu0 0.0
    %2860 = vmatpush1.msra.mxu0 0.0
    %2861 = vmatprep.subr.mxu0 0.0
    %2862 = vmatpush1.msra.mxu0 0.0
    %2863 = vmatprep.subr.mxu0 0.0
    %2864 = vmatpush1.msra.mxu0 0.0
    %2865 = vmatprep.subr.mxu0 0.0
    %2866 = vmatpush1.msra.mxu0 0.0
    %2867 = vmatprep.subr.mxu0 0.0
    %2868 = vmatpush1.msra.mxu0 0.0
    %2869 = vmatprep.subr.mxu0 0.0
    %2870 = vmatpush1.msra.mxu0 0.0
    %2871 = vmatprep.subr.mxu0 0.0
    %2872 = vmatpush1.msra.mxu0 0.0
    %2873 = vmatprep.subr.mxu0 0.0
    %2874 = vmatpush1.msra.mxu0 0.0
    %2875 = vmatprep.subr.mxu0 0.0
    %2876 = vmatpush1.msra.mxu0 0.0
    %2877 = vmatprep.subr.mxu0 0.0
    %2878 = vmatpush1.msra.mxu0 0.0
    %2879 = vmatprep.subr.mxu0 0.0
    %2880 = vmatpush1.msra.mxu0 0.0
    %2881 = vmatprep.subr.mxu0 0.0
    %2882 = vmatpush1.msra.mxu0 0.0
    %2883 = vmatprep.subr.mxu0 0.0
    %2884 = vmatpush1.msra.mxu0 0.0
    %2885 = vmatprep.subr.mxu0 0.0
    %2886 = vmatpush1.msra.mxu0 0.0
    %2887 = vmatprep.subr.mxu0 0.0
    %2888 = vmatpush1.msra.mxu0 0.0
    %2889 = vmatprep.subr.mxu0 0.0
    %2890 = vmatpush1.msra.mxu0 0.0
    %2891 = vmatprep.subr.mxu0 0.0
    %2892 = vmatpush1.msra.mxu0 0.0
    %2893 = vmatprep.subr.mxu0 0.0
    %2894 = vmatpush1.msra.mxu0 0.0
    %2895 = vmatprep.subr.mxu0 0.0
    %2896 = vmatpush1.msra.mxu0 0.0
    %2897 = vmatprep.subr.mxu0 0.0
    %2898 = vmatpush1.msra.mxu0 0.0
    %2899 = vmatprep.subr.mxu0 0.0
    %2900 = vmatpush1.msra.mxu0 0.0
    %2901 = vmatprep.subr.mxu0 0.0
    %2902 = vmatpush1.msra.mxu0 0.0
    %2903 = vmatprep.subr.mxu0 0.0
    %2904 = vmatpush1.msra.mxu0 0.0
    %2905 = vmatprep.subr.mxu0 0.0
    %2906 = vmatpush1.msra.mxu0 0.0
    %2907 = vmatprep.subr.mxu0 0.0
    %2908 = vmatpush1.msra.mxu0 0.0
    %2909 = vmatprep.subr.mxu0 0.0
    %2910 = vmatpush1.msra.mxu0 0.0
    %2911 = vmatprep.subr.mxu0 0.0
    %2912 = vmatpush1.msra.mxu0 0.0
    %2913 = vmatprep.subr.mxu0 0.0
    %2914 = vmatpush1.msra.mxu0 0.0
    %2915 = vmatprep.subr.mxu0 0.0
    %2916 = vmatpush1.msra.mxu0 0.0
    %2917 = vmatprep.subr.mxu0 0.0
    %2918 = vmatpush1.msra.mxu0 0.0
    %2919 = vmatprep.mubr.f32.mxu0 0.0
    %2920 = vmatmul.mubr.f32.gmra.mrb[0].mxu0 %v2853
    %v2921 = vpop.f32.mrb[0].mxu0
    %v2922 = vadd.f32 0.0, %v2921
    %v2923 = vpop.f32.mrb[0].mxu0
    %2924 = vdwg.mxu0
    %v2926 = vsel %vm2009, %v2701, 0
    %2928 = vmatprep.subr.mxu0 0.0
    %2929 = vmatpush1.msra.mxu0 %v1726
    %2930 = vmatprep.subr.mxu0 0.0
    %2931 = vmatpush1.msra.mxu0 0.0
    %2932 = vmatprep.subr.mxu0 0.0
    %2933 = vmatpush1.msra.mxu0 0.0
    %2934 = vmatprep.subr.mxu0 0.0
    %2935 = vmatpush1.msra.mxu0 0.0
    %2936 = vmatprep.subr.mxu0 0.0
    %2937 = vmatpush1.msra.mxu0 0.0
    %2938 = vmatprep.subr.mxu0 0.0
    %2939 = vmatpush1.msra.mxu0 0.0
    %2940 = vmatprep.subr.mxu0 0.0
    %2941 = vmatpush1.msra.mxu0 0.0
    %2942 = vmatprep.subr.mxu0 0.0
    %2943 = vmatpush1.msra.mxu0 0.0
    %2944 = vmatprep.subr.mxu0 0.0
    %2945 = vmatpush1.msra.mxu0 0.0
    %2946 = vmatprep.subr.mxu0 0.0
    %2947 = vmatpush1.msra.mxu0 0.0
    %2948 = vmatprep.subr.mxu0 0.0
    %2949 = vmatpush1.msra.mxu0 0.0
    %2950 = vmatprep.subr.mxu0 0.0
    %2951 = vmatpush1.msra.mxu0 0.0
    %2952 = vmatprep.subr.mxu0 0.0
    %2953 = vmatpush1.msra.mxu0 0.0
    %2954 = vmatprep.subr.mxu0 0.0
    %2955 = vmatpush1.msra.mxu0 0.0
    %2956 = vmatprep.subr.mxu0 0.0
    %2957 = vmatpush1.msra.mxu0 0.0
    %2958 = vmatprep.subr.mxu0 0.0
    %2959 = vmatpush1.msra.mxu0 0.0
    %2960 = vmatprep.subr.mxu0 0.0
    %2961 = vmatpush1.msra.mxu0 0.0
    %2962 = vmatprep.subr.mxu0 0.0
    %2963 = vmatpush1.msra.mxu0 0.0
    %2964 = vmatprep.subr.mxu0 0.0
    %2965 = vmatpush1.msra.mxu0 0.0
    %2966 = vmatprep.subr.mxu0 0.0
    %2967 = vmatpush1.msra.mxu0 0.0
    %2968 = vmatprep.subr.mxu0 0.0
    %2969 = vmatpush1.msra.mxu0 0.0
    %2970 = vmatprep.subr.mxu0 0.0
    %2971 = vmatpush1.msra.mxu0 0.0
    %2972 = vmatprep.subr.mxu0 0.0
    %2973 = vmatpush1.msra.mxu0 0.0
    %2974 = vmatprep.subr.mxu0 0.0
    %2975 = vmatpush1.msra.mxu0 0.0
    %2976 = vmatprep.subr.mxu0 0.0
    %2977 = vmatpush1.msra.mxu0 0.0
    %2978 = vmatprep.subr.mxu0 0.0
    %2979 = vmatpush1.msra.mxu0 0.0
    %2980 = vmatprep.subr.mxu0 0.0
    %2981 = vmatpush1.msra.mxu0 0.0
    %2982 = vmatprep.subr.mxu0 0.0
    %2983 = vmatpush1.msra.mxu0 0.0
    %2984 = vmatprep.subr.mxu0 0.0
    %2985 = vmatpush1.msra.mxu0 0.0
    %2986 = vmatprep.subr.mxu0 0.0
    %2987 = vmatpush1.msra.mxu0 0.0
    %2988 = vmatprep.subr.mxu0 0.0
    %2989 = vmatpush1.msra.mxu0 0.0
    %2990 = vmatprep.subr.mxu0 0.0
    %2991 = vmatpush1.msra.mxu0 0.0
    %2992 = vmatprep.mubr.f32.mxu0 0.0
    %2993 = vmatmul.mubr.f32.gmra.mrb[0].mxu0 %v2926
    %v2994 = vpop.f32.mrb[0].mxu0
    %v2995 = vadd.f32 0.0, %v2994
    %v2996 = vpop.f32.mrb[0].mxu0
    %2997 = vdwg.mxu0
    %v2999 = vsel %vm2009, %v2702, 0
    %3001 = vmatprep.subr.mxu0 0.0
    %3002 = vmatpush1.msra.mxu0 %v1796
    %3003 = vmatprep.subr.mxu0 0.0
    %3004 = vmatpush1.msra.mxu0 0.0
    %3005 = vmatprep.subr.mxu0 0.0
    %3006 = vmatpush1.msra.mxu0 0.0
    %3007 = vmatprep.subr.mxu0 0.0
    %3008 = vmatpush1.msra.mxu0 0.0
    %3009 = vmatprep.subr.mxu0 0.0
    %3010 = vmatpush1.msra.mxu0 0.0
    %3011 = vmatprep.subr.mxu0 0.0
    %3012 = vmatpush1.msra.mxu0 0.0
    %3013 = vmatprep.subr.mxu0 0.0
    %3014 = vmatpush1.msra.mxu0 0.0
    %3015 = vmatprep.subr.mxu0 0.0
    %3016 = vmatpush1.msra.mxu0 0.0
    %3017 = vmatprep.subr.mxu0 0.0
    %3018 = vmatpush1.msra.mxu0 0.0
    %3019 = vmatprep.subr.mxu0 0.0
    %3020 = vmatpush1.msra.mxu0 0.0
    %3021 = vmatprep.subr.mxu0 0.0
    %3022 = vmatpush1.msra.mxu0 0.0
    %3023 = vmatprep.subr.mxu0 0.0
    %3024 = vmatpush1.msra.mxu0 0.0
    %3025 = vmatprep.subr.mxu0 0.0
    %3026 = vmatpush1.msra.mxu0 0.0
    %3027 = vmatprep.subr.mxu0 0.0
    %3028 = vmatpush1.msra.mxu0 0.0
    %3029 = vmatprep.subr.mxu0 0.0
    %3030 = vmatpush1.msra.mxu0 0.0
    %3031 = vmatprep.subr.mxu0 0.0
    %3032 = vmatpush1.msra.mxu0 0.0
    %3033 = vmatprep.subr.mxu0 0.0
    %3034 = vmatpush1.msra.mxu0 0.0
    %3035 = vmatprep.subr.mxu0 0.0
    %3036 = vmatpush1.msra.mxu0 0.0
    %3037 = vmatprep.subr.mxu0 0.0
    %3038 = vmatpush1.msra.mxu0 0.0
    %3039 = vmatprep.subr.mxu0 0.0
    %3040 = vmatpush1.msra.mxu0 0.0
    %3041 = vmatprep.subr.mxu0 0.0
    %3042 = vmatpush1.msra.mxu0 0.0
    %3043 = vmatprep.subr.mxu0 0.0
    %3044 = vmatpush1.msra.mxu0 0.0
    %3045 = vmatprep.subr.mxu0 0.0
    %3046 = vmatpush1.msra.mxu0 0.0
    %3047 = vmatprep.subr.mxu0 0.0
    %3048 = vmatpush1.msra.mxu0 0.0
    %3049 = vmatprep.subr.mxu0 0.0
    %3050 = vmatpush1.msra.mxu0 0.0
    %3051 = vmatprep.subr.mxu0 0.0
    %3052 = vmatpush1.msra.mxu0 0.0
    %3053 = vmatprep.subr.mxu0 0.0
    %3054 = vmatpush1.msra.mxu0 0.0
    %3055 = vmatprep.subr.mxu0 0.0
    %3056 = vmatpush1.msra.mxu0 0.0
    %3057 = vmatprep.subr.mxu0 0.0
    %3058 = vmatpush1.msra.mxu0 0.0
    %3059 = vmatprep.subr.mxu0 0.0
    %3060 = vmatpush1.msra.mxu0 0.0
    %3061 = vmatprep.subr.mxu0 0.0
    %3062 = vmatpush1.msra.mxu0 0.0
    %3063 = vmatprep.subr.mxu0 0.0
    %3064 = vmatpush1.msra.mxu0 0.0
    %3065 = vmatprep.mubr.f32.mxu0 0.0
    %3066 = vmatmul.mubr.f32.gmra.mrb[0].mxu0 %v2999
    %v3067 = vpop.f32.mrb[0].mxu0
    %v3068 = vadd.f32 0.0, %v3067
    %v3069 = vpop.f32.mrb[0].mxu0
    %3070 = vdwg.mxu0
    %v3072 = vsel %vm2009, %v2703, 0
    %3074 = vmatprep.subr.mxu0 0.0
    %3075 = vmatpush1.msra.mxu0 %v1866
    %3076 = vmatprep.subr.mxu0 0.0
    %3077 = vmatpush1.msra.mxu0 0.0
    %3078 = vmatprep.subr.mxu0 0.0
    %3079 = vmatpush1.msra.mxu0 0.0
    %3080 = vmatprep.subr.mxu0 0.0
    %3081 = vmatpush1.msra.mxu0 0.0
    %3082 = vmatprep.subr.mxu0 0.0
    %3083 = vmatpush1.msra.mxu0 0.0
    %3084 = vmatprep.subr.mxu0 0.0
    %3085 = vmatpush1.msra.mxu0 0.0
    %3086 = vmatprep.subr.mxu0 0.0
    %3087 = vmatpush1.msra.mxu0 0.0
    %3088 = vmatprep.subr.mxu0 0.0
    %3089 = vmatpush1.msra.mxu0 0.0
    %3090 = vmatprep.subr.mxu0 0.0
    %3091 = vmatpush1.msra.mxu0 0.0
    %3092 = vmatprep.subr.mxu0 0.0
    %3093 = vmatpush1.msra.mxu0 0.0
    %3094 = vmatprep.subr.mxu0 0.0
    %3095 = vmatpush1.msra.mxu0 0.0
    %3096 = vmatprep.subr.mxu0 0.0
    %3097 = vmatpush1.msra.mxu0 0.0
    %3098 = vmatprep.subr.mxu0 0.0
    %3099 = vmatpush1.msra.mxu0 0.0
    %3100 = vmatprep.subr.mxu0 0.0
    %3101 = vmatpush1.msra.mxu0 0.0
    %3102 = vmatprep.subr.mxu0 0.0
    %3103 = vmatpush1.msra.mxu0 0.0
    %3104 = vmatprep.subr.mxu0 0.0
    %3105 = vmatpush1.msra.mxu0 0.0
    %3106 = vmatprep.subr.mxu0 0.0
    %3107 = vmatpush1.msra.mxu0 0.0
    %3108 = vmatprep.subr.mxu0 0.0
    %3109 = vmatpush1.msra.mxu0 0.0
    %3110 = vmatprep.subr.mxu0 0.0
    %3111 = vmatpush1.msra.mxu0 0.0
    %3112 = vmatprep.subr.mxu0 0.0
    %3113 = vmatpush1.msra.mxu0 0.0
    %3114 = vmatprep.subr.mxu0 0.0
    %3115 = vmatpush1.msra.mxu0 0.0
    %3116 = vmatprep.subr.mxu0 0.0
    %3117 = vmatpush1.msra.mxu0 0.0
    %3118 = vmatprep.subr.mxu0 0.0
    %3119 = vmatpush1.msra.mxu0 0.0
    %3120 = vmatprep.subr.mxu0 0.0
    %3121 = vmatpush1.msra.mxu0 0.0
    %3122 = vmatprep.subr.mxu0 0.0
    %3123 = vmatpush1.msra.mxu0 0.0
    %3124 = vmatprep.subr.mxu0 0.0
    %3125 = vmatpush1.msra.mxu0 0.0
    %3126 = vmatprep.subr.mxu0 0.0
    %3127 = vmatpush1.msra.mxu0 0.0
    %3128 = vmatprep.subr.mxu0 0.0
    %3129 = vmatpush1.msra.mxu0 0.0
    %3130 = vmatprep.subr.mxu0 0.0
    %3131 = vmatpush1.msra.mxu0 0.0
    %3132 = vmatprep.subr.mxu0 0.0
    %3133 = vmatpush1.msra.mxu0 0.0
    %3134 = vmatprep.subr.mxu0 0.0
    %3135 = vmatpush1.msra.mxu0 0.0
    %3136 = vmatprep.subr.mxu0 0.0
    %3137 = vmatpush1.msra.mxu0 0.0
    %3138 = vmatprep.mubr.f32.mxu0 0.0
    %3139 = vmatmul.mubr.f32.gmra.mrb[0].mxu0 %v3072
    %v3140 = vpop.f32.mrb[0].mxu0
    %v3141 = vadd.f32 0.0, %v3140
    %v3142 = vpop.f32.mrb[0].mxu0
    %3143 = vdwg.mxu0
    %v3145 = vsel %vm2009, %v2704, 0
    %3147 = vmatprep.subr.mxu0 0.0
    %3148 = vmatpush1.msra.mxu0 %v1936
    %3149 = vmatprep.subr.mxu0 0.0
    %3150 = vmatpush1.msra.mxu0 0.0
    %3151 = vmatprep.subr.mxu0 0.0
    %3152 = vmatpush1.msra.mxu0 0.0
    %3153 = vmatprep.subr.mxu0 0.0
    %3154 = vmatpush1.msra.mxu0 0.0
    %3155 = vmatprep.subr.mxu0 0.0
    %3156 = vmatpush1.msra.mxu0 0.0
    %3157 = vmatprep.subr.mxu0 0.0
    %3158 = vmatpush1.msra.mxu0 0.0
    %3159 = vmatprep.subr.mxu0 0.0
    %3160 = vmatpush1.msra.mxu0 0.0
    %3161 = vmatprep.subr.mxu0 0.0
    %3162 = vmatpush1.msra.mxu0 0.0
    %3163 = vmatprep.subr.mxu0 0.0
    %3164 = vmatpush1.msra.mxu0 0.0
    %3165 = vmatprep.subr.mxu0 0.0
    %3166 = vmatpush1.msra.mxu0 0.0
    %3167 = vmatprep.subr.mxu0 0.0
    %3168 = vmatpush1.msra.mxu0 0.0
    %3169 = vmatprep.subr.mxu0 0.0
    %3170 = vmatpush1.msra.mxu0 0.0
    %3171 = vmatprep.subr.mxu0 0.0
    %3172 = vmatpush1.msra.mxu0 0.0
    %3173 = vmatprep.subr.mxu0 0.0
    %3174 = vmatpush1.msra.mxu0 0.0
    %3175 = vmatprep.subr.mxu0 0.0
    %3176 = vmatpush1.msra.mxu0 0.0
    %3177 = vmatprep.subr.mxu0 0.0
    %3178 = vmatpush1.msra.mxu0 0.0
    %3179 = vmatprep.subr.mxu0 0.0
    %3180 = vmatpush1.msra.mxu0 0.0
    %3181 = vmatprep.subr.mxu0 0.0
    %3182 = vmatpush1.msra.mxu0 0.0
    %3183 = vmatprep.subr.mxu0 0.0
    %3184 = vmatpush1.msra.mxu0 0.0
    %3185 = vmatprep.subr.mxu0 0.0
    %3186 = vmatpush1.msra.mxu0 0.0
    %3187 = vmatprep.subr.mxu0 0.0
    %3188 = vmatpush1.msra.mxu0 0.0
    %3189 = vmatprep.subr.mxu0 0.0
    %3190 = vmatpush1.msra.mxu0 0.0
    %3191 = vmatprep.subr.mxu0 0.0
    %3192 = vmatpush1.msra.mxu0 0.0
    %3193 = vmatprep.subr.mxu0 0.0
    %3194 = vmatpush1.msra.mxu0 0.0
    %3195 = vmatprep.subr.mxu0 0.0
    %3196 = vmatpush1.msra.mxu0 0.0
    %3197 = vmatprep.subr.mxu0 0.0
    %3198 = vmatpush1.msra.mxu0 0.0
    %3199 = vmatprep.subr.mxu0 0.0
    %3200 = vmatpush1.msra.mxu0 0.0
    %3201 = vmatprep.subr.mxu0 0.0
    %3202 = vmatpush1.msra.mxu0 0.0
    %3203 = vmatprep.subr.mxu0 0.0
    %3204 = vmatpush1.msra.mxu0 0.0
    %3205 = vmatprep.subr.mxu0 0.0
    %3206 = vmatpush1.msra.mxu0 0.0
    %3207 = vmatprep.subr.mxu0 0.0
    %3208 = vmatpush1.msra.mxu0 0.0
    %3209 = vmatprep.subr.mxu0 0.0
    %3210 = vmatpush1.msra.mxu0 0.0
    %3211 = vmatprep.mubr.f32.mxu0 0.0
    %3212 = vmatmul.mubr.f32.gmra.mrb[0].mxu0 %v3145
    %v3213 = vpop.f32.mrb[0].mxu0
    %v3214 = vadd.f32 0.0, %v3213
    %v3215 = vpop.f32.mrb[0].mxu0
    %3216 = vdwg.mxu0
    %v3218 = vsel %vm2009, %v2705, 0
    %3220 = vmatprep.subr.mxu0 0.0
    %3221 = vmatpush1.msra.mxu0 %v2006
    %3222 = vmatprep.subr.mxu0 0.0
    %3223 = vmatpush1.msra.mxu0 0.0
    %3224 = vmatprep.subr.mxu0 0.0
    %3225 = vmatpush1.msra.mxu0 0.0
    %3226 = vmatprep.subr.mxu0 0.0
    %3227 = vmatpush1.msra.mxu0 0.0
    %3228 = vmatprep.subr.mxu0 0.0
    %3229 = vmatpush1.msra.mxu0 0.0
    %3230 = vmatprep.subr.mxu0 0.0
    %3231 = vmatpush1.msra.mxu0 0.0
    %3232 = vmatprep.subr.mxu0 0.0
    %3233 = vmatpush1.msra.mxu0 0.0
    %3234 = vmatprep.subr.mxu0 0.0
    %3235 = vmatpush1.msra.mxu0 0.0
    %3236 = vmatprep.subr.mxu0 0.0
    %3237 = vmatpush1.msra.mxu0 0.0
    %3238 = vmatprep.subr.mxu0 0.0
    %3239 = vmatpush1.msra.mxu0 0.0
    %3240 = vmatprep.subr.mxu0 0.0
    %3241 = vmatpush1.msra.mxu0 0.0
    %3242 = vmatprep.subr.mxu0 0.0
    %3243 = vmatpush1.msra.mxu0 0.0
    %3244 = vmatprep.subr.mxu0 0.0
    %3245 = vmatpush1.msra.mxu0 0.0
    %3246 = vmatprep.subr.mxu0 0.0
    %3247 = vmatpush1.msra.mxu0 0.0
    %3248 = vmatprep.subr.mxu0 0.0
    %3249 = vmatpush1.msra.mxu0 0.0
    %3250 = vmatprep.subr.mxu0 0.0
    %3251 = vmatpush1.msra.mxu0 0.0
    %3252 = vmatprep.subr.mxu0 0.0
    %3253 = vmatpush1.msra.mxu0 0.0
    %3254 = vmatprep.subr.mxu0 0.0
    %3255 = vmatpush1.msra.mxu0 0.0
    %3256 = vmatprep.subr.mxu0 0.0
    %3257 = vmatpush1.msra.mxu0 0.0
    %3258 = vmatprep.subr.mxu0 0.0
    %3259 = vmatpush1.msra.mxu0 0.0
    %3260 = vmatprep.subr.mxu0 0.0
    %3261 = vmatpush1.msra.mxu0 0.0
    %3262 = vmatprep.subr.mxu0 0.0
    %3263 = vmatpush1.msra.mxu0 0.0
    %3264 = vmatprep.subr.mxu0 0.0
    %3265 = vmatpush1.msra.mxu0 0.0
    %3266 = vmatprep.subr.mxu0 0.0
    %3267 = vmatpush1.msra.mxu0 0.0
    %3268 = vmatprep.subr.mxu0 0.0
    %3269 = vmatpush1.msra.mxu0 0.0
    %3270 = vmatprep.subr.mxu0 0.0
    %3271 = vmatpush1.msra.mxu0 0.0
    %3272 = vmatprep.subr.mxu0 0.0
    %3273 = vmatpush1.msra.mxu0 0.0
    %3274 = vmatprep.subr.mxu0 0.0
    %3275 = vmatpush1.msra.mxu0 0.0
    %3276 = vmatprep.subr.mxu0 0.0
    %3277 = vmatpush1.msra.mxu0 0.0
    %3278 = vmatprep.subr.mxu0 0.0
    %3279 = vmatpush1.msra.mxu0 0.0
    %3280 = vmatprep.subr.mxu0 0.0
    %3281 = vmatpush1.msra.mxu0 0.0
    %3282 = vmatprep.subr.mxu0 0.0
    %3283 = vmatpush1.msra.mxu0 0.0
    %3284 = vmatprep.mubr.f32.mxu0 0.0
    %3285 = vmatmul.mubr.f32.gmra.mrb[0].mxu0 %v3218
    %v3286 = vpop.f32.mrb[0].mxu0
    %v3287 = vadd.f32 0.0, %v3286
    %v3288 = vpop.f32.mrb[0].mxu0
    %3289 = vdwg.mxu0
    %v3290 = vld [vmem:[%s5] sm:$0xff]
    %v3291 = vld [vmem:[%s5 + $0x8] sm:$0xff]
    %v3292 = vld [vmem:[%s5 + $0x10] sm:$0xff]
    %v3293 = vld [vmem:[%s5 + $0x18] sm:$0xff]
    %v3294 = vld [vmem:[%s5 + $0x20] sm:$0xff]
    %v3295 = vld [vmem:[%s5 + $0x28] sm:$0xff]
    %v3296 = vld [vmem:[%s5 + $0x30] sm:$0xff]
    %v3297 = vld [vmem:[%s5 + $0x38] sm:$0xff]
    %v3299 = vsel %vm2009, %v2776, 0
    %3301 = vmatprep.subr.mxu0 0.0
    %3302 = vmatpush1.msra.mxu0 %v3290
    %3303 = vmatprep.subr.mxu0 0.0
    %3304 = vmatpush1.msra.mxu0 0.0
    %3305 = vmatprep.subr.mxu0 0.0
    %3306 = vmatpush1.msra.mxu0 0.0
    %3307 = vmatprep.subr.mxu0 0.0
    %3308 = vmatpush1.msra.mxu0 0.0
    %3309 = vmatprep.subr.mxu0 0.0
    %3310 = vmatpush1.msra.mxu0 0.0
    %3311 = vmatprep.subr.mxu0 0.0
    %3312 = vmatpush1.msra.mxu0 0.0
    %3313 = vmatprep.subr.mxu0 0.0
    %3314 = vmatpush1.msra.mxu0 0.0
    %3315 = vmatprep.subr.mxu0 0.0
    %3316 = vmatpush1.msra.mxu0 0.0
    %3317 = vmatprep.subr.mxu0 0.0
    %3318 = vmatpush1.msra.mxu0 0.0
    %3319 = vmatprep.subr.mxu0 0.0
    %3320 = vmatpush1.msra.mxu0 0.0
    %3321 = vmatprep.subr.mxu0 0.0
    %3322 = vmatpush1.msra.mxu0 0.0
    %3323 = vmatprep.subr.mxu0 0.0
    %3324 = vmatpush1.msra.mxu0 0.0
    %3325 = vmatprep.subr.mxu0 0.0
    %3326 = vmatpush1.msra.mxu0 0.0
    %3327 = vmatprep.subr.mxu0 0.0
    %3328 = vmatpush1.msra.mxu0 0.0
    %3329 = vmatprep.subr.mxu0 0.0
    %3330 = vmatpush1.msra.mxu0 0.0
    %3331 = vmatprep.subr.mxu0 0.0
    %3332 = vmatpush1.msra.mxu0 0.0
    %3333 = vmatprep.subr.mxu0 0.0
    %3334 = vmatpush1.msra.mxu0 0.0
    %3335 = vmatprep.subr.mxu0 0.0
    %3336 = vmatpush1.msra.mxu0 0.0
    %3337 = vmatprep.subr.mxu0 0.0
    %3338 = vmatpush1.msra.mxu0 0.0
    %3339 = vmatprep.subr.mxu0 0.0
    %3340 = vmatpush1.msra.mxu0 0.0
    %3341 = vmatprep.subr.mxu0 0.0
    %3342 = vmatpush1.msra.mxu0 0.0
    %3343 = vmatprep.subr.mxu0 0.0
    %3344 = vmatpush1.msra.mxu0 0.0
    %3345 = vmatprep.subr.mxu0 0.0
    %3346 = vmatpush1.msra.mxu0 0.0
    %3347 = vmatprep.subr.mxu0 0.0
    %3348 = vmatpush1.msra.mxu0 0.0
    %3349 = vmatprep.subr.mxu0 0.0
    %3350 = vmatpush1.msra.mxu0 0.0
    %3351 = vmatprep.subr.mxu0 0.0
    %3352 = vmatpush1.msra.mxu0 0.0
    %3353 = vmatprep.subr.mxu0 0.0
    %3354 = vmatpush1.msra.mxu0 0.0
    %3355 = vmatprep.subr.mxu0 0.0
    %3356 = vmatpush1.msra.mxu0 0.0
    %3357 = vmatprep.subr.mxu0 0.0
    %3358 = vmatpush1.msra.mxu0 0.0
    %3359 = vmatprep.subr.mxu0 0.0
    %3360 = vmatpush1.msra.mxu0 0.0
    %3361 = vmatprep.subr.mxu0 0.0
    %3362 = vmatpush1.msra.mxu0 0.0
    %3363 = vmatprep.subr.mxu0 0.0
    %3364 = vmatpush1.msra.mxu0 0.0
    %3365 = vmatprep.mubr.f32.mxu0 0.0
    %3366 = vmatmul.mubr.f32.gmra.mrb[0].mxu0 %v3299
    %v3367 = vpop.f32.mrb[0].mxu0
    %v3368 = vadd.f32 0.0, %v3367
    %v3369 = vpop.f32.mrb[0].mxu0
    %3370 = vdwg.mxu0
    %v3372 = vsel %vm2009, %v2849, 0
    %3374 = vmatprep.subr.mxu0 0.0
    %3375 = vmatpush1.msra.mxu0 %v3291
    %3376 = vmatprep.subr.mxu0 0.0
    %3377 = vmatpush1.msra.mxu0 0.0
    %3378 = vmatprep.subr.mxu0 0.0
    %3379 = vmatpush1.msra.mxu0 0.0
    %3380 = vmatprep.subr.mxu0 0.0
    %3381 = vmatpush1.msra.mxu0 0.0
    %3382 = vmatprep.subr.mxu0 0.0
    %3383 = vmatpush1.msra.mxu0 0.0
    %3384 = vmatprep.subr.mxu0 0.0
    %3385 = vmatpush1.msra.mxu0 0.0
    %3386 = vmatprep.subr.mxu0 0.0
    %3387 = vmatpush1.msra.mxu0 0.0
    %3388 = vmatprep.subr.mxu0 0.0
    %3389 = vmatpush1.msra.mxu0 0.0
    %3390 = vmatprep.subr.mxu0 0.0
    %3391 = vmatpush1.msra.mxu0 0.0
    %3392 = vmatprep.subr.mxu0 0.0
    %3393 = vmatpush1.msra.mxu0 0.0
    %3394 = vmatprep.subr.mxu0 0.0
    %3395 = vmatpush1.msra.mxu0 0.0
    %3396 = vmatprep.subr.mxu0 0.0
    %3397 = vmatpush1.msra.mxu0 0.0
    %3398 = vmatprep.subr.mxu0 0.0
    %3399 = vmatpush1.msra.mxu0 0.0
    %3400 = vmatprep.subr.mxu0 0.0
    %3401 = vmatpush1.msra.mxu0 0.0
    %3402 = vmatprep.subr.mxu0 0.0
    %3403 = vmatpush1.msra.mxu0 0.0
    %3404 = vmatprep.subr.mxu0 0.0
    %3405 = vmatpush1.msra.mxu0 0.0
    %3406 = vmatprep.subr.mxu0 0.0
    %3407 = vmatpush1.msra.mxu0 0.0
    %3408 = vmatprep.subr.mxu0 0.0
    %3409 = vmatpush1.msra.mxu0 0.0
    %3410 = vmatprep.subr.mxu0 0.0
    %3411 = vmatpush1.msra.mxu0 0.0
    %3412 = vmatprep.subr.mxu0 0.0
    %3413 = vmatpush1.msra.mxu0 0.0
    %3414 = vmatprep.subr.mxu0 0.0
    %3415 = vmatpush1.msra.mxu0 0.0
    %3416 = vmatprep.subr.mxu0 0.0
    %3417 = vmatpush1.msra.mxu0 0.0
    %3418 = vmatprep.subr.mxu0 0.0
    %3419 = vmatpush1.msra.mxu0 0.0
    %3420 = vmatprep.subr.mxu0 0.0
    %3421 = vmatpush1.msra.mxu0 0.0
    %3422 = vmatprep.subr.mxu0 0.0
    %3423 = vmatpush1.msra.mxu0 0.0
    %3424 = vmatprep.subr.mxu0 0.0
    %3425 = vmatpush1.msra.mxu0 0.0
    %3426 = vmatprep.subr.mxu0 0.0
    %3427 = vmatpush1.msra.mxu0 0.0
    %3428 = vmatprep.subr.mxu0 0.0
    %3429 = vmatpush1.msra.mxu0 0.0
    %3430 = vmatprep.subr.mxu0 0.0
    %3431 = vmatpush1.msra.mxu0 0.0
    %3432 = vmatprep.subr.mxu0 0.0
    %3433 = vmatpush1.msra.mxu0 0.0
    %3434 = vmatprep.subr.mxu0 0.0
    %3435 = vmatpush1.msra.mxu0 0.0
    %3436 = vmatprep.subr.mxu0 0.0
    %3437 = vmatpush1.msra.mxu0 0.0
    %3438 = vmatprep.mubr.f32.mxu0 0.0
    %3439 = vmatmul.mubr.f32.gmra.mrb[0].mxu0 %v3372
    %v3440 = vpop.f32.mrb[0].mxu0
    %v3441 = vadd.f32 0.0, %v3440
    %v3442 = vpop.f32.mrb[0].mxu0
    %3443 = vdwg.mxu0
    %v3445 = vsel %vm2009, %v2922, 0
    %3447 = vmatprep.subr.mxu0 0.0
    %3448 = vmatpush1.msra.mxu0 %v3292
    %3449 = vmatprep.subr.mxu0 0.0
    %3450 = vmatpush1.msra.mxu0 0.0
    %3451 = vmatprep.subr.mxu0 0.0
    %3452 = vmatpush1.msra.mxu0 0.0
    %3453 = vmatprep.subr.mxu0 0.0
    %3454 = vmatpush1.msra.mxu0 0.0
    %3455 = vmatprep.subr.mxu0 0.0
    %3456 = vmatpush1.msra.mxu0 0.0
    %3457 = vmatprep.subr.mxu0 0.0
    %3458 = vmatpush1.msra.mxu0 0.0
    %3459 = vmatprep.subr.mxu0 0.0
    %3460 = vmatpush1.msra.mxu0 0.0
    %3461 = vmatprep.subr.mxu0 0.0
    %3462 = vmatpush1.msra.mxu0 0.0
    %3463 = vmatprep.subr.mxu0 0.0
    %3464 = vmatpush1.msra.mxu0 0.0
    %3465 = vmatprep.subr.mxu0 0.0
    %3466 = vmatpush1.msra.mxu0 0.0
    %3467 = vmatprep.subr.mxu0 0.0
    %3468 = vmatpush1.msra.mxu0 0.0
    %3469 = vmatprep.subr.mxu0 0.0
    %3470 = vmatpush1.msra.mxu0 0.0
    %3471 = vmatprep.subr.mxu0 0.0
    %3472 = vmatpush1.msra.mxu0 0.0
    %3473 = vmatprep.subr.mxu0 0.0
    %3474 = vmatpush1.msra.mxu0 0.0
    %3475 = vmatprep.subr.mxu0 0.0
    %3476 = vmatpush1.msra.mxu0 0.0
    %3477 = vmatprep.subr.mxu0 0.0
    %3478 = vmatpush1.msra.mxu0 0.0
    %3479 = vmatprep.subr.mxu0 0.0
    %3480 = vmatpush1.msra.mxu0 0.0
    %3481 = vmatprep.subr.mxu0 0.0
    %3482 = vmatpush1.msra.mxu0 0.0
    %3483 = vmatprep.subr.mxu0 0.0
    %3484 = vmatpush1.msra.mxu0 0.0
    %3485 = vmatprep.subr.mxu0 0.0
    %3486 = vmatpush1.msra.mxu0 0.0
    %3487 = vmatprep.subr.mxu0 0.0
    %3488 = vmatpush1.msra.mxu0 0.0
    %3489 = vmatprep.subr.mxu0 0.0
    %3490 = vmatpush1.msra.mxu0 0.0
    %3491 = vmatprep.subr.mxu0 0.0
    %3492 = vmatpush1.msra.mxu0 0.0
    %3493 = vmatprep.subr.mxu0 0.0
    %3494 = vmatpush1.msra.mxu0 0.0
    %3495 = vmatprep.subr.mxu0 0.0
    %3496 = vmatpush1.msra.mxu0 0.0
    %3497 = vmatprep.subr.mxu0 0.0
    %3498 = vmatpush1.msra.mxu0 0.0
    %3499 = vmatprep.subr.mxu0 0.0
    %3500 = vmatpush1.msra.mxu0 0.0
    %3501 = vmatprep.subr.mxu0 0.0
    %3502 = vmatpush1.msra.mxu0 0.0
    %3503 = vmatprep.subr.mxu0 0.0
    %3504 = vmatpush1.msra.mxu0 0.0
    %3505 = vmatprep.subr.mxu0 0.0
    %3506 = vmatpush1.msra.mxu0 0.0
    %3507 = vmatprep.subr.mxu0 0.0
    %3508 = vmatpush1.msra.mxu0 0.0
    %3509 = vmatprep.subr.mxu0 0.0
    %3510 = vmatpush1.msra.mxu0 0.0
    %3511 = vmatprep.mubr.f32.mxu0 0.0
    %3512 = vmatmul.mubr.f32.gmra.mrb[0].mxu0 %v3445
    %v3513 = vpop.f32.mrb[0].mxu0
    %v3514 = vadd.f32 0.0, %v3513
    %v3515 = vpop.f32.mrb[0].mxu0
    %3516 = vdwg.mxu0
    %v3518 = vsel %vm2009, %v2995, 0
    %3520 = vmatprep.subr.mxu0 0.0
    %3521 = vmatpush1.msra.mxu0 %v3293
    %3522 = vmatprep.subr.mxu0 0.0
    %3523 = vmatpush1.msra.mxu0 0.0
    %3524 = vmatprep.subr.mxu0 0.0
    %3525 = vmatpush1.msra.mxu0 0.0
    %3526 = vmatprep.subr.mxu0 0.0
    %3527 = vmatpush1.msra.mxu0 0.0
    %3528 = vmatprep.subr.mxu0 0.0
    %3529 = vmatpush1.msra.mxu0 0.0
    %3530 = vmatprep.subr.mxu0 0.0
    %3531 = vmatpush1.msra.mxu0 0.0
    %3532 = vmatprep.subr.mxu0 0.0
    %3533 = vmatpush1.msra.mxu0 0.0
    %3534 = vmatprep.subr.mxu0 0.0
    %3535 = vmatpush1.msra.mxu0 0.0
    %3536 = vmatprep.subr.mxu0 0.0
    %3537 = vmatpush1.msra.mxu0 0.0
    %3538 = vmatprep.subr.mxu0 0.0
    %3539 = vmatpush1.msra.mxu0 0.0
    %3540 = vmatprep.subr.mxu0 0.0
    %3541 = vmatpush1.msra.mxu0 0.0
    %3542 = vmatprep.subr.mxu0 0.0
    %3543 = vmatpush1.msra.mxu0 0.0
    %3544 = vmatprep.subr.mxu0 0.0
    %3545 = vmatpush1.msra.mxu0 0.0
    %3546 = vmatprep.subr.mxu0 0.0
    %3547 = vmatpush1.msra.mxu0 0.0
    %3548 = vmatprep.subr.mxu0 0.0
    %3549 = vmatpush1.msra.mxu0 0.0
    %3550 = vmatprep.subr.mxu0 0.0
    %3551 = vmatpush1.msra.mxu0 0.0
    %3552 = vmatprep.subr.mxu0 0.0
    %3553 = vmatpush1.msra.mxu0 0.0
    %3554 = vmatprep.subr.mxu0 0.0
    %3555 = vmatpush1.msra.mxu0 0.0
    %3556 = vmatprep.subr.mxu0 0.0
    %3557 = vmatpush1.msra.mxu0 0.0
    %3558 = vmatprep.subr.mxu0 0.0
    %3559 = vmatpush1.msra.mxu0 0.0
    %3560 = vmatprep.subr.mxu0 0.0
    %3561 = vmatpush1.msra.mxu0 0.0
    %3562 = vmatprep.subr.mxu0 0.0
    %3563 = vmatpush1.msra.mxu0 0.0
    %3564 = vmatprep.subr.mxu0 0.0
    %3565 = vmatpush1.msra.mxu0 0.0
    %3566 = vmatprep.subr.mxu0 0.0
    %3567 = vmatpush1.msra.mxu0 0.0
    %3568 = vmatprep.subr.mxu0 0.0
    %3569 = vmatpush1.msra.mxu0 0.0
    %3570 = vmatprep.subr.mxu0 0.0
    %3571 = vmatpush1.msra.mxu0 0.0
    %3572 = vmatprep.subr.mxu0 0.0
    %3573 = vmatpush1.msra.mxu0 0.0
    %3574 = vmatprep.subr.mxu0 0.0
    %3575 = vmatpush1.msra.mxu0 0.0
    %3576 = vmatprep.subr.mxu0 0.0
    %3577 = vmatpush1.msra.mxu0 0.0
    %3578 = vmatprep.subr.mxu0 0.0
    %3579 = vmatpush1.msra.mxu0 0.0
    %3580 = vmatprep.subr.mxu0 0.0
    %3581 = vmatpush1.msra.mxu0 0.0
    %3582 = vmatprep.subr.mxu0 0.0
    %3583 = vmatpush1.msra.mxu0 0.0
    %3584 = vmatprep.mubr.f32.mxu0 0.0
    %3585 = vmatmul.mubr.f32.gmra.mrb[0].mxu0 %v3518
    %v3586 = vpop.f32.mrb[0].mxu0
    %v3587 = vadd.f32 0.0, %v3586
    %v3588 = vpop.f32.mrb[0].mxu0
    %3589 = vdwg.mxu0
    %v3591 = vsel %vm2009, %v3068, 0
    %3593 = vmatprep.subr.mxu0 0.0
    %3594 = vmatpush1.msra.mxu0 %v3294
    %3595 = vmatprep.subr.mxu0 0.0
    %3596 = vmatpush1.msra.mxu0 0.0
    %3597 = vmatprep.subr.mxu0 0.0
    %3598 = vmatpush1.msra.mxu0 0.0
    %3599 = vmatprep.subr.mxu0 0.0
    %3600 = vmatpush1.msra.mxu0 0.0
    %3601 = vmatprep.subr.mxu0 0.0
    %3602 = vmatpush1.msra.mxu0 0.0
    %3603 = vmatprep.subr.mxu0 0.0
    %3604 = vmatpush1.msra.mxu0 0.0
    %3605 = vmatprep.subr.mxu0 0.0
    %3606 = vmatpush1.msra.mxu0 0.0
    %3607 = vmatprep.subr.mxu0 0.0
    %3608 = vmatpush1.msra.mxu0 0.0
    %3609 = vmatprep.subr.mxu0 0.0
    %3610 = vmatpush1.msra.mxu0 0.0
    %3611 = vmatprep.subr.mxu0 0.0
    %3612 = vmatpush1.msra.mxu0 0.0
    %3613 = vmatprep.subr.mxu0 0.0
    %3614 = vmatpush1.msra.mxu0 0.0
    %3615 = vmatprep.subr.mxu0 0.0
    %3616 = vmatpush1.msra.mxu0 0.0
    %3617 = vmatprep.subr.mxu0 0.0
    %3618 = vmatpush1.msra.mxu0 0.0
    %3619 = vmatprep.subr.mxu0 0.0
    %3620 = vmatpush1.msra.mxu0 0.0
    %3621 = vmatprep.subr.mxu0 0.0
    %3622 = vmatpush1.msra.mxu0 0.0
    %3623 = vmatprep.subr.mxu0 0.0
    %3624 = vmatpush1.msra.mxu0 0.0
    %3625 = vmatprep.subr.mxu0 0.0
    %3626 = vmatpush1.msra.mxu0 0.0
    %3627 = vmatprep.subr.mxu0 0.0
    %3628 = vmatpush1.msra.mxu0 0.0
    %3629 = vmatprep.subr.mxu0 0.0
    %3630 = vmatpush1.msra.mxu0 0.0
    %3631 = vmatprep.subr.mxu0 0.0
    %3632 = vmatpush1.msra.mxu0 0.0
    %3633 = vmatprep.subr.mxu0 0.0
    %3634 = vmatpush1.msra.mxu0 0.0
    %3635 = vmatprep.subr.mxu0 0.0
    %3636 = vmatpush1.msra.mxu0 0.0
    %3637 = vmatprep.subr.mxu0 0.0
    %3638 = vmatpush1.msra.mxu0 0.0
    %3639 = vmatprep.subr.mxu0 0.0
    %3640 = vmatpush1.msra.mxu0 0.0
    %3641 = vmatprep.subr.mxu0 0.0
    %3642 = vmatpush1.msra.mxu0 0.0
    %3643 = vmatprep.subr.mxu0 0.0
    %3644 = vmatpush1.msra.mxu0 0.0
    %3645 = vmatprep.subr.mxu0 0.0
    %3646 = vmatpush1.msra.mxu0 0.0
    %3647 = vmatprep.subr.mxu0 0.0
    %3648 = vmatpush1.msra.mxu0 0.0
    %3649 = vmatprep.subr.mxu0 0.0
    %3650 = vmatpush1.msra.mxu0 0.0
    %3651 = vmatprep.subr.mxu0 0.0
    %3652 = vmatpush1.msra.mxu0 0.0
    %3653 = vmatprep.subr.mxu0 0.0
    %3654 = vmatpush1.msra.mxu0 0.0
    %3655 = vmatprep.subr.mxu0 0.0
    %3656 = vmatpush1.msra.mxu0 0.0
    %3657 = vmatprep.mubr.f32.mxu0 0.0
    %3658 = vmatmul.mubr.f32.gmra.mrb[0].mxu0 %v3591
    %v3659 = vpop.f32.mrb[0].mxu0
    %v3660 = vadd.f32 0.0, %v3659
    %v3661 = vpop.f32.mrb[0].mxu0
    %3662 = vdwg.mxu0
    %v3664 = vsel %vm2009, %v3141, 0
    %3666 = vmatprep.subr.mxu0 0.0
    %3667 = vmatpush1.msra.mxu0 %v3295
    %3668 = vmatprep.subr.mxu0 0.0
    %3669 = vmatpush1.msra.mxu0 0.0
    %3670 = vmatprep.subr.mxu0 0.0
    %3671 = vmatpush1.msra.mxu0 0.0
    %3672 = vmatprep.subr.mxu0 0.0
    %3673 = vmatpush1.msra.mxu0 0.0
    %3674 = vmatprep.subr.mxu0 0.0
    %3675 = vmatpush1.msra.mxu0 0.0
    %3676 = vmatprep.subr.mxu0 0.0
    %3677 = vmatpush1.msra.mxu0 0.0
    %3678 = vmatprep.subr.mxu0 0.0
    %3679 = vmatpush1.msra.mxu0 0.0
    %3680 = vmatprep.subr.mxu0 0.0
    %3681 = vmatpush1.msra.mxu0 0.0
    %3682 = vmatprep.subr.mxu0 0.0
    %3683 = vmatpush1.msra.mxu0 0.0
    %3684 = vmatprep.subr.mxu0 0.0
    %3685 = vmatpush1.msra.mxu0 0.0
    %3686 = vmatprep.subr.mxu0 0.0
    %3687 = vmatpush1.msra.mxu0 0.0
    %3688 = vmatprep.subr.mxu0 0.0
    %3689 = vmatpush1.msra.mxu0 0.0
    %3690 = vmatprep.subr.mxu0 0.0
    %3691 = vmatpush1.msra.mxu0 0.0
    %3692 = vmatprep.subr.mxu0 0.0
    %3693 = vmatpush1.msra.mxu0 0.0
    %3694 = vmatprep.subr.mxu0 0.0
    %3695 = vmatpush1.msra.mxu0 0.0
    %3696 = vmatprep.subr.mxu0 0.0
    %3697 = vmatpush1.msra.mxu0 0.0
    %3698 = vmatprep.subr.mxu0 0.0
    %3699 = vmatpush1.msra.mxu0 0.0
    %3700 = vmatprep.subr.mxu0 0.0
    %3701 = vmatpush1.msra.mxu0 0.0
    %3702 = vmatprep.subr.mxu0 0.0
    %3703 = vmatpush1.msra.mxu0 0.0
    %3704 = vmatprep.subr.mxu0 0.0
    %3705 = vmatpush1.msra.mxu0 0.0
    %3706 = vmatprep.subr.mxu0 0.0
    %3707 = vmatpush1.msra.mxu0 0.0
    %3708 = vmatprep.subr.mxu0 0.0
    %3709 = vmatpush1.msra.mxu0 0.0
    %3710 = vmatprep.subr.mxu0 0.0
    %3711 = vmatpush1.msra.mxu0 0.0
    %3712 = vmatprep.subr.mxu0 0.0
    %3713 = vmatpush1.msra.mxu0 0.0
    %3714 = vmatprep.subr.mxu0 0.0
    %3715 = vmatpush1.msra.mxu0 0.0
    %3716 = vmatprep.subr.mxu0 0.0
    %3717 = vmatpush1.msra.mxu0 0.0
    %3718 = vmatprep.subr.mxu0 0.0
    %3719 = vmatpush1.msra.mxu0 0.0
    %3720 = vmatprep.subr.mxu0 0.0
    %3721 = vmatpush1.msra.mxu0 0.0
    %3722 = vmatprep.subr.mxu0 0.0
    %3723 = vmatpush1.msra.mxu0 0.0
    %3724 = vmatprep.subr.mxu0 0.0
    %3725 = vmatpush1.msra.mxu0 0.0
    %3726 = vmatprep.subr.mxu0 0.0
    %3727 = vmatpush1.msra.mxu0 0.0
    %3728 = vmatprep.subr.mxu0 0.0
    %3729 = vmatpush1.msra.mxu0 0.0
    %3730 = vmatprep.mubr.f32.mxu0 0.0
    %3731 = vmatmul.mubr.f32.gmra.mrb[0].mxu0 %v3664
    %v3732 = vpop.f32.mrb[0].mxu0
    %v3733 = vadd.f32 0.0, %v3732
    %v3734 = vpop.f32.mrb[0].mxu0
    %3735 = vdwg.mxu0
    %v3737 = vsel %vm2009, %v3214, 0
    %3739 = vmatprep.subr.mxu0 0.0
    %3740 = vmatpush1.msra.mxu0 %v3296
    %3741 = vmatprep.subr.mxu0 0.0
    %3742 = vmatpush1.msra.mxu0 0.0
    %3743 = vmatprep.subr.mxu0 0.0
    %3744 = vmatpush1.msra.mxu0 0.0
    %3745 = vmatprep.subr.mxu0 0.0
    %3746 = vmatpush1.msra.mxu0 0.0
    %3747 = vmatprep.subr.mxu0 0.0
    %3748 = vmatpush1.msra.mxu0 0.0
    %3749 = vmatprep.subr.mxu0 0.0
    %3750 = vmatpush1.msra.mxu0 0.0
    %3751 = vmatprep.subr.mxu0 0.0
    %3752 = vmatpush1.msra.mxu0 0.0
    %3753 = vmatprep.subr.mxu0 0.0
    %3754 = vmatpush1.msra.mxu0 0.0
    %3755 = vmatprep.subr.mxu0 0.0
    %3756 = vmatpush1.msra.mxu0 0.0
    %3757 = vmatprep.subr.mxu0 0.0
    %3758 = vmatpush1.msra.mxu0 0.0
    %3759 = vmatprep.subr.mxu0 0.0
    %3760 = vmatpush1.msra.mxu0 0.0
    %3761 = vmatprep.subr.mxu0 0.0
    %3762 = vmatpush1.msra.mxu0 0.0
    %3763 = vmatprep.subr.mxu0 0.0
    %3764 = vmatpush1.msra.mxu0 0.0
    %3765 = vmatprep.subr.mxu0 0.0
    %3766 = vmatpush1.msra.mxu0 0.0
    %3767 = vmatprep.subr.mxu0 0.0
    %3768 = vmatpush1.msra.mxu0 0.0
    %3769 = vmatprep.subr.mxu0 0.0
    %3770 = vmatpush1.msra.mxu0 0.0
    %3771 = vmatprep.subr.mxu0 0.0
    %3772 = vmatpush1.msra.mxu0 0.0
    %3773 = vmatprep.subr.mxu0 0.0
    %3774 = vmatpush1.msra.mxu0 0.0
    %3775 = vmatprep.subr.mxu0 0.0
    %3776 = vmatpush1.msra.mxu0 0.0
    %3777 = vmatprep.subr.mxu0 0.0
    %3778 = vmatpush1.msra.mxu0 0.0
    %3779 = vmatprep.subr.mxu0 0.0
    %3780 = vmatpush1.msra.mxu0 0.0
    %3781 = vmatprep.subr.mxu0 0.0
    %3782 = vmatpush1.msra.mxu0 0.0
    %3783 = vmatprep.subr.mxu0 0.0
    %3784 = vmatpush1.msra.mxu0 0.0
    %3785 = vmatprep.subr.mxu0 0.0
    %3786 = vmatpush1.msra.mxu0 0.0
    %3787 = vmatprep.subr.mxu0 0.0
    %3788 = vmatpush1.msra.mxu0 0.0
    %3789 = vmatprep.subr.mxu0 0.0
    %3790 = vmatpush1.msra.mxu0 0.0
    %3791 = vmatprep.subr.mxu0 0.0
    %3792 = vmatpush1.msra.mxu0 0.0
    %3793 = vmatprep.subr.mxu0 0.0
    %3794 = vmatpush1.msra.mxu0 0.0
    %3795 = vmatprep.subr.mxu0 0.0
    %3796 = vmatpush1.msra.mxu0 0.0
    %3797 = vmatprep.subr.mxu0 0.0
    %3798 = vmatpush1.msra.mxu0 0.0
    %3799 = vmatprep.subr.mxu0 0.0
    %3800 = vmatpush1.msra.mxu0 0.0
    %3801 = vmatprep.subr.mxu0 0.0
    %3802 = vmatpush1.msra.mxu0 0.0
    %3803 = vmatprep.mubr.f32.mxu0 0.0
    %3804 = vmatmul.mubr.f32.gmra.mrb[0].mxu0 %v3737
    %v3805 = vpop.f32.mrb[0].mxu0
    %v3806 = vadd.f32 0.0, %v3805
    %v3807 = vpop.f32.mrb[0].mxu0
    %3808 = vdwg.mxu0
    %v3810 = vsel %vm2009, %v3287, 0
    %3812 = vmatprep.subr.mxu0 0.0
    %3813 = vmatpush1.msra.mxu0 %v3297
    %3814 = vmatprep.subr.mxu0 0.0
    %3815 = vmatpush1.msra.mxu0 0.0
    %3816 = vmatprep.subr.mxu0 0.0
    %3817 = vmatpush1.msra.mxu0 0.0
    %3818 = vmatprep.subr.mxu0 0.0
    %3819 = vmatpush1.msra.mxu0 0.0
    %3820 = vmatprep.subr.mxu0 0.0
    %3821 = vmatpush1.msra.mxu0 0.0
    %3822 = vmatprep.subr.mxu0 0.0
    %3823 = vmatpush1.msra.mxu0 0.0
    %3824 = vmatprep.subr.mxu0 0.0
    %3825 = vmatpush1.msra.mxu0 0.0
    %3826 = vmatprep.subr.mxu0 0.0
    %3827 = vmatpush1.msra.mxu0 0.0
    %3828 = vmatprep.subr.mxu0 0.0
    %3829 = vmatpush1.msra.mxu0 0.0
    %3830 = vmatprep.subr.mxu0 0.0
    %3831 = vmatpush1.msra.mxu0 0.0
    %3832 = vmatprep.subr.mxu0 0.0
    %3833 = vmatpush1.msra.mxu0 0.0
    %3834 = vmatprep.subr.mxu0 0.0
    %3835 = vmatpush1.msra.mxu0 0.0
    %3836 = vmatprep.subr.mxu0 0.0
    %3837 = vmatpush1.msra.mxu0 0.0
    %3838 = vmatprep.subr.mxu0 0.0
    %3839 = vmatpush1.msra.mxu0 0.0
    %3840 = vmatprep.subr.mxu0 0.0
    %3841 = vmatpush1.msra.mxu0 0.0
    %3842 = vmatprep.subr.mxu0 0.0
    %3843 = vmatpush1.msra.mxu0 0.0
    %3844 = vmatprep.subr.mxu0 0.0
    %3845 = vmatpush1.msra.mxu0 0.0
    %3846 = vmatprep.subr.mxu0 0.0
    %3847 = vmatpush1.msra.mxu0 0.0
    %3848 = vmatprep.subr.mxu0 0.0
    %3849 = vmatpush1.msra.mxu0 0.0
    %3850 = vmatprep.subr.mxu0 0.0
    %3851 = vmatpush1.msra.mxu0 0.0
    %3852 = vmatprep.subr.mxu0 0.0
    %3853 = vmatpush1.msra.mxu0 0.0
    %3854 = vmatprep.subr.mxu0 0.0
    %3855 = vmatpush1.msra.mxu0 0.0
    %3856 = vmatprep.subr.mxu0 0.0
    %3857 = vmatpush1.msra.mxu0 0.0
    %3858 = vmatprep.subr.mxu0 0.0
    %3859 = vmatpush1.msra.mxu0 0.0
    %3860 = vmatprep.subr.mxu0 0.0
    %3861 = vmatpush1.msra.mxu0 0.0
    %3862 = vmatprep.subr.mxu0 0.0
    %3863 = vmatpush1.msra.mxu0 0.0
    %3864 = vmatprep.subr.mxu0 0.0
    %3865 = vmatpush1.msra.mxu0 0.0
    %3866 = vmatprep.subr.mxu0 0.0
    %3867 = vmatpush1.msra.mxu0 0.0
    %3868 = vmatprep.subr.mxu0 0.0
    %3869 = vmatpush1.msra.mxu0 0.0
    %3870 = vmatprep.subr.mxu0 0.0
    %3871 = vmatpush1.msra.mxu0 0.0
    %3872 = vmatprep.subr.mxu0 0.0
    %3873 = vmatpush1.msra.mxu0 0.0
    %3874 = vmatprep.subr.mxu0 0.0
    %3875 = vmatpush1.msra.mxu0 0.0
    %3876 = vmatprep.mubr.f32.mxu0 0.0
    %3877 = vmatmul.mubr.f32.gmra.mrb[0].mxu0 %v3810
    %v3878 = vpop.f32.mrb[0].mxu0
    %v3879 = vadd.f32 0.0, %v3878
    %v3880 = vpop.f32.mrb[0].mxu0
    %3881 = vdwg.mxu0
    %v3882 = vadd.f32 %v3368, %v3441
    %v3883 = vadd.f32 %v3660, %v3733
    %v3884 = vadd.f32 %v3882, %v3514
    %v3885 = vadd.f32 %v3883, %v3806
    %v3886 = vadd.f32 %v3884, %v3587
    %v3887 = vadd.f32 %v3885, %v3879
    %v3888 = vld [vmem:[%s6] sm:$0x1]
    %v3890 = vlaneseq
    %v3891 = vshrl.u32 %v3890, 7
    %v3892 = vsub.s32 0, %v3891
    %v3893 = vrot.slane %v3888, %v3892
    %v3895 = vadd.f32 %v3886, %v3893
    %v3896 = vadd.f32 %v3887, %v3893
    %v3897 = vadd.f32 %v3895, %v42
    %v3898 = vadd.f32 %v3896, %v43
    %v3899 = vld [vmem:[%s11] sm:$0x1]
    %s3900 = scalar_lea.vmem %s11, 1
    %v3901 = vld [vmem:[%s3900] sm:$0x1]
    %v3902 = vsel %vm136, %v3897, 0.0
    %3903 = vadd.xlane.f32.xlu0 %v3902
    %v3904 = vpop.xlane.xlu0 %3903
    %v3905 = vsel %vm136, %v3898, 0.0
    %3906 = vadd.xlane.f32.xlu0 %v3905
    %v3907 = vpop.xlane.xlu0 %3906
    %v3908 = vrcp.pop 32.0
    %v3909 = vmul.f32 %v3904, %v3908
    %v3910 = vmul.f32 %v3907, %v3908
    %v3911 = vsub.f32 %v3897, %v3909
    %v3912 = vsub.f32 %v3898, %v3910
    %v3913 = vmul.f32 %v3911, %v3911
    %v3914 = vmul.f32 %v3912, %v3912
    %v3915 = vsel %vm136, %v3913, 0.0
    %3916 = vadd.xlane.f32.xlu0 %v3915
    %v3917 = vpop.xlane.xlu0 %3916
    %v3918 = vsel %vm136, %v3914, 0.0
    %3919 = vadd.xlane.f32.xlu0 %v3918
    %v3920 = vpop.xlane.xlu0 %3919
    %v3921 = vmul.f32 %v3917, %v3908
    %v3922 = vmul.f32 %v3920, %v3908
    %v3923 = vadd.f32 %v3921, 1e-05
    %v3924 = vadd.f32 %v3922, 1e-05
    %v3925 = vrsqrt.pop %v3923
    %v3926 = vrsqrt.pop %v3924
    %v3927 = vmul.f32 %v3911, %v3925
    %v3928 = vmul.f32 %v3912, %v3926
    %v3930 = vlaneseq
    %v3931 = vshrl.u32 %v3930, 7
    %v3932 = vsub.s32 0, %v3931
    %v3933 = vrot.slane %v3899, %v3932
    %v3935 = vmul.f32 %v3927, %v3933
    %v3936 = vmul.f32 %v3928, %v3933
    %v3938 = vlaneseq
    %v3939 = vshrl.u32 %v3938, 7
    %v3940 = vsub.s32 0, %v3939
    %v3941 = vrot.slane %v3901, %v3940
    %v3943 = vadd.f32 %v3935, %v3941
    %v3944 = vadd.f32 %v3936, %v3941
    %s3945 = scalar_lea.vmem %s3, 768
    %v3946 = vld [vmem:[%s3945] sm:$0xff]
    %v3947 = vld [vmem:[%s3945 + $0x8] sm:$0xff]
    %v3948 = vld [vmem:[%s3945 + $0x10] sm:$0xff]
    %v3949 = vld [vmem:[%s3945 + $0x18] sm:$0xff]
    %v3950 = vld [vmem:[%s3945 + $0x20] sm:$0xff]
    %v3951 = vld [vmem:[%s3945 + $0x28] sm:$0xff]
    %v3952 = vld [vmem:[%s3945 + $0x30] sm:$0xff]
    %v3953 = vld [vmem:[%s3945 + $0x38] sm:$0xff]
    %v3954 = vld [vmem:[%s3945 + $0x40] sm:$0xff]
    %v3955 = vld [vmem:[%s3945 + $0x48] sm:$0xff]
    %v3956 = vld [vmem:[%s3945 + $0x50] sm:$0xff]
    %v3957 = vld [vmem:[%s3945 + $0x58] sm:$0xff]
    %v3958 = vld [vmem:[%s3945 + $0x60] sm:$0xff]
    %v3959 = vld [vmem:[%s3945 + $0x68] sm:$0xff]
    %v3960 = vld [vmem:[%s3945 + $0x70] sm:$0xff]
    %v3961 = vld [vmem:[%s3945 + $0x78] sm:$0xff]
    %v3962 = vld [vmem:[%s3945 + $0x80] sm:$0xff]
    %v3963 = vld [vmem:[%s3945 + $0x88] sm:$0xff]
    %v3964 = vld [vmem:[%s3945 + $0x90] sm:$0xff]
    %v3965 = vld [vmem:[%s3945 + $0x98] sm:$0xff]
    %v3966 = vld [vmem:[%s3945 + $0xa0] sm:$0xff]
    %v3967 = vld [vmem:[%s3945 + $0xa8] sm:$0xff]
    %v3968 = vld [vmem:[%s3945 + $0xb0] sm:$0xff]
    %v3969 = vld [vmem:[%s3945 + $0xb8] sm:$0xff]
    %v3970 = vld [vmem:[%s3945 + $0xc0] sm:$0xff]
    %v3971 = vld [vmem:[%s3945 + $0xc8] sm:$0xff]
    %v3972 = vld [vmem:[%s3945 + $0xd0] sm:$0xff]
    %v3973 = vld [vmem:[%s3945 + $0xd8] sm:$0xff]
    %v3974 = vld [vmem:[%s3945 + $0xe0] sm:$0xff]
    %v3975 = vld [vmem:[%s3945 + $0xe8] sm:$0xff]
    %v3976 = vld [vmem:[%s3945 + $0xf0] sm:$0xff]
    %v3977 = vld [vmem:[%s3945 + $0xf8] sm:$0xff]
    %s3978 = scalar_lea.vmem %s4, 24
    %v3979 = vld [vmem:[%s3978] sm:$0x1]
    %v3980 = vld [vmem:[%s3978 + $0x1] sm:$0x1]
    %v3981 = vld [vmem:[%s3978 + $0x2] sm:$0x1]
    %v3982 = vld [vmem:[%s3978 + $0x3] sm:$0x1]
    %v3983 = vld [vmem:[%s3978 + $0x4] sm:$0x1]
    %v3984 = vld [vmem:[%s3978 + $0x5] sm:$0x1]
    %v3985 = vld [vmem:[%s3978 + $0x6] sm:$0x1]
    %v3986 = vld [vmem:[%s3978 + $0x7] sm:$0x1]
    %v3995 = vlaneseq
    %v3996 = vshrl.u32 %v3995, 7
    %v3997 = vsub.s32 0, %v3996
    %v3998 = vrot.slane %v3979, %v3997
    %v3999 = vlaneseq
    %v4000 = vshrl.u32 %v3999, 7
    %v4001 = vsub.s32 0, %v4000
    %v4002 = vrot.slane %v3980, %v4001
    %v4003 = vlaneseq
    %v4004 = vshrl.u32 %v4003, 7
    %v4005 = vsub.s32 0, %v4004
    %v4006 = vrot.slane %v3981, %v4005
    %v4007 = vlaneseq
    %v4008 = vshrl.u32 %v4007, 7
    %v4009 = vsub.s32 0, %v4008
    %v4010 = vrot.slane %v3982, %v4009
    %v4011 = vlaneseq
    %v4012 = vshrl.u32 %v4011, 7
    %v4013 = vsub.s32 0, %v4012
    %v4014 = vrot.slane %v3983, %v4013
    %v4015 = vlaneseq
    %v4016 = vshrl.u32 %v4015, 7
    %v4017 = vsub.s32 0, %v4016
    %v4018 = vrot.slane %v3984, %v4017
    %v4019 = vlaneseq
    %v4020 = vshrl.u32 %v4019, 7
    %v4021 = vsub.s32 0, %v4020
    %v4022 = vrot.slane %v3985, %v4021
    %v4023 = vlaneseq
    %v4024 = vshrl.u32 %v4023, 7
    %v4025 = vsub.s32 0, %v4024
    %v4026 = vrot.slane %v3986, %v4025
    %v4036 = vsel %vm136, %v3943, 0
    %4038 = vmatprep.subr.mxu0 0.0
    %4039 = vmatpush1.msra.mxu0 %v3946
    %4040 = vmatprep.subr.mxu0 0.0
    %4041 = vmatpush1.msra.mxu0 %v3947
    %4042 = vmatprep.subr.mxu0 0.0
    %4043 = vmatpush1.msra.mxu0 %v3948
    %4044 = vmatprep.subr.mxu0 0.0
    %4045 = vmatpush1.msra.mxu0 %v3949
    %4046 = vmatprep.subr.mxu0 0.0
    %4047 = vmatpush1.msra.mxu0 0.0
    %4048 = vmatprep.subr.mxu0 0.0
    %4049 = vmatpush1.msra.mxu0 0.0
    %4050 = vmatprep.subr.mxu0 0.0
    %4051 = vmatpush1.msra.mxu0 0.0
    %4052 = vmatprep.subr.mxu0 0.0
    %4053 = vmatpush1.msra.mxu0 0.0
    %4054 = vmatprep.subr.mxu0 0.0
    %4055 = vmatpush1.msra.mxu0 0.0
    %4056 = vmatprep.subr.mxu0 0.0
    %4057 = vmatpush1.msra.mxu0 0.0
    %4058 = vmatprep.subr.mxu0 0.0
    %4059 = vmatpush1.msra.mxu0 0.0
    %4060 = vmatprep.subr.mxu0 0.0
    %4061 = vmatpush1.msra.mxu0 0.0
    %4062 = vmatprep.subr.mxu0 0.0
    %4063 = vmatpush1.msra.mxu0 0.0
    %4064 = vmatprep.subr.mxu0 0.0
    %4065 = vmatpush1.msra.mxu0 0.0
    %4066 = vmatprep.subr.mxu0 0.0
    %4067 = vmatpush1.msra.mxu0 0.0
    %4068 = vmatprep.subr.mxu0 0.0
    %4069 = vmatpush1.msra.mxu0 0.0
    %4070 = vmatprep.subr.mxu0 0.0
    %4071 = vmatpush1.msra.mxu0 0.0
    %4072 = vmatprep.subr.mxu0 0.0
    %4073 = vmatpush1.msra.mxu0 0.0
    %4074 = vmatprep.subr.mxu0 0.0
    %4075 = vmatpush1.msra.mxu0 0.0
    %4076 = vmatprep.subr.mxu0 0.0
    %4077 = vmatpush1.msra.mxu0 0.0
    %4078 = vmatprep.subr.mxu0 0.0
    %4079 = vmatpush1.msra.mxu0 0.0
    %4080 = vmatprep.subr.mxu0 0.0
    %4081 = vmatpush1.msra.mxu0 0.0
    %4082 = vmatprep.subr.mxu0 0.0
    %4083 = vmatpush1.msra.mxu0 0.0
    %4084 = vmatprep.subr.mxu0 0.0
    %4085 = vmatpush1.msra.mxu0 0.0
    %4086 = vmatprep.subr.mxu0 0.0
    %4087 = vmatpush1.msra.mxu0 0.0
    %4088 = vmatprep.subr.mxu0 0.0
    %4089 = vmatpush1.msra.mxu0 0.0
    %4090 = vmatprep.subr.mxu0 0.0
    %4091 = vmatpush1.msra.mxu0 0.0
    %4092 = vmatprep.subr.mxu0 0.0
    %4093 = vmatpush1.msra.mxu0 0.0
    %4094 = vmatprep.subr.mxu0 0.0
    %4095 = vmatpush1.msra.mxu0 0.0
    %4096 = vmatprep.subr.mxu0 0.0
    %4097 = vmatpush1.msra.mxu0 0.0
    %4098 = vmatprep.subr.mxu0 0.0
    %4099 = vmatpush1.msra.mxu0 0.0
    %4100 = vmatprep.subr.mxu0 0.0
    %4101 = vmatpush1.msra.mxu0 0.0
    %4102 = vmatprep.mubr.f32.mxu0 0.0
    %4103 = vmatmul.mubr.f32.gmra.mrb[0].mxu0 %v4036
    %v4104 = vpop.f32.mrb[0].mxu0
    %v4105 = vadd.f32 %v3998, %v4104
    %v4106 = vpop.f32.mrb[0].mxu0
    %4107 = vdwg.mxu0
    %4108 = vmatprep.subr.mxu0 0.0
    %4109 = vmatpush1.msra.mxu0 %v3950
    %4110 = vmatprep.subr.mxu0 0.0
    %4111 = vmatpush1.msra.mxu0 %v3951
    %4112 = vmatprep.subr.mxu0 0.0
    %4113 = vmatpush1.msra.mxu0 %v3952
    %4114 = vmatprep.subr.mxu0 0.0
    %4115 = vmatpush1.msra.mxu0 %v3953
    %4116 = vmatprep.subr.mxu0 0.0
    %4117 = vmatpush1.msra.mxu0 0.0
    %4118 = vmatprep.subr.mxu0 0.0
    %4119 = vmatpush1.msra.mxu0 0.0
    %4120 = vmatprep.subr.mxu0 0.0
    %4121 = vmatpush1.msra.mxu0 0.0
    %4122 = vmatprep.subr.mxu0 0.0
    %4123 = vmatpush1.msra.mxu0 0.0
    %4124 = vmatprep.subr.mxu0 0.0
    %4125 = vmatpush1.msra.mxu0 0.0
    %4126 = vmatprep.subr.mxu0 0.0
    %4127 = vmatpush1.msra.mxu0 0.0
    %4128 = vmatprep.subr.mxu0 0.0
    %4129 = vmatpush1.msra.mxu0 0.0
    %4130 = vmatprep.subr.mxu0 0.0
    %4131 = vmatpush1.msra.mxu0 0.0
    %4132 = vmatprep.subr.mxu0 0.0
    %4133 = vmatpush1.msra.mxu0 0.0
    %4134 = vmatprep.subr.mxu0 0.0
    %4135 = vmatpush1.msra.mxu0 0.0
    %4136 = vmatprep.subr.mxu0 0.0
    %4137 = vmatpush1.msra.mxu0 0.0
    %4138 = vmatprep.subr.mxu0 0.0
    %4139 = vmatpush1.msra.mxu0 0.0
    %4140 = vmatprep.subr.mxu0 0.0
    %4141 = vmatpush1.msra.mxu0 0.0
    %4142 = vmatprep.subr.mxu0 0.0
    %4143 = vmatpush1.msra.mxu0 0.0
    %4144 = vmatprep.subr.mxu0 0.0
    %4145 = vmatpush1.msra.mxu0 0.0
    %4146 = vmatprep.subr.mxu0 0.0
    %4147 = vmatpush1.msra.mxu0 0.0
    %4148 = vmatprep.subr.mxu0 0.0
    %4149 = vmatpush1.msra.mxu0 0.0
    %4150 = vmatprep.subr.mxu0 0.0
    %4151 = vmatpush1.msra.mxu0 0.0
    %4152 = vmatprep.subr.mxu0 0.0
    %4153 = vmatpush1.msra.mxu0 0.0
    %4154 = vmatprep.subr.mxu0 0.0
    %4155 = vmatpush1.msra.mxu0 0.0
    %4156 = vmatprep.subr.mxu0 0.0
    %4157 = vmatpush1.msra.mxu0 0.0
    %4158 = vmatprep.subr.mxu0 0.0
    %4159 = vmatpush1.msra.mxu0 0.0
    %4160 = vmatprep.subr.mxu0 0.0
    %4161 = vmatpush1.msra.mxu0 0.0
    %4162 = vmatprep.subr.mxu0 0.0
    %4163 = vmatpush1.msra.mxu0 0.0
    %4164 = vmatprep.subr.mxu0 0.0
    %4165 = vmatpush1.msra.mxu0 0.0
    %4166 = vmatprep.subr.mxu0 0.0
    %4167 = vmatpush1.msra.mxu0 0.0
    %4168 = vmatprep.subr.mxu0 0.0
    %4169 = vmatpush1.msra.mxu0 0.0
    %4170 = vmatprep.subr.mxu0 0.0
    %4171 = vmatpush1.msra.mxu0 0.0
    %4172 = vmatprep.mubr.f32.mxu0 0.0
    %4173 = vmatmul.mubr.f32.gmra.mrb[0].mxu0 %v4036
    %v4174 = vpop.f32.mrb[0].mxu0
    %v4175 = vadd.f32 %v4002, %v4174
    %v4176 = vpop.f32.mrb[0].mxu0
    %4177 = vdwg.mxu0
    %4178 = vmatprep.subr.mxu0 0.0
    %4179 = vmatpush1.msra.mxu0 %v3954
    %4180 = vmatprep.subr.mxu0 0.0
    %4181 = vmatpush1.msra.mxu0 %v3955
    %4182 = vmatprep.subr.mxu0 0.0
    %4183 = vmatpush1.msra.mxu0 %v3956
    %4184 = vmatprep.subr.mxu0 0.0
    %4185 = vmatpush1.msra.mxu0 %v3957
    %4186 = vmatprep.subr.mxu0 0.0
    %4187 = vmatpush1.msra.mxu0 0.0
    %4188 = vmatprep.subr.mxu0 0.0
    %4189 = vmatpush1.msra.mxu0 0.0
    %4190 = vmatprep.subr.mxu0 0.0
    %4191 = vmatpush1.msra.mxu0 0.0
    %4192 = vmatprep.subr.mxu0 0.0
    %4193 = vmatpush1.msra.mxu0 0.0
    %4194 = vmatprep.subr.mxu0 0.0
    %4195 = vmatpush1.msra.mxu0 0.0
    %4196 = vmatprep.subr.mxu0 0.0
    %4197 = vmatpush1.msra.mxu0 0.0
    %4198 = vmatprep.subr.mxu0 0.0
    %4199 = vmatpush1.msra.mxu0 0.0
    %4200 = vmatprep.subr.mxu0 0.0
    %4201 = vmatpush1.msra.mxu0 0.0
    %4202 = vmatprep.subr.mxu0 0.0
    %4203 = vmatpush1.msra.mxu0 0.0
    %4204 = vmatprep.subr.mxu0 0.0
    %4205 = vmatpush1.msra.mxu0 0.0
    %4206 = vmatprep.subr.mxu0 0.0
    %4207 = vmatpush1.msra.mxu0 0.0
    %4208 = vmatprep.subr.mxu0 0.0
    %4209 = vmatpush1.msra.mxu0 0.0
    %4210 = vmatprep.subr.mxu0 0.0
    %4211 = vmatpush1.msra.mxu0 0.0
    %4212 = vmatprep.subr.mxu0 0.0
    %4213 = vmatpush1.msra.mxu0 0.0
    %4214 = vmatprep.subr.mxu0 0.0
    %4215 = vmatpush1.msra.mxu0 0.0
    %4216 = vmatprep.subr.mxu0 0.0
    %4217 = vmatpush1.msra.mxu0 0.0
    %4218 = vmatprep.subr.mxu0 0.0
    %4219 = vmatpush1.msra.mxu0 0.0
    %4220 = vmatprep.subr.mxu0 0.0
    %4221 = vmatpush1.msra.mxu0 0.0
    %4222 = vmatprep.subr.mxu0 0.0
    %4223 = vmatpush1.msra.mxu0 0.0
    %4224 = vmatprep.subr.mxu0 0.0
    %4225 = vmatpush1.msra.mxu0 0.0
    %4226 = vmatprep.subr.mxu0 0.0
    %4227 = vmatpush1.msra.mxu0 0.0
    %4228 = vmatprep.subr.mxu0 0.0
    %4229 = vmatpush1.msra.mxu0 0.0
    %4230 = vmatprep.subr.mxu0 0.0
    %4231 = vmatpush1.msra.mxu0 0.0
    %4232 = vmatprep.subr.mxu0 0.0
    %4233 = vmatpush1.msra.mxu0 0.0
    %4234 = vmatprep.subr.mxu0 0.0
    %4235 = vmatpush1.msra.mxu0 0.0
    %4236 = vmatprep.subr.mxu0 0.0
    %4237 = vmatpush1.msra.mxu0 0.0
    %4238 = vmatprep.subr.mxu0 0.0
    %4239 = vmatpush1.msra.mxu0 0.0
    %4240 = vmatprep.subr.mxu0 0.0
    %4241 = vmatpush1.msra.mxu0 0.0
    %4242 = vmatprep.mubr.f32.mxu0 0.0
    %4243 = vmatmul.mubr.f32.gmra.mrb[0].mxu0 %v4036
    %v4244 = vpop.f32.mrb[0].mxu0
    %v4245 = vadd.f32 %v4006, %v4244
    %v4246 = vpop.f32.mrb[0].mxu0
    %4247 = vdwg.mxu0
    %4248 = vmatprep.subr.mxu0 0.0
    %4249 = vmatpush1.msra.mxu0 %v3958
    %4250 = vmatprep.subr.mxu0 0.0
    %4251 = vmatpush1.msra.mxu0 %v3959
    %4252 = vmatprep.subr.mxu0 0.0
    %4253 = vmatpush1.msra.mxu0 %v3960
    %4254 = vmatprep.subr.mxu0 0.0
    %4255 = vmatpush1.msra.mxu0 %v3961
    %4256 = vmatprep.subr.mxu0 0.0
    %4257 = vmatpush1.msra.mxu0 0.0
    %4258 = vmatprep.subr.mxu0 0.0
    %4259 = vmatpush1.msra.mxu0 0.0
    %4260 = vmatprep.subr.mxu0 0.0
    %4261 = vmatpush1.msra.mxu0 0.0
    %4262 = vmatprep.subr.mxu0 0.0
    %4263 = vmatpush1.msra.mxu0 0.0
    %4264 = vmatprep.subr.mxu0 0.0
    %4265 = vmatpush1.msra.mxu0 0.0
    %4266 = vmatprep.subr.mxu0 0.0
    %4267 = vmatpush1.msra.mxu0 0.0
    %4268 = vmatprep.subr.mxu0 0.0
    %4269 = vmatpush1.msra.mxu0 0.0
    %4270 = vmatprep.subr.mxu0 0.0
    %4271 = vmatpush1.msra.mxu0 0.0
    %4272 = vmatprep.subr.mxu0 0.0
    %4273 = vmatpush1.msra.mxu0 0.0
    %4274 = vmatprep.subr.mxu0 0.0
    %4275 = vmatpush1.msra.mxu0 0.0
    %4276 = vmatprep.subr.mxu0 0.0
    %4277 = vmatpush1.msra.mxu0 0.0
    %4278 = vmatprep.subr.mxu0 0.0
    %4279 = vmatpush1.msra.mxu0 0.0
    %4280 = vmatprep.subr.mxu0 0.0
    %4281 = vmatpush1.msra.mxu0 0.0
    %4282 = vmatprep.subr.mxu0 0.0
    %4283 = vmatpush1.msra.mxu0 0.0
    %4284 = vmatprep.subr.mxu0 0.0
    %4285 = vmatpush1.msra.mxu0 0.0
    %4286 = vmatprep.subr.mxu0 0.0
    %4287 = vmatpush1.msra.mxu0 0.0
    %4288 = vmatprep.subr.mxu0 0.0
    %4289 = vmatpush1.msra.mxu0 0.0
    %4290 = vmatprep.subr.mxu0 0.0
    %4291 = vmatpush1.msra.mxu0 0.0
    %4292 = vmatprep.subr.mxu0 0.0
    %4293 = vmatpush1.msra.mxu0 0.0
    %4294 = vmatprep.subr.mxu0 0.0
    %4295 = vmatpush1.msra.mxu0 0.0
    %4296 = vmatprep.subr.mxu0 0.0
    %4297 = vmatpush1.msra.mxu0 0.0
    %4298 = vmatprep.subr.mxu0 0.0
    %4299 = vmatpush1.msra.mxu0 0.0
    %4300 = vmatprep.subr.mxu0 0.0
    %4301 = vmatpush1.msra.mxu0 0.0
    %4302 = vmatprep.subr.mxu0 0.0
    %4303 = vmatpush1.msra.mxu0 0.0
    %4304 = vmatprep.subr.mxu0 0.0
    %4305 = vmatpush1.msra.mxu0 0.0
    %4306 = vmatprep.subr.mxu0 0.0
    %4307 = vmatpush1.msra.mxu0 0.0
    %4308 = vmatprep.subr.mxu0 0.0
    %4309 = vmatpush1.msra.mxu0 0.0
    %4310 = vmatprep.subr.mxu0 0.0
    %4311 = vmatpush1.msra.mxu0 0.0
    %4312 = vmatprep.mubr.f32.mxu0 0.0
    %4313 = vmatmul.mubr.f32.gmra.mrb[0].mxu0 %v4036
    %v4314 = vpop.f32.mrb[0].mxu0
    %v4315 = vadd.f32 %v4010, %v4314
    %v4316 = vpop.f32.mrb[0].mxu0
    %4317 = vdwg.mxu0
    %v4319 = vsel %vm136, %v3944, 0
    %4321 = vmatprep.subr.mxu0 0.0
    %4322 = vmatpush1.msra.mxu0 %v3962
    %4323 = vmatprep.subr.mxu0 0.0
    %4324 = vmatpush1.msra.mxu0 %v3963
    %4325 = vmatprep.subr.mxu0 0.0
    %4326 = vmatpush1.msra.mxu0 %v3964
    %4327 = vmatprep.subr.mxu0 0.0
    %4328 = vmatpush1.msra.mxu0 %v3965
    %4329 = vmatprep.subr.mxu0 0.0
    %4330 = vmatpush1.msra.mxu0 0.0
    %4331 = vmatprep.subr.mxu0 0.0
    %4332 = vmatpush1.msra.mxu0 0.0
    %4333 = vmatprep.subr.mxu0 0.0
    %4334 = vmatpush1.msra.mxu0 0.0
    %4335 = vmatprep.subr.mxu0 0.0
    %4336 = vmatpush1.msra.mxu0 0.0
    %4337 = vmatprep.subr.mxu0 0.0
    %4338 = vmatpush1.msra.mxu0 0.0
    %4339 = vmatprep.subr.mxu0 0.0
    %4340 = vmatpush1.msra.mxu0 0.0
    %4341 = vmatprep.subr.mxu0 0.0
    %4342 = vmatpush1.msra.mxu0 0.0
    %4343 = vmatprep.subr.mxu0 0.0
    %4344 = vmatpush1.msra.mxu0 0.0
    %4345 = vmatprep.subr.mxu0 0.0
    %4346 = vmatpush1.msra.mxu0 0.0
    %4347 = vmatprep.subr.mxu0 0.0
    %4348 = vmatpush1.msra.mxu0 0.0
    %4349 = vmatprep.subr.mxu0 0.0
    %4350 = vmatpush1.msra.mxu0 0.0
    %4351 = vmatprep.subr.mxu0 0.0
    %4352 = vmatpush1.msra.mxu0 0.0
    %4353 = vmatprep.subr.mxu0 0.0
    %4354 = vmatpush1.msra.mxu0 0.0
    %4355 = vmatprep.subr.mxu0 0.0
    %4356 = vmatpush1.msra.mxu0 0.0
    %4357 = vmatprep.subr.mxu0 0.0
    %4358 = vmatpush1.msra.mxu0 0.0
    %4359 = vmatprep.subr.mxu0 0.0
    %4360 = vmatpush1.msra.mxu0 0.0
    %4361 = vmatprep.subr.mxu0 0.0
    %4362 = vmatpush1.msra.mxu0 0.0
    %4363 = vmatprep.subr.mxu0 0.0
    %4364 = vmatpush1.msra.mxu0 0.0
    %4365 = vmatprep.subr.mxu0 0.0
    %4366 = vmatpush1.msra.mxu0 0.0
    %4367 = vmatprep.subr.mxu0 0.0
    %4368 = vmatpush1.msra.mxu0 0.0
    %4369 = vmatprep.subr.mxu0 0.0
    %4370 = vmatpush1.msra.mxu0 0.0
    %4371 = vmatprep.subr.mxu0 0.0
    %4372 = vmatpush1.msra.mxu0 0.0
    %4373 = vmatprep.subr.mxu0 0.0
    %4374 = vmatpush1.msra.mxu0 0.0
    %4375 = vmatprep.subr.mxu0 0.0
    %4376 = vmatpush1.msra.mxu0 0.0
    %4377 = vmatprep.subr.mxu0 0.0
    %4378 = vmatpush1.msra.mxu0 0.0
    %4379 = vmatprep.subr.mxu0 0.0
    %4380 = vmatpush1.msra.mxu0 0.0
    %4381 = vmatprep.subr.mxu0 0.0
    %4382 = vmatpush1.msra.mxu0 0.0
    %4383 = vmatprep.subr.mxu0 0.0
    %4384 = vmatpush1.msra.mxu0 0.0
    %4385 = vmatprep.mubr.f32.mxu0 0.0
    %4386 = vmatmul.mubr.f32.gmra.mrb[0].mxu0 %v4319
    %v4387 = vpop.f32.mrb[0].mxu0
    %v4388 = vadd.f32 %v4014, %v4387
    %v4389 = vpop.f32.mrb[0].mxu0
    %4390 = vdwg.mxu0
    %4391 = vmatprep.subr.mxu0 0.0
    %4392 = vmatpush1.msra.mxu0 %v3966
    %4393 = vmatprep.subr.mxu0 0.0
    %4394 = vmatpush1.msra.mxu0 %v3967
    %4395 = vmatprep.subr.mxu0 0.0
    %4396 = vmatpush1.msra.mxu0 %v3968
    %4397 = vmatprep.subr.mxu0 0.0
    %4398 = vmatpush1.msra.mxu0 %v3969
    %4399 = vmatprep.subr.mxu0 0.0
    %4400 = vmatpush1.msra.mxu0 0.0
    %4401 = vmatprep.subr.mxu0 0.0
    %4402 = vmatpush1.msra.mxu0 0.0
    %4403 = vmatprep.subr.mxu0 0.0
    %4404 = vmatpush1.msra.mxu0 0.0
    %4405 = vmatprep.subr.mxu0 0.0
    %4406 = vmatpush1.msra.mxu0 0.0
    %4407 = vmatprep.subr.mxu0 0.0
    %4408 = vmatpush1.msra.mxu0 0.0
    %4409 = vmatprep.subr.mxu0 0.0
    %4410 = vmatpush1.msra.mxu0 0.0
    %4411 = vmatprep.subr.mxu0 0.0
    %4412 = vmatpush1.msra.mxu0 0.0
    %4413 = vmatprep.subr.mxu0 0.0
    %4414 = vmatpush1.msra.mxu0 0.0
    %4415 = vmatprep.subr.mxu0 0.0
    %4416 = vmatpush1.msra.mxu0 0.0
    %4417 = vmatprep.subr.mxu0 0.0
    %4418 = vmatpush1.msra.mxu0 0.0
    %4419 = vmatprep.subr.mxu0 0.0
    %4420 = vmatpush1.msra.mxu0 0.0
    %4421 = vmatprep.subr.mxu0 0.0
    %4422 = vmatpush1.msra.mxu0 0.0
    %4423 = vmatprep.subr.mxu0 0.0
    %4424 = vmatpush1.msra.mxu0 0.0
    %4425 = vmatprep.subr.mxu0 0.0
    %4426 = vmatpush1.msra.mxu0 0.0
    %4427 = vmatprep.subr.mxu0 0.0
    %4428 = vmatpush1.msra.mxu0 0.0
    %4429 = vmatprep.subr.mxu0 0.0
    %4430 = vmatpush1.msra.mxu0 0.0
    %4431 = vmatprep.subr.mxu0 0.0
    %4432 = vmatpush1.msra.mxu0 0.0
    %4433 = vmatprep.subr.mxu0 0.0
    %4434 = vmatpush1.msra.mxu0 0.0
    %4435 = vmatprep.subr.mxu0 0.0
    %4436 = vmatpush1.msra.mxu0 0.0
    %4437 = vmatprep.subr.mxu0 0.0
    %4438 = vmatpush1.msra.mxu0 0.0
    %4439 = vmatprep.subr.mxu0 0.0
    %4440 = vmatpush1.msra.mxu0 0.0
    %4441 = vmatprep.subr.mxu0 0.0
    %4442 = vmatpush1.msra.mxu0 0.0
    %4443 = vmatprep.subr.mxu0 0.0
    %4444 = vmatpush1.msra.mxu0 0.0
    %4445 = vmatprep.subr.mxu0 0.0
    %4446 = vmatpush1.msra.mxu0 0.0
    %4447 = vmatprep.subr.mxu0 0.0
    %4448 = vmatpush1.msra.mxu0 0.0
    %4449 = vmatprep.subr.mxu0 0.0
    %4450 = vmatpush1.msra.mxu0 0.0
    %4451 = vmatprep.subr.mxu0 0.0
    %4452 = vmatpush1.msra.mxu0 0.0
    %4453 = vmatprep.subr.mxu0 0.0
    %4454 = vmatpush1.msra.mxu0 0.0
    %4455 = vmatprep.mubr.f32.mxu0 0.0
    %4456 = vmatmul.mubr.f32.gmra.mrb[0].mxu0 %v4319
    %v4457 = vpop.f32.mrb[0].mxu0
    %v4458 = vadd.f32 %v4018, %v4457
    %v4459 = vpop.f32.mrb[0].mxu0
    %4460 = vdwg.mxu0
    %4461 = vmatprep.subr.mxu0 0.0
    %4462 = vmatpush1.msra.mxu0 %v3970
    %4463 = vmatprep.subr.mxu0 0.0
    %4464 = vmatpush1.msra.mxu0 %v3971
    %4465 = vmatprep.subr.mxu0 0.0
    %4466 = vmatpush1.msra.mxu0 %v3972
    %4467 = vmatprep.subr.mxu0 0.0
    %4468 = vmatpush1.msra.mxu0 %v3973
    %4469 = vmatprep.subr.mxu0 0.0
    %4470 = vmatpush1.msra.mxu0 0.0
    %4471 = vmatprep.subr.mxu0 0.0
    %4472 = vmatpush1.msra.mxu0 0.0
    %4473 = vmatprep.subr.mxu0 0.0
    %4474 = vmatpush1.msra.mxu0 0.0
    %4475 = vmatprep.subr.mxu0 0.0
    %4476 = vmatpush1.msra.mxu0 0.0
    %4477 = vmatprep.subr.mxu0 0.0
    %4478 = vmatpush1.msra.mxu0 0.0
    %4479 = vmatprep.subr.mxu0 0.0
    %4480 = vmatpush1.msra.mxu0 0.0
    %4481 = vmatprep.subr.mxu0 0.0
    %4482 = vmatpush1.msra.mxu0 0.0
    %4483 = vmatprep.subr.mxu0 0.0
    %4484 = vmatpush1.msra.mxu0 0.0
    %4485 = vmatprep.subr.mxu0 0.0
    %4486 = vmatpush1.msra.mxu0 0.0
    %4487 = vmatprep.subr.mxu0 0.0
    %4488 = vmatpush1.msra.mxu0 0.0
    %4489 = vmatprep.subr.mxu0 0.0
    %4490 = vmatpush1.msra.mxu0 0.0
    %4491 = vmatprep.subr.mxu0 0.0
    %4492 = vmatpush1.msra.mxu0 0.0
    %4493 = vmatprep.subr.mxu0 0.0
    %4494 = vmatpush1.msra.mxu0 0.0
    %4495 = vmatprep.subr.mxu0 0.0
    %4496 = vmatpush1.msra.mxu0 0.0
    %4497 = vmatprep.subr.mxu0 0.0
    %4498 = vmatpush1.msra.mxu0 0.0
    %4499 = vmatprep.subr.mxu0 0.0
    %4500 = vmatpush1.msra.mxu0 0.0
    %4501 = vmatprep.subr.mxu0 0.0
    %4502 = vmatpush1.msra.mxu0 0.0
    %4503 = vmatprep.subr.mxu0 0.0
    %4504 = vmatpush1.msra.mxu0 0.0
    %4505 = vmatprep.subr.mxu0 0.0
    %4506 = vmatpush1.msra.mxu0 0.0
    %4507 = vmatprep.subr.mxu0 0.0
    %4508 = vmatpush1.msra.mxu0 0.0
    %4509 = vmatprep.subr.mxu0 0.0
    %4510 = vmatpush1.msra.mxu0 0.0
    %4511 = vmatprep.subr.mxu0 0.0
    %4512 = vmatpush1.msra.mxu0 0.0
    %4513 = vmatprep.subr.mxu0 0.0
    %4514 = vmatpush1.msra.mxu0 0.0
    %4515 = vmatprep.subr.mxu0 0.0
    %4516 = vmatpush1.msra.mxu0 0.0
    %4517 = vmatprep.subr.mxu0 0.0
    %4518 = vmatpush1.msra.mxu0 0.0
    %4519 = vmatprep.subr.mxu0 0.0
    %4520 = vmatpush1.msra.mxu0 0.0
    %4521 = vmatprep.subr.mxu0 0.0
    %4522 = vmatpush1.msra.mxu0 0.0
    %4523 = vmatprep.subr.mxu0 0.0
    %4524 = vmatpush1.msra.mxu0 0.0
    %4525 = vmatprep.mubr.f32.mxu0 0.0
    %4526 = vmatmul.mubr.f32.gmra.mrb[0].mxu0 %v4319
    %v4527 = vpop.f32.mrb[0].mxu0
    %v4528 = vadd.f32 %v4022, %v4527
    %v4529 = vpop.f32.mrb[0].mxu0
    %4530 = vdwg.mxu0
    %4531 = vmatprep.subr.mxu0 0.0
    %4532 = vmatpush1.msra.mxu0 %v3974
    %4533 = vmatprep.subr.mxu0 0.0
    %4534 = vmatpush1.msra.mxu0 %v3975
    %4535 = vmatprep.subr.mxu0 0.0
    %4536 = vmatpush1.msra.mxu0 %v3976
    %4537 = vmatprep.subr.mxu0 0.0
    %4538 = vmatpush1.msra.mxu0 %v3977
    %4539 = vmatprep.subr.mxu0 0.0
    %4540 = vmatpush1.msra.mxu0 0.0
    %4541 = vmatprep.subr.mxu0 0.0
    %4542 = vmatpush1.msra.mxu0 0.0
    %4543 = vmatprep.subr.mxu0 0.0
    %4544 = vmatpush1.msra.mxu0 0.0
    %4545 = vmatprep.subr.mxu0 0.0
    %4546 = vmatpush1.msra.mxu0 0.0
    %4547 = vmatprep.subr.mxu0 0.0
    %4548 = vmatpush1.msra.mxu0 0.0
    %4549 = vmatprep.subr.mxu0 0.0
    %4550 = vmatpush1.msra.mxu0 0.0
    %4551 = vmatprep.subr.mxu0 0.0
    %4552 = vmatpush1.msra.mxu0 0.0
    %4553 = vmatprep.subr.mxu0 0.0
    %4554 = vmatpush1.msra.mxu0 0.0
    %4555 = vmatprep.subr.mxu0 0.0
    %4556 = vmatpush1.msra.mxu0 0.0
    %4557 = vmatprep.subr.mxu0 0.0
    %4558 = vmatpush1.msra.mxu0 0.0
    %4559 = vmatprep.subr.mxu0 0.0
    %4560 = vmatpush1.msra.mxu0 0.0
    %4561 = vmatprep.subr.mxu0 0.0
    %4562 = vmatpush1.msra.mxu0 0.0
    %4563 = vmatprep.subr.mxu0 0.0
    %4564 = vmatpush1.msra.mxu0 0.0
    %4565 = vmatprep.subr.mxu0 0.0
    %4566 = vmatpush1.msra.mxu0 0.0
    %4567 = vmatprep.subr.mxu0 0.0
    %4568 = vmatpush1.msra.mxu0 0.0
    %4569 = vmatprep.subr.mxu0 0.0
    %4570 = vmatpush1.msra.mxu0 0.0
    %4571 = vmatprep.subr.mxu0 0.0
    %4572 = vmatpush1.msra.mxu0 0.0
    %4573 = vmatprep.subr.mxu0 0.0
    %4574 = vmatpush1.msra.mxu0 0.0
    %4575 = vmatprep.subr.mxu0 0.0
    %4576 = vmatpush1.msra.mxu0 0.0
    %4577 = vmatprep.subr.mxu0 0.0
    %4578 = vmatpush1.msra.mxu0 0.0
    %4579 = vmatprep.subr.mxu0 0.0
    %4580 = vmatpush1.msra.mxu0 0.0
    %4581 = vmatprep.subr.mxu0 0.0
    %4582 = vmatpush1.msra.mxu0 0.0
    %4583 = vmatprep.subr.mxu0 0.0
    %4584 = vmatpush1.msra.mxu0 0.0
    %4585 = vmatprep.subr.mxu0 0.0
    %4586 = vmatpush1.msra.mxu0 0.0
    %4587 = vmatprep.subr.mxu0 0.0
    %4588 = vmatpush1.msra.mxu0 0.0
    %4589 = vmatprep.subr.mxu0 0.0
    %4590 = vmatpush1.msra.mxu0 0.0
    %4591 = vmatprep.subr.mxu0 0.0
    %4592 = vmatpush1.msra.mxu0 0.0
    %4593 = vmatprep.subr.mxu0 0.0
    %4594 = vmatpush1.msra.mxu0 0.0
    %4595 = vmatprep.mubr.f32.mxu0 0.0
    %4596 = vmatmul.mubr.f32.gmra.mrb[0].mxu0 %v4319
    %v4597 = vpop.f32.mrb[0].mxu0
    %v4598 = vadd.f32 %v4026, %v4597
    %v4599 = vpop.f32.mrb[0].mxu0
    %4600 = vdwg.mxu0
    %s4601 = scalar_lea.vmem %s3, 1024
    %v4602 = vld [vmem:[%s4601] sm:$0xff]
    %v4603 = vld [vmem:[%s4601 + $0x8] sm:$0xff]
    %v4604 = vld [vmem:[%s4601 + $0x10] sm:$0xff]
    %v4605 = vld [vmem:[%s4601 + $0x18] sm:$0xff]
    %v4606 = vld [vmem:[%s4601 + $0x20] sm:$0xff]
    %v4607 = vld [vmem:[%s4601 + $0x28] sm:$0xff]
    %v4608 = vld [vmem:[%s4601 + $0x30] sm:$0xff]
    %v4609 = vld [vmem:[%s4601 + $0x38] sm:$0xff]
    %v4610 = vld [vmem:[%s4601 + $0x40] sm:$0xff]
    %v4611 = vld [vmem:[%s4601 + $0x48] sm:$0xff]
    %v4612 = vld [vmem:[%s4601 + $0x50] sm:$0xff]
    %v4613 = vld [vmem:[%s4601 + $0x58] sm:$0xff]
    %v4614 = vld [vmem:[%s4601 + $0x60] sm:$0xff]
    %v4615 = vld [vmem:[%s4601 + $0x68] sm:$0xff]
    %v4616 = vld [vmem:[%s4601 + $0x70] sm:$0xff]
    %v4617 = vld [vmem:[%s4601 + $0x78] sm:$0xff]
    %v4618 = vld [vmem:[%s4601 + $0x80] sm:$0xff]
    %v4619 = vld [vmem:[%s4601 + $0x88] sm:$0xff]
    %v4620 = vld [vmem:[%s4601 + $0x90] sm:$0xff]
    %v4621 = vld [vmem:[%s4601 + $0x98] sm:$0xff]
    %v4622 = vld [vmem:[%s4601 + $0xa0] sm:$0xff]
    %v4623 = vld [vmem:[%s4601 + $0xa8] sm:$0xff]
    %v4624 = vld [vmem:[%s4601 + $0xb0] sm:$0xff]
    %v4625 = vld [vmem:[%s4601 + $0xb8] sm:$0xff]
    %v4626 = vld [vmem:[%s4601 + $0xc0] sm:$0xff]
    %v4627 = vld [vmem:[%s4601 + $0xc8] sm:$0xff]
    %v4628 = vld [vmem:[%s4601 + $0xd0] sm:$0xff]
    %v4629 = vld [vmem:[%s4601 + $0xd8] sm:$0xff]
    %v4630 = vld [vmem:[%s4601 + $0xe0] sm:$0xff]
    %v4631 = vld [vmem:[%s4601 + $0xe8] sm:$0xff]
    %v4632 = vld [vmem:[%s4601 + $0xf0] sm:$0xff]
    %v4633 = vld [vmem:[%s4601 + $0xf8] sm:$0xff]
    %s4634 = scalar_lea.vmem %s4, 32
    %v4635 = vld [vmem:[%s4634] sm:$0x1]
    %v4636 = vld [vmem:[%s4634 + $0x1] sm:$0x1]
    %v4637 = vld [vmem:[%s4634 + $0x2] sm:$0x1]
    %v4638 = vld [vmem:[%s4634 + $0x3] sm:$0x1]
    %v4639 = vld [vmem:[%s4634 + $0x4] sm:$0x1]
    %v4640 = vld [vmem:[%s4634 + $0x5] sm:$0x1]
    %v4641 = vld [vmem:[%s4634 + $0x6] sm:$0x1]
    %v4642 = vld [vmem:[%s4634 + $0x7] sm:$0x1]
    %v4651 = vlaneseq
    %v4652 = vshrl.u32 %v4651, 7
    %v4653 = vsub.s32 0, %v4652
    %v4654 = vrot.slane %v4635, %v4653
    %v4655 = vlaneseq
    %v4656 = vshrl.u32 %v4655, 7
    %v4657 = vsub.s32 0, %v4656
    %v4658 = vrot.slane %v4636, %v4657
    %v4659 = vlaneseq
    %v4660 = vshrl.u32 %v4659, 7
    %v4661 = vsub.s32 0, %v4660
    %v4662 = vrot.slane %v4637, %v4661
    %v4663 = vlaneseq
    %v4664 = vshrl.u32 %v4663, 7
    %v4665 = vsub.s32 0, %v4664
    %v4666 = vrot.slane %v4638, %v4665
    %v4667 = vlaneseq
    %v4668 = vshrl.u32 %v4667, 7
    %v4669 = vsub.s32 0, %v4668
    %v4670 = vrot.slane %v4639, %v4669
    %v4671 = vlaneseq
    %v4672 = vshrl.u32 %v4671, 7
    %v4673 = vsub.s32 0, %v4672
    %v4674 = vrot.slane %v4640, %v4673
    %v4675 = vlaneseq
    %v4676 = vshrl.u32 %v4675, 7
    %v4677 = vsub.s32 0, %v4676
    %v4678 = vrot.slane %v4641, %v4677
    %v4679 = vlaneseq
    %v4680 = vshrl.u32 %v4679, 7
    %v4681 = vsub.s32 0, %v4680
    %v4682 = vrot.slane %v4642, %v4681
    %v4692 = vsel %vm136, %v44, 0
    %4694 = vmatprep.subr.mxu0 0.0
    %4695 = vmatpush1.msra.mxu0 %v4602
    %4696 = vmatprep.subr.mxu0 0.0
    %4697 = vmatpush1.msra.mxu0 %v4603
    %4698 = vmatprep.subr.mxu0 0.0
    %4699 = vmatpush1.msra.mxu0 %v4604
    %4700 = vmatprep.subr.mxu0 0.0
    %4701 = vmatpush1.msra.mxu0 %v4605
    %4702 = vmatprep.subr.mxu0 0.0
    %4703 = vmatpush1.msra.mxu0 0.0
    %4704 = vmatprep.subr.mxu0 0.0
    %4705 = vmatpush1.msra.mxu0 0.0
    %4706 = vmatprep.subr.mxu0 0.0
    %4707 = vmatpush1.msra.mxu0 0.0
    %4708 = vmatprep.subr.mxu0 0.0
    %4709 = vmatpush1.msra.mxu0 0.0
    %4710 = vmatprep.subr.mxu0 0.0
    %4711 = vmatpush1.msra.mxu0 0.0
    %4712 = vmatprep.subr.mxu0 0.0
    %4713 = vmatpush1.msra.mxu0 0.0
    %4714 = vmatprep.subr.mxu0 0.0
    %4715 = vmatpush1.msra.mxu0 0.0
    %4716 = vmatprep.subr.mxu0 0.0
    %4717 = vmatpush1.msra.mxu0 0.0
    %4718 = vmatprep.subr.mxu0 0.0
    %4719 = vmatpush1.msra.mxu0 0.0
    %4720 = vmatprep.subr.mxu0 0.0
    %4721 = vmatpush1.msra.mxu0 0.0
    %4722 = vmatprep.subr.mxu0 0.0
    %4723 = vmatpush1.msra.mxu0 0.0
    %4724 = vmatprep.subr.mxu0 0.0
    %4725 = vmatpush1.msra.mxu0 0.0
    %4726 = vmatprep.subr.mxu0 0.0
    %4727 = vmatpush1.msra.mxu0 0.0
    %4728 = vmatprep.subr.mxu0 0.0
    %4729 = vmatpush1.msra.mxu0 0.0
    %4730 = vmatprep.subr.mxu0 0.0
    %4731 = vmatpush1.msra.mxu0 0.0
    %4732 = vmatprep.subr.mxu0 0.0
    %4733 = vmatpush1.msra.mxu0 0.0
    %4734 = vmatprep.subr.mxu0 0.0
    %4735 = vmatpush1.msra.mxu0 0.0
    %4736 = vmatprep.subr.mxu0 0.0
    %4737 = vmatpush1.msra.mxu0 0.0
    %4738 = vmatprep.subr.mxu0 0.0
    %4739 = vmatpush1.msra.mxu0 0.0
    %4740 = vmatprep.subr.mxu0 0.0
    %4741 = vmatpush1.msra.mxu0 0.0
    %4742 = vmatprep.subr.mxu0 0.0
    %4743 = vmatpush1.msra.mxu0 0.0
    %4744 = vmatprep.subr.mxu0 0.0
    %4745 = vmatpush1.msra.mxu0 0.0
    %4746 = vmatprep.subr.mxu0 0.0
    %4747 = vmatpush1.msra.mxu0 0.0
    %4748 = vmatprep.subr.mxu0 0.0
    %4749 = vmatpush1.msra.mxu0 0.0
    %4750 = vmatprep.subr.mxu0 0.0
    %4751 = vmatpush1.msra.mxu0 0.0
    %4752 = vmatprep.subr.mxu0 0.0
    %4753 = vmatpush1.msra.mxu0 0.0
    %4754 = vmatprep.subr.mxu0 0.0
    %4755 = vmatpush1.msra.mxu0 0.0
    %4756 = vmatprep.subr.mxu0 0.0
    %4757 = vmatpush1.msra.mxu0 0.0
    %4758 = vmatprep.mubr.f32.mxu0 0.0
    %4759 = vmatmul.mubr.f32.gmra.mrb[0].mxu0 %v4692
    %v4760 = vpop.f32.mrb[0].mxu0
    %v4761 = vadd.f32 %v4654, %v4760
    %v4762 = vpop.f32.mrb[0].mxu0
    %4763 = vdwg.mxu0
    %4764 = vmatprep.subr.mxu0 0.0
    %4765 = vmatpush1.msra.mxu0 %v4606
    %4766 = vmatprep.subr.mxu0 0.0
    %4767 = vmatpush1.msra.mxu0 %v4607
    %4768 = vmatprep.subr.mxu0 0.0
    %4769 = vmatpush1.msra.mxu0 %v4608
    %4770 = vmatprep.subr.mxu0 0.0
    %4771 = vmatpush1.msra.mxu0 %v4609
    %4772 = vmatprep.subr.mxu0 0.0
    %4773 = vmatpush1.msra.mxu0 0.0
    %4774 = vmatprep.subr.mxu0 0.0
    %4775 = vmatpush1.msra.mxu0 0.0
    %4776 = vmatprep.subr.mxu0 0.0
    %4777 = vmatpush1.msra.mxu0 0.0
    %4778 = vmatprep.subr.mxu0 0.0
    %4779 = vmatpush1.msra.mxu0 0.0
    %4780 = vmatprep.subr.mxu0 0.0
    %4781 = vmatpush1.msra.mxu0 0.0
    %4782 = vmatprep.subr.mxu0 0.0
    %4783 = vmatpush1.msra.mxu0 0.0
    %4784 = vmatprep.subr.mxu0 0.0
    %4785 = vmatpush1.msra.mxu0 0.0
    %4786 = vmatprep.subr.mxu0 0.0
    %4787 = vmatpush1.msra.mxu0 0.0
    %4788 = vmatprep.subr.mxu0 0.0
    %4789 = vmatpush1.msra.mxu0 0.0
    %4790 = vmatprep.subr.mxu0 0.0
    %4791 = vmatpush1.msra.mxu0 0.0
    %4792 = vmatprep.subr.mxu0 0.0
    %4793 = vmatpush1.msra.mxu0 0.0
    %4794 = vmatprep.subr.mxu0 0.0
    %4795 = vmatpush1.msra.mxu0 0.0
    %4796 = vmatprep.subr.mxu0 0.0
    %4797 = vmatpush1.msra.mxu0 0.0
    %4798 = vmatprep.subr.mxu0 0.0
    %4799 = vmatpush1.msra.mxu0 0.0
    %4800 = vmatprep.subr.mxu0 0.0
    %4801 = vmatpush1.msra.mxu0 0.0
    %4802 = vmatprep.subr.mxu0 0.0
    %4803 = vmatpush1.msra.mxu0 0.0
    %4804 = vmatprep.subr.mxu0 0.0
    %4805 = vmatpush1.msra.mxu0 0.0
    %4806 = vmatprep.subr.mxu0 0.0
    %4807 = vmatpush1.msra.mxu0 0.0
    %4808 = vmatprep.subr.mxu0 0.0
    %4809 = vmatpush1.msra.mxu0 0.0
    %4810 = vmatprep.subr.mxu0 0.0
    %4811 = vmatpush1.msra.mxu0 0.0
    %4812 = vmatprep.subr.mxu0 0.0
    %4813 = vmatpush1.msra.mxu0 0.0
    %4814 = vmatprep.subr.mxu0 0.0
    %4815 = vmatpush1.msra.mxu0 0.0
    %4816 = vmatprep.subr.mxu0 0.0
    %4817 = vmatpush1.msra.mxu0 0.0
    %4818 = vmatprep.subr.mxu0 0.0
    %4819 = vmatpush1.msra.mxu0 0.0
    %4820 = vmatprep.subr.mxu0 0.0
    %4821 = vmatpush1.msra.mxu0 0.0
    %4822 = vmatprep.subr.mxu0 0.0
    %4823 = vmatpush1.msra.mxu0 0.0
    %4824 = vmatprep.subr.mxu0 0.0
    %4825 = vmatpush1.msra.mxu0 0.0
    %4826 = vmatprep.subr.mxu0 0.0
    %4827 = vmatpush1.msra.mxu0 0.0
    %4828 = vmatprep.mubr.f32.mxu0 0.0
    %4829 = vmatmul.mubr.f32.gmra.mrb[0].mxu0 %v4692
    %v4830 = vpop.f32.mrb[0].mxu0
    %v4831 = vadd.f32 %v4658, %v4830
    %v4832 = vpop.f32.mrb[0].mxu0
    %4833 = vdwg.mxu0
    %4834 = vmatprep.subr.mxu0 0.0
    %4835 = vmatpush1.msra.mxu0 %v4610
    %4836 = vmatprep.subr.mxu0 0.0
    %4837 = vmatpush1.msra.mxu0 %v4611
    %4838 = vmatprep.subr.mxu0 0.0
    %4839 = vmatpush1.msra.mxu0 %v4612
    %4840 = vmatprep.subr.mxu0 0.0
    %4841 = vmatpush1.msra.mxu0 %v4613
    %4842 = vmatprep.subr.mxu0 0.0
    %4843 = vmatpush1.msra.mxu0 0.0
    %4844 = vmatprep.subr.mxu0 0.0
    %4845 = vmatpush1.msra.mxu0 0.0
    %4846 = vmatprep.subr.mxu0 0.0
    %4847 = vmatpush1.msra.mxu0 0.0
    %4848 = vmatprep.subr.mxu0 0.0
    %4849 = vmatpush1.msra.mxu0 0.0
    %4850 = vmatprep.subr.mxu0 0.0
    %4851 = vmatpush1.msra.mxu0 0.0
    %4852 = vmatprep.subr.mxu0 0.0
    %4853 = vmatpush1.msra.mxu0 0.0
    %4854 = vmatprep.subr.mxu0 0.0
    %4855 = vmatpush1.msra.mxu0 0.0
    %4856 = vmatprep.subr.mxu0 0.0
    %4857 = vmatpush1.msra.mxu0 0.0
    %4858 = vmatprep.subr.mxu0 0.0
    %4859 = vmatpush1.msra.mxu0 0.0
    %4860 = vmatprep.subr.mxu0 0.0
    %4861 = vmatpush1.msra.mxu0 0.0
    %4862 = vmatprep.subr.mxu0 0.0
    %4863 = vmatpush1.msra.mxu0 0.0
    %4864 = vmatprep.subr.mxu0 0.0
    %4865 = vmatpush1.msra.mxu0 0.0
    %4866 = vmatprep.subr.mxu0 0.0
    %4867 = vmatpush1.msra.mxu0 0.0
    %4868 = vmatprep.subr.mxu0 0.0
    %4869 = vmatpush1.msra.mxu0 0.0
    %4870 = vmatprep.subr.mxu0 0.0
    %4871 = vmatpush1.msra.mxu0 0.0
    %4872 = vmatprep.subr.mxu0 0.0
    %4873 = vmatpush1.msra.mxu0 0.0
    %4874 = vmatprep.subr.mxu0 0.0
    %4875 = vmatpush1.msra.mxu0 0.0
    %4876 = vmatprep.subr.mxu0 0.0
    %4877 = vmatpush1.msra.mxu0 0.0
    %4878 = vmatprep.subr.mxu0 0.0
    %4879 = vmatpush1.msra.mxu0 0.0
    %4880 = vmatprep.subr.mxu0 0.0
    %4881 = vmatpush1.msra.mxu0 0.0
    %4882 = vmatprep.subr.mxu0 0.0
    %4883 = vmatpush1.msra.mxu0 0.0
    %4884 = vmatprep.subr.mxu0 0.0
    %4885 = vmatpush1.msra.mxu0 0.0
    %4886 = vmatprep.subr.mxu0 0.0
    %4887 = vmatpush1.msra.mxu0 0.0
    %4888 = vmatprep.subr.mxu0 0.0
    %4889 = vmatpush1.msra.mxu0 0.0
    %4890 = vmatprep.subr.mxu0 0.0
    %4891 = vmatpush1.msra.mxu0 0.0
    %4892 = vmatprep.subr.mxu0 0.0
    %4893 = vmatpush1.msra.mxu0 0.0
    %4894 = vmatprep.subr.mxu0 0.0
    %4895 = vmatpush1.msra.mxu0 0.0
    %4896 = vmatprep.subr.mxu0 0.0
    %4897 = vmatpush1.msra.mxu0 0.0
    %4898 = vmatprep.mubr.f32.mxu0 0.0
    %4899 = vmatmul.mubr.f32.gmra.mrb[0].mxu0 %v4692
    %v4900 = vpop.f32.mrb[0].mxu0
    %v4901 = vadd.f32 %v4662, %v4900
    %v4902 = vpop.f32.mrb[0].mxu0
    %4903 = vdwg.mxu0
    %4904 = vmatprep.subr.mxu0 0.0
    %4905 = vmatpush1.msra.mxu0 %v4614
    %4906 = vmatprep.subr.mxu0 0.0
    %4907 = vmatpush1.msra.mxu0 %v4615
    %4908 = vmatprep.subr.mxu0 0.0
    %4909 = vmatpush1.msra.mxu0 %v4616
    %4910 = vmatprep.subr.mxu0 0.0
    %4911 = vmatpush1.msra.mxu0 %v4617
    %4912 = vmatprep.subr.mxu0 0.0
    %4913 = vmatpush1.msra.mxu0 0.0
    %4914 = vmatprep.subr.mxu0 0.0
    %4915 = vmatpush1.msra.mxu0 0.0
    %4916 = vmatprep.subr.mxu0 0.0
    %4917 = vmatpush1.msra.mxu0 0.0
    %4918 = vmatprep.subr.mxu0 0.0
    %4919 = vmatpush1.msra.mxu0 0.0
    %4920 = vmatprep.subr.mxu0 0.0
    %4921 = vmatpush1.msra.mxu0 0.0
    %4922 = vmatprep.subr.mxu0 0.0
    %4923 = vmatpush1.msra.mxu0 0.0
    %4924 = vmatprep.subr.mxu0 0.0
    %4925 = vmatpush1.msra.mxu0 0.0
    %4926 = vmatprep.subr.mxu0 0.0
    %4927 = vmatpush1.msra.mxu0 0.0
    %4928 = vmatprep.subr.mxu0 0.0
    %4929 = vmatpush1.msra.mxu0 0.0
    %4930 = vmatprep.subr.mxu0 0.0
    %4931 = vmatpush1.msra.mxu0 0.0
    %4932 = vmatprep.subr.mxu0 0.0
    %4933 = vmatpush1.msra.mxu0 0.0
    %4934 = vmatprep.subr.mxu0 0.0
    %4935 = vmatpush1.msra.mxu0 0.0
    %4936 = vmatprep.subr.mxu0 0.0
    %4937 = vmatpush1.msra.mxu0 0.0
    %4938 = vmatprep.subr.mxu0 0.0
    %4939 = vmatpush1.msra.mxu0 0.0
    %4940 = vmatprep.subr.mxu0 0.0
    %4941 = vmatpush1.msra.mxu0 0.0
    %4942 = vmatprep.subr.mxu0 0.0
    %4943 = vmatpush1.msra.mxu0 0.0
    %4944 = vmatprep.subr.mxu0 0.0
    %4945 = vmatpush1.msra.mxu0 0.0
    %4946 = vmatprep.subr.mxu0 0.0
    %4947 = vmatpush1.msra.mxu0 0.0
    %4948 = vmatprep.subr.mxu0 0.0
    %4949 = vmatpush1.msra.mxu0 0.0
    %4950 = vmatprep.subr.mxu0 0.0
    %4951 = vmatpush1.msra.mxu0 0.0
    %4952 = vmatprep.subr.mxu0 0.0
    %4953 = vmatpush1.msra.mxu0 0.0
    %4954 = vmatprep.subr.mxu0 0.0
    %4955 = vmatpush1.msra.mxu0 0.0
    %4956 = vmatprep.subr.mxu0 0.0
    %4957 = vmatpush1.msra.mxu0 0.0
    %4958 = vmatprep.subr.mxu0 0.0
    %4959 = vmatpush1.msra.mxu0 0.0
    %4960 = vmatprep.subr.mxu0 0.0
    %4961 = vmatpush1.msra.mxu0 0.0
    %4962 = vmatprep.subr.mxu0 0.0
    %4963 = vmatpush1.msra.mxu0 0.0
    %4964 = vmatprep.subr.mxu0 0.0
    %4965 = vmatpush1.msra.mxu0 0.0
    %4966 = vmatprep.subr.mxu0 0.0
    %4967 = vmatpush1.msra.mxu0 0.0
    %4968 = vmatprep.mubr.f32.mxu0 0.0
    %4969 = vmatmul.mubr.f32.gmra.mrb[0].mxu0 %v4692
    %v4970 = vpop.f32.mrb[0].mxu0
    %v4971 = vadd.f32 %v4666, %v4970
    %v4972 = vpop.f32.mrb[0].mxu0
    %4973 = vdwg.mxu0
    %v4975 = vsel %vm136, %v45, 0
    %4977 = vmatprep.subr.mxu0 0.0
    %4978 = vmatpush1.msra.mxu0 %v4618
    %4979 = vmatprep.subr.mxu0 0.0
    %4980 = vmatpush1.msra.mxu0 %v4619
    %4981 = vmatprep.subr.mxu0 0.0
    %4982 = vmatpush1.msra.mxu0 %v4620
    %4983 = vmatprep.subr.mxu0 0.0
    %4984 = vmatpush1.msra.mxu0 %v4621
    %4985 = vmatprep.subr.mxu0 0.0
    %4986 = vmatpush1.msra.mxu0 0.0
    %4987 = vmatprep.subr.mxu0 0.0
    %4988 = vmatpush1.msra.mxu0 0.0
    %4989 = vmatprep.subr.mxu0 0.0
    %4990 = vmatpush1.msra.mxu0 0.0
    %4991 = vmatprep.subr.mxu0 0.0
    %4992 = vmatpush1.msra.mxu0 0.0
    %4993 = vmatprep.subr.mxu0 0.0
    %4994 = vmatpush1.msra.mxu0 0.0
    %4995 = vmatprep.subr.mxu0 0.0
    %4996 = vmatpush1.msra.mxu0 0.0
    %4997 = vmatprep.subr.mxu0 0.0
    %4998 = vmatpush1.msra.mxu0 0.0
    %4999 = vmatprep.subr.mxu0 0.0
    %5000 = vmatpush1.msra.mxu0 0.0
    %5001 = vmatprep.subr.mxu0 0.0
    %5002 = vmatpush1.msra.mxu0 0.0
    %5003 = vmatprep.subr.mxu0 0.0
    %5004 = vmatpush1.msra.mxu0 0.0
    %5005 = vmatprep.subr.mxu0 0.0
    %5006 = vmatpush1.msra.mxu0 0.0
    %5007 = vmatprep.subr.mxu0 0.0
    %5008 = vmatpush1.msra.mxu0 0.0
    %5009 = vmatprep.subr.mxu0 0.0
    %5010 = vmatpush1.msra.mxu0 0.0
    %5011 = vmatprep.subr.mxu0 0.0
    %5012 = vmatpush1.msra.mxu0 0.0
    %5013 = vmatprep.subr.mxu0 0.0
    %5014 = vmatpush1.msra.mxu0 0.0
    %5015 = vmatprep.subr.mxu0 0.0
    %5016 = vmatpush1.msra.mxu0 0.0
    %5017 = vmatprep.subr.mxu0 0.0
    %5018 = vmatpush1.msra.mxu0 0.0
    %5019 = vmatprep.subr.mxu0 0.0
    %5020 = vmatpush1.msra.mxu0 0.0
    %5021 = vmatprep.subr.mxu0 0.0
    %5022 = vmatpush1.msra.mxu0 0.0
    %5023 = vmatprep.subr.mxu0 0.0
    %5024 = vmatpush1.msra.mxu0 0.0
    %5025 = vmatprep.subr.mxu0 0.0
    %5026 = vmatpush1.msra.mxu0 0.0
    %5027 = vmatprep.subr.mxu0 0.0
    %5028 = vmatpush1.msra.mxu0 0.0
    %5029 = vmatprep.subr.mxu0 0.0
    %5030 = vmatpush1.msra.mxu0 0.0
    %5031 = vmatprep.subr.mxu0 0.0
    %5032 = vmatpush1.msra.mxu0 0.0
    %5033 = vmatprep.subr.mxu0 0.0
    %5034 = vmatpush1.msra.mxu0 0.0
    %5035 = vmatprep.subr.mxu0 0.0
    %5036 = vmatpush1.msra.mxu0 0.0
    %5037 = vmatprep.subr.mxu0 0.0
    %5038 = vmatpush1.msra.mxu0 0.0
    %5039 = vmatprep.subr.mxu0 0.0
    %5040 = vmatpush1.msra.mxu0 0.0
    %5041 = vmatprep.mubr.f32.mxu0 0.0
    %5042 = vmatmul.mubr.f32.gmra.mrb[0].mxu0 %v4975
    %v5043 = vpop.f32.mrb[0].mxu0
    %v5044 = vadd.f32 %v4670, %v5043
    %v5045 = vpop.f32.mrb[0].mxu0
    %5046 = vdwg.mxu0
    %5047 = vmatprep.subr.mxu0 0.0
    %5048 = vmatpush1.msra.mxu0 %v4622
    %5049 = vmatprep.subr.mxu0 0.0
    %5050 = vmatpush1.msra.mxu0 %v4623
    %5051 = vmatprep.subr.mxu0 0.0
    %5052 = vmatpush1.msra.mxu0 %v4624
    %5053 = vmatprep.subr.mxu0 0.0
    %5054 = vmatpush1.msra.mxu0 %v4625
    %5055 = vmatprep.subr.mxu0 0.0
    %5056 = vmatpush1.msra.mxu0 0.0
    %5057 = vmatprep.subr.mxu0 0.0
    %5058 = vmatpush1.msra.mxu0 0.0
    %5059 = vmatprep.subr.mxu0 0.0
    %5060 = vmatpush1.msra.mxu0 0.0
    %5061 = vmatprep.subr.mxu0 0.0
    %5062 = vmatpush1.msra.mxu0 0.0
    %5063 = vmatprep.subr.mxu0 0.0
    %5064 = vmatpush1.msra.mxu0 0.0
    %5065 = vmatprep.subr.mxu0 0.0
    %5066 = vmatpush1.msra.mxu0 0.0
    %5067 = vmatprep.subr.mxu0 0.0
    %5068 = vmatpush1.msra.mxu0 0.0
    %5069 = vmatprep.subr.mxu0 0.0
    %5070 = vmatpush1.msra.mxu0 0.0
    %5071 = vmatprep.subr.mxu0 0.0
    %5072 = vmatpush1.msra.mxu0 0.0
    %5073 = vmatprep.subr.mxu0 0.0
    %5074 = vmatpush1.msra.mxu0 0.0
    %5075 = vmatprep.subr.mxu0 0.0
    %5076 = vmatpush1.msra.mxu0 0.0
    %5077 = vmatprep.subr.mxu0 0.0
    %5078 = vmatpush1.msra.mxu0 0.0
    %5079 = vmatprep.subr.mxu0 0.0
    %5080 = vmatpush1.msra.mxu0 0.0
    %5081 = vmatprep.subr.mxu0 0.0
    %5082 = vmatpush1.msra.mxu0 0.0
    %5083 = vmatprep.subr.mxu0 0.0
    %5084 = vmatpush1.msra.mxu0 0.0
    %5085 = vmatprep.subr.mxu0 0.0
    %5086 = vmatpush1.msra.mxu0 0.0
    %5087 = vmatprep.subr.mxu0 0.0
    %5088 = vmatpush1.msra.mxu0 0.0
    %5089 = vmatprep.subr.mxu0 0.0
    %5090 = vmatpush1.msra.mxu0 0.0
    %5091 = vmatprep.subr.mxu0 0.0
    %5092 = vmatpush1.msra.mxu0 0.0
    %5093 = vmatprep.subr.mxu0 0.0
    %5094 = vmatpush1.msra.mxu0 0.0
    %5095 = vmatprep.subr.mxu0 0.0
    %5096 = vmatpush1.msra.mxu0 0.0
    %5097 = vmatprep.subr.mxu0 0.0
    %5098 = vmatpush1.msra.mxu0 0.0
    %5099 = vmatprep.subr.mxu0 0.0
    %5100 = vmatpush1.msra.mxu0 0.0
    %5101 = vmatprep.subr.mxu0 0.0
    %5102 = vmatpush1.msra.mxu0 0.0
    %5103 = vmatprep.subr.mxu0 0.0
    %5104 = vmatpush1.msra.mxu0 0.0
    %5105 = vmatprep.subr.mxu0 0.0
    %5106 = vmatpush1.msra.mxu0 0.0
    %5107 = vmatprep.subr.mxu0 0.0
    %5108 = vmatpush1.msra.mxu0 0.0
    %5109 = vmatprep.subr.mxu0 0.0
    %5110 = vmatpush1.msra.mxu0 0.0
    %5111 = vmatprep.mubr.f32.mxu0 0.0
    %5112 = vmatmul.mubr.f32.gmra.mrb[0].mxu0 %v4975
    %v5113 = vpop.f32.mrb[0].mxu0
    %v5114 = vadd.f32 %v4674, %v5113
    %v5115 = vpop.f32.mrb[0].mxu0
    %5116 = vdwg.mxu0
    %5117 = vmatprep.subr.mxu0 0.0
    %5118 = vmatpush1.msra.mxu0 %v4626
    %5119 = vmatprep.subr.mxu0 0.0
    %5120 = vmatpush1.msra.mxu0 %v4627
    %5121 = vmatprep.subr.mxu0 0.0
    %5122 = vmatpush1.msra.mxu0 %v4628
    %5123 = vmatprep.subr.mxu0 0.0
    %5124 = vmatpush1.msra.mxu0 %v4629
    %5125 = vmatprep.subr.mxu0 0.0
    %5126 = vmatpush1.msra.mxu0 0.0
    %5127 = vmatprep.subr.mxu0 0.0
    %5128 = vmatpush1.msra.mxu0 0.0
    %5129 = vmatprep.subr.mxu0 0.0
    %5130 = vmatpush1.msra.mxu0 0.0
    %5131 = vmatprep.subr.mxu0 0.0
    %5132 = vmatpush1.msra.mxu0 0.0
    %5133 = vmatprep.subr.mxu0 0.0
    %5134 = vmatpush1.msra.mxu0 0.0
    %5135 = vmatprep.subr.mxu0 0.0
    %5136 = vmatpush1.msra.mxu0 0.0
    %5137 = vmatprep.subr.mxu0 0.0
    %5138 = vmatpush1.msra.mxu0 0.0
    %5139 = vmatprep.subr.mxu0 0.0
    %5140 = vmatpush1.msra.mxu0 0.0
    %5141 = vmatprep.subr.mxu0 0.0
    %5142 = vmatpush1.msra.mxu0 0.0
    %5143 = vmatprep.subr.mxu0 0.0
    %5144 = vmatpush1.msra.mxu0 0.0
    %5145 = vmatprep.subr.mxu0 0.0
    %5146 = vmatpush1.msra.mxu0 0.0
    %5147 = vmatprep.subr.mxu0 0.0
    %5148 = vmatpush1.msra.mxu0 0.0
    %5149 = vmatprep.subr.mxu0 0.0
    %5150 = vmatpush1.msra.mxu0 0.0
    %5151 = vmatprep.subr.mxu0 0.0
    %5152 = vmatpush1.msra.mxu0 0.0
    %5153 = vmatprep.subr.mxu0 0.0
    %5154 = vmatpush1.msra.mxu0 0.0
    %5155 = vmatprep.subr.mxu0 0.0
    %5156 = vmatpush1.msra.mxu0 0.0
    %5157 = vmatprep.subr.mxu0 0.0
    %5158 = vmatpush1.msra.mxu0 0.0
    %5159 = vmatprep.subr.mxu0 0.0
    %5160 = vmatpush1.msra.mxu0 0.0
    %5161 = vmatprep.subr.mxu0 0.0
    %5162 = vmatpush1.msra.mxu0 0.0
    %5163 = vmatprep.subr.mxu0 0.0
    %5164 = vmatpush1.msra.mxu0 0.0
    %5165 = vmatprep.subr.mxu0 0.0
    %5166 = vmatpush1.msra.mxu0 0.0
    %5167 = vmatprep.subr.mxu0 0.0
    %5168 = vmatpush1.msra.mxu0 0.0
    %5169 = vmatprep.subr.mxu0 0.0
    %5170 = vmatpush1.msra.mxu0 0.0
    %5171 = vmatprep.subr.mxu0 0.0
    %5172 = vmatpush1.msra.mxu0 0.0
    %5173 = vmatprep.subr.mxu0 0.0
    %5174 = vmatpush1.msra.mxu0 0.0
    %5175 = vmatprep.subr.mxu0 0.0
    %5176 = vmatpush1.msra.mxu0 0.0
    %5177 = vmatprep.subr.mxu0 0.0
    %5178 = vmatpush1.msra.mxu0 0.0
    %5179 = vmatprep.subr.mxu0 0.0
    %5180 = vmatpush1.msra.mxu0 0.0
    %5181 = vmatprep.mubr.f32.mxu0 0.0
    %5182 = vmatmul.mubr.f32.gmra.mrb[0].mxu0 %v4975
    %v5183 = vpop.f32.mrb[0].mxu0
    %v5184 = vadd.f32 %v4678, %v5183
    %v5185 = vpop.f32.mrb[0].mxu0
    %5186 = vdwg.mxu0
    %5187 = vmatprep.subr.mxu0 0.0
    %5188 = vmatpush1.msra.mxu0 %v4630
    %5189 = vmatprep.subr.mxu0 0.0
    %5190 = vmatpush1.msra.mxu0 %v4631
    %5191 = vmatprep.subr.mxu0 0.0
    %5192 = vmatpush1.msra.mxu0 %v4632
    %5193 = vmatprep.subr.mxu0 0.0
    %5194 = vmatpush1.msra.mxu0 %v4633
    %5195 = vmatprep.subr.mxu0 0.0
    %5196 = vmatpush1.msra.mxu0 0.0
    %5197 = vmatprep.subr.mxu0 0.0
    %5198 = vmatpush1.msra.mxu0 0.0
    %5199 = vmatprep.subr.mxu0 0.0
    %5200 = vmatpush1.msra.mxu0 0.0
    %5201 = vmatprep.subr.mxu0 0.0
    %5202 = vmatpush1.msra.mxu0 0.0
    %5203 = vmatprep.subr.mxu0 0.0
    %5204 = vmatpush1.msra.mxu0 0.0
    %5205 = vmatprep.subr.mxu0 0.0
    %5206 = vmatpush1.msra.mxu0 0.0
    %5207 = vmatprep.subr.mxu0 0.0
    %5208 = vmatpush1.msra.mxu0 0.0
    %5209 = vmatprep.subr.mxu0 0.0
    %5210 = vmatpush1.msra.mxu0 0.0
    %5211 = vmatprep.subr.mxu0 0.0
    %5212 = vmatpush1.msra.mxu0 0.0
    %5213 = vmatprep.subr.mxu0 0.0
    %5214 = vmatpush1.msra.mxu0 0.0
    %5215 = vmatprep.subr.mxu0 0.0
    %5216 = vmatpush1.msra.mxu0 0.0
    %5217 = vmatprep.subr.mxu0 0.0
    %5218 = vmatpush1.msra.mxu0 0.0
    %5219 = vmatprep.subr.mxu0 0.0
    %5220 = vmatpush1.msra.mxu0 0.0
    %5221 = vmatprep.subr.mxu0 0.0
    %5222 = vmatpush1.msra.mxu0 0.0
    %5223 = vmatprep.subr.mxu0 0.0
    %5224 = vmatpush1.msra.mxu0 0.0
    %5225 = vmatprep.subr.mxu0 0.0
    %5226 = vmatpush1.msra.mxu0 0.0
    %5227 = vmatprep.subr.mxu0 0.0
    %5228 = vmatpush1.msra.mxu0 0.0
    %5229 = vmatprep.subr.mxu0 0.0
    %5230 = vmatpush1.msra.mxu0 0.0
    %5231 = vmatprep.subr.mxu0 0.0
    %5232 = vmatpush1.msra.mxu0 0.0
    %5233 = vmatprep.subr.mxu0 0.0
    %5234 = vmatpush1.msra.mxu0 0.0
    %5235 = vmatprep.subr.mxu0 0.0
    %5236 = vmatpush1.msra.mxu0 0.0
    %5237 = vmatprep.subr.mxu0 0.0
    %5238 = vmatpush1.msra.mxu0 0.0
    %5239 = vmatprep.subr.mxu0 0.0
    %5240 = vmatpush1.msra.mxu0 0.0
    %5241 = vmatprep.subr.mxu0 0.0
    %5242 = vmatpush1.msra.mxu0 0.0
    %5243 = vmatprep.subr.mxu0 0.0
    %5244 = vmatpush1.msra.mxu0 0.0
    %5245 = vmatprep.subr.mxu0 0.0
    %5246 = vmatpush1.msra.mxu0 0.0
    %5247 = vmatprep.subr.mxu0 0.0
    %5248 = vmatpush1.msra.mxu0 0.0
    %5249 = vmatprep.subr.mxu0 0.0
    %5250 = vmatpush1.msra.mxu0 0.0
    %5251 = vmatprep.mubr.f32.mxu0 0.0
    %5252 = vmatmul.mubr.f32.gmra.mrb[0].mxu0 %v4975
    %v5253 = vpop.f32.mrb[0].mxu0
    %v5254 = vadd.f32 %v4682, %v5253
    %v5255 = vpop.f32.mrb[0].mxu0
    %5256 = vdwg.mxu0
    %s5257 = scalar_lea.vmem %s3, 1280
    %v5258 = vld [vmem:[%s5257] sm:$0xff]
    %v5259 = vld [vmem:[%s5257 + $0x8] sm:$0xff]
    %v5260 = vld [vmem:[%s5257 + $0x10] sm:$0xff]
    %v5261 = vld [vmem:[%s5257 + $0x18] sm:$0xff]
    %v5262 = vld [vmem:[%s5257 + $0x20] sm:$0xff]
    %v5263 = vld [vmem:[%s5257 + $0x28] sm:$0xff]
    %v5264 = vld [vmem:[%s5257 + $0x30] sm:$0xff]
    %v5265 = vld [vmem:[%s5257 + $0x38] sm:$0xff]
    %v5266 = vld [vmem:[%s5257 + $0x40] sm:$0xff]
    %v5267 = vld [vmem:[%s5257 + $0x48] sm:$0xff]
    %v5268 = vld [vmem:[%s5257 + $0x50] sm:$0xff]
    %v5269 = vld [vmem:[%s5257 + $0x58] sm:$0xff]
    %v5270 = vld [vmem:[%s5257 + $0x60] sm:$0xff]
    %v5271 = vld [vmem:[%s5257 + $0x68] sm:$0xff]
    %v5272 = vld [vmem:[%s5257 + $0x70] sm:$0xff]
    %v5273 = vld [vmem:[%s5257 + $0x78] sm:$0xff]
    %v5274 = vld [vmem:[%s5257 + $0x80] sm:$0xff]
    %v5275 = vld [vmem:[%s5257 + $0x88] sm:$0xff]
    %v5276 = vld [vmem:[%s5257 + $0x90] sm:$0xff]
    %v5277 = vld [vmem:[%s5257 + $0x98] sm:$0xff]
    %v5278 = vld [vmem:[%s5257 + $0xa0] sm:$0xff]
    %v5279 = vld [vmem:[%s5257 + $0xa8] sm:$0xff]
    %v5280 = vld [vmem:[%s5257 + $0xb0] sm:$0xff]
    %v5281 = vld [vmem:[%s5257 + $0xb8] sm:$0xff]
    %v5282 = vld [vmem:[%s5257 + $0xc0] sm:$0xff]
    %v5283 = vld [vmem:[%s5257 + $0xc8] sm:$0xff]
    %v5284 = vld [vmem:[%s5257 + $0xd0] sm:$0xff]
    %v5285 = vld [vmem:[%s5257 + $0xd8] sm:$0xff]
    %v5286 = vld [vmem:[%s5257 + $0xe0] sm:$0xff]
    %v5287 = vld [vmem:[%s5257 + $0xe8] sm:$0xff]
    %v5288 = vld [vmem:[%s5257 + $0xf0] sm:$0xff]
    %v5289 = vld [vmem:[%s5257 + $0xf8] sm:$0xff]
    %s5290 = scalar_lea.vmem %s4, 40
    %v5291 = vld [vmem:[%s5290] sm:$0x1]
    %v5292 = vld [vmem:[%s5290 + $0x1] sm:$0x1]
    %v5293 = vld [vmem:[%s5290 + $0x2] sm:$0x1]
    %v5294 = vld [vmem:[%s5290 + $0x3] sm:$0x1]
    %v5295 = vld [vmem:[%s5290 + $0x4] sm:$0x1]
    %v5296 = vld [vmem:[%s5290 + $0x5] sm:$0x1]
    %v5297 = vld [vmem:[%s5290 + $0x6] sm:$0x1]
    %v5298 = vld [vmem:[%s5290 + $0x7] sm:$0x1]
    %v5307 = vlaneseq
    %v5308 = vshrl.u32 %v5307, 7
    %v5309 = vsub.s32 0, %v5308
    %v5310 = vrot.slane %v5291, %v5309
    %v5311 = vlaneseq
    %v5312 = vshrl.u32 %v5311, 7
    %v5313 = vsub.s32 0, %v5312
    %v5314 = vrot.slane %v5292, %v5313
    %v5315 = vlaneseq
    %v5316 = vshrl.u32 %v5315, 7
    %v5317 = vsub.s32 0, %v5316
    %v5318 = vrot.slane %v5293, %v5317
    %v5319 = vlaneseq
    %v5320 = vshrl.u32 %v5319, 7
    %v5321 = vsub.s32 0, %v5320
    %v5322 = vrot.slane %v5294, %v5321
    %v5323 = vlaneseq
    %v5324 = vshrl.u32 %v5323, 7
    %v5325 = vsub.s32 0, %v5324
    %v5326 = vrot.slane %v5295, %v5325
    %v5327 = vlaneseq
    %v5328 = vshrl.u32 %v5327, 7
    %v5329 = vsub.s32 0, %v5328
    %v5330 = vrot.slane %v5296, %v5329
    %v5331 = vlaneseq
    %v5332 = vshrl.u32 %v5331, 7
    %v5333 = vsub.s32 0, %v5332
    %v5334 = vrot.slane %v5297, %v5333
    %v5335 = vlaneseq
    %v5336 = vshrl.u32 %v5335, 7
    %v5337 = vsub.s32 0, %v5336
    %v5338 = vrot.slane %v5298, %v5337
    %5347 = vmatprep.subr.mxu0 0.0
    %5348 = vmatpush1.msra.mxu0 %v5258
    %5349 = vmatprep.subr.mxu0 0.0
    %5350 = vmatpush1.msra.mxu0 %v5259
    %5351 = vmatprep.subr.mxu0 0.0
    %5352 = vmatpush1.msra.mxu0 %v5260
    %5353 = vmatprep.subr.mxu0 0.0
    %5354 = vmatpush1.msra.mxu0 %v5261
    %5355 = vmatprep.subr.mxu0 0.0
    %5356 = vmatpush1.msra.mxu0 0.0
    %5357 = vmatprep.subr.mxu0 0.0
    %5358 = vmatpush1.msra.mxu0 0.0
    %5359 = vmatprep.subr.mxu0 0.0
    %5360 = vmatpush1.msra.mxu0 0.0
    %5361 = vmatprep.subr.mxu0 0.0
    %5362 = vmatpush1.msra.mxu0 0.0
    %5363 = vmatprep.subr.mxu0 0.0
    %5364 = vmatpush1.msra.mxu0 0.0
    %5365 = vmatprep.subr.mxu0 0.0
    %5366 = vmatpush1.msra.mxu0 0.0
    %5367 = vmatprep.subr.mxu0 0.0
    %5368 = vmatpush1.msra.mxu0 0.0
    %5369 = vmatprep.subr.mxu0 0.0
    %5370 = vmatpush1.msra.mxu0 0.0
    %5371 = vmatprep.subr.mxu0 0.0
    %5372 = vmatpush1.msra.mxu0 0.0
    %5373 = vmatprep.subr.mxu0 0.0
    %5374 = vmatpush1.msra.mxu0 0.0
    %5375 = vmatprep.subr.mxu0 0.0
    %5376 = vmatpush1.msra.mxu0 0.0
    %5377 = vmatprep.subr.mxu0 0.0
    %5378 = vmatpush1.msra.mxu0 0.0
    %5379 = vmatprep.subr.mxu0 0.0
    %5380 = vmatpush1.msra.mxu0 0.0
    %5381 = vmatprep.subr.mxu0 0.0
    %5382 = vmatpush1.msra.mxu0 0.0
    %5383 = vmatprep.subr.mxu0 0.0
    %5384 = vmatpush1.msra.mxu0 0.0
    %5385 = vmatprep.subr.mxu0 0.0
    %5386 = vmatpush1.msra.mxu0 0.0
    %5387 = vmatprep.subr.mxu0 0.0
    %5388 = vmatpush1.msra.mxu0 0.0
    %5389 = vmatprep.subr.mxu0 0.0
    %5390 = vmatpush1.msra.mxu0 0.0
    %5391 = vmatprep.subr.mxu0 0.0
    %5392 = vmatpush1.msra.mxu0 0.0
    %5393 = vmatprep.subr.mxu0 0.0
    %5394 = vmatpush1.msra.mxu0 0.0
    %5395 = vmatprep.subr.mxu0 0.0
    %5396 = vmatpush1.msra.mxu0 0.0
    %5397 = vmatprep.subr.mxu0 0.0
    %5398 = vmatpush1.msra.mxu0 0.0
    %5399 = vmatprep.subr.mxu0 0.0
    %5400 = vmatpush1.msra.mxu0 0.0
    %5401 = vmatprep.subr.mxu0 0.0
    %5402 = vmatpush1.msra.mxu0 0.0
    %5403 = vmatprep.subr.mxu0 0.0
    %5404 = vmatpush1.msra.mxu0 0.0
    %5405 = vmatprep.subr.mxu0 0.0
    %5406 = vmatpush1.msra.mxu0 0.0
    %5407 = vmatprep.subr.mxu0 0.0
    %5408 = vmatpush1.msra.mxu0 0.0
    %5409 = vmatprep.subr.mxu0 0.0
    %5410 = vmatpush1.msra.mxu0 0.0
    %5411 = vmatprep.mubr.f32.mxu0 0.0
    %5412 = vmatmul.mubr.f32.gmra.mrb[0].mxu0 %v4692
    %v5413 = vpop.f32.mrb[0].mxu0
    %v5414 = vadd.f32 %v5310, %v5413
    %v5415 = vpop.f32.mrb[0].mxu0
    %5416 = vdwg.mxu0
    %5417 = vmatprep.subr.mxu0 0.0
    %5418 = vmatpush1.msra.mxu0 %v5262
    %5419 = vmatprep.subr.mxu0 0.0
    %5420 = vmatpush1.msra.mxu0 %v5263
    %5421 = vmatprep.subr.mxu0 0.0
    %5422 = vmatpush1.msra.mxu0 %v5264
    %5423 = vmatprep.subr.mxu0 0.0
    %5424 = vmatpush1.msra.mxu0 %v5265
    %5425 = vmatprep.subr.mxu0 0.0
    %5426 = vmatpush1.msra.mxu0 0.0
    %5427 = vmatprep.subr.mxu0 0.0
    %5428 = vmatpush1.msra.mxu0 0.0
    %5429 = vmatprep.subr.mxu0 0.0
    %5430 = vmatpush1.msra.mxu0 0.0
    %5431 = vmatprep.subr.mxu0 0.0
    %5432 = vmatpush1.msra.mxu0 0.0
    %5433 = vmatprep.subr.mxu0 0.0
    %5434 = vmatpush1.msra.mxu0 0.0
    %5435 = vmatprep.subr.mxu0 0.0
    %5436 = vmatpush1.msra.mxu0 0.0
    %5437 = vmatprep.subr.mxu0 0.0
    %5438 = vmatpush1.msra.mxu0 0.0
    %5439 = vmatprep.subr.mxu0 0.0
    %5440 = vmatpush1.msra.mxu0 0.0
    %5441 = vmatprep.subr.mxu0 0.0
    %5442 = vmatpush1.msra.mxu0 0.0
    %5443 = vmatprep.subr.mxu0 0.0
    %5444 = vmatpush1.msra.mxu0 0.0
    %5445 = vmatprep.subr.mxu0 0.0
    %5446 = vmatpush1.msra.mxu0 0.0
    %5447 = vmatprep.subr.mxu0 0.0
    %5448 = vmatpush1.msra.mxu0 0.0
    %5449 = vmatprep.subr.mxu0 0.0
    %5450 = vmatpush1.msra.mxu0 0.0
    %5451 = vmatprep.subr.mxu0 0.0
    %5452 = vmatpush1.msra.mxu0 0.0
    %5453 = vmatprep.subr.mxu0 0.0
    %5454 = vmatpush1.msra.mxu0 0.0
    %5455 = vmatprep.subr.mxu0 0.0
    %5456 = vmatpush1.msra.mxu0 0.0
    %5457 = vmatprep.subr.mxu0 0.0
    %5458 = vmatpush1.msra.mxu0 0.0
    %5459 = vmatprep.subr.mxu0 0.0
    %5460 = vmatpush1.msra.mxu0 0.0
    %5461 = vmatprep.subr.mxu0 0.0
    %5462 = vmatpush1.msra.mxu0 0.0
    %5463 = vmatprep.subr.mxu0 0.0
    %5464 = vmatpush1.msra.mxu0 0.0
    %5465 = vmatprep.subr.mxu0 0.0
    %5466 = vmatpush1.msra.mxu0 0.0
    %5467 = vmatprep.subr.mxu0 0.0
    %5468 = vmatpush1.msra.mxu0 0.0
    %5469 = vmatprep.subr.mxu0 0.0
    %5470 = vmatpush1.msra.mxu0 0.0
    %5471 = vmatprep.subr.mxu0 0.0
    %5472 = vmatpush1.msra.mxu0 0.0
    %5473 = vmatprep.subr.mxu0 0.0
    %5474 = vmatpush1.msra.mxu0 0.0
    %5475 = vmatprep.subr.mxu0 0.0
    %5476 = vmatpush1.msra.mxu0 0.0
    %5477 = vmatprep.subr.mxu0 0.0
    %5478 = vmatpush1.msra.mxu0 0.0
    %5479 = vmatprep.subr.mxu0 0.0
    %5480 = vmatpush1.msra.mxu0 0.0
    %5481 = vmatprep.mubr.f32.mxu0 0.0
    %5482 = vmatmul.mubr.f32.gmra.mrb[0].mxu0 %v4692
    %v5483 = vpop.f32.mrb[0].mxu0
    %v5484 = vadd.f32 %v5314, %v5483
    %v5485 = vpop.f32.mrb[0].mxu0
    %5486 = vdwg.mxu0
    %5487 = vmatprep.subr.mxu0 0.0
    %5488 = vmatpush1.msra.mxu0 %v5266
    %5489 = vmatprep.subr.mxu0 0.0
    %5490 = vmatpush1.msra.mxu0 %v5267
    %5491 = vmatprep.subr.mxu0 0.0
    %5492 = vmatpush1.msra.mxu0 %v5268
    %5493 = vmatprep.subr.mxu0 0.0
    %5494 = vmatpush1.msra.mxu0 %v5269
    %5495 = vmatprep.subr.mxu0 0.0
    %5496 = vmatpush1.msra.mxu0 0.0
    %5497 = vmatprep.subr.mxu0 0.0
    %5498 = vmatpush1.msra.mxu0 0.0
    %5499 = vmatprep.subr.mxu0 0.0
    %5500 = vmatpush1.msra.mxu0 0.0
    %5501 = vmatprep.subr.mxu0 0.0
    %5502 = vmatpush1.msra.mxu0 0.0
    %5503 = vmatprep.subr.mxu0 0.0
    %5504 = vmatpush1.msra.mxu0 0.0
    %5505 = vmatprep.subr.mxu0 0.0
    %5506 = vmatpush1.msra.mxu0 0.0
    %5507 = vmatprep.subr.mxu0 0.0
    %5508 = vmatpush1.msra.mxu0 0.0
    %5509 = vmatprep.subr.mxu0 0.0
    %5510 = vmatpush1.msra.mxu0 0.0
    %5511 = vmatprep.subr.mxu0 0.0
    %5512 = vmatpush1.msra.mxu0 0.0
    %5513 = vmatprep.subr.mxu0 0.0
    %5514 = vmatpush1.msra.mxu0 0.0
    %5515 = vmatprep.subr.mxu0 0.0
    %5516 = vmatpush1.msra.mxu0 0.0
    %5517 = vmatprep.subr.mxu0 0.0
    %5518 = vmatpush1.msra.mxu0 0.0
    %5519 = vmatprep.subr.mxu0 0.0
    %5520 = vmatpush1.msra.mxu0 0.0
    %5521 = vmatprep.subr.mxu0 0.0
    %5522 = vmatpush1.msra.mxu0 0.0
    %5523 = vmatprep.subr.mxu0 0.0
    %5524 = vmatpush1.msra.mxu0 0.0
    %5525 = vmatprep.subr.mxu0 0.0
    %5526 = vmatpush1.msra.mxu0 0.0
    %5527 = vmatprep.subr.mxu0 0.0
    %5528 = vmatpush1.msra.mxu0 0.0
    %5529 = vmatprep.subr.mxu0 0.0
    %5530 = vmatpush1.msra.mxu0 0.0
    %5531 = vmatprep.subr.mxu0 0.0
    %5532 = vmatpush1.msra.mxu0 0.0
    %5533 = vmatprep.subr.mxu0 0.0
    %5534 = vmatpush1.msra.mxu0 0.0
    %5535 = vmatprep.subr.mxu0 0.0
    %5536 = vmatpush1.msra.mxu0 0.0
    %5537 = vmatprep.subr.mxu0 0.0
    %5538 = vmatpush1.msra.mxu0 0.0
    %5539 = vmatprep.subr.mxu0 0.0
    %5540 = vmatpush1.msra.mxu0 0.0
    %5541 = vmatprep.subr.mxu0 0.0
    %5542 = vmatpush1.msra.mxu0 0.0
    %5543 = vmatprep.subr.mxu0 0.0
    %5544 = vmatpush1.msra.mxu0 0.0
    %5545 = vmatprep.subr.mxu0 0.0
    %5546 = vmatpush1.msra.mxu0 0.0
    %5547 = vmatprep.subr.mxu0 0.0
    %5548 = vmatpush1.msra.mxu0 0.0
    %5549 = vmatprep.subr.mxu0 0.0
    %5550 = vmatpush1.msra.mxu0 0.0
    %5551 = vmatprep.mubr.f32.mxu0 0.0
    %5552 = vmatmul.mubr.f32.gmra.mrb[0].mxu0 %v4692
    %v5553 = vpop.f32.mrb[0].mxu0
    %v5554 = vadd.f32 %v5318, %v5553
    %v5555 = vpop.f32.mrb[0].mxu0
    %5556 = vdwg.mxu0
    %5557 = vmatprep.subr.mxu0 0.0
    %5558 = vmatpush1.msra.mxu0 %v5270
    %5559 = vmatprep.subr.mxu0 0.0
    %5560 = vmatpush1.msra.mxu0 %v5271
    %5561 = vmatprep.subr.mxu0 0.0
    %5562 = vmatpush1.msra.mxu0 %v5272
    %5563 = vmatprep.subr.mxu0 0.0
    %5564 = vmatpush1.msra.mxu0 %v5273
    %5565 = vmatprep.subr.mxu0 0.0
    %5566 = vmatpush1.msra.mxu0 0.0
    %5567 = vmatprep.subr.mxu0 0.0
    %5568 = vmatpush1.msra.mxu0 0.0
    %5569 = vmatprep.subr.mxu0 0.0
    %5570 = vmatpush1.msra.mxu0 0.0
    %5571 = vmatprep.subr.mxu0 0.0
    %5572 = vmatpush1.msra.mxu0 0.0
    %5573 = vmatprep.subr.mxu0 0.0
    %5574 = vmatpush1.msra.mxu0 0.0
    %5575 = vmatprep.subr.mxu0 0.0
    %5576 = vmatpush1.msra.mxu0 0.0
    %5577 = vmatprep.subr.mxu0 0.0
    %5578 = vmatpush1.msra.mxu0 0.0
    %5579 = vmatprep.subr.mxu0 0.0
    %5580 = vmatpush1.msra.mxu0 0.0
    %5581 = vmatprep.subr.mxu0 0.0
    %5582 = vmatpush1.msra.mxu0 0.0
    %5583 = vmatprep.subr.mxu0 0.0
    %5584 = vmatpush1.msra.mxu0 0.0
    %5585 = vmatprep.subr.mxu0 0.0
    %5586 = vmatpush1.msra.mxu0 0.0
    %5587 = vmatprep.subr.mxu0 0.0
    %5588 = vmatpush1.msra.mxu0 0.0
    %5589 = vmatprep.subr.mxu0 0.0
    %5590 = vmatpush1.msra.mxu0 0.0
    %5591 = vmatprep.subr.mxu0 0.0
    %5592 = vmatpush1.msra.mxu0 0.0
    %5593 = vmatprep.subr.mxu0 0.0
    %5594 = vmatpush1.msra.mxu0 0.0
    %5595 = vmatprep.subr.mxu0 0.0
    %5596 = vmatpush1.msra.mxu0 0.0
    %5597 = vmatprep.subr.mxu0 0.0
    %5598 = vmatpush1.msra.mxu0 0.0
    %5599 = vmatprep.subr.mxu0 0.0
    %5600 = vmatpush1.msra.mxu0 0.0
    %5601 = vmatprep.subr.mxu0 0.0
    %5602 = vmatpush1.msra.mxu0 0.0
    %5603 = vmatprep.subr.mxu0 0.0
    %5604 = vmatpush1.msra.mxu0 0.0
    %5605 = vmatprep.subr.mxu0 0.0
    %5606 = vmatpush1.msra.mxu0 0.0
    %5607 = vmatprep.subr.mxu0 0.0
    %5608 = vmatpush1.msra.mxu0 0.0
    %5609 = vmatprep.subr.mxu0 0.0
    %5610 = vmatpush1.msra.mxu0 0.0
    %5611 = vmatprep.subr.mxu0 0.0
    %5612 = vmatpush1.msra.mxu0 0.0
    %5613 = vmatprep.subr.mxu0 0.0
    %5614 = vmatpush1.msra.mxu0 0.0
    %5615 = vmatprep.subr.mxu0 0.0
    %5616 = vmatpush1.msra.mxu0 0.0
    %5617 = vmatprep.subr.mxu0 0.0
    %5618 = vmatpush1.msra.mxu0 0.0
    %5619 = vmatprep.subr.mxu0 0.0
    %5620 = vmatpush1.msra.mxu0 0.0
    %5621 = vmatprep.mubr.f32.mxu0 0.0
    %5622 = vmatmul.mubr.f32.gmra.mrb[0].mxu0 %v4692
    %v5623 = vpop.f32.mrb[0].mxu0
    %v5624 = vadd.f32 %v5322, %v5623
    %v5625 = vpop.f32.mrb[0].mxu0
    %5626 = vdwg.mxu0
    %5627 = vmatprep.subr.mxu0 0.0
    %5628 = vmatpush1.msra.mxu0 %v5274
    %5629 = vmatprep.subr.mxu0 0.0
    %5630 = vmatpush1.msra.mxu0 %v5275
    %5631 = vmatprep.subr.mxu0 0.0
    %5632 = vmatpush1.msra.mxu0 %v5276
    %5633 = vmatprep.subr.mxu0 0.0
    %5634 = vmatpush1.msra.mxu0 %v5277
    %5635 = vmatprep.subr.mxu0 0.0
    %5636 = vmatpush1.msra.mxu0 0.0
    %5637 = vmatprep.subr.mxu0 0.0
    %5638 = vmatpush1.msra.mxu0 0.0
    %5639 = vmatprep.subr.mxu0 0.0
    %5640 = vmatpush1.msra.mxu0 0.0
    %5641 = vmatprep.subr.mxu0 0.0
    %5642 = vmatpush1.msra.mxu0 0.0
    %5643 = vmatprep.subr.mxu0 0.0
    %5644 = vmatpush1.msra.mxu0 0.0
    %5645 = vmatprep.subr.mxu0 0.0
    %5646 = vmatpush1.msra.mxu0 0.0
    %5647 = vmatprep.subr.mxu0 0.0
    %5648 = vmatpush1.msra.mxu0 0.0
    %5649 = vmatprep.subr.mxu0 0.0
    %5650 = vmatpush1.msra.mxu0 0.0
    %5651 = vmatprep.subr.mxu0 0.0
    %5652 = vmatpush1.msra.mxu0 0.0
    %5653 = vmatprep.subr.mxu0 0.0
    %5654 = vmatpush1.msra.mxu0 0.0
    %5655 = vmatprep.subr.mxu0 0.0
    %5656 = vmatpush1.msra.mxu0 0.0
    %5657 = vmatprep.subr.mxu0 0.0
    %5658 = vmatpush1.msra.mxu0 0.0
    %5659 = vmatprep.subr.mxu0 0.0
    %5660 = vmatpush1.msra.mxu0 0.0
    %5661 = vmatprep.subr.mxu0 0.0
    %5662 = vmatpush1.msra.mxu0 0.0
    %5663 = vmatprep.subr.mxu0 0.0
    %5664 = vmatpush1.msra.mxu0 0.0
    %5665 = vmatprep.subr.mxu0 0.0
    %5666 = vmatpush1.msra.mxu0 0.0
    %5667 = vmatprep.subr.mxu0 0.0
    %5668 = vmatpush1.msra.mxu0 0.0
    %5669 = vmatprep.subr.mxu0 0.0
    %5670 = vmatpush1.msra.mxu0 0.0
    %5671 = vmatprep.subr.mxu0 0.0
    %5672 = vmatpush1.msra.mxu0 0.0
    %5673 = vmatprep.subr.mxu0 0.0
    %5674 = vmatpush1.msra.mxu0 0.0
    %5675 = vmatprep.subr.mxu0 0.0
    %5676 = vmatpush1.msra.mxu0 0.0
    %5677 = vmatprep.subr.mxu0 0.0
    %5678 = vmatpush1.msra.mxu0 0.0
    %5679 = vmatprep.subr.mxu0 0.0
    %5680 = vmatpush1.msra.mxu0 0.0
    %5681 = vmatprep.subr.mxu0 0.0
    %5682 = vmatpush1.msra.mxu0 0.0
    %5683 = vmatprep.subr.mxu0 0.0
    %5684 = vmatpush1.msra.mxu0 0.0
    %5685 = vmatprep.subr.mxu0 0.0
    %5686 = vmatpush1.msra.mxu0 0.0
    %5687 = vmatprep.subr.mxu0 0.0
    %5688 = vmatpush1.msra.mxu0 0.0
    %5689 = vmatprep.subr.mxu0 0.0
    %5690 = vmatpush1.msra.mxu0 0.0
    %5691 = vmatprep.mubr.f32.mxu0 0.0
    %5692 = vmatmul.mubr.f32.gmra.mrb[0].mxu0 %v4975
    %v5693 = vpop.f32.mrb[0].mxu0
    %v5694 = vadd.f32 %v5326, %v5693
    %v5695 = vpop.f32.mrb[0].mxu0
    %5696 = vdwg.mxu0
    %5697 = vmatprep.subr.mxu0 0.0
    %5698 = vmatpush1.msra.mxu0 %v5278
    %5699 = vmatprep.subr.mxu0 0.0
    %5700 = vmatpush1.msra.mxu0 %v5279
    %5701 = vmatprep.subr.mxu0 0.0
    %5702 = vmatpush1.msra.mxu0 %v5280
    %5703 = vmatprep.subr.mxu0 0.0
    %5704 = vmatpush1.msra.mxu0 %v5281
    %5705 = vmatprep.subr.mxu0 0.0
    %5706 = vmatpush1.msra.mxu0 0.0
    %5707 = vmatprep.subr.mxu0 0.0
    %5708 = vmatpush1.msra.mxu0 0.0
    %5709 = vmatprep.subr.mxu0 0.0
    %5710 = vmatpush1.msra.mxu0 0.0
    %5711 = vmatprep.subr.mxu0 0.0
    %5712 = vmatpush1.msra.mxu0 0.0
    %5713 = vmatprep.subr.mxu0 0.0
    %5714 = vmatpush1.msra.mxu0 0.0
    %5715 = vmatprep.subr.mxu0 0.0
    %5716 = vmatpush1.msra.mxu0 0.0
    %5717 = vmatprep.subr.mxu0 0.0
    %5718 = vmatpush1.msra.mxu0 0.0
    %5719 = vmatprep.subr.mxu0 0.0
    %5720 = vmatpush1.msra.mxu0 0.0
    %5721 = vmatprep.subr.mxu0 0.0
    %5722 = vmatpush1.msra.mxu0 0.0
    %5723 = vmatprep.subr.mxu0 0.0
    %5724 = vmatpush1.msra.mxu0 0.0
    %5725 = vmatprep.subr.mxu0 0.0
    %5726 = vmatpush1.msra.mxu0 0.0
    %5727 = vmatprep.subr.mxu0 0.0
    %5728 = vmatpush1.msra.mxu0 0.0
    %5729 = vmatprep.subr.mxu0 0.0
    %5730 = vmatpush1.msra.mxu0 0.0
    %5731 = vmatprep.subr.mxu0 0.0
    %5732 = vmatpush1.msra.mxu0 0.0
    %5733 = vmatprep.subr.mxu0 0.0
    %5734 = vmatpush1.msra.mxu0 0.0
    %5735 = vmatprep.subr.mxu0 0.0
    %5736 = vmatpush1.msra.mxu0 0.0
    %5737 = vmatprep.subr.mxu0 0.0
    %5738 = vmatpush1.msra.mxu0 0.0
    %5739 = vmatprep.subr.mxu0 0.0
    %5740 = vmatpush1.msra.mxu0 0.0
    %5741 = vmatprep.subr.mxu0 0.0
    %5742 = vmatpush1.msra.mxu0 0.0
    %5743 = vmatprep.subr.mxu0 0.0
    %5744 = vmatpush1.msra.mxu0 0.0
    %5745 = vmatprep.subr.mxu0 0.0
    %5746 = vmatpush1.msra.mxu0 0.0
    %5747 = vmatprep.subr.mxu0 0.0
    %5748 = vmatpush1.msra.mxu0 0.0
    %5749 = vmatprep.subr.mxu0 0.0
    %5750 = vmatpush1.msra.mxu0 0.0
    %5751 = vmatprep.subr.mxu0 0.0
    %5752 = vmatpush1.msra.mxu0 0.0
    %5753 = vmatprep.subr.mxu0 0.0
    %5754 = vmatpush1.msra.mxu0 0.0
    %5755 = vmatprep.subr.mxu0 0.0
    %5756 = vmatpush1.msra.mxu0 0.0
    %5757 = vmatprep.subr.mxu0 0.0
    %5758 = vmatpush1.msra.mxu0 0.0
    %5759 = vmatprep.subr.mxu0 0.0
    %5760 = vmatpush1.msra.mxu0 0.0
    %5761 = vmatprep.mubr.f32.mxu0 0.0
    %5762 = vmatmul.mubr.f32.gmra.mrb[0].mxu0 %v4975
    %v5763 = vpop.f32.mrb[0].mxu0
    %v5764 = vadd.f32 %v5330, %v5763
    %v5765 = vpop.f32.mrb[0].mxu0
    %5766 = vdwg.mxu0
    %5767 = vmatprep.subr.mxu0 0.0
    %5768 = vmatpush1.msra.mxu0 %v5282
    %5769 = vmatprep.subr.mxu0 0.0
    %5770 = vmatpush1.msra.mxu0 %v5283
    %5771 = vmatprep.subr.mxu0 0.0
    %5772 = vmatpush1.msra.mxu0 %v5284
    %5773 = vmatprep.subr.mxu0 0.0
    %5774 = vmatpush1.msra.mxu0 %v5285
    %5775 = vmatprep.subr.mxu0 0.0
    %5776 = vmatpush1.msra.mxu0 0.0
    %5777 = vmatprep.subr.mxu0 0.0
    %5778 = vmatpush1.msra.mxu0 0.0
    %5779 = vmatprep.subr.mxu0 0.0
    %5780 = vmatpush1.msra.mxu0 0.0
    %5781 = vmatprep.subr.mxu0 0.0
    %5782 = vmatpush1.msra.mxu0 0.0
    %5783 = vmatprep.subr.mxu0 0.0
    %5784 = vmatpush1.msra.mxu0 0.0
    %5785 = vmatprep.subr.mxu0 0.0
    %5786 = vmatpush1.msra.mxu0 0.0
    %5787 = vmatprep.subr.mxu0 0.0
    %5788 = vmatpush1.msra.mxu0 0.0
    %5789 = vmatprep.subr.mxu0 0.0
    %5790 = vmatpush1.msra.mxu0 0.0
    %5791 = vmatprep.subr.mxu0 0.0
    %5792 = vmatpush1.msra.mxu0 0.0
    %5793 = vmatprep.subr.mxu0 0.0
    %5794 = vmatpush1.msra.mxu0 0.0
    %5795 = vmatprep.subr.mxu0 0.0
    %5796 = vmatpush1.msra.mxu0 0.0
    %5797 = vmatprep.subr.mxu0 0.0
    %5798 = vmatpush1.msra.mxu0 0.0
    %5799 = vmatprep.subr.mxu0 0.0
    %5800 = vmatpush1.msra.mxu0 0.0
    %5801 = vmatprep.subr.mxu0 0.0
    %5802 = vmatpush1.msra.mxu0 0.0
    %5803 = vmatprep.subr.mxu0 0.0
    %5804 = vmatpush1.msra.mxu0 0.0
    %5805 = vmatprep.subr.mxu0 0.0
    %5806 = vmatpush1.msra.mxu0 0.0
    %5807 = vmatprep.subr.mxu0 0.0
    %5808 = vmatpush1.msra.mxu0 0.0
    %5809 = vmatprep.subr.mxu0 0.0
    %5810 = vmatpush1.msra.mxu0 0.0
    %5811 = vmatprep.subr.mxu0 0.0
    %5812 = vmatpush1.msra.mxu0 0.0
    %5813 = vmatprep.subr.mxu0 0.0
    %5814 = vmatpush1.msra.mxu0 0.0
    %5815 = vmatprep.subr.mxu0 0.0
    %5816 = vmatpush1.msra.mxu0 0.0
    %5817 = vmatprep.subr.mxu0 0.0
    %5818 = vmatpush1.msra.mxu0 0.0
    %5819 = vmatprep.subr.mxu0 0.0
    %5820 = vmatpush1.msra.mxu0 0.0
    %5821 = vmatprep.subr.mxu0 0.0
    %5822 = vmatpush1.msra.mxu0 0.0
    %5823 = vmatprep.subr.mxu0 0.0
    %5824 = vmatpush1.msra.mxu0 0.0
    %5825 = vmatprep.subr.mxu0 0.0
    %5826 = vmatpush1.msra.mxu0 0.0
    %5827 = vmatprep.subr.mxu0 0.0
    %5828 = vmatpush1.msra.mxu0 0.0
    %5829 = vmatprep.subr.mxu0 0.0
    %5830 = vmatpush1.msra.mxu0 0.0
    %5831 = vmatprep.mubr.f32.mxu0 0.0
    %5832 = vmatmul.mubr.f32.gmra.mrb[0].mxu0 %v4975
    %v5833 = vpop.f32.mrb[0].mxu0
    %v5834 = vadd.f32 %v5334, %v5833
    %v5835 = vpop.f32.mrb[0].mxu0
    %5836 = vdwg.mxu0
    %5837 = vmatprep.subr.mxu0 0.0
    %5838 = vmatpush1.msra.mxu0 %v5286
    %5839 = vmatprep.subr.mxu0 0.0
    %5840 = vmatpush1.msra.mxu0 %v5287
    %5841 = vmatprep.subr.mxu0 0.0
    %5842 = vmatpush1.msra.mxu0 %v5288
    %5843 = vmatprep.subr.mxu0 0.0
    %5844 = vmatpush1.msra.mxu0 %v5289
    %5845 = vmatprep.subr.mxu0 0.0
    %5846 = vmatpush1.msra.mxu0 0.0
    %5847 = vmatprep.subr.mxu0 0.0
    %5848 = vmatpush1.msra.mxu0 0.0
    %5849 = vmatprep.subr.mxu0 0.0
    %5850 = vmatpush1.msra.mxu0 0.0
    %5851 = vmatprep.subr.mxu0 0.0
    %5852 = vmatpush1.msra.mxu0 0.0
    %5853 = vmatprep.subr.mxu0 0.0
    %5854 = vmatpush1.msra.mxu0 0.0
    %5855 = vmatprep.subr.mxu0 0.0
    %5856 = vmatpush1.msra.mxu0 0.0
    %5857 = vmatprep.subr.mxu0 0.0
    %5858 = vmatpush1.msra.mxu0 0.0
    %5859 = vmatprep.subr.mxu0 0.0
    %5860 = vmatpush1.msra.mxu0 0.0
    %5861 = vmatprep.subr.mxu0 0.0
    %5862 = vmatpush1.msra.mxu0 0.0
    %5863 = vmatprep.subr.mxu0 0.0
    %5864 = vmatpush1.msra.mxu0 0.0
    %5865 = vmatprep.subr.mxu0 0.0
    %5866 = vmatpush1.msra.mxu0 0.0
    %5867 = vmatprep.subr.mxu0 0.0
    %5868 = vmatpush1.msra.mxu0 0.0
    %5869 = vmatprep.subr.mxu0 0.0
    %5870 = vmatpush1.msra.mxu0 0.0
    %5871 = vmatprep.subr.mxu0 0.0
    %5872 = vmatpush1.msra.mxu0 0.0
    %5873 = vmatprep.subr.mxu0 0.0
    %5874 = vmatpush1.msra.mxu0 0.0
    %5875 = vmatprep.subr.mxu0 0.0
    %5876 = vmatpush1.msra.mxu0 0.0
    %5877 = vmatprep.subr.mxu0 0.0
    %5878 = vmatpush1.msra.mxu0 0.0
    %5879 = vmatprep.subr.mxu0 0.0
    %5880 = vmatpush1.msra.mxu0 0.0
    %5881 = vmatprep.subr.mxu0 0.0
    %5882 = vmatpush1.msra.mxu0 0.0
    %5883 = vmatprep.subr.mxu0 0.0
    %5884 = vmatpush1.msra.mxu0 0.0
    %5885 = vmatprep.subr.mxu0 0.0
    %5886 = vmatpush1.msra.mxu0 0.0
    %5887 = vmatprep.subr.mxu0 0.0
    %5888 = vmatpush1.msra.mxu0 0.0
    %5889 = vmatprep.subr.mxu0 0.0
    %5890 = vmatpush1.msra.mxu0 0.0
    %5891 = vmatprep.subr.mxu0 0.0
    %5892 = vmatpush1.msra.mxu0 0.0
    %5893 = vmatprep.subr.mxu0 0.0
    %5894 = vmatpush1.msra.mxu0 0.0
    %5895 = vmatprep.subr.mxu0 0.0
    %5896 = vmatpush1.msra.mxu0 0.0
    %5897 = vmatprep.subr.mxu0 0.0
    %5898 = vmatpush1.msra.mxu0 0.0
    %5899 = vmatprep.subr.mxu0 0.0
    %5900 = vmatpush1.msra.mxu0 0.0
    %5901 = vmatprep.mubr.f32.mxu0 0.0
    %5902 = vmatmul.mubr.f32.gmra.mrb[0].mxu0 %v4975
    %v5903 = vpop.f32.mrb[0].mxu0
    %v5904 = vadd.f32 %v5338, %v5903
    %v5905 = vpop.f32.mrb[0].mxu0
    %5906 = vdwg.mxu0
    %v5908 = vsel %vm2009, %v4105, 0
    %v5911 = vsel %vm2009, %v4761, 0
    %5913 = vmatprep.subr.mxu0 0.0
    %5914 = vmatpush1.xpose.msra.mxu0 %v5911
    %5915 = vmatprep.subr.mxu0 0.0
    %5916 = vmatpush1.xpose.msra.mxu0 0.0
    %5917 = vmatprep.subr.mxu0 0.0
    %5918 = vmatpush1.xpose.msra.mxu0 0.0
    %5919 = vmatprep.subr.mxu0 0.0
    %5920 = vmatpush1.xpose.msra.mxu0 0.0
    %5921 = vmatprep.subr.mxu0 0.0
    %5922 = vmatpush1.xpose.msra.mxu0 0.0
    %5923 = vmatprep.subr.mxu0 0.0
    %5924 = vmatpush1.xpose.msra.mxu0 0.0
    %5925 = vmatprep.subr.mxu0 0.0
    %5926 = vmatpush1.xpose.msra.mxu0 0.0
    %5927 = vmatprep.subr.mxu0 0.0
    %5928 = vmatpush1.xpose.msra.mxu0 0.0
    %5929 = vmatprep.subr.mxu0 0.0
    %5930 = vmatpush1.xpose.msra.mxu0 0.0
    %5931 = vmatprep.subr.mxu0 0.0
    %5932 = vmatpush1.xpose.msra.mxu0 0.0
    %5933 = vmatprep.subr.mxu0 0.0
    %5934 = vmatpush1.xpose.msra.mxu0 0.0
    %5935 = vmatprep.subr.mxu0 0.0
    %5936 = vmatpush1.xpose.msra.mxu0 0.0
    %5937 = vmatprep.subr.mxu0 0.0
    %5938 = vmatpush1.xpose.msra.mxu0 0.0
    %5939 = vmatprep.subr.mxu0 0.0
    %5940 = vmatpush1.xpose.msra.mxu0 0.0
    %5941 = vmatprep.subr.mxu0 0.0
    %5942 = vmatpush1.xpose.msra.mxu0 0.0
    %5943 = vmatprep.subr.mxu0 0.0
    %5944 = vmatpush1.xpose.msra.mxu0 0.0
    %5945 = vmatprep.subr.mxu0 0.0
    %5946 = vmatpush1.xpose.msra.mxu0 0.0
    %5947 = vmatprep.subr.mxu0 0.0
    %5948 = vmatpush1.xpose.msra.mxu0 0.0
    %5949 = vmatprep.subr.mxu0 0.0
    %5950 = vmatpush1.xpose.msra.mxu0 0.0
    %5951 = vmatprep.subr.mxu0 0.0
    %5952 = vmatpush1.xpose.msra.mxu0 0.0
    %5953 = vmatprep.subr.mxu0 0.0
    %5954 = vmatpush1.xpose.msra.mxu0 0.0
    %5955 = vmatprep.subr.mxu0 0.0
    %5956 = vmatpush1.xpose.msra.mxu0 0.0
    %5957 = vmatprep.subr.mxu0 0.0
    %5958 = vmatpush1.xpose.msra.mxu0 0.0
    %5959 = vmatprep.subr.mxu0 0.0
    %5960 = vmatpush1.xpose.msra.mxu0 0.0
    %5961 = vmatprep.subr.mxu0 0.0
    %5962 = vmatpush1.xpose.msra.mxu0 0.0
    %5963 = vmatprep.subr.mxu0 0.0
    %5964 = vmatpush1.xpose.msra.mxu0 0.0
    %5965 = vmatprep.subr.mxu0 0.0
    %5966 = vmatpush1.xpose.msra.mxu0 0.0
    %5967 = vmatprep.subr.mxu0 0.0
    %5968 = vmatpush1.xpose.msra.mxu0 0.0
    %5969 = vmatprep.subr.mxu0 0.0
    %5970 = vmatpush1.xpose.msra.mxu0 0.0
    %5971 = vmatprep.subr.mxu0 0.0
    %5972 = vmatpush1.xpose.msra.mxu0 0.0
    %5973 = vmatprep.subr.mxu0 0.0
    %5974 = vmatpush1.xpose.msra.mxu0 0.0
    %5975 = vmatprep.subr.mxu0 0.0
    %5976 = vmatpush1.xpose.msra.mxu0 0.0
    %5977 = vmatprep.mubr.f32.mxu0 0.0
    %5978 = vmatmul.mubr.f32.gmra.mrb[0].mxu0 %v5908
    %v5979 = vpop.f32.mrb[0].mxu0
    %v5980 = vadd.f32 0.0, %v5979
    %v5981 = vpop.f32.mrb[0].mxu0
    %5982 = vdwg.mxu0
    %v5984 = vsel %vm2009, %v4175, 0
    %v5987 = vsel %vm2009, %v4831, 0
    %5989 = vmatprep.subr.mxu0 0.0
    %5990 = vmatpush1.xpose.msra.mxu0 %v5987
    %5991 = vmatprep.subr.mxu0 0.0
    %5992 = vmatpush1.xpose.msra.mxu0 0.0
    %5993 = vmatprep.subr.mxu0 0.0
    %5994 = vmatpush1.xpose.msra.mxu0 0.0
    %5995 = vmatprep.subr.mxu0 0.0
    %5996 = vmatpush1.xpose.msra.mxu0 0.0
    %5997 = vmatprep.subr.mxu0 0.0
    %5998 = vmatpush1.xpose.msra.mxu0 0.0
    %5999 = vmatprep.subr.mxu0 0.0
    %6000 = vmatpush1.xpose.msra.mxu0 0.0
    %6001 = vmatprep.subr.mxu0 0.0
    %6002 = vmatpush1.xpose.msra.mxu0 0.0
    %6003 = vmatprep.subr.mxu0 0.0
    %6004 = vmatpush1.xpose.msra.mxu0 0.0
    %6005 = vmatprep.subr.mxu0 0.0
    %6006 = vmatpush1.xpose.msra.mxu0 0.0
    %6007 = vmatprep.subr.mxu0 0.0
    %6008 = vmatpush1.xpose.msra.mxu0 0.0
    %6009 = vmatprep.subr.mxu0 0.0
    %6010 = vmatpush1.xpose.msra.mxu0 0.0
    %6011 = vmatprep.subr.mxu0 0.0
    %6012 = vmatpush1.xpose.msra.mxu0 0.0
    %6013 = vmatprep.subr.mxu0 0.0
    %6014 = vmatpush1.xpose.msra.mxu0 0.0
    %6015 = vmatprep.subr.mxu0 0.0
    %6016 = vmatpush1.xpose.msra.mxu0 0.0
    %6017 = vmatprep.subr.mxu0 0.0
    %6018 = vmatpush1.xpose.msra.mxu0 0.0
    %6019 = vmatprep.subr.mxu0 0.0
    %6020 = vmatpush1.xpose.msra.mxu0 0.0
    %6021 = vmatprep.subr.mxu0 0.0
    %6022 = vmatpush1.xpose.msra.mxu0 0.0
    %6023 = vmatprep.subr.mxu0 0.0
    %6024 = vmatpush1.xpose.msra.mxu0 0.0
    %6025 = vmatprep.subr.mxu0 0.0
    %6026 = vmatpush1.xpose.msra.mxu0 0.0
    %6027 = vmatprep.subr.mxu0 0.0
    %6028 = vmatpush1.xpose.msra.mxu0 0.0
    %6029 = vmatprep.subr.mxu0 0.0
    %6030 = vmatpush1.xpose.msra.mxu0 0.0
    %6031 = vmatprep.subr.mxu0 0.0
    %6032 = vmatpush1.xpose.msra.mxu0 0.0
    %6033 = vmatprep.subr.mxu0 0.0
    %6034 = vmatpush1.xpose.msra.mxu0 0.0
    %6035 = vmatprep.subr.mxu0 0.0
    %6036 = vmatpush1.xpose.msra.mxu0 0.0
    %6037 = vmatprep.subr.mxu0 0.0
    %6038 = vmatpush1.xpose.msra.mxu0 0.0
    %6039 = vmatprep.subr.mxu0 0.0
    %6040 = vmatpush1.xpose.msra.mxu0 0.0
    %6041 = vmatprep.subr.mxu0 0.0
    %6042 = vmatpush1.xpose.msra.mxu0 0.0
    %6043 = vmatprep.subr.mxu0 0.0
    %6044 = vmatpush1.xpose.msra.mxu0 0.0
    %6045 = vmatprep.subr.mxu0 0.0
    %6046 = vmatpush1.xpose.msra.mxu0 0.0
    %6047 = vmatprep.subr.mxu0 0.0
    %6048 = vmatpush1.xpose.msra.mxu0 0.0
    %6049 = vmatprep.subr.mxu0 0.0
    %6050 = vmatpush1.xpose.msra.mxu0 0.0
    %6051 = vmatprep.subr.mxu0 0.0
    %6052 = vmatpush1.xpose.msra.mxu0 0.0
    %6053 = vmatprep.mubr.f32.mxu0 0.0
    %6054 = vmatmul.mubr.f32.gmra.mrb[0].mxu0 %v5984
    %v6055 = vpop.f32.mrb[0].mxu0
    %v6056 = vadd.f32 0.0, %v6055
    %v6057 = vpop.f32.mrb[0].mxu0
    %6058 = vdwg.mxu0
    %v6060 = vsel %vm2009, %v4245, 0
    %v6063 = vsel %vm2009, %v4901, 0
    %6065 = vmatprep.subr.mxu0 0.0
    %6066 = vmatpush1.xpose.msra.mxu0 %v6063
    %6067 = vmatprep.subr.mxu0 0.0
    %6068 = vmatpush1.xpose.msra.mxu0 0.0
    %6069 = vmatprep.subr.mxu0 0.0
    %6070 = vmatpush1.xpose.msra.mxu0 0.0
    %6071 = vmatprep.subr.mxu0 0.0
    %6072 = vmatpush1.xpose.msra.mxu0 0.0
    %6073 = vmatprep.subr.mxu0 0.0
    %6074 = vmatpush1.xpose.msra.mxu0 0.0
    %6075 = vmatprep.subr.mxu0 0.0
    %6076 = vmatpush1.xpose.msra.mxu0 0.0
    %6077 = vmatprep.subr.mxu0 0.0
    %6078 = vmatpush1.xpose.msra.mxu0 0.0
    %6079 = vmatprep.subr.mxu0 0.0
    %6080 = vmatpush1.xpose.msra.mxu0 0.0
    %6081 = vmatprep.subr.mxu0 0.0
    %6082 = vmatpush1.xpose.msra.mxu0 0.0
    %6083 = vmatprep.subr.mxu0 0.0
    %6084 = vmatpush1.xpose.msra.mxu0 0.0
    %6085 = vmatprep.subr.mxu0 0.0
    %6086 = vmatpush1.xpose.msra.mxu0 0.0
    %6087 = vmatprep.subr.mxu0 0.0
    %6088 = vmatpush1.xpose.msra.mxu0 0.0
    %6089 = vmatprep.subr.mxu0 0.0
    %6090 = vmatpush1.xpose.msra.mxu0 0.0
    %6091 = vmatprep.subr.mxu0 0.0
    %6092 = vmatpush1.xpose.msra.mxu0 0.0
    %6093 = vmatprep.subr.mxu0 0.0
    %6094 = vmatpush1.xpose.msra.mxu0 0.0
    %6095 = vmatprep.subr.mxu0 0.0
    %6096 = vmatpush1.xpose.msra.mxu0 0.0
    %6097 = vmatprep.subr.mxu0 0.0
    %6098 = vmatpush1.xpose.msra.mxu0 0.0
    %6099 = vmatprep.subr.mxu0 0.0
    %6100 = vmatpush1.xpose.msra.mxu0 0.0
    %6101 = vmatprep.subr.mxu0 0.0
    %6102 = vmatpush1.xpose.msra.mxu0 0.0
    %6103 = vmatprep.subr.mxu0 0.0
    %6104 = vmatpush1.xpose.msra.mxu0 0.0
    %6105 = vmatprep.subr.mxu0 0.0
    %6106 = vmatpush1.xpose.msra.mxu0 0.0
    %6107 = vmatprep.subr.mxu0 0.0
    %6108 = vmatpush1.xpose.msra.mxu0 0.0
    %6109 = vmatprep.subr.mxu0 0.0
    %6110 = vmatpush1.xpose.msra.mxu0 0.0
    %6111 = vmatprep.subr.mxu0 0.0
    %6112 = vmatpush1.xpose.msra.mxu0 0.0
    %6113 = vmatprep.subr.mxu0 0.0
    %6114 = vmatpush1.xpose.msra.mxu0 0.0
    %6115 = vmatprep.subr.mxu0 0.0
    %6116 = vmatpush1.xpose.msra.mxu0 0.0
    %6117 = vmatprep.subr.mxu0 0.0
    %6118 = vmatpush1.xpose.msra.mxu0 0.0
    %6119 = vmatprep.subr.mxu0 0.0
    %6120 = vmatpush1.xpose.msra.mxu0 0.0
    %6121 = vmatprep.subr.mxu0 0.0
    %6122 = vmatpush1.xpose.msra.mxu0 0.0
    %6123 = vmatprep.subr.mxu0 0.0
    %6124 = vmatpush1.xpose.msra.mxu0 0.0
    %6125 = vmatprep.subr.mxu0 0.0
    %6126 = vmatpush1.xpose.msra.mxu0 0.0
    %6127 = vmatprep.subr.mxu0 0.0
    %6128 = vmatpush1.xpose.msra.mxu0 0.0
    %6129 = vmatprep.mubr.f32.mxu0 0.0
    %6130 = vmatmul.mubr.f32.gmra.mrb[0].mxu0 %v6060
    %v6131 = vpop.f32.mrb[0].mxu0
    %v6132 = vadd.f32 0.0, %v6131
    %v6133 = vpop.f32.mrb[0].mxu0
    %6134 = vdwg.mxu0
    %v6136 = vsel %vm2009, %v4315, 0
    %v6139 = vsel %vm2009, %v4971, 0
    %6141 = vmatprep.subr.mxu0 0.0
    %6142 = vmatpush1.xpose.msra.mxu0 %v6139
    %6143 = vmatprep.subr.mxu0 0.0
    %6144 = vmatpush1.xpose.msra.mxu0 0.0
    %6145 = vmatprep.subr.mxu0 0.0
    %6146 = vmatpush1.xpose.msra.mxu0 0.0
    %6147 = vmatprep.subr.mxu0 0.0
    %6148 = vmatpush1.xpose.msra.mxu0 0.0
    %6149 = vmatprep.subr.mxu0 0.0
    %6150 = vmatpush1.xpose.msra.mxu0 0.0
    %6151 = vmatprep.subr.mxu0 0.0
    %6152 = vmatpush1.xpose.msra.mxu0 0.0
    %6153 = vmatprep.subr.mxu0 0.0
    %6154 = vmatpush1.xpose.msra.mxu0 0.0
    %6155 = vmatprep.subr.mxu0 0.0
    %6156 = vmatpush1.xpose.msra.mxu0 0.0
    %6157 = vmatprep.subr.mxu0 0.0
    %6158 = vmatpush1.xpose.msra.mxu0 0.0
    %6159 = vmatprep.subr.mxu0 0.0
    %6160 = vmatpush1.xpose.msra.mxu0 0.0
    %6161 = vmatprep.subr.mxu0 0.0
    %6162 = vmatpush1.xpose.msra.mxu0 0.0
    %6163 = vmatprep.subr.mxu0 0.0
    %6164 = vmatpush1.xpose.msra.mxu0 0.0
    %6165 = vmatprep.subr.mxu0 0.0
    %6166 = vmatpush1.xpose.msra.mxu0 0.0
    %6167 = vmatprep.subr.mxu0 0.0
    %6168 = vmatpush1.xpose.msra.mxu0 0.0
    %6169 = vmatprep.subr.mxu0 0.0
    %6170 = vmatpush1.xpose.msra.mxu0 0.0
    %6171 = vmatprep.subr.mxu0 0.0
    %6172 = vmatpush1.xpose.msra.mxu0 0.0
    %6173 = vmatprep.subr.mxu0 0.0
    %6174 = vmatpush1.xpose.msra.mxu0 0.0
    %6175 = vmatprep.subr.mxu0 0.0
    %6176 = vmatpush1.xpose.msra.mxu0 0.0
    %6177 = vmatprep.subr.mxu0 0.0
    %6178 = vmatpush1.xpose.msra.mxu0 0.0
    %6179 = vmatprep.subr.mxu0 0.0
    %6180 = vmatpush1.xpose.msra.mxu0 0.0
    %6181 = vmatprep.subr.mxu0 0.0
    %6182 = vmatpush1.xpose.msra.mxu0 0.0
    %6183 = vmatprep.subr.mxu0 0.0
    %6184 = vmatpush1.xpose.msra.mxu0 0.0
    %6185 = vmatprep.subr.mxu0 0.0
    %6186 = vmatpush1.xpose.msra.mxu0 0.0
    %6187 = vmatprep.subr.mxu0 0.0
    %6188 = vmatpush1.xpose.msra.mxu0 0.0
    %6189 = vmatprep.subr.mxu0 0.0
    %6190 = vmatpush1.xpose.msra.mxu0 0.0
    %6191 = vmatprep.subr.mxu0 0.0
    %6192 = vmatpush1.xpose.msra.mxu0 0.0
    %6193 = vmatprep.subr.mxu0 0.0
    %6194 = vmatpush1.xpose.msra.mxu0 0.0
    %6195 = vmatprep.subr.mxu0 0.0
    %6196 = vmatpush1.xpose.msra.mxu0 0.0
    %6197 = vmatprep.subr.mxu0 0.0
    %6198 = vmatpush1.xpose.msra.mxu0 0.0
    %6199 = vmatprep.subr.mxu0 0.0
    %6200 = vmatpush1.xpose.msra.mxu0 0.0
    %6201 = vmatprep.subr.mxu0 0.0
    %6202 = vmatpush1.xpose.msra.mxu0 0.0
    %6203 = vmatprep.subr.mxu0 0.0
    %6204 = vmatpush1.xpose.msra.mxu0 0.0
    %6205 = vmatprep.mubr.f32.mxu0 0.0
    %6206 = vmatmul.mubr.f32.gmra.mrb[0].mxu0 %v6136
    %v6207 = vpop.f32.mrb[0].mxu0
    %v6208 = vadd.f32 0.0, %v6207
    %v6209 = vpop.f32.mrb[0].mxu0
    %6210 = vdwg.mxu0
    %v6212 = vsel %vm2009, %v4388, 0
    %v6215 = vsel %vm2009, %v5044, 0
    %6217 = vmatprep.subr.mxu0 0.0
    %6218 = vmatpush1.xpose.msra.mxu0 %v6215
    %6219 = vmatprep.subr.mxu0 0.0
    %6220 = vmatpush1.xpose.msra.mxu0 0.0
    %6221 = vmatprep.subr.mxu0 0.0
    %6222 = vmatpush1.xpose.msra.mxu0 0.0
    %6223 = vmatprep.subr.mxu0 0.0
    %6224 = vmatpush1.xpose.msra.mxu0 0.0
    %6225 = vmatprep.subr.mxu0 0.0
    %6226 = vmatpush1.xpose.msra.mxu0 0.0
    %6227 = vmatprep.subr.mxu0 0.0
    %6228 = vmatpush1.xpose.msra.mxu0 0.0
    %6229 = vmatprep.subr.mxu0 0.0
    %6230 = vmatpush1.xpose.msra.mxu0 0.0
    %6231 = vmatprep.subr.mxu0 0.0
    %6232 = vmatpush1.xpose.msra.mxu0 0.0
    %6233 = vmatprep.subr.mxu0 0.0
    %6234 = vmatpush1.xpose.msra.mxu0 0.0
    %6235 = vmatprep.subr.mxu0 0.0
    %6236 = vmatpush1.xpose.msra.mxu0 0.0
    %6237 = vmatprep.subr.mxu0 0.0
    %6238 = vmatpush1.xpose.msra.mxu0 0.0
    %6239 = vmatprep.subr.mxu0 0.0
    %6240 = vmatpush1.xpose.msra.mxu0 0.0
    %6241 = vmatprep.subr.mxu0 0.0
    %6242 = vmatpush1.xpose.msra.mxu0 0.0
    %6243 = vmatprep.subr.mxu0 0.0
    %6244 = vmatpush1.xpose.msra.mxu0 0.0
    %6245 = vmatprep.subr.mxu0 0.0
    %6246 = vmatpush1.xpose.msra.mxu0 0.0
    %6247 = vmatprep.subr.mxu0 0.0
    %6248 = vmatpush1.xpose.msra.mxu0 0.0
    %6249 = vmatprep.subr.mxu0 0.0
    %6250 = vmatpush1.xpose.msra.mxu0 0.0
    %6251 = vmatprep.subr.mxu0 0.0
    %6252 = vmatpush1.xpose.msra.mxu0 0.0
    %6253 = vmatprep.subr.mxu0 0.0
    %6254 = vmatpush1.xpose.msra.mxu0 0.0
    %6255 = vmatprep.subr.mxu0 0.0
    %6256 = vmatpush1.xpose.msra.mxu0 0.0
    %6257 = vmatprep.subr.mxu0 0.0
    %6258 = vmatpush1.xpose.msra.mxu0 0.0
    %6259 = vmatprep.subr.mxu0 0.0
    %6260 = vmatpush1.xpose.msra.mxu0 0.0
    %6261 = vmatprep.subr.mxu0 0.0
    %6262 = vmatpush1.xpose.msra.mxu0 0.0
    %6263 = vmatprep.subr.mxu0 0.0
    %6264 = vmatpush1.xpose.msra.mxu0 0.0
    %6265 = vmatprep.subr.mxu0 0.0
    %6266 = vmatpush1.xpose.msra.mxu0 0.0
    %6267 = vmatprep.subr.mxu0 0.0
    %6268 = vmatpush1.xpose.msra.mxu0 0.0
    %6269 = vmatprep.subr.mxu0 0.0
    %6270 = vmatpush1.xpose.msra.mxu0 0.0
    %6271 = vmatprep.subr.mxu0 0.0
    %6272 = vmatpush1.xpose.msra.mxu0 0.0
    %6273 = vmatprep.subr.mxu0 0.0
    %6274 = vmatpush1.xpose.msra.mxu0 0.0
    %6275 = vmatprep.subr.mxu0 0.0
    %6276 = vmatpush1.xpose.msra.mxu0 0.0
    %6277 = vmatprep.subr.mxu0 0.0
    %6278 = vmatpush1.xpose.msra.mxu0 0.0
    %6279 = vmatprep.subr.mxu0 0.0
    %6280 = vmatpush1.xpose.msra.mxu0 0.0
    %6281 = vmatprep.mubr.f32.mxu0 0.0
    %6282 = vmatmul.mubr.f32.gmra.mrb[0].mxu0 %v6212
    %v6283 = vpop.f32.mrb[0].mxu0
    %v6284 = vadd.f32 0.0, %v6283
    %v6285 = vpop.f32.mrb[0].mxu0
    %6286 = vdwg.mxu0
    %v6288 = vsel %vm2009, %v4458, 0
    %v6291 = vsel %vm2009, %v5114, 0
    %6293 = vmatprep.subr.mxu0 0.0
    %6294 = vmatpush1.xpose.msra.mxu0 %v6291
    %6295 = vmatprep.subr.mxu0 0.0
    %6296 = vmatpush1.xpose.msra.mxu0 0.0
    %6297 = vmatprep.subr.mxu0 0.0
    %6298 = vmatpush1.xpose.msra.mxu0 0.0
    %6299 = vmatprep.subr.mxu0 0.0
    %6300 = vmatpush1.xpose.msra.mxu0 0.0
    %6301 = vmatprep.subr.mxu0 0.0
    %6302 = vmatpush1.xpose.msra.mxu0 0.0
    %6303 = vmatprep.subr.mxu0 0.0
    %6304 = vmatpush1.xpose.msra.mxu0 0.0
    %6305 = vmatprep.subr.mxu0 0.0
    %6306 = vmatpush1.xpose.msra.mxu0 0.0
    %6307 = vmatprep.subr.mxu0 0.0
    %6308 = vmatpush1.xpose.msra.mxu0 0.0
    %6309 = vmatprep.subr.mxu0 0.0
    %6310 = vmatpush1.xpose.msra.mxu0 0.0
    %6311 = vmatprep.subr.mxu0 0.0
    %6312 = vmatpush1.xpose.msra.mxu0 0.0
    %6313 = vmatprep.subr.mxu0 0.0
    %6314 = vmatpush1.xpose.msra.mxu0 0.0
    %6315 = vmatprep.subr.mxu0 0.0
    %6316 = vmatpush1.xpose.msra.mxu0 0.0
    %6317 = vmatprep.subr.mxu0 0.0
    %6318 = vmatpush1.xpose.msra.mxu0 0.0
    %6319 = vmatprep.subr.mxu0 0.0
    %6320 = vmatpush1.xpose.msra.mxu0 0.0
    %6321 = vmatprep.subr.mxu0 0.0
    %6322 = vmatpush1.xpose.msra.mxu0 0.0
    %6323 = vmatprep.subr.mxu0 0.0
    %6324 = vmatpush1.xpose.msra.mxu0 0.0
    %6325 = vmatprep.subr.mxu0 0.0
    %6326 = vmatpush1.xpose.msra.mxu0 0.0
    %6327 = vmatprep.subr.mxu0 0.0
    %6328 = vmatpush1.xpose.msra.mxu0 0.0
    %6329 = vmatprep.subr.mxu0 0.0
    %6330 = vmatpush1.xpose.msra.mxu0 0.0
    %6331 = vmatprep.subr.mxu0 0.0
    %6332 = vmatpush1.xpose.msra.mxu0 0.0
    %6333 = vmatprep.subr.mxu0 0.0
    %6334 = vmatpush1.xpose.msra.mxu0 0.0
    %6335 = vmatprep.subr.mxu0 0.0
    %6336 = vmatpush1.xpose.msra.mxu0 0.0
    %6337 = vmatprep.subr.mxu0 0.0
    %6338 = vmatpush1.xpose.msra.mxu0 0.0
    %6339 = vmatprep.subr.mxu0 0.0
    %6340 = vmatpush1.xpose.msra.mxu0 0.0
    %6341 = vmatprep.subr.mxu0 0.0
    %6342 = vmatpush1.xpose.msra.mxu0 0.0
    %6343 = vmatprep.subr.mxu0 0.0
    %6344 = vmatpush1.xpose.msra.mxu0 0.0
    %6345 = vmatprep.subr.mxu0 0.0
    %6346 = vmatpush1.xpose.msra.mxu0 0.0
    %6347 = vmatprep.subr.mxu0 0.0
    %6348 = vmatpush1.xpose.msra.mxu0 0.0
    %6349 = vmatprep.subr.mxu0 0.0
    %6350 = vmatpush1.xpose.msra.mxu0 0.0
    %6351 = vmatprep.subr.mxu0 0.0
    %6352 = vmatpush1.xpose.msra.mxu0 0.0
    %6353 = vmatprep.subr.mxu0 0.0
    %6354 = vmatpush1.xpose.msra.mxu0 0.0
    %6355 = vmatprep.subr.mxu0 0.0
    %6356 = vmatpush1.xpose.msra.mxu0 0.0
    %6357 = vmatprep.mubr.f32.mxu0 0.0
    %6358 = vmatmul.mubr.f32.gmra.mrb[0].mxu0 %v6288
    %v6359 = vpop.f32.mrb[0].mxu0
    %v6360 = vadd.f32 0.0, %v6359
    %v6361 = vpop.f32.mrb[0].mxu0
    %6362 = vdwg.mxu0
    %v6364 = vsel %vm2009, %v4528, 0
    %v6367 = vsel %vm2009, %v5184, 0
    %6369 = vmatprep.subr.mxu0 0.0
    %6370 = vmatpush1.xpose.msra.mxu0 %v6367
    %6371 = vmatprep.subr.mxu0 0.0
    %6372 = vmatpush1.xpose.msra.mxu0 0.0
    %6373 = vmatprep.subr.mxu0 0.0
    %6374 = vmatpush1.xpose.msra.mxu0 0.0
    %6375 = vmatprep.subr.mxu0 0.0
    %6376 = vmatpush1.xpose.msra.mxu0 0.0
    %6377 = vmatprep.subr.mxu0 0.0
    %6378 = vmatpush1.xpose.msra.mxu0 0.0
    %6379 = vmatprep.subr.mxu0 0.0
    %6380 = vmatpush1.xpose.msra.mxu0 0.0
    %6381 = vmatprep.subr.mxu0 0.0
    %6382 = vmatpush1.xpose.msra.mxu0 0.0
    %6383 = vmatprep.subr.mxu0 0.0
    %6384 = vmatpush1.xpose.msra.mxu0 0.0
    %6385 = vmatprep.subr.mxu0 0.0
    %6386 = vmatpush1.xpose.msra.mxu0 0.0
    %6387 = vmatprep.subr.mxu0 0.0
    %6388 = vmatpush1.xpose.msra.mxu0 0.0
    %6389 = vmatprep.subr.mxu0 0.0
    %6390 = vmatpush1.xpose.msra.mxu0 0.0
    %6391 = vmatprep.subr.mxu0 0.0
    %6392 = vmatpush1.xpose.msra.mxu0 0.0
    %6393 = vmatprep.subr.mxu0 0.0
    %6394 = vmatpush1.xpose.msra.mxu0 0.0
    %6395 = vmatprep.subr.mxu0 0.0
    %6396 = vmatpush1.xpose.msra.mxu0 0.0
    %6397 = vmatprep.subr.mxu0 0.0
    %6398 = vmatpush1.xpose.msra.mxu0 0.0
    %6399 = vmatprep.subr.mxu0 0.0
    %6400 = vmatpush1.xpose.msra.mxu0 0.0
    %6401 = vmatprep.subr.mxu0 0.0
    %6402 = vmatpush1.xpose.msra.mxu0 0.0
    %6403 = vmatprep.subr.mxu0 0.0
    %6404 = vmatpush1.xpose.msra.mxu0 0.0
    %6405 = vmatprep.subr.mxu0 0.0
    %6406 = vmatpush1.xpose.msra.mxu0 0.0
    %6407 = vmatprep.subr.mxu0 0.0
    %6408 = vmatpush1.xpose.msra.mxu0 0.0
    %6409 = vmatprep.subr.mxu0 0.0
    %6410 = vmatpush1.xpose.msra.mxu0 0.0
    %6411 = vmatprep.subr.mxu0 0.0
    %6412 = vmatpush1.xpose.msra.mxu0 0.0
    %6413 = vmatprep.subr.mxu0 0.0
    %6414 = vmatpush1.xpose.msra.mxu0 0.0
    %6415 = vmatprep.subr.mxu0 0.0
    %6416 = vmatpush1.xpose.msra.mxu0 0.0
    %6417 = vmatprep.subr.mxu0 0.0
    %6418 = vmatpush1.xpose.msra.mxu0 0.0
    %6419 = vmatprep.subr.mxu0 0.0
    %6420 = vmatpush1.xpose.msra.mxu0 0.0
    %6421 = vmatprep.subr.mxu0 0.0
    %6422 = vmatpush1.xpose.msra.mxu0 0.0
    %6423 = vmatprep.subr.mxu0 0.0
    %6424 = vmatpush1.xpose.msra.mxu0 0.0
    %6425 = vmatprep.subr.mxu0 0.0
    %6426 = vmatpush1.xpose.msra.mxu0 0.0
    %6427 = vmatprep.subr.mxu0 0.0
    %6428 = vmatpush1.xpose.msra.mxu0 0.0
    %6429 = vmatprep.subr.mxu0 0.0
    %6430 = vmatpush1.xpose.msra.mxu0 0.0
    %6431 = vmatprep.subr.mxu0 0.0
    %6432 = vmatpush1.xpose.msra.mxu0 0.0
    %6433 = vmatprep.mubr.f32.mxu0 0.0
    %6434 = vmatmul.mubr.f32.gmra.mrb[0].mxu0 %v6364
    %v6435 = vpop.f32.mrb[0].mxu0
    %v6436 = vadd.f32 0.0, %v6435
    %v6437 = vpop.f32.mrb[0].mxu0
    %6438 = vdwg.mxu0
    %v6440 = vsel %vm2009, %v4598, 0
    %v6443 = vsel %vm2009, %v5254, 0
    %6445 = vmatprep.subr.mxu0 0.0
    %6446 = vmatpush1.xpose.msra.mxu0 %v6443
    %6447 = vmatprep.subr.mxu0 0.0
    %6448 = vmatpush1.xpose.msra.mxu0 0.0
    %6449 = vmatprep.subr.mxu0 0.0
    %6450 = vmatpush1.xpose.msra.mxu0 0.0
    %6451 = vmatprep.subr.mxu0 0.0
    %6452 = vmatpush1.xpose.msra.mxu0 0.0
    %6453 = vmatprep.subr.mxu0 0.0
    %6454 = vmatpush1.xpose.msra.mxu0 0.0
    %6455 = vmatprep.subr.mxu0 0.0
    %6456 = vmatpush1.xpose.msra.mxu0 0.0
    %6457 = vmatprep.subr.mxu0 0.0
    %6458 = vmatpush1.xpose.msra.mxu0 0.0
    %6459 = vmatprep.subr.mxu0 0.0
    %6460 = vmatpush1.xpose.msra.mxu0 0.0
    %6461 = vmatprep.subr.mxu0 0.0
    %6462 = vmatpush1.xpose.msra.mxu0 0.0
    %6463 = vmatprep.subr.mxu0 0.0
    %6464 = vmatpush1.xpose.msra.mxu0 0.0
    %6465 = vmatprep.subr.mxu0 0.0
    %6466 = vmatpush1.xpose.msra.mxu0 0.0
    %6467 = vmatprep.subr.mxu0 0.0
    %6468 = vmatpush1.xpose.msra.mxu0 0.0
    %6469 = vmatprep.subr.mxu0 0.0
    %6470 = vmatpush1.xpose.msra.mxu0 0.0
    %6471 = vmatprep.subr.mxu0 0.0
    %6472 = vmatpush1.xpose.msra.mxu0 0.0
    %6473 = vmatprep.subr.mxu0 0.0
    %6474 = vmatpush1.xpose.msra.mxu0 0.0
    %6475 = vmatprep.subr.mxu0 0.0
    %6476 = vmatpush1.xpose.msra.mxu0 0.0
    %6477 = vmatprep.subr.mxu0 0.0
    %6478 = vmatpush1.xpose.msra.mxu0 0.0
    %6479 = vmatprep.subr.mxu0 0.0
    %6480 = vmatpush1.xpose.msra.mxu0 0.0
    %6481 = vmatprep.subr.mxu0 0.0
    %6482 = vmatpush1.xpose.msra.mxu0 0.0
    %6483 = vmatprep.subr.mxu0 0.0
    %6484 = vmatpush1.xpose.msra.mxu0 0.0
    %6485 = vmatprep.subr.mxu0 0.0
    %6486 = vmatpush1.xpose.msra.mxu0 0.0
    %6487 = vmatprep.subr.mxu0 0.0
    %6488 = vmatpush1.xpose.msra.mxu0 0.0
    %6489 = vmatprep.subr.mxu0 0.0
    %6490 = vmatpush1.xpose.msra.mxu0 0.0
    %6491 = vmatprep.subr.mxu0 0.0
    %6492 = vmatpush1.xpose.msra.mxu0 0.0
    %6493 = vmatprep.subr.mxu0 0.0
    %6494 = vmatpush1.xpose.msra.mxu0 0.0
    %6495 = vmatprep.subr.mxu0 0.0
    %6496 = vmatpush1.xpose.msra.mxu0 0.0
    %6497 = vmatprep.subr.mxu0 0.0
    %6498 = vmatpush1.xpose.msra.mxu0 0.0
    %6499 = vmatprep.subr.mxu0 0.0
    %6500 = vmatpush1.xpose.msra.mxu0 0.0
    %6501 = vmatprep.subr.mxu0 0.0
    %6502 = vmatpush1.xpose.msra.mxu0 0.0
    %6503 = vmatprep.subr.mxu0 0.0
    %6504 = vmatpush1.xpose.msra.mxu0 0.0
    %6505 = vmatprep.subr.mxu0 0.0
    %6506 = vmatpush1.xpose.msra.mxu0 0.0
    %6507 = vmatprep.subr.mxu0 0.0
    %6508 = vmatpush1.xpose.msra.mxu0 0.0
    %6509 = vmatprep.mubr.f32.mxu0 0.0
    %6510 = vmatmul.mubr.f32.gmra.mrb[0].mxu0 %v6440
    %v6511 = vpop.f32.mrb[0].mxu0
    %v6512 = vadd.f32 0.0, %v6511
    %v6513 = vpop.f32.mrb[0].mxu0
    %6514 = vdwg.mxu0
    %v6515 = vsel %vm2009, %v5980, -inf
    %6516 = vmax.xlane.f32.xlu0 %v6515
    %v6517 = vpop.xlane.xlu0 %6516
    %v6518 = vsel %vm2009, %v6056, -inf
    %6519 = vmax.xlane.f32.xlu0 %v6518
    %v6520 = vpop.xlane.xlu0 %6519
    %v6521 = vsel %vm2009, %v6132, -inf
    %6522 = vmax.xlane.f32.xlu0 %v6521
    %v6523 = vpop.xlane.xlu0 %6522
    %v6524 = vsel %vm2009, %v6208, -inf
    %6525 = vmax.xlane.f32.xlu0 %v6524
    %v6526 = vpop.xlane.xlu0 %6525
    %v6527 = vsel %vm2009, %v6284, -inf
    %6528 = vmax.xlane.f32.xlu0 %v6527
    %v6529 = vpop.xlane.xlu0 %6528
    %v6530 = vsel %vm2009, %v6360, -inf
    %6531 = vmax.xlane.f32.xlu0 %v6530
    %v6532 = vpop.xlane.xlu0 %6531
    %v6533 = vsel %vm2009, %v6436, -inf
    %6534 = vmax.xlane.f32.xlu0 %v6533
    %v6535 = vpop.xlane.xlu0 %6534
    %v6536 = vsel %vm2009, %v6512, -inf
    %6537 = vmax.xlane.f32.xlu0 %v6536
    %v6538 = vpop.xlane.xlu0 %6537
    %v6539 = vsub.f32 %v5980, %v6517
    %v6540 = vsub.f32 %v6056, %v6520
    %v6541 = vsub.f32 %v6132, %v6523
    %v6542 = vsub.f32 %v6208, %v6526
    %v6543 = vsub.f32 %v6284, %v6529
    %v6544 = vsub.f32 %v6360, %v6532
    %v6545 = vsub.f32 %v6436, %v6535
    %v6546 = vsub.f32 %v6512, %v6538
    %v6547 = vmul.f32 %v6539, 1.442695
    %v6548 = vpow.pop %v6547
    %v6549 = vmul.f32 %v6540, 1.442695
    %v6550 = vpow.pop %v6549
    %v6551 = vmul.f32 %v6541, 1.442695
    %v6552 = vpow.pop %v6551
    %v6553 = vmul.f32 %v6542, 1.442695
    %v6554 = vpow.pop %v6553
    %v6555 = vmul.f32 %v6543, 1.442695
    %v6556 = vpow.pop %v6555
    %v6557 = vmul.f32 %v6544, 1.442695
    %v6558 = vpow.pop %v6557
    %v6559 = vmul.f32 %v6545, 1.442695
    %v6560 = vpow.pop %v6559
    %v6561 = vmul.f32 %v6546, 1.442695
    %v6562 = vpow.pop %v6561
    %v6563 = vsel %vm2009, %v6548, 0.0
    %6564 = vadd.xlane.f32.xlu0 %v6563
    %v6565 = vpop.xlane.xlu0 %6564
    %v6566 = vsel %vm2009, %v6550, 0.0
    %6567 = vadd.xlane.f32.xlu0 %v6566
    %v6568 = vpop.xlane.xlu0 %6567
    %v6569 = vsel %vm2009, %v6552, 0.0
    %6570 = vadd.xlane.f32.xlu0 %v6569
    %v6571 = vpop.xlane.xlu0 %6570
    %v6572 = vsel %vm2009, %v6554, 0.0
    %6573 = vadd.xlane.f32.xlu0 %v6572
    %v6574 = vpop.xlane.xlu0 %6573
    %v6575 = vsel %vm2009, %v6556, 0.0
    %6576 = vadd.xlane.f32.xlu0 %v6575
    %v6577 = vpop.xlane.xlu0 %6576
    %v6578 = vsel %vm2009, %v6558, 0.0
    %6579 = vadd.xlane.f32.xlu0 %v6578
    %v6580 = vpop.xlane.xlu0 %6579
    %v6581 = vsel %vm2009, %v6560, 0.0
    %6582 = vadd.xlane.f32.xlu0 %v6581
    %v6583 = vpop.xlane.xlu0 %6582
    %v6584 = vsel %vm2009, %v6562, 0.0
    %6585 = vadd.xlane.f32.xlu0 %v6584
    %v6586 = vpop.xlane.xlu0 %6585
    %v6587 = vrcp.pop %v6565
    %v6588 = vrcp.pop %v6568
    %v6589 = vrcp.pop %v6571
    %v6590 = vrcp.pop %v6574
    %v6591 = vrcp.pop %v6577
    %v6592 = vrcp.pop %v6580
    %v6593 = vrcp.pop %v6583
    %v6594 = vrcp.pop %v6586
    %v6595 = vmul.f32 %v6548, %v6587
    %v6596 = vmul.f32 %v6550, %v6588
    %v6597 = vmul.f32 %v6552, %v6589
    %v6598 = vmul.f32 %v6554, %v6590
    %v6599 = vmul.f32 %v6556, %v6591
    %v6600 = vmul.f32 %v6558, %v6592
    %v6601 = vmul.f32 %v6560, %v6593
    %v6602 = vmul.f32 %v6562, %v6594
    %v6604 = vsel %vm2009, %v6595, 0
    %6606 = vmatprep.subr.mxu0 0.0
    %6607 = vmatpush1.msra.mxu0 %v5414
    %6608 = vmatprep.subr.mxu0 0.0
    %6609 = vmatpush1.msra.mxu0 0.0
    %6610 = vmatprep.subr.mxu0 0.0
    %6611 = vmatpush1.msra.mxu0 0.0
    %6612 = vmatprep.subr.mxu0 0.0
    %6613 = vmatpush1.msra.mxu0 0.0
    %6614 = vmatprep.subr.mxu0 0.0
    %6615 = vmatpush1.msra.mxu0 0.0
    %6616 = vmatprep.subr.mxu0 0.0
    %6617 = vmatpush1.msra.mxu0 0.0
    %6618 = vmatprep.subr.mxu0 0.0
    %6619 = vmatpush1.msra.mxu0 0.0
    %6620 = vmatprep.subr.mxu0 0.0
    %6621 = vmatpush1.msra.mxu0 0.0
    %6622 = vmatprep.subr.mxu0 0.0
    %6623 = vmatpush1.msra.mxu0 0.0
    %6624 = vmatprep.subr.mxu0 0.0
    %6625 = vmatpush1.msra.mxu0 0.0
    %6626 = vmatprep.subr.mxu0 0.0
    %6627 = vmatpush1.msra.mxu0 0.0
    %6628 = vmatprep.subr.mxu0 0.0
    %6629 = vmatpush1.msra.mxu0 0.0
    %6630 = vmatprep.subr.mxu0 0.0
    %6631 = vmatpush1.msra.mxu0 0.0
    %6632 = vmatprep.subr.mxu0 0.0
    %6633 = vmatpush1.msra.mxu0 0.0
    %6634 = vmatprep.subr.mxu0 0.0
    %6635 = vmatpush1.msra.mxu0 0.0
    %6636 = vmatprep.subr.mxu0 0.0
    %6637 = vmatpush1.msra.mxu0 0.0
    %6638 = vmatprep.subr.mxu0 0.0
    %6639 = vmatpush1.msra.mxu0 0.0
    %6640 = vmatprep.subr.mxu0 0.0
    %6641 = vmatpush1.msra.mxu0 0.0
    %6642 = vmatprep.subr.mxu0 0.0
    %6643 = vmatpush1.msra.mxu0 0.0
    %6644 = vmatprep.subr.mxu0 0.0
    %6645 = vmatpush1.msra.mxu0 0.0
    %6646 = vmatprep.subr.mxu0 0.0
    %6647 = vmatpush1.msra.mxu0 0.0
    %6648 = vmatprep.subr.mxu0 0.0
    %6649 = vmatpush1.msra.mxu0 0.0
    %6650 = vmatprep.subr.mxu0 0.0
    %6651 = vmatpush1.msra.mxu0 0.0
    %6652 = vmatprep.subr.mxu0 0.0
    %6653 = vmatpush1.msra.mxu0 0.0
    %6654 = vmatprep.subr.mxu0 0.0
    %6655 = vmatpush1.msra.mxu0 0.0
    %6656 = vmatprep.subr.mxu0 0.0
    %6657 = vmatpush1.msra.mxu0 0.0
    %6658 = vmatprep.subr.mxu0 0.0
    %6659 = vmatpush1.msra.mxu0 0.0
    %6660 = vmatprep.subr.mxu0 0.0
    %6661 = vmatpush1.msra.mxu0 0.0
    %6662 = vmatprep.subr.mxu0 0.0
    %6663 = vmatpush1.msra.mxu0 0.0
    %6664 = vmatprep.subr.mxu0 0.0
    %6665 = vmatpush1.msra.mxu0 0.0
    %6666 = vmatprep.subr.mxu0 0.0
    %6667 = vmatpush1.msra.mxu0 0.0
    %6668 = vmatprep.subr.mxu0 0.0
    %6669 = vmatpush1.msra.mxu0 0.0
    %6670 = vmatprep.mubr.f32.mxu0 0.0
    %6671 = vmatmul.mubr.f32.gmra.mrb[0].mxu0 %v6604
    %v6672 = vpop.f32.mrb[0].mxu0
    %v6673 = vadd.f32 0.0, %v6672
    %v6674 = vpop.f32.mrb[0].mxu0
    %6675 = vdwg.mxu0
    %v6677 = vsel %vm2009, %v6596, 0
    %6679 = vmatprep.subr.mxu0 0.0
    %6680 = vmatpush1.msra.mxu0 %v5484
    %6681 = vmatprep.subr.mxu0 0.0
    %6682 = vmatpush1.msra.mxu0 0.0
    %6683 = vmatprep.subr.mxu0 0.0
    %6684 = vmatpush1.msra.mxu0 0.0
    %6685 = vmatprep.subr.mxu0 0.0
    %6686 = vmatpush1.msra.mxu0 0.0
    %6687 = vmatprep.subr.mxu0 0.0
    %6688 = vmatpush1.msra.mxu0 0.0
    %6689 = vmatprep.subr.mxu0 0.0
    %6690 = vmatpush1.msra.mxu0 0.0
    %6691 = vmatprep.subr.mxu0 0.0
    %6692 = vmatpush1.msra.mxu0 0.0
    %6693 = vmatprep.subr.mxu0 0.0
    %6694 = vmatpush1.msra.mxu0 0.0
    %6695 = vmatprep.subr.mxu0 0.0
    %6696 = vmatpush1.msra.mxu0 0.0
    %6697 = vmatprep.subr.mxu0 0.0
    %6698 = vmatpush1.msra.mxu0 0.0
    %6699 = vmatprep.subr.mxu0 0.0
    %6700 = vmatpush1.msra.mxu0 0.0
    %6701 = vmatprep.subr.mxu0 0.0
    %6702 = vmatpush1.msra.mxu0 0.0
    %6703 = vmatprep.subr.mxu0 0.0
    %6704 = vmatpush1.msra.mxu0 0.0
    %6705 = vmatprep.subr.mxu0 0.0
    %6706 = vmatpush1.msra.mxu0 0.0
    %6707 = vmatprep.subr.mxu0 0.0
    %6708 = vmatpush1.msra.mxu0 0.0
    %6709 = vmatprep.subr.mxu0 0.0
    %6710 = vmatpush1.msra.mxu0 0.0
    %6711 = vmatprep.subr.mxu0 0.0
    %6712 = vmatpush1.msra.mxu0 0.0
    %6713 = vmatprep.subr.mxu0 0.0
    %6714 = vmatpush1.msra.mxu0 0.0
    %6715 = vmatprep.subr.mxu0 0.0
    %6716 = vmatpush1.msra.mxu0 0.0
    %6717 = vmatprep.subr.mxu0 0.0
    %6718 = vmatpush1.msra.mxu0 0.0
    %6719 = vmatprep.subr.mxu0 0.0
    %6720 = vmatpush1.msra.mxu0 0.0
    %6721 = vmatprep.subr.mxu0 0.0
    %6722 = vmatpush1.msra.mxu0 0.0
    %6723 = vmatprep.subr.mxu0 0.0
    %6724 = vmatpush1.msra.mxu0 0.0
    %6725 = vmatprep.subr.mxu0 0.0
    %6726 = vmatpush1.msra.mxu0 0.0
    %6727 = vmatprep.subr.mxu0 0.0
    %6728 = vmatpush1.msra.mxu0 0.0
    %6729 = vmatprep.subr.mxu0 0.0
    %6730 = vmatpush1.msra.mxu0 0.0
    %6731 = vmatprep.subr.mxu0 0.0
    %6732 = vmatpush1.msra.mxu0 0.0
    %6733 = vmatprep.subr.mxu0 0.0
    %6734 = vmatpush1.msra.mxu0 0.0
    %6735 = vmatprep.subr.mxu0 0.0
    %6736 = vmatpush1.msra.mxu0 0.0
    %6737 = vmatprep.subr.mxu0 0.0
    %6738 = vmatpush1.msra.mxu0 0.0
    %6739 = vmatprep.subr.mxu0 0.0
    %6740 = vmatpush1.msra.mxu0 0.0
    %6741 = vmatprep.subr.mxu0 0.0
    %6742 = vmatpush1.msra.mxu0 0.0
    %6743 = vmatprep.mubr.f32.mxu0 0.0
    %6744 = vmatmul.mubr.f32.gmra.mrb[0].mxu0 %v6677
    %v6745 = vpop.f32.mrb[0].mxu0
    %v6746 = vadd.f32 0.0, %v6745
    %v6747 = vpop.f32.mrb[0].mxu0
    %6748 = vdwg.mxu0
    %v6750 = vsel %vm2009, %v6597, 0
    %6752 = vmatprep.subr.mxu0 0.0
    %6753 = vmatpush1.msra.mxu0 %v5554
    %6754 = vmatprep.subr.mxu0 0.0
    %6755 = vmatpush1.msra.mxu0 0.0
    %6756 = vmatprep.subr.mxu0 0.0
    %6757 = vmatpush1.msra.mxu0 0.0
    %6758 = vmatprep.subr.mxu0 0.0
    %6759 = vmatpush1.msra.mxu0 0.0
    %6760 = vmatprep.subr.mxu0 0.0
    %6761 = vmatpush1.msra.mxu0 0.0
    %6762 = vmatprep.subr.mxu0 0.0
    %6763 = vmatpush1.msra.mxu0 0.0
    %6764 = vmatprep.subr.mxu0 0.0
    %6765 = vmatpush1.msra.mxu0 0.0
    %6766 = vmatprep.subr.mxu0 0.0
    %6767 = vmatpush1.msra.mxu0 0.0
    %6768 = vmatprep.subr.mxu0 0.0
    %6769 = vmatpush1.msra.mxu0 0.0
    %6770 = vmatprep.subr.mxu0 0.0
    %6771 = vmatpush1.msra.mxu0 0.0
    %6772 = vmatprep.subr.mxu0 0.0
    %6773 = vmatpush1.msra.mxu0 0.0
    %6774 = vmatprep.subr.mxu0 0.0
    %6775 = vmatpush1.msra.mxu0 0.0
    %6776 = vmatprep.subr.mxu0 0.0
    %6777 = vmatpush1.msra.mxu0 0.0
    %6778 = vmatprep.subr.mxu0 0.0
    %6779 = vmatpush1.msra.mxu0 0.0
    %6780 = vmatprep.subr.mxu0 0.0
    %6781 = vmatpush1.msra.mxu0 0.0
    %6782 = vmatprep.subr.mxu0 0.0
    %6783 = vmatpush1.msra.mxu0 0.0
    %6784 = vmatprep.subr.mxu0 0.0
    %6785 = vmatpush1.msra.mxu0 0.0
    %6786 = vmatprep.subr.mxu0 0.0
    %6787 = vmatpush1.msra.mxu0 0.0
    %6788 = vmatprep.subr.mxu0 0.0
    %6789 = vmatpush1.msra.mxu0 0.0
    %6790 = vmatprep.subr.mxu0 0.0
    %6791 = vmatpush1.msra.mxu0 0.0
    %6792 = vmatprep.subr.mxu0 0.0
    %6793 = vmatpush1.msra.mxu0 0.0
    %6794 = vmatprep.subr.mxu0 0.0
    %6795 = vmatpush1.msra.mxu0 0.0
    %6796 = vmatprep.subr.mxu0 0.0
    %6797 = vmatpush1.msra.mxu0 0.0
    %6798 = vmatprep.subr.mxu0 0.0
    %6799 = vmatpush1.msra.mxu0 0.0
    %6800 = vmatprep.subr.mxu0 0.0
    %6801 = vmatpush1.msra.mxu0 0.0
    %6802 = vmatprep.subr.mxu0 0.0
    %6803 = vmatpush1.msra.mxu0 0.0
    %6804 = vmatprep.subr.mxu0 0.0
    %6805 = vmatpush1.msra.mxu0 0.0
    %6806 = vmatprep.subr.mxu0 0.0
    %6807 = vmatpush1.msra.mxu0 0.0
    %6808 = vmatprep.subr.mxu0 0.0
    %6809 = vmatpush1.msra.mxu0 0.0
    %6810 = vmatprep.subr.mxu0 0.0
    %6811 = vmatpush1.msra.mxu0 0.0
    %6812 = vmatprep.subr.mxu0 0.0
    %6813 = vmatpush1.msra.mxu0 0.0
    %6814 = vmatprep.subr.mxu0 0.0
    %6815 = vmatpush1.msra.mxu0 0.0
    %6816 = vmatprep.mubr.f32.mxu0 0.0
    %6817 = vmatmul.mubr.f32.gmra.mrb[0].mxu0 %v6750
    %v6818 = vpop.f32.mrb[0].mxu0
    %v6819 = vadd.f32 0.0, %v6818
    %v6820 = vpop.f32.mrb[0].mxu0
    %6821 = vdwg.mxu0
    %v6823 = vsel %vm2009, %v6598, 0
    %6825 = vmatprep.subr.mxu0 0.0
    %6826 = vmatpush1.msra.mxu0 %v5624
    %6827 = vmatprep.subr.mxu0 0.0
    %6828 = vmatpush1.msra.mxu0 0.0
    %6829 = vmatprep.subr.mxu0 0.0
    %6830 = vmatpush1.msra.mxu0 0.0
    %6831 = vmatprep.subr.mxu0 0.0
    %6832 = vmatpush1.msra.mxu0 0.0
    %6833 = vmatprep.subr.mxu0 0.0
    %6834 = vmatpush1.msra.mxu0 0.0
    %6835 = vmatprep.subr.mxu0 0.0
    %6836 = vmatpush1.msra.mxu0 0.0
    %6837 = vmatprep.subr.mxu0 0.0
    %6838 = vmatpush1.msra.mxu0 0.0
    %6839 = vmatprep.subr.mxu0 0.0
    %6840 = vmatpush1.msra.mxu0 0.0
    %6841 = vmatprep.subr.mxu0 0.0
    %6842 = vmatpush1.msra.mxu0 0.0
    %6843 = vmatprep.subr.mxu0 0.0
    %6844 = vmatpush1.msra.mxu0 0.0
    %6845 = vmatprep.subr.mxu0 0.0
    %6846 = vmatpush1.msra.mxu0 0.0
    %6847 = vmatprep.subr.mxu0 0.0
    %6848 = vmatpush1.msra.mxu0 0.0
    %6849 = vmatprep.subr.mxu0 0.0
    %6850 = vmatpush1.msra.mxu0 0.0
    %6851 = vmatprep.subr.mxu0 0.0
    %6852 = vmatpush1.msra.mxu0 0.0
    %6853 = vmatprep.subr.mxu0 0.0
    %6854 = vmatpush1.msra.mxu0 0.0
    %6855 = vmatprep.subr.mxu0 0.0
    %6856 = vmatpush1.msra.mxu0 0.0
    %6857 = vmatprep.subr.mxu0 0.0
    %6858 = vmatpush1.msra.mxu0 0.0
    %6859 = vmatprep.subr.mxu0 0.0
    %6860 = vmatpush1.msra.mxu0 0.0
    %6861 = vmatprep.subr.mxu0 0.0
    %6862 = vmatpush1.msra.mxu0 0.0
    %6863 = vmatprep.subr.mxu0 0.0
    %6864 = vmatpush1.msra.mxu0 0.0
    %6865 = vmatprep.subr.mxu0 0.0
    %6866 = vmatpush1.msra.mxu0 0.0
    %6867 = vmatprep.subr.mxu0 0.0
    %6868 = vmatpush1.msra.mxu0 0.0
    %6869 = vmatprep.subr.mxu0 0.0
    %6870 = vmatpush1.msra.mxu0 0.0
    %6871 = vmatprep.subr.mxu0 0.0
    %6872 = vmatpush1.msra.mxu0 0.0
    %6873 = vmatprep.subr.mxu0 0.0
    %6874 = vmatpush1.msra.mxu0 0.0
    %6875 = vmatprep.subr.mxu0 0.0
    %6876 = vmatpush1.msra.mxu0 0.0
    %6877 = vmatprep.subr.mxu0 0.0
    %6878 = vmatpush1.msra.mxu0 0.0
    %6879 = vmatprep.subr.mxu0 0.0
    %6880 = vmatpush1.msra.mxu0 0.0
    %6881 = vmatprep.subr.mxu0 0.0
    %6882 = vmatpush1.msra.mxu0 0.0
    %6883 = vmatprep.subr.mxu0 0.0
    %6884 = vmatpush1.msra.mxu0 0.0
    %6885 = vmatprep.subr.mxu0 0.0
    %6886 = vmatpush1.msra.mxu0 0.0
    %6887 = vmatprep.subr.mxu0 0.0
    %6888 = vmatpush1.msra.mxu0 0.0
    %6889 = vmatprep.mubr.f32.mxu0 0.0
    %6890 = vmatmul.mubr.f32.gmra.mrb[0].mxu0 %v6823
    %v6891 = vpop.f32.mrb[0].mxu0
    %v6892 = vadd.f32 0.0, %v6891
    %v6893 = vpop.f32.mrb[0].mxu0
    %6894 = vdwg.mxu0
    %v6896 = vsel %vm2009, %v6599, 0
    %6898 = vmatprep.subr.mxu0 0.0
    %6899 = vmatpush1.msra.mxu0 %v5694
    %6900 = vmatprep.subr.mxu0 0.0
    %6901 = vmatpush1.msra.mxu0 0.0
    %6902 = vmatprep.subr.mxu0 0.0
    %6903 = vmatpush1.msra.mxu0 0.0
    %6904 = vmatprep.subr.mxu0 0.0
    %6905 = vmatpush1.msra.mxu0 0.0
    %6906 = vmatprep.subr.mxu0 0.0
    %6907 = vmatpush1.msra.mxu0 0.0
    %6908 = vmatprep.subr.mxu0 0.0
    %6909 = vmatpush1.msra.mxu0 0.0
    %6910 = vmatprep.subr.mxu0 0.0
    %6911 = vmatpush1.msra.mxu0 0.0
    %6912 = vmatprep.subr.mxu0 0.0
    %6913 = vmatpush1.msra.mxu0 0.0
    %6914 = vmatprep.subr.mxu0 0.0
    %6915 = vmatpush1.msra.mxu0 0.0
    %6916 = vmatprep.subr.mxu0 0.0
    %6917 = vmatpush1.msra.mxu0 0.0
    %6918 = vmatprep.subr.mxu0 0.0
    %6919 = vmatpush1.msra.mxu0 0.0
    %6920 = vmatprep.subr.mxu0 0.0
    %6921 = vmatpush1.msra.mxu0 0.0
    %6922 = vmatprep.subr.mxu0 0.0
    %6923 = vmatpush1.msra.mxu0 0.0
    %6924 = vmatprep.subr.mxu0 0.0
    %6925 = vmatpush1.msra.mxu0 0.0
    %6926 = vmatprep.subr.mxu0 0.0
    %6927 = vmatpush1.msra.mxu0 0.0
    %6928 = vmatprep.subr.mxu0 0.0
    %6929 = vmatpush1.msra.mxu0 0.0
    %6930 = vmatprep.subr.mxu0 0.0
    %6931 = vmatpush1.msra.mxu0 0.0
    %6932 = vmatprep.subr.mxu0 0.0
    %6933 = vmatpush1.msra.mxu0 0.0
    %6934 = vmatprep.subr.mxu0 0.0
    %6935 = vmatpush1.msra.mxu0 0.0
    %6936 = vmatprep.subr.mxu0 0.0
    %6937 = vmatpush1.msra.mxu0 0.0
    %6938 = vmatprep.subr.mxu0 0.0
    %6939 = vmatpush1.msra.mxu0 0.0
    %6940 = vmatprep.subr.mxu0 0.0
    %6941 = vmatpush1.msra.mxu0 0.0
    %6942 = vmatprep.subr.mxu0 0.0
    %6943 = vmatpush1.msra.mxu0 0.0
    %6944 = vmatprep.subr.mxu0 0.0
    %6945 = vmatpush1.msra.mxu0 0.0
    %6946 = vmatprep.subr.mxu0 0.0
    %6947 = vmatpush1.msra.mxu0 0.0
    %6948 = vmatprep.subr.mxu0 0.0
    %6949 = vmatpush1.msra.mxu0 0.0
    %6950 = vmatprep.subr.mxu0 0.0
    %6951 = vmatpush1.msra.mxu0 0.0
    %6952 = vmatprep.subr.mxu0 0.0
    %6953 = vmatpush1.msra.mxu0 0.0
    %6954 = vmatprep.subr.mxu0 0.0
    %6955 = vmatpush1.msra.mxu0 0.0
    %6956 = vmatprep.subr.mxu0 0.0
    %6957 = vmatpush1.msra.mxu0 0.0
    %6958 = vmatprep.subr.mxu0 0.0
    %6959 = vmatpush1.msra.mxu0 0.0
    %6960 = vmatprep.subr.mxu0 0.0
    %6961 = vmatpush1.msra.mxu0 0.0
    %6962 = vmatprep.mubr.f32.mxu0 0.0
    %6963 = vmatmul.mubr.f32.gmra.mrb[0].mxu0 %v6896
    %v6964 = vpop.f32.mrb[0].mxu0
    %v6965 = vadd.f32 0.0, %v6964
    %v6966 = vpop.f32.mrb[0].mxu0
    %6967 = vdwg.mxu0
    %v6969 = vsel %vm2009, %v6600, 0
    %6971 = vmatprep.subr.mxu0 0.0
    %6972 = vmatpush1.msra.mxu0 %v5764
    %6973 = vmatprep.subr.mxu0 0.0
    %6974 = vmatpush1.msra.mxu0 0.0
    %6975 = vmatprep.subr.mxu0 0.0
    %6976 = vmatpush1.msra.mxu0 0.0
    %6977 = vmatprep.subr.mxu0 0.0
    %6978 = vmatpush1.msra.mxu0 0.0
    %6979 = vmatprep.subr.mxu0 0.0
    %6980 = vmatpush1.msra.mxu0 0.0
    %6981 = vmatprep.subr.mxu0 0.0
    %6982 = vmatpush1.msra.mxu0 0.0
    %6983 = vmatprep.subr.mxu0 0.0
    %6984 = vmatpush1.msra.mxu0 0.0
    %6985 = vmatprep.subr.mxu0 0.0
    %6986 = vmatpush1.msra.mxu0 0.0
    %6987 = vmatprep.subr.mxu0 0.0
    %6988 = vmatpush1.msra.mxu0 0.0
    %6989 = vmatprep.subr.mxu0 0.0
    %6990 = vmatpush1.msra.mxu0 0.0
    %6991 = vmatprep.subr.mxu0 0.0
    %6992 = vmatpush1.msra.mxu0 0.0
    %6993 = vmatprep.subr.mxu0 0.0
    %6994 = vmatpush1.msra.mxu0 0.0
    %6995 = vmatprep.subr.mxu0 0.0
    %6996 = vmatpush1.msra.mxu0 0.0
    %6997 = vmatprep.subr.mxu0 0.0
    %6998 = vmatpush1.msra.mxu0 0.0
    %6999 = vmatprep.subr.mxu0 0.0
    %7000 = vmatpush1.msra.mxu0 0.0
    %7001 = vmatprep.subr.mxu0 0.0
    %7002 = vmatpush1.msra.mxu0 0.0
    %7003 = vmatprep.subr.mxu0 0.0
    %7004 = vmatpush1.msra.mxu0 0.0
    %7005 = vmatprep.subr.mxu0 0.0
    %7006 = vmatpush1.msra.mxu0 0.0
    %7007 = vmatprep.subr.mxu0 0.0
    %7008 = vmatpush1.msra.mxu0 0.0
    %7009 = vmatprep.subr.mxu0 0.0
    %7010 = vmatpush1.msra.mxu0 0.0
    %7011 = vmatprep.subr.mxu0 0.0
    %7012 = vmatpush1.msra.mxu0 0.0
    %7013 = vmatprep.subr.mxu0 0.0
    %7014 = vmatpush1.msra.mxu0 0.0
    %7015 = vmatprep.subr.mxu0 0.0
    %7016 = vmatpush1.msra.mxu0 0.0
    %7017 = vmatprep.subr.mxu0 0.0
    %7018 = vmatpush1.msra.mxu0 0.0
    %7019 = vmatprep.subr.mxu0 0.0
    %7020 = vmatpush1.msra.mxu0 0.0
    %7021 = vmatprep.subr.mxu0 0.0
    %7022 = vmatpush1.msra.mxu0 0.0
    %7023 = vmatprep.subr.mxu0 0.0
    %7024 = vmatpush1.msra.mxu0 0.0
    %7025 = vmatprep.subr.mxu0 0.0
    %7026 = vmatpush1.msra.mxu0 0.0
    %7027 = vmatprep.subr.mxu0 0.0
    %7028 = vmatpush1.msra.mxu0 0.0
    %7029 = vmatprep.subr.mxu0 0.0
    %7030 = vmatpush1.msra.mxu0 0.0
    %7031 = vmatprep.subr.mxu0 0.0
    %7032 = vmatpush1.msra.mxu0 0.0
    %7033 = vmatprep.subr.mxu0 0.0
    %7034 = vmatpush1.msra.mxu0 0.0
    %7035 = vmatprep.mubr.f32.mxu0 0.0
    %7036 = vmatmul.mubr.f32.gmra.mrb[0].mxu0 %v6969
    %v7037 = vpop.f32.mrb[0].mxu0
    %v7038 = vadd.f32 0.0, %v7037
    %v7039 = vpop.f32.mrb[0].mxu0
    %7040 = vdwg.mxu0
    %v7042 = vsel %vm2009, %v6601, 0
    %7044 = vmatprep.subr.mxu0 0.0
    %7045 = vmatpush1.msra.mxu0 %v5834
    %7046 = vmatprep.subr.mxu0 0.0
    %7047 = vmatpush1.msra.mxu0 0.0
    %7048 = vmatprep.subr.mxu0 0.0
    %7049 = vmatpush1.msra.mxu0 0.0
    %7050 = vmatprep.subr.mxu0 0.0
    %7051 = vmatpush1.msra.mxu0 0.0
    %7052 = vmatprep.subr.mxu0 0.0
    %7053 = vmatpush1.msra.mxu0 0.0
    %7054 = vmatprep.subr.mxu0 0.0
    %7055 = vmatpush1.msra.mxu0 0.0
    %7056 = vmatprep.subr.mxu0 0.0
    %7057 = vmatpush1.msra.mxu0 0.0
    %7058 = vmatprep.subr.mxu0 0.0
    %7059 = vmatpush1.msra.mxu0 0.0
    %7060 = vmatprep.subr.mxu0 0.0
    %7061 = vmatpush1.msra.mxu0 0.0
    %7062 = vmatprep.subr.mxu0 0.0
    %7063 = vmatpush1.msra.mxu0 0.0
    %7064 = vmatprep.subr.mxu0 0.0
    %7065 = vmatpush1.msra.mxu0 0.0
    %7066 = vmatprep.subr.mxu0 0.0
    %7067 = vmatpush1.msra.mxu0 0.0
    %7068 = vmatprep.subr.mxu0 0.0
    %7069 = vmatpush1.msra.mxu0 0.0
    %7070 = vmatprep.subr.mxu0 0.0
    %7071 = vmatpush1.msra.mxu0 0.0
    %7072 = vmatprep.subr.mxu0 0.0
    %7073 = vmatpush1.msra.mxu0 0.0
    %7074 = vmatprep.subr.mxu0 0.0
    %7075 = vmatpush1.msra.mxu0 0.0
    %7076 = vmatprep.subr.mxu0 0.0
    %7077 = vmatpush1.msra.mxu0 0.0
    %7078 = vmatprep.subr.mxu0 0.0
    %7079 = vmatpush1.msra.mxu0 0.0
    %7080 = vmatprep.subr.mxu0 0.0
    %7081 = vmatpush1.msra.mxu0 0.0
    %7082 = vmatprep.subr.mxu0 0.0
    %7083 = vmatpush1.msra.mxu0 0.0
    %7084 = vmatprep.subr.mxu0 0.0
    %7085 = vmatpush1.msra.mxu0 0.0
    %7086 = vmatprep.subr.mxu0 0.0
    %7087 = vmatpush1.msra.mxu0 0.0
    %7088 = vmatprep.subr.mxu0 0.0
    %7089 = vmatpush1.msra.mxu0 0.0
    %7090 = vmatprep.subr.mxu0 0.0
    %7091 = vmatpush1.msra.mxu0 0.0
    %7092 = vmatprep.subr.mxu0 0.0
    %7093 = vmatpush1.msra.mxu0 0.0
    %7094 = vmatprep.subr.mxu0 0.0
    %7095 = vmatpush1.msra.mxu0 0.0
    %7096 = vmatprep.subr.mxu0 0.0
    %7097 = vmatpush1.msra.mxu0 0.0
    %7098 = vmatprep.subr.mxu0 0.0
    %7099 = vmatpush1.msra.mxu0 0.0
    %7100 = vmatprep.subr.mxu0 0.0
    %7101 = vmatpush1.msra.mxu0 0.0
    %7102 = vmatprep.subr.mxu0 0.0
    %7103 = vmatpush1.msra.mxu0 0.0
    %7104 = vmatprep.subr.mxu0 0.0
    %7105 = vmatpush1.msra.mxu0 0.0
    %7106 = vmatprep.subr.mxu0 0.0
    %7107 = vmatpush1.msra.mxu0 0.0
    %7108 = vmatprep.mubr.f32.mxu0 0.0
    %7109 = vmatmul.mubr.f32.gmra.mrb[0].mxu0 %v7042
    %v7110 = vpop.f32.mrb[0].mxu0
    %v7111 = vadd.f32 0.0, %v7110
    %v7112 = vpop.f32.mrb[0].mxu0
    %7113 = vdwg.mxu0
    %v7115 = vsel %vm2009, %v6602, 0
    %7117 = vmatprep.subr.mxu0 0.0
    %7118 = vmatpush1.msra.mxu0 %v5904
    %7119 = vmatprep.subr.mxu0 0.0
    %7120 = vmatpush1.msra.mxu0 0.0
    %7121 = vmatprep.subr.mxu0 0.0
    %7122 = vmatpush1.msra.mxu0 0.0
    %7123 = vmatprep.subr.mxu0 0.0
    %7124 = vmatpush1.msra.mxu0 0.0
    %7125 = vmatprep.subr.mxu0 0.0
    %7126 = vmatpush1.msra.mxu0 0.0
    %7127 = vmatprep.subr.mxu0 0.0
    %7128 = vmatpush1.msra.mxu0 0.0
    %7129 = vmatprep.subr.mxu0 0.0
    %7130 = vmatpush1.msra.mxu0 0.0
    %7131 = vmatprep.subr.mxu0 0.0
    %7132 = vmatpush1.msra.mxu0 0.0
    %7133 = vmatprep.subr.mxu0 0.0
    %7134 = vmatpush1.msra.mxu0 0.0
    %7135 = vmatprep.subr.mxu0 0.0
    %7136 = vmatpush1.msra.mxu0 0.0
    %7137 = vmatprep.subr.mxu0 0.0
    %7138 = vmatpush1.msra.mxu0 0.0
    %7139 = vmatprep.subr.mxu0 0.0
    %7140 = vmatpush1.msra.mxu0 0.0
    %7141 = vmatprep.subr.mxu0 0.0
    %7142 = vmatpush1.msra.mxu0 0.0
    %7143 = vmatprep.subr.mxu0 0.0
    %7144 = vmatpush1.msra.mxu0 0.0
    %7145 = vmatprep.subr.mxu0 0.0
    %7146 = vmatpush1.msra.mxu0 0.0
    %7147 = vmatprep.subr.mxu0 0.0
    %7148 = vmatpush1.msra.mxu0 0.0
    %7149 = vmatprep.subr.mxu0 0.0
    %7150 = vmatpush1.msra.mxu0 0.0
    %7151 = vmatprep.subr.mxu0 0.0
    %7152 = vmatpush1.msra.mxu0 0.0
    %7153 = vmatprep.subr.mxu0 0.0
    %7154 = vmatpush1.msra.mxu0 0.0
    %7155 = vmatprep.subr.mxu0 0.0
    %7156 = vmatpush1.msra.mxu0 0.0
    %7157 = vmatprep.subr.mxu0 0.0
    %7158 = vmatpush1.msra.mxu0 0.0
    %7159 = vmatprep.subr.mxu0 0.0
    %7160 = vmatpush1.msra.mxu0 0.0
    %7161 = vmatprep.subr.mxu0 0.0
    %7162 = vmatpush1.msra.mxu0 0.0
    %7163 = vmatprep.subr.mxu0 0.0
    %7164 = vmatpush1.msra.mxu0 0.0
    %7165 = vmatprep.subr.mxu0 0.0
    %7166 = vmatpush1.msra.mxu0 0.0
    %7167 = vmatprep.subr.mxu0 0.0
    %7168 = vmatpush1.msra.mxu0 0.0
    %7169 = vmatprep.subr.mxu0 0.0
    %7170 = vmatpush1.msra.mxu0 0.0
    %7171 = vmatprep.subr.mxu0 0.0
    %7172 = vmatpush1.msra.mxu0 0.0
    %7173 = vmatprep.subr.mxu0 0.0
    %7174 = vmatpush1.msra.mxu0 0.0
    %7175 = vmatprep.subr.mxu0 0.0
    %7176 = vmatpush1.msra.mxu0 0.0
    %7177 = vmatprep.subr.mxu0 0.0
    %7178 = vmatpush1.msra.mxu0 0.0
    %7179 = vmatprep.subr.mxu0 0.0
    %7180 = vmatpush1.msra.mxu0 0.0
    %7181 = vmatprep.mubr.f32.mxu0 0.0
    %7182 = vmatmul.mubr.f32.gmra.mrb[0].mxu0 %v7115
    %v7183 = vpop.f32.mrb[0].mxu0
    %v7184 = vadd.f32 0.0, %v7183
    %v7185 = vpop.f32.mrb[0].mxu0
    %7186 = vdwg.mxu0
    %s7187 = scalar_lea.vmem %s5, 64
    %v7188 = vld [vmem:[%s7187] sm:$0xff]
    %v7189 = vld [vmem:[%s7187 + $0x8] sm:$0xff]
    %v7190 = vld [vmem:[%s7187 + $0x10] sm:$0xff]
    %v7191 = vld [vmem:[%s7187 + $0x18] sm:$0xff]
    %v7192 = vld [vmem:[%s7187 + $0x20] sm:$0xff]
    %v7193 = vld [vmem:[%s7187 + $0x28] sm:$0xff]
    %v7194 = vld [vmem:[%s7187 + $0x30] sm:$0xff]
    %v7195 = vld [vmem:[%s7187 + $0x38] sm:$0xff]
    %v7197 = vsel %vm2009, %v6673, 0
    %7199 = vmatprep.subr.mxu0 0.0
    %7200 = vmatpush1.msra.mxu0 %v7188
    %7201 = vmatprep.subr.mxu0 0.0
    %7202 = vmatpush1.msra.mxu0 0.0
    %7203 = vmatprep.subr.mxu0 0.0
    %7204 = vmatpush1.msra.mxu0 0.0
    %7205 = vmatprep.subr.mxu0 0.0
    %7206 = vmatpush1.msra.mxu0 0.0
    %7207 = vmatprep.subr.mxu0 0.0
    %7208 = vmatpush1.msra.mxu0 0.0
    %7209 = vmatprep.subr.mxu0 0.0
    %7210 = vmatpush1.msra.mxu0 0.0
    %7211 = vmatprep.subr.mxu0 0.0
    %7212 = vmatpush1.msra.mxu0 0.0
    %7213 = vmatprep.subr.mxu0 0.0
    %7214 = vmatpush1.msra.mxu0 0.0
    %7215 = vmatprep.subr.mxu0 0.0
    %7216 = vmatpush1.msra.mxu0 0.0
    %7217 = vmatprep.subr.mxu0 0.0
    %7218 = vmatpush1.msra.mxu0 0.0
    %7219 = vmatprep.subr.mxu0 0.0
    %7220 = vmatpush1.msra.mxu0 0.0
    %7221 = vmatprep.subr.mxu0 0.0
    %7222 = vmatpush1.msra.mxu0 0.0
    %7223 = vmatprep.subr.mxu0 0.0
    %7224 = vmatpush1.msra.mxu0 0.0
    %7225 = vmatprep.subr.mxu0 0.0
    %7226 = vmatpush1.msra.mxu0 0.0
    %7227 = vmatprep.subr.mxu0 0.0
    %7228 = vmatpush1.msra.mxu0 0.0
    %7229 = vmatprep.subr.mxu0 0.0
    %7230 = vmatpush1.msra.mxu0 0.0
    %7231 = vmatprep.subr.mxu0 0.0
    %7232 = vmatpush1.msra.mxu0 0.0
    %7233 = vmatprep.subr.mxu0 0.0
    %7234 = vmatpush1.msra.mxu0 0.0
    %7235 = vmatprep.subr.mxu0 0.0
    %7236 = vmatpush1.msra.mxu0 0.0
    %7237 = vmatprep.subr.mxu0 0.0
    %7238 = vmatpush1.msra.mxu0 0.0
    %7239 = vmatprep.subr.mxu0 0.0
    %7240 = vmatpush1.msra.mxu0 0.0
    %7241 = vmatprep.subr.mxu0 0.0
    %7242 = vmatpush1.msra.mxu0 0.0
    %7243 = vmatprep.subr.mxu0 0.0
    %7244 = vmatpush1.msra.mxu0 0.0
    %7245 = vmatprep.subr.mxu0 0.0
    %7246 = vmatpush1.msra.mxu0 0.0
    %7247 = vmatprep.subr.mxu0 0.0
    %7248 = vmatpush1.msra.mxu0 0.0
    %7249 = vmatprep.subr.mxu0 0.0
    %7250 = vmatpush1.msra.mxu0 0.0
    %7251 = vmatprep.subr.mxu0 0.0
    %7252 = vmatpush1.msra.mxu0 0.0
    %7253 = vmatprep.subr.mxu0 0.0
    %7254 = vmatpush1.msra.mxu0 0.0
    %7255 = vmatprep.subr.mxu0 0.0
    %7256 = vmatpush1.msra.mxu0 0.0
    %7257 = vmatprep.subr.mxu0 0.0
    %7258 = vmatpush1.msra.mxu0 0.0
    %7259 = vmatprep.subr.mxu0 0.0
    %7260 = vmatpush1.msra.mxu0 0.0
    %7261 = vmatprep.subr.mxu0 0.0
    %7262 = vmatpush1.msra.mxu0 0.0
    %7263 = vmatprep.mubr.f32.mxu0 0.0
    %7264 = vmatmul.mubr.f32.gmra.mrb[0].mxu0 %v7197
    %v7265 = vpop.f32.mrb[0].mxu0
    %v7266 = vadd.f32 0.0, %v7265
    %v7267 = vpop.f32.mrb[0].mxu0
    %7268 = vdwg.mxu0
    %v7270 = vsel %vm2009, %v6746, 0
    %7272 = vmatprep.subr.mxu0 0.0
    %7273 = vmatpush1.msra.mxu0 %v7189
    %7274 = vmatprep.subr.mxu0 0.0
    %7275 = vmatpush1.msra.mxu0 0.0
    %7276 = vmatprep.subr.mxu0 0.0
    %7277 = vmatpush1.msra.mxu0 0.0
    %7278 = vmatprep.subr.mxu0 0.0
    %7279 = vmatpush1.msra.mxu0 0.0
    %7280 = vmatprep.subr.mxu0 0.0
    %7281 = vmatpush1.msra.mxu0 0.0
    %7282 = vmatprep.subr.mxu0 0.0
    %7283 = vmatpush1.msra.mxu0 0.0
    %7284 = vmatprep.subr.mxu0 0.0
    %7285 = vmatpush1.msra.mxu0 0.0
    %7286 = vmatprep.subr.mxu0 0.0
    %7287 = vmatpush1.msra.mxu0 0.0
    %7288 = vmatprep.subr.mxu0 0.0
    %7289 = vmatpush1.msra.mxu0 0.0
    %7290 = vmatprep.subr.mxu0 0.0
    %7291 = vmatpush1.msra.mxu0 0.0
    %7292 = vmatprep.subr.mxu0 0.0
    %7293 = vmatpush1.msra.mxu0 0.0
    %7294 = vmatprep.subr.mxu0 0.0
    %7295 = vmatpush1.msra.mxu0 0.0
    %7296 = vmatprep.subr.mxu0 0.0
    %7297 = vmatpush1.msra.mxu0 0.0
    %7298 = vmatprep.subr.mxu0 0.0
    %7299 = vmatpush1.msra.mxu0 0.0
    %7300 = vmatprep.subr.mxu0 0.0
    %7301 = vmatpush1.msra.mxu0 0.0
    %7302 = vmatprep.subr.mxu0 0.0
    %7303 = vmatpush1.msra.mxu0 0.0
    %7304 = vmatprep.subr.mxu0 0.0
    %7305 = vmatpush1.msra.mxu0 0.0
    %7306 = vmatprep.subr.mxu0 0.0
    %7307 = vmatpush1.msra.mxu0 0.0
    %7308 = vmatprep.subr.mxu0 0.0
    %7309 = vmatpush1.msra.mxu0 0.0
    %7310 = vmatprep.subr.mxu0 0.0
    %7311 = vmatpush1.msra.mxu0 0.0
    %7312 = vmatprep.subr.mxu0 0.0
    %7313 = vmatpush1.msra.mxu0 0.0
    %7314 = vmatprep.subr.mxu0 0.0
    %7315 = vmatpush1.msra.mxu0 0.0
    %7316 = vmatprep.subr.mxu0 0.0
    %7317 = vmatpush1.msra.mxu0 0.0
    %7318 = vmatprep.subr.mxu0 0.0
    %7319 = vmatpush1.msra.mxu0 0.0
    %7320 = vmatprep.subr.mxu0 0.0
    %7321 = vmatpush1.msra.mxu0 0.0
    %7322 = vmatprep.subr.mxu0 0.0
    %7323 = vmatpush1.msra.mxu0 0.0
    %7324 = vmatprep.subr.mxu0 0.0
    %7325 = vmatpush1.msra.mxu0 0.0
    %7326 = vmatprep.subr.mxu0 0.0
    %7327 = vmatpush1.msra.mxu0 0.0
    %7328 = vmatprep.subr.mxu0 0.0
    %7329 = vmatpush1.msra.mxu0 0.0
    %7330 = vmatprep.subr.mxu0 0.0
    %7331 = vmatpush1.msra.mxu0 0.0
    %7332 = vmatprep.subr.mxu0 0.0
    %7333 = vmatpush1.msra.mxu0 0.0
    %7334 = vmatprep.subr.mxu0 0.0
    %7335 = vmatpush1.msra.mxu0 0.0
    %7336 = vmatprep.mubr.f32.mxu0 0.0
    %7337 = vmatmul.mubr.f32.gmra.mrb[0].mxu0 %v7270
    %v7338 = vpop.f32.mrb[0].mxu0
    %v7339 = vadd.f32 0.0, %v7338
    %v7340 = vpop.f32.mrb[0].mxu0
    %7341 = vdwg.mxu0
    %v7343 = vsel %vm2009, %v6819, 0
    %7345 = vmatprep.subr.mxu0 0.0
    %7346 = vmatpush1.msra.mxu0 %v7190
    %7347 = vmatprep.subr.mxu0 0.0
    %7348 = vmatpush1.msra.mxu0 0.0
    %7349 = vmatprep.subr.mxu0 0.0
    %7350 = vmatpush1.msra.mxu0 0.0
    %7351 = vmatprep.subr.mxu0 0.0
    %7352 = vmatpush1.msra.mxu0 0.0
    %7353 = vmatprep.subr.mxu0 0.0
    %7354 = vmatpush1.msra.mxu0 0.0
    %7355 = vmatprep.subr.mxu0 0.0
    %7356 = vmatpush1.msra.mxu0 0.0
    %7357 = vmatprep.subr.mxu0 0.0
    %7358 = vmatpush1.msra.mxu0 0.0
    %7359 = vmatprep.subr.mxu0 0.0
    %7360 = vmatpush1.msra.mxu0 0.0
    %7361 = vmatprep.subr.mxu0 0.0
    %7362 = vmatpush1.msra.mxu0 0.0
    %7363 = vmatprep.subr.mxu0 0.0
    %7364 = vmatpush1.msra.mxu0 0.0
    %7365 = vmatprep.subr.mxu0 0.0
    %7366 = vmatpush1.msra.mxu0 0.0
    %7367 = vmatprep.subr.mxu0 0.0
    %7368 = vmatpush1.msra.mxu0 0.0
    %7369 = vmatprep.subr.mxu0 0.0
    %7370 = vmatpush1.msra.mxu0 0.0
    %7371 = vmatprep.subr.mxu0 0.0
    %7372 = vmatpush1.msra.mxu0 0.0
    %7373 = vmatprep.subr.mxu0 0.0
    %7374 = vmatpush1.msra.mxu0 0.0
    %7375 = vmatprep.subr.mxu0 0.0
    %7376 = vmatpush1.msra.mxu0 0.0
    %7377 = vmatprep.subr.mxu0 0.0
    %7378 = vmatpush1.msra.mxu0 0.0
    %7379 = vmatprep.subr.mxu0 0.0
    %7380 = vmatpush1.msra.mxu0 0.0
    %7381 = vmatprep.subr.mxu0 0.0
    %7382 = vmatpush1.msra.mxu0 0.0
    %7383 = vmatprep.subr.mxu0 0.0
    %7384 = vmatpush1.msra.mxu0 0.0
    %7385 = vmatprep.subr.mxu0 0.0
    %7386 = vmatpush1.msra.mxu0 0.0
    %7387 = vmatprep.subr.mxu0 0.0
    %7388 = vmatpush1.msra.mxu0 0.0
    %7389 = vmatprep.subr.mxu0 0.0
    %7390 = vmatpush1.msra.mxu0 0.0
    %7391 = vmatprep.subr.mxu0 0.0
    %7392 = vmatpush1.msra.mxu0 0.0
    %7393 = vmatprep.subr.mxu0 0.0
    %7394 = vmatpush1.msra.mxu0 0.0
    %7395 = vmatprep.subr.mxu0 0.0
    %7396 = vmatpush1.msra.mxu0 0.0
    %7397 = vmatprep.subr.mxu0 0.0
    %7398 = vmatpush1.msra.mxu0 0.0
    %7399 = vmatprep.subr.mxu0 0.0
    %7400 = vmatpush1.msra.mxu0 0.0
    %7401 = vmatprep.subr.mxu0 0.0
    %7402 = vmatpush1.msra.mxu0 0.0
    %7403 = vmatprep.subr.mxu0 0.0
    %7404 = vmatpush1.msra.mxu0 0.0
    %7405 = vmatprep.subr.mxu0 0.0
    %7406 = vmatpush1.msra.mxu0 0.0
    %7407 = vmatprep.subr.mxu0 0.0
    %7408 = vmatpush1.msra.mxu0 0.0
    %7409 = vmatprep.mubr.f32.mxu0 0.0
    %7410 = vmatmul.mubr.f32.gmra.mrb[0].mxu0 %v7343
    %v7411 = vpop.f32.mrb[0].mxu0
    %v7412 = vadd.f32 0.0, %v7411
    %v7413 = vpop.f32.mrb[0].mxu0
    %7414 = vdwg.mxu0
    %v7416 = vsel %vm2009, %v6892, 0
    %7418 = vmatprep.subr.mxu0 0.0
    %7419 = vmatpush1.msra.mxu0 %v7191
    %7420 = vmatprep.subr.mxu0 0.0
    %7421 = vmatpush1.msra.mxu0 0.0
    %7422 = vmatprep.subr.mxu0 0.0
    %7423 = vmatpush1.msra.mxu0 0.0
    %7424 = vmatprep.subr.mxu0 0.0
    %7425 = vmatpush1.msra.mxu0 0.0
    %7426 = vmatprep.subr.mxu0 0.0
    %7427 = vmatpush1.msra.mxu0 0.0
    %7428 = vmatprep.subr.mxu0 0.0
    %7429 = vmatpush1.msra.mxu0 0.0
    %7430 = vmatprep.subr.mxu0 0.0
    %7431 = vmatpush1.msra.mxu0 0.0
    %7432 = vmatprep.subr.mxu0 0.0
    %7433 = vmatpush1.msra.mxu0 0.0
    %7434 = vmatprep.subr.mxu0 0.0
    %7435 = vmatpush1.msra.mxu0 0.0
    %7436 = vmatprep.subr.mxu0 0.0
    %7437 = vmatpush1.msra.mxu0 0.0
    %7438 = vmatprep.subr.mxu0 0.0
    %7439 = vmatpush1.msra.mxu0 0.0
    %7440 = vmatprep.subr.mxu0 0.0
    %7441 = vmatpush1.msra.mxu0 0.0
    %7442 = vmatprep.subr.mxu0 0.0
    %7443 = vmatpush1.msra.mxu0 0.0
    %7444 = vmatprep.subr.mxu0 0.0
    %7445 = vmatpush1.msra.mxu0 0.0
    %7446 = vmatprep.subr.mxu0 0.0
    %7447 = vmatpush1.msra.mxu0 0.0
    %7448 = vmatprep.subr.mxu0 0.0
    %7449 = vmatpush1.msra.mxu0 0.0
    %7450 = vmatprep.subr.mxu0 0.0
    %7451 = vmatpush1.msra.mxu0 0.0
    %7452 = vmatprep.subr.mxu0 0.0
    %7453 = vmatpush1.msra.mxu0 0.0
    %7454 = vmatprep.subr.mxu0 0.0
    %7455 = vmatpush1.msra.mxu0 0.0
    %7456 = vmatprep.subr.mxu0 0.0
    %7457 = vmatpush1.msra.mxu0 0.0
    %7458 = vmatprep.subr.mxu0 0.0
    %7459 = vmatpush1.msra.mxu0 0.0
    %7460 = vmatprep.subr.mxu0 0.0
    %7461 = vmatpush1.msra.mxu0 0.0
    %7462 = vmatprep.subr.mxu0 0.0
    %7463 = vmatpush1.msra.mxu0 0.0
    %7464 = vmatprep.subr.mxu0 0.0
    %7465 = vmatpush1.msra.mxu0 0.0
    %7466 = vmatprep.subr.mxu0 0.0
    %7467 = vmatpush1.msra.mxu0 0.0
    %7468 = vmatprep.subr.mxu0 0.0
    %7469 = vmatpush1.msra.mxu0 0.0
    %7470 = vmatprep.subr.mxu0 0.0
    %7471 = vmatpush1.msra.mxu0 0.0
    %7472 = vmatprep.subr.mxu0 0.0
    %7473 = vmatpush1.msra.mxu0 0.0
    %7474 = vmatprep.subr.mxu0 0.0
    %7475 = vmatpush1.msra.mxu0 0.0
    %7476 = vmatprep.subr.mxu0 0.0
    %7477 = vmatpush1.msra.mxu0 0.0
    %7478 = vmatprep.subr.mxu0 0.0
    %7479 = vmatpush1.msra.mxu0 0.0
    %7480 = vmatprep.subr.mxu0 0.0
    %7481 = vmatpush1.msra.mxu0 0.0
    %7482 = vmatprep.mubr.f32.mxu0 0.0
    %7483 = vmatmul.mubr.f32.gmra.mrb[0].mxu0 %v7416
    %v7484 = vpop.f32.mrb[0].mxu0
    %v7485 = vadd.f32 0.0, %v7484
    %v7486 = vpop.f32.mrb[0].mxu0
    %7487 = vdwg.mxu0
    %v7489 = vsel %vm2009, %v6965, 0
    %7491 = vmatprep.subr.mxu0 0.0
    %7492 = vmatpush1.msra.mxu0 %v7192
    %7493 = vmatprep.subr.mxu0 0.0
    %7494 = vmatpush1.msra.mxu0 0.0
    %7495 = vmatprep.subr.mxu0 0.0
    %7496 = vmatpush1.msra.mxu0 0.0
    %7497 = vmatprep.subr.mxu0 0.0
    %7498 = vmatpush1.msra.mxu0 0.0
    %7499 = vmatprep.subr.mxu0 0.0
    %7500 = vmatpush1.msra.mxu0 0.0
    %7501 = vmatprep.subr.mxu0 0.0
    %7502 = vmatpush1.msra.mxu0 0.0
    %7503 = vmatprep.subr.mxu0 0.0
    %7504 = vmatpush1.msra.mxu0 0.0
    %7505 = vmatprep.subr.mxu0 0.0
    %7506 = vmatpush1.msra.mxu0 0.0
    %7507 = vmatprep.subr.mxu0 0.0
    %7508 = vmatpush1.msra.mxu0 0.0
    %7509 = vmatprep.subr.mxu0 0.0
    %7510 = vmatpush1.msra.mxu0 0.0
    %7511 = vmatprep.subr.mxu0 0.0
    %7512 = vmatpush1.msra.mxu0 0.0
    %7513 = vmatprep.subr.mxu0 0.0
    %7514 = vmatpush1.msra.mxu0 0.0
    %7515 = vmatprep.subr.mxu0 0.0
    %7516 = vmatpush1.msra.mxu0 0.0
    %7517 = vmatprep.subr.mxu0 0.0
    %7518 = vmatpush1.msra.mxu0 0.0
    %7519 = vmatprep.subr.mxu0 0.0
    %7520 = vmatpush1.msra.mxu0 0.0
    %7521 = vmatprep.subr.mxu0 0.0
    %7522 = vmatpush1.msra.mxu0 0.0
    %7523 = vmatprep.subr.mxu0 0.0
    %7524 = vmatpush1.msra.mxu0 0.0
    %7525 = vmatprep.subr.mxu0 0.0
    %7526 = vmatpush1.msra.mxu0 0.0
    %7527 = vmatprep.subr.mxu0 0.0
    %7528 = vmatpush1.msra.mxu0 0.0
    %7529 = vmatprep.subr.mxu0 0.0
    %7530 = vmatpush1.msra.mxu0 0.0
    %7531 = vmatprep.subr.mxu0 0.0
    %7532 = vmatpush1.msra.mxu0 0.0
    %7533 = vmatprep.subr.mxu0 0.0
    %7534 = vmatpush1.msra.mxu0 0.0
    %7535 = vmatprep.subr.mxu0 0.0
    %7536 = vmatpush1.msra.mxu0 0.0
    %7537 = vmatprep.subr.mxu0 0.0
    %7538 = vmatpush1.msra.mxu0 0.0
    %7539 = vmatprep.subr.mxu0 0.0
    %7540 = vmatpush1.msra.mxu0 0.0
    %7541 = vmatprep.subr.mxu0 0.0
    %7542 = vmatpush1.msra.mxu0 0.0
    %7543 = vmatprep.subr.mxu0 0.0
    %7544 = vmatpush1.msra.mxu0 0.0
    %7545 = vmatprep.subr.mxu0 0.0
    %7546 = vmatpush1.msra.mxu0 0.0
    %7547 = vmatprep.subr.mxu0 0.0
    %7548 = vmatpush1.msra.mxu0 0.0
    %7549 = vmatprep.subr.mxu0 0.0
    %7550 = vmatpush1.msra.mxu0 0.0
    %7551 = vmatprep.subr.mxu0 0.0
    %7552 = vmatpush1.msra.mxu0 0.0
    %7553 = vmatprep.subr.mxu0 0.0
    %7554 = vmatpush1.msra.mxu0 0.0
    %7555 = vmatprep.mubr.f32.mxu0 0.0
    %7556 = vmatmul.mubr.f32.gmra.mrb[0].mxu0 %v7489
    %v7557 = vpop.f32.mrb[0].mxu0
    %v7558 = vadd.f32 0.0, %v7557
    %v7559 = vpop.f32.mrb[0].mxu0
    %7560 = vdwg.mxu0
    %v7562 = vsel %vm2009, %v7038, 0
    %7564 = vmatprep.subr.mxu0 0.0
    %7565 = vmatpush1.msra.mxu0 %v7193
    %7566 = vmatprep.subr.mxu0 0.0
    %7567 = vmatpush1.msra.mxu0 0.0
    %7568 = vmatprep.subr.mxu0 0.0
    %7569 = vmatpush1.msra.mxu0 0.0
    %7570 = vmatprep.subr.mxu0 0.0
    %7571 = vmatpush1.msra.mxu0 0.0
    %7572 = vmatprep.subr.mxu0 0.0
    %7573 = vmatpush1.msra.mxu0 0.0
    %7574 = vmatprep.subr.mxu0 0.0
    %7575 = vmatpush1.msra.mxu0 0.0
    %7576 = vmatprep.subr.mxu0 0.0
    %7577 = vmatpush1.msra.mxu0 0.0
    %7578 = vmatprep.subr.mxu0 0.0
    %7579 = vmatpush1.msra.mxu0 0.0
    %7580 = vmatprep.subr.mxu0 0.0
    %7581 = vmatpush1.msra.mxu0 0.0
    %7582 = vmatprep.subr.mxu0 0.0
    %7583 = vmatpush1.msra.mxu0 0.0
    %7584 = vmatprep.subr.mxu0 0.0
    %7585 = vmatpush1.msra.mxu0 0.0
    %7586 = vmatprep.subr.mxu0 0.0
    %7587 = vmatpush1.msra.mxu0 0.0
    %7588 = vmatprep.subr.mxu0 0.0
    %7589 = vmatpush1.msra.mxu0 0.0
    %7590 = vmatprep.subr.mxu0 0.0
    %7591 = vmatpush1.msra.mxu0 0.0
    %7592 = vmatprep.subr.mxu0 0.0
    %7593 = vmatpush1.msra.mxu0 0.0
    %7594 = vmatprep.subr.mxu0 0.0
    %7595 = vmatpush1.msra.mxu0 0.0
    %7596 = vmatprep.subr.mxu0 0.0
    %7597 = vmatpush1.msra.mxu0 0.0
    %7598 = vmatprep.subr.mxu0 0.0
    %7599 = vmatpush1.msra.mxu0 0.0
    %7600 = vmatprep.subr.mxu0 0.0
    %7601 = vmatpush1.msra.mxu0 0.0
    %7602 = vmatprep.subr.mxu0 0.0
    %7603 = vmatpush1.msra.mxu0 0.0
    %7604 = vmatprep.subr.mxu0 0.0
    %7605 = vmatpush1.msra.mxu0 0.0
    %7606 = vmatprep.subr.mxu0 0.0
    %7607 = vmatpush1.msra.mxu0 0.0
    %7608 = vmatprep.subr.mxu0 0.0
    %7609 = vmatpush1.msra.mxu0 0.0
    %7610 = vmatprep.subr.mxu0 0.0
    %7611 = vmatpush1.msra.mxu0 0.0
    %7612 = vmatprep.subr.mxu0 0.0
    %7613 = vmatpush1.msra.mxu0 0.0
    %7614 = vmatprep.subr.mxu0 0.0
    %7615 = vmatpush1.msra.mxu0 0.0
    %7616 = vmatprep.subr.mxu0 0.0
    %7617 = vmatpush1.msra.mxu0 0.0
    %7618 = vmatprep.subr.mxu0 0.0
    %7619 = vmatpush1.msra.mxu0 0.0
    %7620 = vmatprep.subr.mxu0 0.0
    %7621 = vmatpush1.msra.mxu0 0.0
    %7622 = vmatprep.subr.mxu0 0.0
    %7623 = vmatpush1.msra.mxu0 0.0
    %7624 = vmatprep.subr.mxu0 0.0
    %7625 = vmatpush1.msra.mxu0 0.0
    %7626 = vmatprep.subr.mxu0 0.0
    %7627 = vmatpush1.msra.mxu0 0.0
    %7628 = vmatprep.mubr.f32.mxu0 0.0
    %7629 = vmatmul.mubr.f32.gmra.mrb[0].mxu0 %v7562
    %v7630 = vpop.f32.mrb[0].mxu0
    %v7631 = vadd.f32 0.0, %v7630
    %v7632 = vpop.f32.mrb[0].mxu0
    %7633 = vdwg.mxu0
    %v7635 = vsel %vm2009, %v7111, 0
    %7637 = vmatprep.subr.mxu0 0.0
    %7638 = vmatpush1.msra.mxu0 %v7194
    %7639 = vmatprep.subr.mxu0 0.0
    %7640 = vmatpush1.msra.mxu0 0.0
    %7641 = vmatprep.subr.mxu0 0.0
    %7642 = vmatpush1.msra.mxu0 0.0
    %7643 = vmatprep.subr.mxu0 0.0
    %7644 = vmatpush1.msra.mxu0 0.0
    %7645 = vmatprep.subr.mxu0 0.0
    %7646 = vmatpush1.msra.mxu0 0.0
    %7647 = vmatprep.subr.mxu0 0.0
    %7648 = vmatpush1.msra.mxu0 0.0
    %7649 = vmatprep.subr.mxu0 0.0
    %7650 = vmatpush1.msra.mxu0 0.0
    %7651 = vmatprep.subr.mxu0 0.0
    %7652 = vmatpush1.msra.mxu0 0.0
    %7653 = vmatprep.subr.mxu0 0.0
    %7654 = vmatpush1.msra.mxu0 0.0
    %7655 = vmatprep.subr.mxu0 0.0
    %7656 = vmatpush1.msra.mxu0 0.0
    %7657 = vmatprep.subr.mxu0 0.0
    %7658 = vmatpush1.msra.mxu0 0.0
    %7659 = vmatprep.subr.mxu0 0.0
    %7660 = vmatpush1.msra.mxu0 0.0
    %7661 = vmatprep.subr.mxu0 0.0
    %7662 = vmatpush1.msra.mxu0 0.0
    %7663 = vmatprep.subr.mxu0 0.0
    %7664 = vmatpush1.msra.mxu0 0.0
    %7665 = vmatprep.subr.mxu0 0.0
    %7666 = vmatpush1.msra.mxu0 0.0
    %7667 = vmatprep.subr.mxu0 0.0
    %7668 = vmatpush1.msra.mxu0 0.0
    %7669 = vmatprep.subr.mxu0 0.0
    %7670 = vmatpush1.msra.mxu0 0.0
    %7671 = vmatprep.subr.mxu0 0.0
    %7672 = vmatpush1.msra.mxu0 0.0
    %7673 = vmatprep.subr.mxu0 0.0
    %7674 = vmatpush1.msra.mxu0 0.0
    %7675 = vmatprep.subr.mxu0 0.0
    %7676 = vmatpush1.msra.mxu0 0.0
    %7677 = vmatprep.subr.mxu0 0.0
    %7678 = vmatpush1.msra.mxu0 0.0
    %7679 = vmatprep.subr.mxu0 0.0
    %7680 = vmatpush1.msra.mxu0 0.0
    %7681 = vmatprep.subr.mxu0 0.0
    %7682 = vmatpush1.msra.mxu0 0.0
    %7683 = vmatprep.subr.mxu0 0.0
    %7684 = vmatpush1.msra.mxu0 0.0
    %7685 = vmatprep.subr.mxu0 0.0
    %7686 = vmatpush1.msra.mxu0 0.0
    %7687 = vmatprep.subr.mxu0 0.0
    %7688 = vmatpush1.msra.mxu0 0.0
    %7689 = vmatprep.subr.mxu0 0.0
    %7690 = vmatpush1.msra.mxu0 0.0
    %7691 = vmatprep.subr.mxu0 0.0
    %7692 = vmatpush1.msra.mxu0 0.0
    %7693 = vmatprep.subr.mxu0 0.0
    %7694 = vmatpush1.msra.mxu0 0.0
    %7695 = vmatprep.subr.mxu0 0.0
    %7696 = vmatpush1.msra.mxu0 0.0
    %7697 = vmatprep.subr.mxu0 0.0
    %7698 = vmatpush1.msra.mxu0 0.0
    %7699 = vmatprep.subr.mxu0 0.0
    %7700 = vmatpush1.msra.mxu0 0.0
    %7701 = vmatprep.mubr.f32.mxu0 0.0
    %7702 = vmatmul.mubr.f32.gmra.mrb[0].mxu0 %v7635
    %v7703 = vpop.f32.mrb[0].mxu0
    %v7704 = vadd.f32 0.0, %v7703
    %v7705 = vpop.f32.mrb[0].mxu0
    %7706 = vdwg.mxu0
    %v7708 = vsel %vm2009, %v7184, 0
    %7710 = vmatprep.subr.mxu0 0.0
    %7711 = vmatpush1.msra.mxu0 %v7195
    %7712 = vmatprep.subr.mxu0 0.0
    %7713 = vmatpush1.msra.mxu0 0.0
    %7714 = vmatprep.subr.mxu0 0.0
    %7715 = vmatpush1.msra.mxu0 0.0
    %7716 = vmatprep.subr.mxu0 0.0
    %7717 = vmatpush1.msra.mxu0 0.0
    %7718 = vmatprep.subr.mxu0 0.0
    %7719 = vmatpush1.msra.mxu0 0.0
    %7720 = vmatprep.subr.mxu0 0.0
    %7721 = vmatpush1.msra.mxu0 0.0
    %7722 = vmatprep.subr.mxu0 0.0
    %7723 = vmatpush1.msra.mxu0 0.0
    %7724 = vmatprep.subr.mxu0 0.0
    %7725 = vmatpush1.msra.mxu0 0.0
    %7726 = vmatprep.subr.mxu0 0.0
    %7727 = vmatpush1.msra.mxu0 0.0
    %7728 = vmatprep.subr.mxu0 0.0
    %7729 = vmatpush1.msra.mxu0 0.0
    %7730 = vmatprep.subr.mxu0 0.0
    %7731 = vmatpush1.msra.mxu0 0.0
    %7732 = vmatprep.subr.mxu0 0.0
    %7733 = vmatpush1.msra.mxu0 0.0
    %7734 = vmatprep.subr.mxu0 0.0
    %7735 = vmatpush1.msra.mxu0 0.0
    %7736 = vmatprep.subr.mxu0 0.0
    %7737 = vmatpush1.msra.mxu0 0.0
    %7738 = vmatprep.subr.mxu0 0.0
    %7739 = vmatpush1.msra.mxu0 0.0
    %7740 = vmatprep.subr.mxu0 0.0
    %7741 = vmatpush1.msra.mxu0 0.0
    %7742 = vmatprep.subr.mxu0 0.0
    %7743 = vmatpush1.msra.mxu0 0.0
    %7744 = vmatprep.subr.mxu0 0.0
    %7745 = vmatpush1.msra.mxu0 0.0
    %7746 = vmatprep.subr.mxu0 0.0
    %7747 = vmatpush1.msra.mxu0 0.0
    %7748 = vmatprep.subr.mxu0 0.0
    %7749 = vmatpush1.msra.mxu0 0.0
    %7750 = vmatprep.subr.mxu0 0.0
    %7751 = vmatpush1.msra.mxu0 0.0
    %7752 = vmatprep.subr.mxu0 0.0
    %7753 = vmatpush1.msra.mxu0 0.0
    %7754 = vmatprep.subr.mxu0 0.0
    %7755 = vmatpush1.msra.mxu0 0.0
    %7756 = vmatprep.subr.mxu0 0.0
    %7757 = vmatpush1.msra.mxu0 0.0
    %7758 = vmatprep.subr.mxu0 0.0
    %7759 = vmatpush1.msra.mxu0 0.0
    %7760 = vmatprep.subr.mxu0 0.0
    %7761 = vmatpush1.msra.mxu0 0.0
    %7762 = vmatprep.subr.mxu0 0.0
    %7763 = vmatpush1.msra.mxu0 0.0
    %7764 = vmatprep.subr.mxu0 0.0
    %7765 = vmatpush1.msra.mxu0 0.0
    %7766 = vmatprep.subr.mxu0 0.0
    %7767 = vmatpush1.msra.mxu0 0.0
    %7768 = vmatprep.subr.mxu0 0.0
    %7769 = vmatpush1.msra.mxu0 0.0
    %7770 = vmatprep.subr.mxu0 0.0
    %7771 = vmatpush1.msra.mxu0 0.0
    %7772 = vmatprep.subr.mxu0 0.0
    %7773 = vmatpush1.msra.mxu0 0.0
    %7774 = vmatprep.mubr.f32.mxu0 0.0
    %7775 = vmatmul.mubr.f32.gmra.mrb[0].mxu0 %v7708
    %v7776 = vpop.f32.mrb[0].mxu0
    %v7777 = vadd.f32 0.0, %v7776
    %v7778 = vpop.f32.mrb[0].mxu0
    %7779 = vdwg.mxu0
    %v7780 = vadd.f32 %v7266, %v7339
    %v7781 = vadd.f32 %v7558, %v7631
    %v7782 = vadd.f32 %v7780, %v7412
    %v7783 = vadd.f32 %v7781, %v7704
    %v7784 = vadd.f32 %v7782, %v7485
    %v7785 = vadd.f32 %v7783, %v7777
    %s7786 = scalar_lea.vmem %s6, 1
    %v7787 = vld [vmem:[%s7786] sm:$0x1]
    %v7789 = vlaneseq
    %v7790 = vshrl.u32 %v7789, 7
    %v7791 = vsub.s32 0, %v7790
    %v7792 = vrot.slane %v7787, %v7791
    %v7794 = vadd.f32 %v7784, %v7792
    %v7795 = vadd.f32 %v7785, %v7792
    %v7796 = vadd.f32 %v7794, %v3943
    %v7797 = vadd.f32 %v7795, %v3944
    %s7798 = scalar_lea.vmem %s11, 2
    %v7799 = vld [vmem:[%s7798] sm:$0x1]
    %s7800 = scalar_lea.vmem %s11, 3
    %v7801 = vld [vmem:[%s7800] sm:$0x1]
    %v7802 = vsel %vm136, %v7796, 0.0
    %7803 = vadd.xlane.f32.xlu0 %v7802
    %v7804 = vpop.xlane.xlu0 %7803
    %v7805 = vsel %vm136, %v7797, 0.0
    %7806 = vadd.xlane.f32.xlu0 %v7805
    %v7807 = vpop.xlane.xlu0 %7806
    %v7808 = vmul.f32 %v7804, %v3908
    %v7809 = vmul.f32 %v7807, %v3908
    %v7810 = vsub.f32 %v7796, %v7808
    %v7811 = vsub.f32 %v7797, %v7809
    %v7812 = vmul.f32 %v7810, %v7810
    %v7813 = vmul.f32 %v7811, %v7811
    %v7814 = vsel %vm136, %v7812, 0.0
    %7815 = vadd.xlane.f32.xlu0 %v7814
    %v7816 = vpop.xlane.xlu0 %7815
    %v7817 = vsel %vm136, %v7813, 0.0
    %7818 = vadd.xlane.f32.xlu0 %v7817
    %v7819 = vpop.xlane.xlu0 %7818
    %v7820 = vmul.f32 %v7816, %v3908
    %v7821 = vmul.f32 %v7819, %v3908
    %v7822 = vadd.f32 %v7820, 1e-05
    %v7823 = vadd.f32 %v7821, 1e-05
    %v7824 = vrsqrt.pop %v7822
    %v7825 = vrsqrt.pop %v7823
    %v7826 = vmul.f32 %v7810, %v7824
    %v7827 = vmul.f32 %v7811, %v7825
    %v7829 = vlaneseq
    %v7830 = vshrl.u32 %v7829, 7
    %v7831 = vsub.s32 0, %v7830
    %v7832 = vrot.slane %v7799, %v7831
    %v7834 = vmul.f32 %v7826, %v7832
    %v7835 = vmul.f32 %v7827, %v7832
    %v7837 = vlaneseq
    %v7838 = vshrl.u32 %v7837, 7
    %v7839 = vsub.s32 0, %v7838
    %v7840 = vrot.slane %v7801, %v7839
    %v7842 = vadd.f32 %v7834, %v7840
    %v7843 = vadd.f32 %v7835, %v7840
    %v7844 = vld [vmem:[%s7] sm:$0xff]
    %v7845 = vld [vmem:[%s7 + $0x8] sm:$0xff]
    %v7846 = vld [vmem:[%s7 + $0x10] sm:$0xff]
    %v7847 = vld [vmem:[%s7 + $0x18] sm:$0xff]
    %v7848 = vld [vmem:[%s8] sm:$0x1]
    %v7850 = vlaneseq
    %v7851 = vshrl.u32 %v7850, 7
    %v7852 = vsub.s32 0, %v7851
    %v7853 = vrot.slane %v7848, %v7852
    %v7856 = vsel %vm136, %v7842, 0
    %v7859 = vsel %vm136, %v7843, 0
    %7861 = vmatprep.subr.mxu0 0.0
    %7862 = vmatpush1.msra.mxu0 %v7844
    %7863 = vmatprep.subr.mxu0 0.0
    %7864 = vmatpush1.msra.mxu0 %v7845
    %7865 = vmatprep.subr.mxu0 0.0
    %7866 = vmatpush1.msra.mxu0 %v7846
    %7867 = vmatprep.subr.mxu0 0.0
    %7868 = vmatpush1.msra.mxu0 %v7847
    %7869 = vmatprep.subr.mxu0 0.0
    %7870 = vmatpush1.msra.mxu0 0.0
    %7871 = vmatprep.subr.mxu0 0.0
    %7872 = vmatpush1.msra.mxu0 0.0
    %7873 = vmatprep.subr.mxu0 0.0
    %7874 = vmatpush1.msra.mxu0 0.0
    %7875 = vmatprep.subr.mxu0 0.0
    %7876 = vmatpush1.msra.mxu0 0.0
    %7877 = vmatprep.subr.mxu0 0.0
    %7878 = vmatpush1.msra.mxu0 0.0
    %7879 = vmatprep.subr.mxu0 0.0
    %7880 = vmatpush1.msra.mxu0 0.0
    %7881 = vmatprep.subr.mxu0 0.0
    %7882 = vmatpush1.msra.mxu0 0.0
    %7883 = vmatprep.subr.mxu0 0.0
    %7884 = vmatpush1.msra.mxu0 0.0
    %7885 = vmatprep.subr.mxu0 0.0
    %7886 = vmatpush1.msra.mxu0 0.0
    %7887 = vmatprep.subr.mxu0 0.0
    %7888 = vmatpush1.msra.mxu0 0.0
    %7889 = vmatprep.subr.mxu0 0.0
    %7890 = vmatpush1.msra.mxu0 0.0
    %7891 = vmatprep.subr.mxu0 0.0
    %7892 = vmatpush1.msra.mxu0 0.0
    %7893 = vmatprep.subr.mxu0 0.0
    %7894 = vmatpush1.msra.mxu0 0.0
    %7895 = vmatprep.subr.mxu0 0.0
    %7896 = vmatpush1.msra.mxu0 0.0
    %7897 = vmatprep.subr.mxu0 0.0
    %7898 = vmatpush1.msra.mxu0 0.0
    %7899 = vmatprep.subr.mxu0 0.0
    %7900 = vmatpush1.msra.mxu0 0.0
    %7901 = vmatprep.subr.mxu0 0.0
    %7902 = vmatpush1.msra.mxu0 0.0
    %7903 = vmatprep.subr.mxu0 0.0
    %7904 = vmatpush1.msra.mxu0 0.0
    %7905 = vmatprep.subr.mxu0 0.0
    %7906 = vmatpush1.msra.mxu0 0.0
    %7907 = vmatprep.subr.mxu0 0.0
    %7908 = vmatpush1.msra.mxu0 0.0
    %7909 = vmatprep.subr.mxu0 0.0
    %7910 = vmatpush1.msra.mxu0 0.0
    %7911 = vmatprep.subr.mxu0 0.0
    %7912 = vmatpush1.msra.mxu0 0.0
    %7913 = vmatprep.subr.mxu0 0.0
    %7914 = vmatpush1.msra.mxu0 0.0
    %7915 = vmatprep.subr.mxu0 0.0
    %7916 = vmatpush1.msra.mxu0 0.0
    %7917 = vmatprep.subr.mxu0 0.0
    %7918 = vmatpush1.msra.mxu0 0.0
    %7919 = vmatprep.subr.mxu0 0.0
    %7920 = vmatpush1.msra.mxu0 0.0
    %7921 = vmatprep.subr.mxu0 0.0
    %7922 = vmatpush1.msra.mxu0 0.0
    %7923 = vmatprep.subr.mxu0 0.0
    %7924 = vmatpush1.msra.mxu0 0.0
    %7925 = vmatprep.mubr.f32.mxu0 0.0
    %7926 = vmatmul.mubr.f32.gmra.mrb[0].mxu0 %v7856
    %v7927 = vpop.f32.mrb[0].mxu0
    %v7928 = vadd.f32 %v7853, %v7927
    %v7929 = vpop.f32.mrb[0].mxu0
    %7930 = vmatprep.mubr.f32.mxu0 0.0
    %7931 = vmatmul.mubr.f32.gmra.mrb[0].mxu0 %v7859
    %v7932 = vpop.f32.mrb[0].mxu0
    %v7933 = vadd.f32 %v7853, %v7932
    %v7934 = vpop.f32.mrb[0].mxu0
    %7935 = vdwg.mxu0
    %v7936 = vmax.f32 %v7928, 0.0
    %v7937 = vmax.f32 %v7933, 0.0
    %v7938 = vld [vmem:[%s9] sm:$0xff]
    %v7939 = vld [vmem:[%s9 + $0x8] sm:$0xff]
    %v7940 = vld [vmem:[%s9 + $0x10] sm:$0xff]
    %v7941 = vld [vmem:[%s9 + $0x18] sm:$0xff]
    %v7942 = vld [vmem:[%s9 + $0x20] sm:$0xff]
    %v7943 = vld [vmem:[%s9 + $0x28] sm:$0xff]
    %v7944 = vld [vmem:[%s9 + $0x30] sm:$0xff]
    %v7945 = vld [vmem:[%s9 + $0x38] sm:$0xff]
    %v7946 = vld [vmem:[%s10] sm:$0x1]
    %v7948 = vlaneseq
    %v7949 = vshrl.u32 %v7948, 7
    %v7950 = vsub.s32 0, %v7949
    %v7951 = vrot.slane %v7946, %v7950
    %vm7953 = vcmask 523264
    %v7955 = vsel %vm7953, %v7936, 0
    %v7958 = vsel %vm7953, %v7937, 0
    %7960 = vmatprep.subr.mxu0 0.0
    %7961 = vmatpush1.msra.mxu0 %v7938
    %7962 = vmatprep.subr.mxu0 0.0
    %7963 = vmatpush1.msra.mxu0 %v7939
    %7964 = vmatprep.subr.mxu0 0.0
    %7965 = vmatpush1.msra.mxu0 %v7940
    %7966 = vmatprep.subr.mxu0 0.0
    %7967 = vmatpush1.msra.mxu0 %v7941
    %7968 = vmatprep.subr.mxu0 0.0
    %7969 = vmatpush1.msra.mxu0 %v7942
    %7970 = vmatprep.subr.mxu0 0.0
    %7971 = vmatpush1.msra.mxu0 %v7943
    %7972 = vmatprep.subr.mxu0 0.0
    %7973 = vmatpush1.msra.mxu0 %v7944
    %7974 = vmatprep.subr.mxu0 0.0
    %7975 = vmatpush1.msra.mxu0 %v7945
    %7976 = vmatprep.subr.mxu0 0.0
    %7977 = vmatpush1.msra.mxu0 0.0
    %7978 = vmatprep.subr.mxu0 0.0
    %7979 = vmatpush1.msra.mxu0 0.0
    %7980 = vmatprep.subr.mxu0 0.0
    %7981 = vmatpush1.msra.mxu0 0.0
    %7982 = vmatprep.subr.mxu0 0.0
    %7983 = vmatpush1.msra.mxu0 0.0
    %7984 = vmatprep.subr.mxu0 0.0
    %7985 = vmatpush1.msra.mxu0 0.0
    %7986 = vmatprep.subr.mxu0 0.0
    %7987 = vmatpush1.msra.mxu0 0.0
    %7988 = vmatprep.subr.mxu0 0.0
    %7989 = vmatpush1.msra.mxu0 0.0
    %7990 = vmatprep.subr.mxu0 0.0
    %7991 = vmatpush1.msra.mxu0 0.0
    %7992 = vmatprep.subr.mxu0 0.0
    %7993 = vmatpush1.msra.mxu0 0.0
    %7994 = vmatprep.subr.mxu0 0.0
    %7995 = vmatpush1.msra.mxu0 0.0
    %7996 = vmatprep.subr.mxu0 0.0
    %7997 = vmatpush1.msra.mxu0 0.0
    %7998 = vmatprep.subr.mxu0 0.0
    %7999 = vmatpush1.msra.mxu0 0.0
    %8000 = vmatprep.subr.mxu0 0.0
    %8001 = vmatpush1.msra.mxu0 0.0
    %8002 = vmatprep.subr.mxu0 0.0
    %8003 = vmatpush1.msra.mxu0 0.0
    %8004 = vmatprep.subr.mxu0 0.0
    %8005 = vmatpush1.msra.mxu0 0.0
    %8006 = vmatprep.subr.mxu0 0.0
    %8007 = vmatpush1.msra.mxu0 0.0
    %8008 = vmatprep.subr.mxu0 0.0
    %8009 = vmatpush1.msra.mxu0 0.0
    %8010 = vmatprep.subr.mxu0 0.0
    %8011 = vmatpush1.msra.mxu0 0.0
    %8012 = vmatprep.subr.mxu0 0.0
    %8013 = vmatpush1.msra.mxu0 0.0
    %8014 = vmatprep.subr.mxu0 0.0
    %8015 = vmatpush1.msra.mxu0 0.0
    %8016 = vmatprep.subr.mxu0 0.0
    %8017 = vmatpush1.msra.mxu0 0.0
    %8018 = vmatprep.subr.mxu0 0.0
    %8019 = vmatpush1.msra.mxu0 0.0
    %8020 = vmatprep.subr.mxu0 0.0
    %8021 = vmatpush1.msra.mxu0 0.0
    %8022 = vmatprep.subr.mxu0 0.0
    %8023 = vmatpush1.msra.mxu0 0.0
    %8024 = vmatprep.mubr.f32.mxu0 0.0
    %8025 = vmatmul.mubr.f32.gmra.mrb[0].mxu0 %v7955
    %v8026 = vpop.f32.mrb[0].mxu0
    %v8027 = vadd.f32 %v7951, %v8026
    %v8028 = vpop.f32.mrb[0].mxu0
    %8029 = vmatprep.mubr.f32.mxu0 0.0
    %8030 = vmatmul.mubr.f32.gmra.mrb[0].mxu0 %v7958
    %v8031 = vpop.f32.mrb[0].mxu0
    %v8032 = vadd.f32 %v7951, %v8031
    %v8033 = vpop.f32.mrb[0].mxu0
    %8034 = vdwg.mxu0
    %v8035 = vadd.f32 %v8027, %v7842
    %v8036 = vadd.f32 %v8032, %v7843
    %s8037 = scalar_lea.vmem %s11, 4
    %v8038 = vld [vmem:[%s8037] sm:$0x1]
    %s8039 = scalar_lea.vmem %s11, 5
    %v8040 = vld [vmem:[%s8039] sm:$0x1]
    %v8041 = vsel %vm136, %v8035, 0.0
    %8042 = vadd.xlane.f32.xlu0 %v8041
    %v8043 = vpop.xlane.xlu0 %8042
    %v8044 = vsel %vm136, %v8036, 0.0
    %8045 = vadd.xlane.f32.xlu0 %v8044
    %v8046 = vpop.xlane.xlu0 %8045
    %v8047 = vmul.f32 %v8043, %v3908
    %v8048 = vmul.f32 %v8046, %v3908
    %v8049 = vsub.f32 %v8035, %v8047
    %v8050 = vsub.f32 %v8036, %v8048
    %v8051 = vmul.f32 %v8049, %v8049
    %v8052 = vmul.f32 %v8050, %v8050
    %v8053 = vsel %vm136, %v8051, 0.0
    %8054 = vadd.xlane.f32.xlu0 %v8053
    %v8055 = vpop.xlane.xlu0 %8054
    %v8056 = vsel %vm136, %v8052, 0.0
    %8057 = vadd.xlane.f32.xlu0 %v8056
    %v8058 = vpop.xlane.xlu0 %8057
    %v8059 = vmul.f32 %v8055, %v3908
    %v8060 = vmul.f32 %v8058, %v3908
    %v8061 = vadd.f32 %v8059, 1e-05
    %v8062 = vadd.f32 %v8060, 1e-05
    %v8063 = vrsqrt.pop %v8061
    %v8064 = vrsqrt.pop %v8062
    %v8065 = vmul.f32 %v8049, %v8063
    %v8066 = vmul.f32 %v8050, %v8064
    %v8068 = vlaneseq
    %v8069 = vshrl.u32 %v8068, 7
    %v8070 = vsub.s32 0, %v8069
    %v8071 = vrot.slane %v8038, %v8070
    %v8073 = vmul.f32 %v8065, %v8071
    %v8074 = vmul.f32 %v8066, %v8071
    %v8076 = vlaneseq
    %v8077 = vshrl.u32 %v8076, 7
    %v8078 = vsub.s32 0, %v8077
    %v8079 = vrot.slane %v8040, %v8078
    %v8081 = vadd.f32 %v8073, %v8079
    %v8082 = vadd.f32 %v8074, %v8079
    %8083 = vst.msk [vmem:[#allocation2] sm:$0xff] %vm136, %v8081
    %8084 = vst.msk [vmem:[#allocation2 + $0x8] sm:$0xff] %vm136, %v8082
    // Predicated region
    $region50: #{decoder_layer.1} parent=1 // pred_check
      _
    $region51: #{decoder_layer.1} parent=1 // pred_check_branch
      %8086 = sbr.rel (0) target = $region53
    $region52: #{decoder_layer.1} parent=1 // pred_region
      %s8088 = ssub.s32 256, 256
      %8089 = vsyncadd [#allocation3], %s8088
      %s8090 = sshll.u32 [#allocation2], 4
      %s8091 = int_to_ptr.vmem [resolvable:$true] %s8090
      %8096 = dma.vmem_to_hbm [thread:$0]  %s8091, 256, %s12, [#allocation3], 128, 128, 8
    $region53: #{decoder_layer.1} parent=1 // pred_fallthru
      _
    // Predicated region
    $region54: #{decoder_layer.1} parent=1 // pred_check
      _
    $region55: #{decoder_layer.1} parent=1 // pred_check_branch
      %8098 = sbr.rel (0) target = $region57
    $region56: #{decoder_layer.1} parent=1 // pred_region
      %8099 = dma.done [#allocation3], 256
    $region57: #{decoder_layer.1} parent=1 // pred_fallthru
      _
    %8100 = vsyncpa [#allocation3], 1

</llo_original>
